<compile_context>
chip_gen: v7x
topology: tpu7x:2x2x1
jax: 0.10.0
libtpu: 0.0.40
codegen_flags: <defaults>
</compile_context>

<pallas_src>
import math
import functools

import jax
import jax.numpy as jnp
from jax.experimental import pallas as pl
from jax.experimental.pallas import tpu as pltpu


def _round_up(n, m):
    return ((n + m - 1) // m) * m


def _has_bf16_vpu():
    """True on TPU generations with a bf16 VALU/EUP (v6e, v7x)."""
    try:
        kind = jax.devices()[0].device_kind.lower()
    except Exception:
        return False
    for old in ("v2", "v3", "v4", "v5"):
        if old in kind:
            return False
    return ("v6" in kind) or ("v7" in kind) or ("tpu" in kind)


def _nrmlp_kernel(dim_x, n_hidden, n_strips, bf16_epilogue, *refs):
    # refs = [x, Bt (2*pi folded), W1_cos, W1_sin, b1,
    #         (W_i, b_i) * n_hidden, W_head_fused, b_head_fused, out]
    it = iter(refs)
    x_ref = next(it)
    bt_ref = next(it)
    w1c_ref, w1s_ref, b1_ref = next(it), next(it), next(it)
    hidden_refs = [(next(it), next(it)) for _ in range(n_hidden)]
    wh_ref, bh_ref = next(it), next(it)
    out_ref = next(it)

    # Load (small, replicated) parameters once per tile.
    bt_rows = [bt_ref[d:d + 1, :] for d in range(dim_x)]     # (1, d_model) f32
    w1c = w1c_ref[...]                                       # bf16
    w1s = w1s_ref[...]                                       # bf16
    b1 = b1_ref[...]                                         # bf16 or f32
    hidden = [(w_ref[...], b_ref[...]) for w_ref, b_ref in hidden_refs]
    wh = wh_ref[...]                                         # bf16
    bh = bh_ref[...]                                         # f32

    tn = out_ref.shape[0]
    rows = tn // n_strips

    # Statically-unrolled independent row sub-strips: strip k+1's cos/sin can
    # overlap strip k's matmul chain in the LLO schedule.
    for s in range(n_strips):
        r0 = s * rows

        # Fourier projection on the VPU (contraction depth dim_x is far too
        # shallow for the MXU).  x columns are sliced lazily from the ref.
        proj = x_ref[r0:r0 + rows, 0:1] * bt_rows[0]
        for d in range(1, dim_x):
            proj = proj + x_ref[r0:r0 + rows, d:d + 1] * bt_rows[d]

        # Periodic features stay f32 (large arguments); cast to bf16 only as
        # MXU operands.
        cosp = jnp.cos(proj).astype(jnp.bfloat16)
        sinp = jnp.sin(proj).astype(jnp.bfloat16)

        # First Linear with W1 split into cos/sin halves -> no lane
        # concatenate; each matmul's K is exactly d_model.
        acc = (jnp.dot(cosp, w1c, preferred_element_type=jnp.float32)
               + jnp.dot(sinp, w1s, preferred_element_type=jnp.float32))
        if bf16_epilogue:
            h = jnp.maximum(acc.astype(jnp.bfloat16) + b1, 0)
        else:
            h = jnp.maximum(acc + b1, 0.0).astype(jnp.bfloat16)

        # Hidden Linear + ReLU stack (bf16 MXU operands, f32 accumulation).
        for w, b in hidden:
            acc = jnp.dot(h, w, preferred_element_type=jnp.float32)
            if bf16_epilogue:
                h = jnp.maximum(acc.astype(jnp.bfloat16) + b, 0)
            else:
                h = jnp.maximum(acc + b, 0.0).astype(jnp.bfloat16)

        # Fused beta/gamma head: one matmul, un-padded (rows, 2*oc) store.
        out = jnp.dot(h, wh, preferred_element_type=jnp.float32) + bh
        out_ref[r0:r0 + rows, :] = out.astype(out_ref.dtype)


def nrmlp_forward(x, params, *, tn=1024, n_strips=2, bf16_epilogue=None,
                  min_grid_steps=4, vmem_limit_bytes=None):
    """Pallas NRMLP forward. x: (N, dim_x). Returns (beta, gamma): (N, oc)."""
    N, dim_x = x.shape
    d_model = params["B"].shape[0]
    mlp = params["mlp"]
    wb, bb = params["beta"]
    wg, bg = params["gamma"]
    out_channels = wb.shape[1]
    n_hidden = len(mlp) - 1

    if bf16_epilogue is None:
        bf16_epilogue = _has_bf16_vpu()
    bias_dt = jnp.bfloat16 if bf16_epilogue else jnp.float32

    # ---- parameter prep (cheap, host/XLA side) ----
    bt2pi = (2.0 * math.pi) * params["B"].T.astype(jnp.float32)  # (dim_x, d_model)

    w1, b1 = mlp[0]
    w1c = w1[:d_model].astype(jnp.bfloat16)      # multiplies cos(proj)
    w1s = w1[d_model:].astype(jnp.bfloat16)      # multiplies sin(proj)
    b1 = b1.astype(bias_dt)
    hidden = [(w.astype(jnp.bfloat16), b.astype(bias_dt)) for w, b in mlp[1:]]

    # Fused beta/gamma head, stored un-padded (head epilogue stays f32).
    hc = 2 * out_channels
    head_w = jnp.concatenate([wb, wg], axis=1).astype(jnp.bfloat16)   # (d_model, hc)
    head_b = jnp.concatenate([bb, bg], axis=1).astype(jnp.float32)    # (1, hc)

    # ---- adaptive row tiling ----
    # Each strip must be sublane-aligned; aim for >= min_grid_steps grid steps
    # so small-N calls don't over-pad and megacore still has work to shard.
    strip_quant = 8 * max(1, n_strips)
    tn_cap = max(strip_quant, _round_up(tn, strip_quant))
    tn_small = _round_up((N + min_grid_steps - 1) // min_grid_steps, strip_quant)
    tn_eff = max(strip_quant, min(tn_cap, tn_small))

    n_pad = _round_up(N, tn_eff)
    if n_pad != N:
        x = jnp.pad(x, ((0, n_pad - N), (0, 0)))   # zero rows: sliced off below
    grid = (n_pad // tn_eff,)

    flat_inputs = [x, bt2pi, w1c, w1s, b1]
    for w, b in hidden:
        flat_inputs += [w, b]
    flat_inputs += [head_w, head_b]

    def full_spec(arr):
        # Replicated (un-tiled) weight/bias: full block, same block every step.
        return pl.BlockSpec(arr.shape, lambda i: (0, 0))

    in_specs = [pl.BlockSpec((tn_eff, dim_x), lambda i: (i, 0))]
    in_specs += [full_spec(a) for a in flat_inputs[1:]]
    # Un-padded output block: last dim == full array last dim -> contiguous
    # HBM writeback of only real data.
    out_specs = pl.BlockSpec((tn_eff, hc), lambda i: (i, 0))
    out_shape = jax.ShapeDtypeStruct((n_pad, hc), jnp.float32)

    kernel = functools.partial(_nrmlp_kernel, dim_x, n_hidden, n_strips,
                               bf16_epilogue)

    fused = pl.pallas_call(
        kernel,
        out_shape=out_shape,
        grid_spec=pltpu.PrefetchScalarGridSpec(
            num_scalar_prefetch=0,
            grid=grid,
            in_specs=in_specs,
            out_specs=out_specs,
        ),
        compiler_params=pltpu.CompilerParams(
            dimension_semantics=("parallel",),
            vmem_limit_bytes=vmem_limit_bytes),
    )(*flat_inputs)

    beta = fused[:N, :out_channels]
    gamma = fused[:N, out_channels:hc]
    return beta, gamma


def init_nrmlp_params(key, out_channels, dim_x=3, d_model=256, MLP_layers=4,
                      scale=10.0):
    """Deterministic synthetic parameters matching the PyTorch module shapes."""
    keys = jax.random.split(key, 2 * MLP_layers + 6)
    k_iter = iter(keys)

    def linear(kw, kb, fan_in, fan_out):
        # nn.Linear default init: U(-1/sqrt(fan_in), 1/sqrt(fan_in)).
        bound = 1.0 / math.sqrt(fan_in)
        w = jax.random.uniform(kw, (fan_in, fan_out), jnp.float32, -bound, bound)
        b = jax.random.uniform(kb, (1, fan_out), jnp.float32, -bound, bound)
        return w, b

    # B ~ N(0,1) * scale, shape (d_model, dim_x)
    B = jax.random.normal(next(k_iter), (d_model, dim_x), jnp.float32) * scale

    mlp = [linear(next(k_iter), next(k_iter), 2 * d_model, d_model)]
    for _ in range(MLP_layers - 2):
        mlp.append(linear(next(k_iter), next(k_iter), d_model, d_model))

    beta_head = linear(next(k_iter), next(k_iter), d_model, out_channels)
    gamma_head = linear(next(k_iter), next(k_iter), d_model, out_channels)

    return {"B": B, "mlp": mlp, "beta": beta_head, "gamma": gamma_head}


def nrmlp_reference(x, params, bf16_epilogue=False):
    """Pure-JAX reference mirroring the PyTorch forward, with the same bf16
    MXU-operand quantization / epilogue dtype as the kernel."""
    proj = 2.0 * jnp.float32(math.pi) * (x @ params["B"].T)
    feat = jnp.concatenate([jnp.cos(proj), jnp.sin(proj)], axis=-1)
    h = feat.astype(jnp.bfloat16)
    for w, b in params["mlp"]:
        acc = jnp.dot(h, w.astype(jnp.bfloat16),
                      preferred_element_type=jnp.float32)
        if bf16_epilogue:
            h = jnp.maximum(acc.astype(jnp.bfloat16) + b.astype(jnp.bfloat16), 0)
        else:
            h = jnp.maximum(acc + b, 0.0).astype(jnp.bfloat16)
    wb, bb = params["beta"]
    wg, bg = params["gamma"]
    beta = jnp.dot(h, wb.astype(jnp.bfloat16),
                   preferred_element_type=jnp.float32) + bb
    gamma = jnp.dot(h, wg.astype(jnp.bfloat16),
                    preferred_element_type=jnp.float32) + bg
    return beta, gamma


if __name__ == "__main__":
    key = jax.random.PRNGKey(0)
    k_param, k_x = jax.random.split(key)

    # Small shapes consistent with the module's forward: x is (N, dim_x).
    # N deliberately NOT a multiple of the tile to exercise the padding path;
    # the adaptive clamp yields a 4-step grid (2 per TensorCore on v7x).
    N = 1000
    dim_x = 3
    d_model = 128
    out_channels = 8
    MLP_layers = 4

    params = init_nrmlp_params(k_param, out_channels, dim_x=dim_x,
                               d_model=d_model, MLP_layers=MLP_layers,
                               scale=10.0)
    x = jax.random.uniform(k_x, (N, dim_x), jnp.float32)   # coordinates in [0,1)

    use_bf16_ep = _has_bf16_vpu()
    beta, gamma = nrmlp_forward(x, params, tn=1024, n_strips=2,
                                bf16_epilogue=use_bf16_ep)
    jax.block_until_ready((beta, gamma))

    beta_ref, gamma_ref = nrmlp_reference(x, params, bf16_epilogue=use_bf16_ep)
    assert jnp.allclose(beta, beta_ref, atol=1e-2, rtol=1e-2), \
        float(jnp.max(jnp.abs(beta - beta_ref)))
    assert jnp.allclose(gamma, gamma_ref, atol=1e-2, rtol=1e-2), \
        float(jnp.max(jnp.abs(gamma - gamma_ref)))

    print("KERNEL_OK")
</pallas_src>

<mosaic_0001>
module attributes {stable_mosaic.version = 11 : i64} {
  func.func @_nrmlp_kernel(%arg0: i32, %arg1: memref<256x3xf32, #tpu.memory_space<vmem>>, %arg2: memref<3x128xf32, #tpu.memory_space<vmem>>, %arg3: memref<128x128xbf16, #tpu.memory_space<vmem>>, %arg4: memref<128x128xbf16, #tpu.memory_space<vmem>>, %arg5: memref<1x128xf32, #tpu.memory_space<vmem>>, %arg6: memref<128x128xbf16, #tpu.memory_space<vmem>>, %arg7: memref<1x128xf32, #tpu.memory_space<vmem>>, %arg8: memref<128x128xbf16, #tpu.memory_space<vmem>>, %arg9: memref<1x128xf32, #tpu.memory_space<vmem>>, %arg10: memref<128x16xbf16, #tpu.memory_space<vmem>>, %arg11: memref<1x16xf32, #tpu.memory_space<vmem>>, %arg12: memref<256x16xf32, #tpu.memory_space<vmem>>) attributes {dimension_semantics = [#tpu.dimension_semantics<parallel>], iteration_bounds = array<i64: 4>, scalar_prefetch = 0 : i64, scratch_operands = 0 : i64, tpu.core_type = #tpu.core_type<tc>, window_params = [{transform_indices = @transform_0, window_bounds = array<i64: 256, 3>}, {pipeline_mode = #tpu.pipeline_mode<synchronous>, transform_indices = @transform_1, window_bounds = array<i64: 3, 128>}, {pipeline_mode = #tpu.pipeline_mode<synchronous>, transform_indices = @transform_2, window_bounds = array<i64: 128, 128>}, {pipeline_mode = #tpu.pipeline_mode<synchronous>, transform_indices = @transform_3, window_bounds = array<i64: 128, 128>}, {pipeline_mode = #tpu.pipeline_mode<synchronous>, transform_indices = @transform_4, window_bounds = array<i64: 1, 128>}, {pipeline_mode = #tpu.pipeline_mode<synchronous>, transform_indices = @transform_5, window_bounds = array<i64: 128, 128>}, {pipeline_mode = #tpu.pipeline_mode<synchronous>, transform_indices = @transform_6, window_bounds = array<i64: 1, 128>}, {pipeline_mode = #tpu.pipeline_mode<synchronous>, transform_indices = @transform_7, window_bounds = array<i64: 128, 128>}, {pipeline_mode = #tpu.pipeline_mode<synchronous>, transform_indices = @transform_8, window_bounds = array<i64: 1, 128>}, {pipeline_mode = #tpu.pipeline_mode<synchronous>, transform_indices = @transform_9, window_bounds = array<i64: 128, 16>}, {pipeline_mode = #tpu.pipeline_mode<synchronous>, transform_indices = @transform_10, window_bounds = array<i64: 1, 16>}, {transform_indices = @transform_11, window_bounds = array<i64: 256, 16>}]} {
    %c0 = arith.constant 0 : index
    %c0_0 = arith.constant 0 : index
    %0 = vector.load %arg2[%c0, %c0_0] : memref<3x128xf32, #tpu.memory_space<vmem>>, vector<1x128xf32>
    %c1 = arith.constant 1 : index
    %c0_1 = arith.constant 0 : index
    %1 = vector.load %arg2[%c1, %c0_1] : memref<3x128xf32, #tpu.memory_space<vmem>>, vector<1x128xf32>
    %c2 = arith.constant 2 : index
    %c0_2 = arith.constant 0 : index
    %2 = vector.load %arg2[%c2, %c0_2] : memref<3x128xf32, #tpu.memory_space<vmem>>, vector<1x128xf32>
    %c0_3 = arith.constant 0 : index
    %c0_4 = arith.constant 0 : index
    %3 = vector.load %arg3[%c0_3, %c0_4] : memref<128x128xbf16, #tpu.memory_space<vmem>>, vector<128x128xbf16>
    %c0_5 = arith.constant 0 : index
    %c0_6 = arith.constant 0 : index
    %4 = vector.load %arg4[%c0_5, %c0_6] : memref<128x128xbf16, #tpu.memory_space<vmem>>, vector<128x128xbf16>
    %c0_7 = arith.constant 0 : index
    %c0_8 = arith.constant 0 : index
    %5 = vector.load %arg5[%c0_7, %c0_8] : memref<1x128xf32, #tpu.memory_space<vmem>>, vector<1x128xf32>
    %c0_9 = arith.constant 0 : index
    %c0_10 = arith.constant 0 : index
    %6 = vector.load %arg6[%c0_9, %c0_10] : memref<128x128xbf16, #tpu.memory_space<vmem>>, vector<128x128xbf16>
    %c0_11 = arith.constant 0 : index
    %c0_12 = arith.constant 0 : index
    %7 = vector.load %arg7[%c0_11, %c0_12] : memref<1x128xf32, #tpu.memory_space<vmem>>, vector<1x128xf32>
    %c0_13 = arith.constant 0 : index
    %c0_14 = arith.constant 0 : index
    %8 = vector.load %arg8[%c0_13, %c0_14] : memref<128x128xbf16, #tpu.memory_space<vmem>>, vector<128x128xbf16>
    %c0_15 = arith.constant 0 : index
    %c0_16 = arith.constant 0 : index
    %9 = vector.load %arg9[%c0_15, %c0_16] : memref<1x128xf32, #tpu.memory_space<vmem>>, vector<1x128xf32>
    %c0_17 = arith.constant 0 : index
    %c0_18 = arith.constant 0 : index
    %10 = vector.load %arg10[%c0_17, %c0_18] : memref<128x16xbf16, #tpu.memory_space<vmem>>, vector<128x16xbf16>
    %c0_19 = arith.constant 0 : index
    %c0_20 = arith.constant 0 : index
    %11 = vector.load %arg11[%c0_19, %c0_20] : memref<1x16xf32, #tpu.memory_space<vmem>>, vector<1x16xf32>
    %c0_21 = arith.constant 0 : index
    %c0_22 = arith.constant 0 : index
    %12 = vector.load %arg1[%c0_21, %c0_22] : memref<256x3xf32, #tpu.memory_space<vmem>>, vector<128x1xf32>
    %13 = vector.broadcast %12 : vector<128x1xf32> to vector<128x128xf32>
    %14 = vector.broadcast %0 : vector<1x128xf32> to vector<128x128xf32>
    %15 = arith.mulf %13, %14 : vector<128x128xf32>
    %c0_23 = arith.constant 0 : index
    %c1_24 = arith.constant 1 : index
    %16 = vector.load %arg1[%c0_23, %c1_24] : memref<256x3xf32, #tpu.memory_space<vmem>>, vector<128x1xf32>
    %17 = vector.broadcast %16 : vector<128x1xf32> to vector<128x128xf32>
    %18 = vector.broadcast %1 : vector<1x128xf32> to vector<128x128xf32>
    %19 = arith.mulf %17, %18 : vector<128x128xf32>
    %20 = arith.addf %15, %19 : vector<128x128xf32>
    %c0_25 = arith.constant 0 : index
    %c2_26 = arith.constant 2 : index
    %21 = vector.load %arg1[%c0_25, %c2_26] : memref<256x3xf32, #tpu.memory_space<vmem>>, vector<128x1xf32>
    %22 = vector.broadcast %21 : vector<128x1xf32> to vector<128x128xf32>
    %23 = vector.broadcast %2 : vector<1x128xf32> to vector<128x128xf32>
    %24 = arith.mulf %22, %23 : vector<128x128xf32>
    %25 = arith.addf %20, %24 : vector<128x128xf32>
    %26 = math.cos %25 : vector<128x128xf32>
    %27 = arith.truncf %26 : vector<128x128xf32> to vector<128x128xbf16>
    %28 = math.sin %25 : vector<128x128xf32>
    %29 = arith.truncf %28 : vector<128x128xf32> to vector<128x128xbf16>
    %cst = arith.constant dense<0.000000e+00> : vector<128x128xf32>
    %30 = tpu.matmul %27, %3, %cst {dimension_numbers = #tpu.dot_dimension_numbers<[1], [0], [0], [1], [0, 0, 1, 1], [], []>} : vector<128x128xbf16>, vector<128x128xbf16>, vector<128x128xf32> -> vector<128x128xf32>
    %cst_27 = arith.constant dense<0.000000e+00> : vector<128x128xf32>
    %31 = tpu.matmul %29, %4, %cst_27 {dimension_numbers = #tpu.dot_dimension_numbers<[1], [0], [0], [1], [0, 0, 1, 1], [], []>} : vector<128x128xbf16>, vector<128x128xbf16>, vector<128x128xf32> -> vector<128x128xf32>
    %32 = arith.addf %30, %31 : vector<128x128xf32>
    %33 = vector.broadcast %5 : vector<1x128xf32> to vector<128x128xf32>
    %34 = arith.addf %32, %33 : vector<128x128xf32>
    %cst_28 = arith.constant 0.000000e+00 : f32
    %35 = vector.broadcast %cst_28 : f32 to vector<128x128xf32>
    %36 = arith.maximumf %34, %35 : vector<128x128xf32>
    %37 = arith.truncf %36 : vector<128x128xf32> to vector<128x128xbf16>
    %cst_29 = arith.constant dense<0.000000e+00> : vector<128x128xf32>
    %38 = tpu.matmul %37, %6, %cst_29 {dimension_numbers = #tpu.dot_dimension_numbers<[1], [0], [0], [1], [0, 0, 1, 1], [], []>} : vector<128x128xbf16>, vector<128x128xbf16>, vector<128x128xf32> -> vector<128x128xf32>
    %39 = vector.broadcast %7 : vector<1x128xf32> to vector<128x128xf32>
    %40 = arith.addf %38, %39 : vector<128x128xf32>
    %cst_30 = arith.constant 0.000000e+00 : f32
    %41 = vector.broadcast %cst_30 : f32 to vector<128x128xf32>
    %42 = arith.maximumf %40, %41 : vector<128x128xf32>
    %43 = arith.truncf %42 : vector<128x128xf32> to vector<128x128xbf16>
    %cst_31 = arith.constant dense<0.000000e+00> : vector<128x128xf32>
    %44 = tpu.matmul %43, %8, %cst_31 {dimension_numbers = #tpu.dot_dimension_numbers<[1], [0], [0], [1], [0, 0, 1, 1], [], []>} : vector<128x128xbf16>, vector<128x128xbf16>, vector<128x128xf32> -> vector<128x128xf32>
    %45 = vector.broadcast %9 : vector<1x128xf32> to vector<128x128xf32>
    %46 = arith.addf %44, %45 : vector<128x128xf32>
    %cst_32 = arith.constant 0.000000e+00 : f32
    %47 = vector.broadcast %cst_32 : f32 to vector<128x128xf32>
    %48 = arith.maximumf %46, %47 : vector<128x128xf32>
    %49 = arith.truncf %48 : vector<128x128xf32> to vector<128x128xbf16>
    %cst_33 = arith.constant dense<0.000000e+00> : vector<128x16xf32>
    %50 = tpu.matmul %49, %10, %cst_33 {dimension_numbers = #tpu.dot_dimension_numbers<[1], [0], [0], [1], [0, 0, 1, 1], [], []>} : vector<128x128xbf16>, vector<128x16xbf16>, vector<128x16xf32> -> vector<128x16xf32>
    %51 = vector.broadcast %11 : vector<1x16xf32> to vector<128x16xf32>
    %52 = arith.addf %50, %51 : vector<128x16xf32>
    %c0_34 = arith.constant 0 : index
    %c0_35 = arith.constant 0 : index
    %53 = vector.load %arg12[%c0_34, %c0_35] : memref<256x16xf32, #tpu.memory_space<vmem>>, vector<128x16xf32>
    tpu.vector_store %arg12[%c0_34, %c0_35], %52 {strides = array<i32>} : memref<256x16xf32, #tpu.memory_space<vmem>>, vector<128x16xf32>,
    %c128 = arith.constant 128 : index
    %c0_36 = arith.constant 0 : index
    %54 = vector.load %arg1[%c128, %c0_36] : memref<256x3xf32, #tpu.memory_space<vmem>>, vector<128x1xf32>
    %55 = vector.broadcast %54 : vector<128x1xf32> to vector<128x128xf32>
    %56 = vector.broadcast %0 : vector<1x128xf32> to vector<128x128xf32>
    %57 = arith.mulf %55, %56 : vector<128x128xf32>
    %c128_37 = arith.constant 128 : index
    %c1_38 = arith.constant 1 : index
    %58 = vector.load %arg1[%c128_37, %c1_38] : memref<256x3xf32, #tpu.memory_space<vmem>>, vector<128x1xf32>
    %59 = vector.broadcast %58 : vector<128x1xf32> to vector<128x128xf32>
    %60 = vector.broadcast %1 : vector<1x128xf32> to vector<128x128xf32>
    %61 = arith.mulf %59, %60 : vector<128x128xf32>
    %62 = arith.addf %57, %61 : vector<128x128xf32>
    %c128_39 = arith.constant 128 : index
    %c2_40 = arith.constant 2 : index
    %63 = vector.load %arg1[%c128_39, %c2_40] : memref<256x3xf32, #tpu.memory_space<vmem>>, vector<128x1xf32>
    %64 = vector.broadcast %63 : vector<128x1xf32> to vector<128x128xf32>
    %65 = vector.broadcast %2 : vector<1x128xf32> to vector<128x128xf32>
    %66 = arith.mulf %64, %65 : vector<128x128xf32>
    %67 = arith.addf %62, %66 : vector<128x128xf32>
    %68 = math.cos %67 : vector<128x128xf32>
    %69 = arith.truncf %68 : vector<128x128xf32> to vector<128x128xbf16>
    %70 = math.sin %67 : vector<128x128xf32>
    %71 = arith.truncf %70 : vector<128x128xf32> to vector<128x128xbf16>
    %cst_41 = arith.constant dense<0.000000e+00> : vector<128x128xf32>
    %72 = tpu.matmul %69, %3, %cst_41 {dimension_numbers = #tpu.dot_dimension_numbers<[1], [0], [0], [1], [0, 0, 1, 1], [], []>} : vector<128x128xbf16>, vector<128x128xbf16>, vector<128x128xf32> -> vector<128x128xf32>
    %cst_42 = arith.constant dense<0.000000e+00> : vector<128x128xf32>
    %73 = tpu.matmul %71, %4, %cst_42 {dimension_numbers = #tpu.dot_dimension_numbers<[1], [0], [0], [1], [0, 0, 1, 1], [], []>} : vector<128x128xbf16>, vector<128x128xbf16>, vector<128x128xf32> -> vector<128x128xf32>
    %74 = arith.addf %72, %73 : vector<128x128xf32>
    %75 = vector.broadcast %5 : vector<1x128xf32> to vector<128x128xf32>
    %76 = arith.addf %74, %75 : vector<128x128xf32>
    %cst_43 = arith.constant 0.000000e+00 : f32
    %77 = vector.broadcast %cst_43 : f32 to vector<128x128xf32>
    %78 = arith.maximumf %76, %77 : vector<128x128xf32>
    %79 = arith.truncf %78 : vector<128x128xf32> to vector<128x128xbf16>
    %cst_44 = arith.constant dense<0.000000e+00> : vector<128x128xf32>
    %80 = tpu.matmul %79, %6, %cst_44 {dimension_numbers = #tpu.dot_dimension_numbers<[1], [0], [0], [1], [0, 0, 1, 1], [], []>} : vector<128x128xbf16>, vector<128x128xbf16>, vector<128x128xf32> -> vector<128x128xf32>
    %81 = vector.broadcast %7 : vector<1x128xf32> to vector<128x128xf32>
    %82 = arith.addf %80, %81 : vector<128x128xf32>
    %cst_45 = arith.constant 0.000000e+00 : f32
    %83 = vector.broadcast %cst_45 : f32 to vector<128x128xf32>
    %84 = arith.maximumf %82, %83 : vector<128x128xf32>
    %85 = arith.truncf %84 : vector<128x128xf32> to vector<128x128xbf16>
    %cst_46 = arith.constant dense<0.000000e+00> : vector<128x128xf32>
    %86 = tpu.matmul %85, %8, %cst_46 {dimension_numbers = #tpu.dot_dimension_numbers<[1], [0], [0], [1], [0, 0, 1, 1], [], []>} : vector<128x128xbf16>, vector<128x128xbf16>, vector<128x128xf32> -> vector<128x128xf32>
    %87 = vector.broadcast %9 : vector<1x128xf32> to vector<128x128xf32>
    %88 = arith.addf %86, %87 : vector<128x128xf32>
    %cst_47 = arith.constant 0.000000e+00 : f32
    %89 = vector.broadcast %cst_47 : f32 to vector<128x128xf32>
    %90 = arith.maximumf %88, %89 : vector<128x128xf32>
    %91 = arith.truncf %90 : vector<128x128xf32> to vector<128x128xbf16>
    %cst_48 = arith.constant dense<0.000000e+00> : vector<128x16xf32>
    %92 = tpu.matmul %91, %10, %cst_48 {dimension_numbers = #tpu.dot_dimension_numbers<[1], [0], [0], [1], [0, 0, 1, 1], [], []>} : vector<128x128xbf16>, vector<128x16xbf16>, vector<128x16xf32> -> vector<128x16xf32>
    %93 = vector.broadcast %11 : vector<1x16xf32> to vector<128x16xf32>
    %94 = arith.addf %92, %93 : vector<128x16xf32>
    %c128_49 = arith.constant 128 : index
    %c0_50 = arith.constant 0 : index
    %95 = vector.load %arg12[%c128_49, %c0_50] : memref<256x16xf32, #tpu.memory_space<vmem>>, vector<128x16xf32>
    tpu.vector_store %arg12[%c128_49, %c0_50], %94 {strides = array<i32>} : memref<256x16xf32, #tpu.memory_space<vmem>>, vector<128x16xf32>,
    return
  }
  func.func @transform_0(%arg0: i32) -> (i32, i32) {
    %c0_i32 = arith.constant 0 : i32
    %c0_i32_0 = arith.constant 0 : i32
    return %arg0, %c0_i32 : i32, i32
  }
  func.func @transform_1(%arg0: i32) -> (i32, i32) {
    %c0_i32 = arith.constant 0 : i32
    %c0_i32_0 = arith.constant 0 : i32
    %c0_i32_1 = arith.constant 0 : i32
    return %c0_i32, %c0_i32_0 : i32, i32
  }
  func.func @transform_2(%arg0: i32) -> (i32, i32) {
    %c0_i32 = arith.constant 0 : i32
    %c0_i32_0 = arith.constant 0 : i32
    %c0_i32_1 = arith.constant 0 : i32
    return %c0_i32, %c0_i32_0 : i32, i32
  }
  func.func @transform_3(%arg0: i32) -> (i32, i32) {
    %c0_i32 = arith.constant 0 : i32
    %c0_i32_0 = arith.constant 0 : i32
    %c0_i32_1 = arith.constant 0 : i32
    return %c0_i32, %c0_i32_0 : i32, i32
  }
  func.func @transform_4(%arg0: i32) -> (i32, i32) {
    %c0_i32 = arith.constant 0 : i32
    %c0_i32_0 = arith.constant 0 : i32
    %c0_i32_1 = arith.constant 0 : i32
    return %c0_i32, %c0_i32_0 : i32, i32
  }
  func.func @transform_5(%arg0: i32) -> (i32, i32) {
    %c0_i32 = arith.constant 0 : i32
    %c0_i32_0 = arith.constant 0 : i32
    %c0_i32_1 = arith.constant 0 : i32
    return %c0_i32, %c0_i32_0 : i32, i32
  }
  func.func @transform_6(%arg0: i32) -> (i32, i32) {
    %c0_i32 = arith.constant 0 : i32
    %c0_i32_0 = arith.constant 0 : i32
    %c0_i32_1 = arith.constant 0 : i32
    return %c0_i32, %c0_i32_0 : i32, i32
  }
  func.func @transform_7(%arg0: i32) -> (i32, i32) {
    %c0_i32 = arith.constant 0 : i32
    %c0_i32_0 = arith.constant 0 : i32
    %c0_i32_1 = arith.constant 0 : i32
    return %c0_i32, %c0_i32_0 : i32, i32
  }
  func.func @transform_8(%arg0: i32) -> (i32, i32) {
    %c0_i32 = arith.constant 0 : i32
    %c0_i32_0 = arith.constant 0 : i32
    %c0_i32_1 = arith.constant 0 : i32
    return %c0_i32, %c0_i32_0 : i32, i32
  }
  func.func @transform_9(%arg0: i32) -> (i32, i32) {
    %c0_i32 = arith.constant 0 : i32
    %c0_i32_0 = arith.constant 0 : i32
    %c0_i32_1 = arith.constant 0 : i32
    return %c0_i32, %c0_i32_0 : i32, i32
  }
  func.func @transform_10(%arg0: i32) -> (i32, i32) {
    %c0_i32 = arith.constant 0 : i32
    %c0_i32_0 = arith.constant 0 : i32
    %c0_i32_1 = arith.constant 0 : i32
    return %c0_i32, %c0_i32_0 : i32, i32
  }
  func.func @transform_11(%arg0: i32) -> (i32, i32) {
    %c0_i32 = arith.constant 0 : i32
    %c0_i32_0 = arith.constant 0 : i32
    return %arg0, %c0_i32 : i32, i32
  }
}

</mosaic_0001>

<llo_original>
// kernel: tpu_custom_call.1
$region0: #{tpu_custom_call.1}
  #allocation0 [shape = 'u32[]', space=smem, size = 0x4, offset = 0x4, fixed_abs, tag = 'smem constant byte address 0x4 - core index']
  #allocation1 [shape = 'u32[144,128]{1,0:T(1,128)}', space=vmem, size = 0x12000, scoped, tag = 'internal scratch']
  %s0 = inlined_call_operand.vmem [shape: f32[1024,3], index: 0, kind: input, shape index: {}]
  %s1 = inlined_call_operand.vmem [shape: f32[3,128], index: 1, kind: input, shape index: {}]
  %s2 = inlined_call_operand.vmem [shape: bf16[128,128], index: 2, kind: input, shape index: {}]
  %s3 = inlined_call_operand.vmem [shape: bf16[128,128], index: 3, kind: input, shape index: {}]
  %s4 = inlined_call_operand.vmem [shape: f32[1,128], index: 4, kind: input, shape index: {}]
  %s5 = inlined_call_operand.vmem [shape: bf16[128,128], index: 5, kind: input, shape index: {}]
  %s6 = inlined_call_operand.vmem [shape: f32[1,128], index: 6, kind: input, shape index: {}]
  %s7 = inlined_call_operand.vmem [shape: bf16[128,128], index: 7, kind: input, shape index: {}]
  %s8 = inlined_call_operand.vmem [shape: f32[1,128], index: 8, kind: input, shape index: {}]
  %s9 = inlined_call_operand.vmem [shape: bf16[128,16], index: 9, kind: input, shape index: {}]
  %s10 = inlined_call_operand.vmem [shape: f32[1,16], index: 10, kind: input, shape index: {}]
  %s11 = inlined_call_operand.vmem [shape: f32[1024,16], index: 11, kind: output, shape index: {}]
  %s12 = sld [smem:[#allocation0]]
  $region77: #{tpu_custom_call.1} parent=0
    _
  %s14 = ssub.s32 1, %s12
  %s15 = scalar_select 0, %s14, %s12
  loop: start=0, step=1, limit=6
  $region2: #{tpu_custom_call.1} parent=0 // loop_pre_header
    _
  $region3: #{tpu_custom_call.1} parent=0 // loop_header
    %s17 = sphi 0, %s21
    %p18 = scmp.ge.s32.totalorder %s17, 6
    %s27 = sphi 0, %s29
    %s30 = sphi 0, %s27
    %s31 = sphi 0, %s30
    %s47 = sphi 0, %s31
    %s51 = sphi 0, %s51
    %s53 = sphi 0, %s51
    %s54 = sphi 0, %s53
    %s68 = sphi 0, %s54
    %s72 = sphi 0, %s72
    %s74 = sphi 0, %s72
    %s75 = sphi 0, %s74
    %s89 = sphi 0, %s75
    %s93 = sphi 0, %s93
    %s95 = sphi 0, %s93
    %s96 = sphi 0, %s95
    %s110 = sphi 0, %s96
    %s114 = sphi 0, %s114
    %s116 = sphi 0, %s114
    %s117 = sphi 0, %s116
    %s131 = sphi 0, %s117
    %s135 = sphi 0, %s135
    %s137 = sphi 0, %s135
    %s138 = sphi 0, %s137
    %s152 = sphi 0, %s138
    %s156 = sphi 0, %s156
    %s158 = sphi 0, %s156
    %s159 = sphi 0, %s158
    %s173 = sphi 0, %s159
    %s177 = sphi 0, %s177
    %s179 = sphi 0, %s177
    %s180 = sphi 0, %s179
    %s194 = sphi 0, %s180
    %s198 = sphi 0, %s198
    %s200 = sphi 0, %s198
    %s201 = sphi 0, %s200
    %s215 = sphi 0, %s201
    %s219 = sphi 0, %s219
    %s221 = sphi 0, %s219
    %s222 = sphi 0, %s221
    %s236 = sphi 0, %s222
    %s240 = sphi 0, %s240
    %s242 = sphi 0, %s240
    %s243 = sphi 0, %s242
    %s257 = sphi 0, %s243
    %s263 = sphi 0, %s265
    %s266 = sphi 0, %s263
    %s267 = sphi 0, %s266
    %s283 = sphi 0, %s267
  $region4: #{tpu_custom_call.1} parent=0 // loop_header_branch
    %20 = sbr.rel (%p18) target = $region8
  $region5: #{tpu_custom_call.1} parent=0 // loop_body
    %s22 = ssub.s32 %s17, 1
    %s23 = ssub.s32 %s17, 2
    %s24 = sadd.s32 %s17, 1
    %s25 = ssub.s32 %s17, %s24
    %p26 = scmp.eq.s32.totalorder %s25, 0
    %s28 = sadd.s32 %s27, 1
    %s29 = scalar_select %p26, %s27, %s28
    %p32 = pneg %p26
    %p33 = scmp.eq.s32.totalorder %s17, 3
    %p34 = por %p32, %p33
    %p35 = scmp.ne.s32.totalorder %s27, %s30
    %p36 = scmp.eq.s32.totalorder %s17, 0
    %p37 = por %p35, %p36
    %p38 = scmp.ne.s32.totalorder %s27, %s30
    %p39 = scmp.eq.s32.totalorder %s22, 3
    %p40 = por %p38, %p39
    %p41 = scmp.ne.s32.totalorder %s30, %s31
    %p42 = scmp.eq.s32.totalorder %s22, 0
    %p43 = por %p41, %p42
    %p44 = scmp.ne.s32.totalorder %s30, %s31
    %p45 = scmp.eq.s32.totalorder %s23, 3
    %p46 = por %p44, %p45
    %p48 = scmp.ne.s32.totalorder %s31, %s47
    %p49 = scmp.eq.s32.totalorder %s23, 0
    %p50 = por %p48, %p49
    %s52 = sadd.s32 %s51, 1
    %p55 = scmp.eq.s32.totalorder %s17, 3
    %p56 = scmp.ne.s32.totalorder %s51, %s53
    %p57 = scmp.eq.s32.totalorder %s17, 0
    %p58 = por %p56, %p57
    %p59 = scmp.ne.s32.totalorder %s51, %s53
    %p60 = scmp.eq.s32.totalorder %s22, 3
    %p61 = por %p59, %p60
    %p62 = scmp.ne.s32.totalorder %s53, %s54
    %p63 = scmp.eq.s32.totalorder %s22, 0
    %p64 = por %p62, %p63
    %p65 = scmp.ne.s32.totalorder %s53, %s54
    %p66 = scmp.eq.s32.totalorder %s23, 3
    %p67 = por %p65, %p66
    %p69 = scmp.ne.s32.totalorder %s54, %s68
    %p70 = scmp.eq.s32.totalorder %s23, 0
    %p71 = por %p69, %p70
    %s73 = sadd.s32 %s72, 1
    %p76 = scmp.eq.s32.totalorder %s17, 3
    %p77 = scmp.ne.s32.totalorder %s72, %s74
    %p78 = scmp.eq.s32.totalorder %s17, 0
    %p79 = por %p77, %p78
    %p80 = scmp.ne.s32.totalorder %s72, %s74
    %p81 = scmp.eq.s32.totalorder %s22, 3
    %p82 = por %p80, %p81
    %p83 = scmp.ne.s32.totalorder %s74, %s75
    %p84 = scmp.eq.s32.totalorder %s22, 0
    %p85 = por %p83, %p84
    %p86 = scmp.ne.s32.totalorder %s74, %s75
    %p87 = scmp.eq.s32.totalorder %s23, 3
    %p88 = por %p86, %p87
    %p90 = scmp.ne.s32.totalorder %s75, %s89
    %p91 = scmp.eq.s32.totalorder %s23, 0
    %p92 = por %p90, %p91
    %s94 = sadd.s32 %s93, 1
    %p97 = scmp.eq.s32.totalorder %s17, 3
    %p98 = scmp.ne.s32.totalorder %s93, %s95
    %p99 = scmp.eq.s32.totalorder %s17, 0
    %p100 = por %p98, %p99
    %p101 = scmp.ne.s32.totalorder %s93, %s95
    %p102 = scmp.eq.s32.totalorder %s22, 3
    %p103 = por %p101, %p102
    %p104 = scmp.ne.s32.totalorder %s95, %s96
    %p105 = scmp.eq.s32.totalorder %s22, 0
    %p106 = por %p104, %p105
    %p107 = scmp.ne.s32.totalorder %s95, %s96
    %p108 = scmp.eq.s32.totalorder %s23, 3
    %p109 = por %p107, %p108
    %p111 = scmp.ne.s32.totalorder %s96, %s110
    %p112 = scmp.eq.s32.totalorder %s23, 0
    %p113 = por %p111, %p112
    %s115 = sadd.s32 %s114, 1
    %p118 = scmp.eq.s32.totalorder %s17, 3
    %p119 = scmp.ne.s32.totalorder %s114, %s116
    %p120 = scmp.eq.s32.totalorder %s17, 0
    %p121 = por %p119, %p120
    %p122 = scmp.ne.s32.totalorder %s114, %s116
    %p123 = scmp.eq.s32.totalorder %s22, 3
    %p124 = por %p122, %p123
    %p125 = scmp.ne.s32.totalorder %s116, %s117
    %p126 = scmp.eq.s32.totalorder %s22, 0
    %p127 = por %p125, %p126
    %p128 = scmp.ne.s32.totalorder %s116, %s117
    %p129 = scmp.eq.s32.totalorder %s23, 3
    %p130 = por %p128, %p129
    %p132 = scmp.ne.s32.totalorder %s117, %s131
    %p133 = scmp.eq.s32.totalorder %s23, 0
    %p134 = por %p132, %p133
    %s136 = sadd.s32 %s135, 1
    %p139 = scmp.eq.s32.totalorder %s17, 3
    %p140 = scmp.ne.s32.totalorder %s135, %s137
    %p141 = scmp.eq.s32.totalorder %s17, 0
    %p142 = por %p140, %p141
    %p143 = scmp.ne.s32.totalorder %s135, %s137
    %p144 = scmp.eq.s32.totalorder %s22, 3
    %p145 = por %p143, %p144
    %p146 = scmp.ne.s32.totalorder %s137, %s138
    %p147 = scmp.eq.s32.totalorder %s22, 0
    %p148 = por %p146, %p147
    %p149 = scmp.ne.s32.totalorder %s137, %s138
    %p150 = scmp.eq.s32.totalorder %s23, 3
    %p151 = por %p149, %p150
    %p153 = scmp.ne.s32.totalorder %s138, %s152
    %p154 = scmp.eq.s32.totalorder %s23, 0
    %p155 = por %p153, %p154
    %s157 = sadd.s32 %s156, 1
    %p160 = scmp.eq.s32.totalorder %s17, 3
    %p161 = scmp.ne.s32.totalorder %s156, %s158
    %p162 = scmp.eq.s32.totalorder %s17, 0
    %p163 = por %p161, %p162
    %p164 = scmp.ne.s32.totalorder %s156, %s158
    %p165 = scmp.eq.s32.totalorder %s22, 3
    %p166 = por %p164, %p165
    %p167 = scmp.ne.s32.totalorder %s158, %s159
    %p168 = scmp.eq.s32.totalorder %s22, 0
    %p169 = por %p167, %p168
    %p170 = scmp.ne.s32.totalorder %s158, %s159
    %p171 = scmp.eq.s32.totalorder %s23, 3
    %p172 = por %p170, %p171
    %p174 = scmp.ne.s32.totalorder %s159, %s173
    %p175 = scmp.eq.s32.totalorder %s23, 0
    %p176 = por %p174, %p175
    %s178 = sadd.s32 %s177, 1
    %p181 = scmp.eq.s32.totalorder %s17, 3
    %p182 = scmp.ne.s32.totalorder %s177, %s179
    %p183 = scmp.eq.s32.totalorder %s17, 0
    %p184 = por %p182, %p183
    %p185 = scmp.ne.s32.totalorder %s177, %s179
    %p186 = scmp.eq.s32.totalorder %s22, 3
    %p187 = por %p185, %p186
    %p188 = scmp.ne.s32.totalorder %s179, %s180
    %p189 = scmp.eq.s32.totalorder %s22, 0
    %p190 = por %p188, %p189
    %p191 = scmp.ne.s32.totalorder %s179, %s180
    %p192 = scmp.eq.s32.totalorder %s23, 3
    %p193 = por %p191, %p192
    %p195 = scmp.ne.s32.totalorder %s180, %s194
    %p196 = scmp.eq.s32.totalorder %s23, 0
    %p197 = por %p195, %p196
    %s199 = sadd.s32 %s198, 1
    %p202 = scmp.eq.s32.totalorder %s17, 3
    %p203 = scmp.ne.s32.totalorder %s198, %s200
    %p204 = scmp.eq.s32.totalorder %s17, 0
    %p205 = por %p203, %p204
    %p206 = scmp.ne.s32.totalorder %s198, %s200
    %p207 = scmp.eq.s32.totalorder %s22, 3
    %p208 = por %p206, %p207
    %p209 = scmp.ne.s32.totalorder %s200, %s201
    %p210 = scmp.eq.s32.totalorder %s22, 0
    %p211 = por %p209, %p210
    %p212 = scmp.ne.s32.totalorder %s200, %s201
    %p213 = scmp.eq.s32.totalorder %s23, 3
    %p214 = por %p212, %p213
    %p216 = scmp.ne.s32.totalorder %s201, %s215
    %p217 = scmp.eq.s32.totalorder %s23, 0
    %p218 = por %p216, %p217
    %s220 = sadd.s32 %s219, 1
    %p223 = scmp.eq.s32.totalorder %s17, 3
    %p224 = scmp.ne.s32.totalorder %s219, %s221
    %p225 = scmp.eq.s32.totalorder %s17, 0
    %p226 = por %p224, %p225
    %p227 = scmp.ne.s32.totalorder %s219, %s221
    %p228 = scmp.eq.s32.totalorder %s22, 3
    %p229 = por %p227, %p228
    %p230 = scmp.ne.s32.totalorder %s221, %s222
    %p231 = scmp.eq.s32.totalorder %s22, 0
    %p232 = por %p230, %p231
    %p233 = scmp.ne.s32.totalorder %s221, %s222
    %p234 = scmp.eq.s32.totalorder %s23, 3
    %p235 = por %p233, %p234
    %p237 = scmp.ne.s32.totalorder %s222, %s236
    %p238 = scmp.eq.s32.totalorder %s23, 0
    %p239 = por %p237, %p238
    %s241 = sadd.s32 %s240, 1
    %p244 = scmp.eq.s32.totalorder %s17, 3
    %p245 = scmp.ne.s32.totalorder %s240, %s242
    %p246 = scmp.eq.s32.totalorder %s17, 0
    %p247 = por %p245, %p246
    %p248 = scmp.ne.s32.totalorder %s240, %s242
    %p249 = scmp.eq.s32.totalorder %s22, 3
    %p250 = por %p248, %p249
    %p251 = scmp.ne.s32.totalorder %s242, %s243
    %p252 = scmp.eq.s32.totalorder %s22, 0
    %p253 = por %p251, %p252
    %p254 = scmp.ne.s32.totalorder %s242, %s243
    %p255 = scmp.eq.s32.totalorder %s23, 3
    %p256 = por %p254, %p255
    %p258 = scmp.ne.s32.totalorder %s243, %s257
    %p259 = scmp.eq.s32.totalorder %s23, 0
    %p260 = por %p258, %p259
    %s261 = ssub.s32 %s17, %s24
    %p262 = scmp.eq.s32.totalorder %s261, 0
    %s264 = sadd.s32 %s263, 1
    %s265 = scalar_select %p262, %s263, %s264
    %p268 = pneg %p262
    %p269 = scmp.eq.s32.totalorder %s17, 3
    %p270 = por %p268, %p269
    %p271 = scmp.ne.s32.totalorder %s263, %s266
    %p272 = scmp.eq.s32.totalorder %s17, 0
    %p273 = por %p271, %p272
    %p274 = scmp.ne.s32.totalorder %s263, %s266
    %p275 = scmp.eq.s32.totalorder %s22, 3
    %p276 = por %p274, %p275
    %p277 = scmp.ne.s32.totalorder %s266, %s267
    %p278 = scmp.eq.s32.totalorder %s22, 0
    %p279 = por %p277, %p278
    %p280 = scmp.ne.s32.totalorder %s266, %s267
    %p281 = scmp.eq.s32.totalorder %s23, 3
    %p282 = por %p280, %p281
    %p284 = scmp.ne.s32.totalorder %s267, %s283
    %p285 = scmp.eq.s32.totalorder %s23, 0
    %p286 = por %p284, %p285
    %p287 = scmp.le.s32.totalorder 1, %s17
    %p288 = scmp.lt.s32.totalorder %s17, 5
    %p289 = pnand %p287, %p288
    %p290 = pneg %p289
    // Predicated region
    $region9: #{tpu_custom_call.1} parent=5 // pred_check
      _
    $region10: #{tpu_custom_call.1} parent=5 // pred_check_branch
      %292 = sbr.rel (%p289) target = $region12
    $region11: #{tpu_custom_call.1} parent=5 // pred_region
      %s293 = ssub.s32 %s17, 1
      // Predicated region
      $region13: #{tpu_custom_call.1} parent=11 // pred_check
        %p294 = pneg %p64
      $region14: #{tpu_custom_call.1} parent=11 // pred_check_branch
        %296 = sbr.rel (%p294) target = $region16
      $region15: #{tpu_custom_call.1} parent=11 // pred_region
        _
      $region16: #{tpu_custom_call.1} parent=11 // pred_fallthru
        _
      // Predicated region
      $region17: #{tpu_custom_call.1} parent=11 // pred_check
        %p297 = pneg %p85
      $region18: #{tpu_custom_call.1} parent=11 // pred_check_branch
        %299 = sbr.rel (%p297) target = $region20
      $region19: #{tpu_custom_call.1} parent=11 // pred_region
        _
      $region20: #{tpu_custom_call.1} parent=11 // pred_fallthru
        _
      // Predicated region
      $region21: #{tpu_custom_call.1} parent=11 // pred_check
        %p300 = pneg %p106
      $region22: #{tpu_custom_call.1} parent=11 // pred_check_branch
        %302 = sbr.rel (%p300) target = $region24
      $region23: #{tpu_custom_call.1} parent=11 // pred_region
        _
      $region24: #{tpu_custom_call.1} parent=11 // pred_fallthru
        _
      // Predicated region
      $region25: #{tpu_custom_call.1} parent=11 // pred_check
        %p303 = pneg %p127
      $region26: #{tpu_custom_call.1} parent=11 // pred_check_branch
        %305 = sbr.rel (%p303) target = $region28
      $region27: #{tpu_custom_call.1} parent=11 // pred_region
        _
      $region28: #{tpu_custom_call.1} parent=11 // pred_fallthru
        _
      // Predicated region
      $region29: #{tpu_custom_call.1} parent=11 // pred_check
        %p306 = pneg %p148
      $region30: #{tpu_custom_call.1} parent=11 // pred_check_branch
        %308 = sbr.rel (%p306) target = $region32
      $region31: #{tpu_custom_call.1} parent=11 // pred_region
        _
      $region32: #{tpu_custom_call.1} parent=11 // pred_fallthru
        _
      // Predicated region
      $region33: #{tpu_custom_call.1} parent=11 // pred_check
        %p309 = pneg %p169
      $region34: #{tpu_custom_call.1} parent=11 // pred_check_branch
        %311 = sbr.rel (%p309) target = $region36
      $region35: #{tpu_custom_call.1} parent=11 // pred_region
        _
      $region36: #{tpu_custom_call.1} parent=11 // pred_fallthru
        _
      // Predicated region
      $region37: #{tpu_custom_call.1} parent=11 // pred_check
        %p312 = pneg %p190
      $region38: #{tpu_custom_call.1} parent=11 // pred_check_branch
        %314 = sbr.rel (%p312) target = $region40
      $region39: #{tpu_custom_call.1} parent=11 // pred_region
        _
      $region40: #{tpu_custom_call.1} parent=11 // pred_fallthru
        _
      // Predicated region
      $region41: #{tpu_custom_call.1} parent=11 // pred_check
        %p315 = pneg %p211
      $region42: #{tpu_custom_call.1} parent=11 // pred_check_branch
        %317 = sbr.rel (%p315) target = $region44
      $region43: #{tpu_custom_call.1} parent=11 // pred_region
        _
      $region44: #{tpu_custom_call.1} parent=11 // pred_fallthru
        _
      // Predicated region
      $region45: #{tpu_custom_call.1} parent=11 // pred_check
        %p318 = pneg %p232
      $region46: #{tpu_custom_call.1} parent=11 // pred_check_branch
        %320 = sbr.rel (%p318) target = $region48
      $region47: #{tpu_custom_call.1} parent=11 // pred_region
        _
      $region48: #{tpu_custom_call.1} parent=11 // pred_fallthru
        _
      // Predicated region
      $region49: #{tpu_custom_call.1} parent=11 // pred_check
        %p321 = pneg %p253
      $region50: #{tpu_custom_call.1} parent=11 // pred_check_branch
        %323 = sbr.rel (%p321) target = $region52
      $region51: #{tpu_custom_call.1} parent=11 // pred_region
        _
      $region52: #{tpu_custom_call.1} parent=11 // pred_fallthru
        _
    $region12: #{tpu_custom_call.1} parent=5 // pred_fallthru
      _
    %p324 = scmp.lt.s32.totalorder %s17, 4
    // Predicated region
    $region53: #{tpu_custom_call.1} parent=5 // pred_check
      %p325 = pneg %p324
    $region54: #{tpu_custom_call.1} parent=5 // pred_check_branch
      %327 = sbr.rel (%p325) target = $region56
    $region55: #{tpu_custom_call.1} parent=5 // pred_region
      // Predicated region
      $region57: #{tpu_custom_call.1} parent=55 // pred_check
        %p328 = pneg %p37
      $region58: #{tpu_custom_call.1} parent=55 // pred_check_branch
        %330 = sbr.rel (%p328) target = $region60
      $region59: #{tpu_custom_call.1} parent=55 // pred_region
        %s331 = smul.u32 32, %s17
        %p332 = scmp.lt.s32.totalorder %s331, 127
        %s333 = scalar_select %p332, %s331, 127
        %s334 = smul.addr %s333, 8
        %s335 = scalar_lea.vmem %s0, %s334
        %s336 = smul.u32 32, %s17
      $region60: #{tpu_custom_call.1} parent=55 // pred_fallthru
        _
    $region56: #{tpu_custom_call.1} parent=5 // pred_fallthru
      _
    %p337 = scmp.le.s32.totalorder 1, %s17
    %p338 = scmp.lt.s32.totalorder %s17, 5
    %p339 = pnand %p337, %p338
    %p340 = pneg %p339
    // Predicated region
    $region61: #{tpu_custom_call.1} parent=5 // pred_check
      _
    $region62: #{tpu_custom_call.1} parent=5 // pred_check_branch
      %342 = sbr.rel (%p339) target = $region64
    $region63: #{tpu_custom_call.1} parent=5 // pred_region
      %s343 = ssub.s32 %s17, 1
      %s344 = smul.u32 32, %s22
      %p345 = scmp.lt.s32.totalorder %s344, 127
      %s346 = scalar_select %p345, %s344, 127
      %s347 = smul.addr %s346, 8
      %s348 = scalar_lea.vmem %s0, %s347
      %p349 = pneg %p43
      %p350 = pneg %p40
      %p351 = pneg %p64
      %p352 = pneg %p61
      %p353 = pneg %p85
      %p354 = pneg %p82
      %p355 = pneg %p106
      %p356 = pneg %p103
      %p357 = pneg %p127
      %p358 = pneg %p124
      %p359 = pneg %p148
      %p360 = pneg %p145
      %p361 = pneg %p169
      %p362 = pneg %p166
      %p363 = pneg %p190
      %p364 = pneg %p187
      %p365 = pneg %p211
      %p366 = pneg %p208
      %p367 = pneg %p232
      %p368 = pneg %p229
      %p369 = pneg %p253
      %p370 = pneg %p250
      %p371 = pneg %p279
      %p372 = pneg %p276
      %s373 = smul.u32 32, %s22
      %p374 = scmp.lt.s32.totalorder %s373, 127
      %s375 = scalar_select %p374, %s373, 127
      %s376 = smul.addr %s375, 8
      %s377 = scalar_lea.vmem %s11, %s376
      %s378 = smul.u32 32, %s22
      %p379 = scmp.lt.s32.totalorder %s378, 127
      %s380 = scalar_select %p379, %s378, 127
      %s381 = smul.addr %s380, 8
      %s382 = scalar_lea.vmem %s0, %s381
      %s383 = smul.u32 32, %s22
      %s384 = smul.u32 32, %s22
      %p385 = scmp.lt.s32.totalorder %s384, 127
      %s386 = scalar_select %p385, %s384, 127
      %s387 = smul.addr %s386, 8
      %s388 = scalar_lea.vmem %s11, %s387
      %s389 = smul.u32 32, %s22
      %v391 = vld [vmem:[%s1] sm:$0x1]
      %v392 = vld [vmem:[%s1 + $0x1] sm:$0x1]
      %v393 = vld [vmem:[%s1 + $0x2] sm:$0x1]
      %v394 = vld [vmem:[%s2] sm:$0xf]
      %v395 = vld [vmem:[%s2 + $0x4] sm:$0xf]
      %v396 = vld [vmem:[%s2 + $0x8] sm:$0xf]
      %v397 = vld [vmem:[%s2 + $0xc] sm:$0xf]
      %v398 = vld [vmem:[%s2 + $0x10] sm:$0xf]
      %v399 = vld [vmem:[%s2 + $0x14] sm:$0xf]
      %v400 = vld [vmem:[%s2 + $0x18] sm:$0xf]
      %v401 = vld [vmem:[%s2 + $0x1c] sm:$0xf]
      %v402 = vld [vmem:[%s2 + $0x20] sm:$0xf]
      %v403 = vld [vmem:[%s2 + $0x24] sm:$0xf]
      %v404 = vld [vmem:[%s2 + $0x28] sm:$0xf]
      %v405 = vld [vmem:[%s2 + $0x2c] sm:$0xf]
      %v406 = vld [vmem:[%s2 + $0x30] sm:$0xf]
      %v407 = vld [vmem:[%s2 + $0x34] sm:$0xf]
      %v408 = vld [vmem:[%s2 + $0x38] sm:$0xf]
      %v409 = vld [vmem:[%s2 + $0x3c] sm:$0xf]
      %v410 = vld [vmem:[%s3] sm:$0xf]
      %v411 = vld [vmem:[%s3 + $0x4] sm:$0xf]
      %v412 = vld [vmem:[%s3 + $0x8] sm:$0xf]
      %v413 = vld [vmem:[%s3 + $0xc] sm:$0xf]
      %v414 = vld [vmem:[%s3 + $0x10] sm:$0xf]
      %v415 = vld [vmem:[%s3 + $0x14] sm:$0xf]
      %v416 = vld [vmem:[%s3 + $0x18] sm:$0xf]
      %v417 = vld [vmem:[%s3 + $0x1c] sm:$0xf]
      %v418 = vld [vmem:[%s3 + $0x20] sm:$0xf]
      %v419 = vld [vmem:[%s3 + $0x24] sm:$0xf]
      %v420 = vld [vmem:[%s3 + $0x28] sm:$0xf]
      %v421 = vld [vmem:[%s3 + $0x2c] sm:$0xf]
      %v422 = vld [vmem:[%s3 + $0x30] sm:$0xf]
      %v423 = vld [vmem:[%s3 + $0x34] sm:$0xf]
      %v424 = vld [vmem:[%s3 + $0x38] sm:$0xf]
      %v425 = vld [vmem:[%s3 + $0x3c] sm:$0xf]
      %v426 = vld [vmem:[%s4] sm:$0x1]
      %v427 = vld [vmem:[%s5] sm:$0xf]
      %v428 = vld [vmem:[%s5 + $0x4] sm:$0xf]
      %v429 = vld [vmem:[%s5 + $0x8] sm:$0xf]
      %v430 = vld [vmem:[%s5 + $0xc] sm:$0xf]
      %v431 = vld [vmem:[%s5 + $0x10] sm:$0xf]
      %v432 = vld [vmem:[%s5 + $0x14] sm:$0xf]
      %v433 = vld [vmem:[%s5 + $0x18] sm:$0xf]
      %v434 = vld [vmem:[%s5 + $0x1c] sm:$0xf]
      %v435 = vld [vmem:[%s5 + $0x20] sm:$0xf]
      %v436 = vld [vmem:[%s5 + $0x24] sm:$0xf]
      %v437 = vld [vmem:[%s5 + $0x28] sm:$0xf]
      %v438 = vld [vmem:[%s5 + $0x2c] sm:$0xf]
      %v439 = vld [vmem:[%s5 + $0x30] sm:$0xf]
      %v440 = vld [vmem:[%s5 + $0x34] sm:$0xf]
      %v441 = vld [vmem:[%s5 + $0x38] sm:$0xf]
      %v442 = vld [vmem:[%s5 + $0x3c] sm:$0xf]
      %v443 = vld [vmem:[%s6] sm:$0x1]
      %v444 = vld [vmem:[%s7] sm:$0xf]
      %v445 = vld [vmem:[%s7 + $0x4] sm:$0xf]
      %v446 = vld [vmem:[%s7 + $0x8] sm:$0xf]
      %v447 = vld [vmem:[%s7 + $0xc] sm:$0xf]
      %v448 = vld [vmem:[%s7 + $0x10] sm:$0xf]
      %v449 = vld [vmem:[%s7 + $0x14] sm:$0xf]
      %v450 = vld [vmem:[%s7 + $0x18] sm:$0xf]
      %v451 = vld [vmem:[%s7 + $0x1c] sm:$0xf]
      %v452 = vld [vmem:[%s7 + $0x20] sm:$0xf]
      %v453 = vld [vmem:[%s7 + $0x24] sm:$0xf]
      %v454 = vld [vmem:[%s7 + $0x28] sm:$0xf]
      %v455 = vld [vmem:[%s7 + $0x2c] sm:$0xf]
      %v456 = vld [vmem:[%s7 + $0x30] sm:$0xf]
      %v457 = vld [vmem:[%s7 + $0x34] sm:$0xf]
      %v458 = vld [vmem:[%s7 + $0x38] sm:$0xf]
      %v459 = vld [vmem:[%s7 + $0x3c] sm:$0xf]
      %v460 = vld [vmem:[%s8] sm:$0x1]
      %v461 = vld [vmem:[%s9] sm:$0xf]
      %v462 = vld [vmem:[%s9 + $0x4] sm:$0xf]
      %v463 = vld [vmem:[%s9 + $0x8] sm:$0xf]
      %v464 = vld [vmem:[%s9 + $0xc] sm:$0xf]
      %v465 = vld [vmem:[%s9 + $0x10] sm:$0xf]
      %v466 = vld [vmem:[%s9 + $0x14] sm:$0xf]
      %v467 = vld [vmem:[%s9 + $0x18] sm:$0xf]
      %v468 = vld [vmem:[%s9 + $0x1c] sm:$0xf]
      %v469 = vld [vmem:[%s9 + $0x20] sm:$0xf]
      %v470 = vld [vmem:[%s9 + $0x24] sm:$0xf]
      %v471 = vld [vmem:[%s9 + $0x28] sm:$0xf]
      %v472 = vld [vmem:[%s9 + $0x2c] sm:$0xf]
      %v473 = vld [vmem:[%s9 + $0x30] sm:$0xf]
      %v474 = vld [vmem:[%s9 + $0x34] sm:$0xf]
      %v475 = vld [vmem:[%s9 + $0x38] sm:$0xf]
      %v476 = vld [vmem:[%s9 + $0x3c] sm:$0xf]
      %v477 = vld [vmem:[%s10] sm:$0x1]
      %v478 = vld [vmem:[%s382] sm:$0xff]
      %v479 = vld [vmem:[%s382 + $0x8] sm:$0xff]
      %v480 = vld [vmem:[%s382 + $0x10] sm:$0xff]
      %v481 = vld [vmem:[%s382 + $0x18] sm:$0xff]
      %v482 = vld [vmem:[%s382 + $0x20] sm:$0xff]
      %v483 = vld [vmem:[%s382 + $0x28] sm:$0xff]
      %v484 = vld [vmem:[%s382 + $0x30] sm:$0xff]
      %v485 = vld [vmem:[%s382 + $0x38] sm:$0xff]
      %v486 = vld [vmem:[%s382 + $0x40] sm:$0xff]
      %v487 = vld [vmem:[%s382 + $0x48] sm:$0xff]
      %v488 = vld [vmem:[%s382 + $0x50] sm:$0xff]
      %v489 = vld [vmem:[%s382 + $0x58] sm:$0xff]
      %v490 = vld [vmem:[%s382 + $0x60] sm:$0xff]
      %v491 = vld [vmem:[%s382 + $0x68] sm:$0xff]
      %v492 = vld [vmem:[%s382 + $0x70] sm:$0xff]
      %v493 = vld [vmem:[%s382 + $0x78] sm:$0xff]
      %495 = vset.pattern.permute.xlu0 0
      %496 = vperm.xlu0 %495, %v478
      %v497 = vpop.permute.xlu0 %496
      %500 = vset.pattern.permute.xlu0 0
      %501 = vperm.xlu0 %500, %v479
      %v502 = vpop.permute.xlu0 %501
      %505 = vset.pattern.permute.xlu0 0
      %506 = vperm.xlu0 %505, %v480
      %v507 = vpop.permute.xlu0 %506
      %510 = vset.pattern.permute.xlu0 0
      %511 = vperm.xlu0 %510, %v481
      %v512 = vpop.permute.xlu0 %511
      %515 = vset.pattern.permute.xlu0 0
      %516 = vperm.xlu0 %515, %v482
      %v517 = vpop.permute.xlu0 %516
      %520 = vset.pattern.permute.xlu0 0
      %521 = vperm.xlu0 %520, %v483
      %v522 = vpop.permute.xlu0 %521
      %525 = vset.pattern.permute.xlu0 0
      %526 = vperm.xlu0 %525, %v484
      %v527 = vpop.permute.xlu0 %526
      %530 = vset.pattern.permute.xlu0 0
      %531 = vperm.xlu0 %530, %v485
      %v532 = vpop.permute.xlu0 %531
      %535 = vset.pattern.permute.xlu0 0
      %536 = vperm.xlu0 %535, %v486
      %v537 = vpop.permute.xlu0 %536
      %540 = vset.pattern.permute.xlu0 0
      %541 = vperm.xlu0 %540, %v487
      %v542 = vpop.permute.xlu0 %541
      %545 = vset.pattern.permute.xlu0 0
      %546 = vperm.xlu0 %545, %v488
      %v547 = vpop.permute.xlu0 %546
      %550 = vset.pattern.permute.xlu0 0
      %551 = vperm.xlu0 %550, %v489
      %v552 = vpop.permute.xlu0 %551
      %555 = vset.pattern.permute.xlu0 0
      %556 = vperm.xlu0 %555, %v490
      %v557 = vpop.permute.xlu0 %556
      %560 = vset.pattern.permute.xlu0 0
      %561 = vperm.xlu0 %560, %v491
      %v562 = vpop.permute.xlu0 %561
      %565 = vset.pattern.permute.xlu0 0
      %566 = vperm.xlu0 %565, %v492
      %v567 = vpop.permute.xlu0 %566
      %570 = vset.pattern.permute.xlu0 0
      %571 = vperm.xlu0 %570, %v493
      %v572 = vpop.permute.xlu0 %571
      %v574 = vlaneseq
      %v575 = vshrl.u32 %v574, 7
      %v576 = vsub.s32 0, %v575
      %v577 = vrot.slane %v391, %v576
      %v578 = vmul.f32 %v497, %v577
      %v579 = vmul.f32 %v502, %v577
      %v580 = vmul.f32 %v507, %v577
      %v581 = vmul.f32 %v512, %v577
      %v582 = vmul.f32 %v517, %v577
      %v583 = vmul.f32 %v522, %v577
      %v584 = vmul.f32 %v527, %v577
      %v585 = vmul.f32 %v532, %v577
      %v586 = vmul.f32 %v537, %v577
      %v587 = vmul.f32 %v542, %v577
      %v588 = vmul.f32 %v547, %v577
      %v589 = vmul.f32 %v552, %v577
      %v590 = vmul.f32 %v557, %v577
      %v591 = vmul.f32 %v562, %v577
      %v592 = vmul.f32 %v567, %v577
      %v593 = vmul.f32 %v572, %v577
      %594 = vset.pattern.permute.xlu0 1
      %595 = vperm.xlu0 %594, %v478
      %v596 = vpop.permute.xlu0 %595
      %598 = vset.pattern.permute.xlu0 1
      %599 = vperm.xlu0 %598, %v479
      %v600 = vpop.permute.xlu0 %599
      %602 = vset.pattern.permute.xlu0 1
      %603 = vperm.xlu0 %602, %v480
      %v604 = vpop.permute.xlu0 %603
      %606 = vset.pattern.permute.xlu0 1
      %607 = vperm.xlu0 %606, %v481
      %v608 = vpop.permute.xlu0 %607
      %610 = vset.pattern.permute.xlu0 1
      %611 = vperm.xlu0 %610, %v482
      %v612 = vpop.permute.xlu0 %611
      %614 = vset.pattern.permute.xlu0 1
      %615 = vperm.xlu0 %614, %v483
      %v616 = vpop.permute.xlu0 %615
      %618 = vset.pattern.permute.xlu0 1
      %619 = vperm.xlu0 %618, %v484
      %v620 = vpop.permute.xlu0 %619
      %622 = vset.pattern.permute.xlu0 1
      %623 = vperm.xlu0 %622, %v485
      %v624 = vpop.permute.xlu0 %623
      %626 = vset.pattern.permute.xlu0 1
      %627 = vperm.xlu0 %626, %v486
      %v628 = vpop.permute.xlu0 %627
      %630 = vset.pattern.permute.xlu0 1
      %631 = vperm.xlu0 %630, %v487
      %v632 = vpop.permute.xlu0 %631
      %634 = vset.pattern.permute.xlu0 1
      %635 = vperm.xlu0 %634, %v488
      %v636 = vpop.permute.xlu0 %635
      %638 = vset.pattern.permute.xlu0 1
      %639 = vperm.xlu0 %638, %v489
      %v640 = vpop.permute.xlu0 %639
      %642 = vset.pattern.permute.xlu0 1
      %643 = vperm.xlu0 %642, %v490
      %v644 = vpop.permute.xlu0 %643
      %646 = vset.pattern.permute.xlu0 1
      %647 = vperm.xlu0 %646, %v491
      %v648 = vpop.permute.xlu0 %647
      %650 = vset.pattern.permute.xlu0 1
      %651 = vperm.xlu0 %650, %v492
      %v652 = vpop.permute.xlu0 %651
      %654 = vset.pattern.permute.xlu0 1
      %655 = vperm.xlu0 %654, %v493
      %v656 = vpop.permute.xlu0 %655
      %v658 = vlaneseq
      %v659 = vshrl.u32 %v658, 7
      %v660 = vsub.s32 0, %v659
      %v661 = vrot.slane %v392, %v660
      %v662 = vmul.f32 %v596, %v661
      %v663 = vmul.f32 %v600, %v661
      %v664 = vmul.f32 %v604, %v661
      %v665 = vmul.f32 %v608, %v661
      %v666 = vmul.f32 %v612, %v661
      %v667 = vmul.f32 %v616, %v661
      %v668 = vmul.f32 %v620, %v661
      %v669 = vmul.f32 %v624, %v661
      %v670 = vmul.f32 %v628, %v661
      %v671 = vmul.f32 %v632, %v661
      %v672 = vmul.f32 %v636, %v661
      %v673 = vmul.f32 %v640, %v661
      %v674 = vmul.f32 %v644, %v661
      %v675 = vmul.f32 %v648, %v661
      %v676 = vmul.f32 %v652, %v661
      %v677 = vmul.f32 %v656, %v661
      %v678 = vadd.f32 %v578, %v662
      %v679 = vadd.f32 %v579, %v663
      %v680 = vadd.f32 %v580, %v664
      %v681 = vadd.f32 %v581, %v665
      %v682 = vadd.f32 %v582, %v666
      %v683 = vadd.f32 %v583, %v667
      %v684 = vadd.f32 %v584, %v668
      %v685 = vadd.f32 %v585, %v669
      %v686 = vadd.f32 %v586, %v670
      %v687 = vadd.f32 %v587, %v671
      %v688 = vadd.f32 %v588, %v672
      %v689 = vadd.f32 %v589, %v673
      %v690 = vadd.f32 %v590, %v674
      %v691 = vadd.f32 %v591, %v675
      %v692 = vadd.f32 %v592, %v676
      %v693 = vadd.f32 %v593, %v677
      %694 = vset.pattern.permute.xlu0 2
      %695 = vperm.xlu0 %694, %v478
      %v696 = vpop.permute.xlu0 %695
      %698 = vset.pattern.permute.xlu0 2
      %699 = vperm.xlu0 %698, %v479
      %v700 = vpop.permute.xlu0 %699
      %702 = vset.pattern.permute.xlu0 2
      %703 = vperm.xlu0 %702, %v480
      %v704 = vpop.permute.xlu0 %703
      %706 = vset.pattern.permute.xlu0 2
      %707 = vperm.xlu0 %706, %v481
      %v708 = vpop.permute.xlu0 %707
      %710 = vset.pattern.permute.xlu0 2
      %711 = vperm.xlu0 %710, %v482
      %v712 = vpop.permute.xlu0 %711
      %714 = vset.pattern.permute.xlu0 2
      %715 = vperm.xlu0 %714, %v483
      %v716 = vpop.permute.xlu0 %715
      %718 = vset.pattern.permute.xlu0 2
      %719 = vperm.xlu0 %718, %v484
      %v720 = vpop.permute.xlu0 %719
      %722 = vset.pattern.permute.xlu0 2
      %723 = vperm.xlu0 %722, %v485
      %v724 = vpop.permute.xlu0 %723
      %726 = vset.pattern.permute.xlu0 2
      %727 = vperm.xlu0 %726, %v486
      %v728 = vpop.permute.xlu0 %727
      %730 = vset.pattern.permute.xlu0 2
      %731 = vperm.xlu0 %730, %v487
      %v732 = vpop.permute.xlu0 %731
      %734 = vset.pattern.permute.xlu0 2
      %735 = vperm.xlu0 %734, %v488
      %v736 = vpop.permute.xlu0 %735
      %738 = vset.pattern.permute.xlu0 2
      %739 = vperm.xlu0 %738, %v489
      %v740 = vpop.permute.xlu0 %739
      %742 = vset.pattern.permute.xlu0 2
      %743 = vperm.xlu0 %742, %v490
      %v744 = vpop.permute.xlu0 %743
      %746 = vset.pattern.permute.xlu0 2
      %747 = vperm.xlu0 %746, %v491
      %v748 = vpop.permute.xlu0 %747
      %750 = vset.pattern.permute.xlu0 2
      %751 = vperm.xlu0 %750, %v492
      %v752 = vpop.permute.xlu0 %751
      %754 = vset.pattern.permute.xlu0 2
      %755 = vperm.xlu0 %754, %v493
      %v756 = vpop.permute.xlu0 %755
      %v758 = vlaneseq
      %v759 = vshrl.u32 %v758, 7
      %v760 = vsub.s32 0, %v759
      %v761 = vrot.slane %v393, %v760
      %v762 = vmul.f32 %v696, %v761
      %v763 = vmul.f32 %v700, %v761
      %v764 = vmul.f32 %v704, %v761
      %v765 = vmul.f32 %v708, %v761
      %v766 = vmul.f32 %v712, %v761
      %v767 = vmul.f32 %v716, %v761
      %v768 = vmul.f32 %v720, %v761
      %v769 = vmul.f32 %v724, %v761
      %v770 = vmul.f32 %v728, %v761
      %v771 = vmul.f32 %v732, %v761
      %v772 = vmul.f32 %v736, %v761
      %v773 = vmul.f32 %v740, %v761
      %v774 = vmul.f32 %v744, %v761
      %v775 = vmul.f32 %v748, %v761
      %v776 = vmul.f32 %v752, %v761
      %v777 = vmul.f32 %v756, %v761
      %v778 = vadd.f32 %v678, %v762
      %v779 = vadd.f32 %v679, %v763
      %v780 = vadd.f32 %v680, %v764
      %v781 = vadd.f32 %v681, %v765
      %v782 = vadd.f32 %v682, %v766
      %v783 = vadd.f32 %v683, %v767
      %v784 = vadd.f32 %v684, %v768
      %v785 = vadd.f32 %v685, %v769
      %v786 = vadd.f32 %v686, %v770
      %v787 = vadd.f32 %v687, %v771
      %v788 = vadd.f32 %v688, %v772
      %v789 = vadd.f32 %v689, %v773
      %v790 = vadd.f32 %v690, %v774
      %v791 = vadd.f32 %v691, %v775
      %v792 = vadd.f32 %v692, %v776
      %v793 = vadd.f32 %v693, %v777
      %v794 = vand.u32 2147483647, %v778
      %vm795 = vcmp.le.f32.partialorder %v794, 0.7853982
      %vm796 = vcmp.lt.s32.totalorder %v778, 0
      %v797 = vand.u32 %v778, 2139095040
      %v798 = vshrl.u32 %v797, 23
      %v799 = vsub.s32 %v798, 127
      %v800 = vand.u32 2147483647, %v778
      %v801 = vand.u32 %v800, 8388607
      %v802 = vor.u32 %v801, 8388608
      %v803 = vsub.s32 0, %v802
      %v804 = vadd.s32 %v799, 1
      %vm805 = vcmp.gt.s32.totalorder %v804, 0
      %v806 = vsel %vm805, %v804, 0
      %v807 = vshrl.u32 %v806, 5
      %v808 = vand.u32 %v806, 31
      %v809 = vsub.s32 32, %v808
      %v810 = vshrl.u32 683565275, %v809
      %v811 = vshll.u32 683565275, %v808
      %v812 = vshrl.u32 2475754826, %v809
      %v813 = vor.u32 %v811, %v812
      %v814 = vshll.u32 2475754826, %v808
      %v815 = vshrl.u32 2131351028, %v809
      %v816 = vor.u32 %v814, %v815
      %v817 = vshll.u32 2131351028, %v808
      %v818 = vshrl.u32 2102212464, %v809
      %v819 = vor.u32 %v817, %v818
      %v820 = vshll.u32 2102212464, %v808
      %v821 = vshrl.u32 920167782, %v809
      %v822 = vor.u32 %v820, %v821
      %v823 = vshll.u32 920167782, %v808
      %v824 = vshrl.u32 1326507024, %v809
      %v825 = vor.u32 %v823, %v824
      %vm826 = vcmp.lt.s32.totalorder %v807, 1
      %vm827 = vcmp.lt.s32.totalorder %v807, 2
      %vm828 = vcmp.lt.s32.totalorder %v807, 3
      %vm829 = vcmp.lt.s32.totalorder %v807, 4
      %v830 = vsel %vm826, %v810, %v813
      %v831 = vsel %vm829, %v819, 2102212464
      %v832 = vsel %vm828, %v816, %v831
      %v833 = vsel %vm827, %v830, %v832
      %v834 = vsel %vm826, %v813, %v816
      %v835 = vsel %vm829, %v822, 920167782
      %v836 = vsel %vm828, %v819, %v835
      %v837 = vsel %vm827, %v834, %v836
      %v838 = vsel %vm826, %v816, %v819
      %v839 = vsel %vm829, %v825, 1326507024
      %v840 = vsel %vm828, %v822, %v839
      %v841 = vsel %vm827, %v838, %v840
      %v842 = vshll.u32 %v802, 8
      %v843 = vmul.u32.u64.compose %v842, %v841
      %v844 = vextract.low.u32 %v843
      %v845 = vextract.high.u32 %v843
      %v846 = vmul.u32.u64.compose %v842, %v837
      %v847 = vextract.low.u32 %v846
      %v848 = vextract.high.u32 %v846
      %v849 = vmul.u32 %v842, %v833
      %v850 = vadd.s32 %v845, %v847
      %vm851 = vc.u32 %v845, %v847
      %v852 = vadd.s32 %v848, 1
      %v853 = vsel %vm851, %v852, %v848
      %v854 = vadd.s32 %v849, %v853
      %v855 = vadd.s32 %v854, 536870912
      %v856 = vshrl.u32 %v855, 30
      %v857 = vshll.u32 %v856, 30
      %v858 = vsub.s32 %v854, %v857
      %vm859 = vcmp.lt.s32.totalorder %v858, 0
      %v860 = vsub.s32 0, %v858
      %v861 = vsel %vm859, %v860, %v858
      %v862 = vclz %v861
      %v863 = vsub.s32 %v862, 2
      %vm864 = vcmp.gt.s32.totalorder 0, %v863
      %v865 = vsel %vm864, 0, %v863
      %v866 = vsub.s32 32, %v865
      %v867 = vshll.u32 %v858, %v865
      %v868 = vshrl.u32 %v850, %v866
      %v869 = vor.u32 %v867, %v868
      %v870 = vsub.s32 4294967266, %v865
      %v871 = vadd.s32 %v870, 127
      %v872 = vshll.u32 %v871, 23
      %v873 = vor.u32 4788187, %v872
      %v874 = vand.u32 2147483647, %v873
      %v876 = vcvt.s32.f32 %v869
      %v877 = vmul.f32 %v876, %v874
      %v878 = vxor.u32 %v877, 2147483648
      %v879 = vsel %vm796, %v878, %v877
      %v880 = vsub.s32 4, %v856
      %v881 = vsel %vm796, %v880, %v856
      %v882 = vsel %vm795, %v778, %v879
      %v883 = vsel %vm795, 0, %v881
      %v884 = vcosq.f32.pop %v882
      %v885 = vsinq.f32.pop %v882
      %vm886 = vweird.f32 %v778
      %v887 = vand.u32 %v883, 3
      %vm888 = vcmp.lt.s32.totalorder %v887, 2
      %vm889 = vcmp.eq.s32.totalorder %v887, 0
      %v890 = vxor.u32 %v885, 2147483648
      %v891 = vsel %vm889, %v884, %v890
      %vm892 = vcmp.eq.s32.totalorder %v887, 2
      %v893 = vxor.u32 %v884, 2147483648
      %v894 = vsel %vm892, %v893, %v885
      %v895 = vsel %vm888, %v891, %v894
      %v896 = vsel %vm886, nan, %v895
      %v897 = vand.u32 2147483647, %v779
      %vm898 = vcmp.le.f32.partialorder %v897, 0.7853982
      %vm899 = vcmp.lt.s32.totalorder %v779, 0
      %v900 = vand.u32 %v779, 2139095040
      %v901 = vshrl.u32 %v900, 23
      %v902 = vsub.s32 %v901, 127
      %v903 = vand.u32 2147483647, %v779
      %v904 = vand.u32 %v903, 8388607
      %v905 = vor.u32 %v904, 8388608
      %v906 = vsub.s32 0, %v905
      %v907 = vadd.s32 %v902, 1
      %vm908 = vcmp.gt.s32.totalorder %v907, 0
      %v909 = vsel %vm908, %v907, 0
      %v910 = vshrl.u32 %v909, 5
      %v911 = vand.u32 %v909, 31
      %v912 = vsub.s32 32, %v911
      %v913 = vshrl.u32 683565275, %v912
      %v914 = vshll.u32 683565275, %v911
      %v915 = vshrl.u32 2475754826, %v912
      %v916 = vor.u32 %v914, %v915
      %v917 = vshll.u32 2475754826, %v911
      %v918 = vshrl.u32 2131351028, %v912
      %v919 = vor.u32 %v917, %v918
      %v920 = vshll.u32 2131351028, %v911
      %v921 = vshrl.u32 2102212464, %v912
      %v922 = vor.u32 %v920, %v921
      %v923 = vshll.u32 2102212464, %v911
      %v924 = vshrl.u32 920167782, %v912
      %v925 = vor.u32 %v923, %v924
      %v926 = vshll.u32 920167782, %v911
      %v927 = vshrl.u32 1326507024, %v912
      %v928 = vor.u32 %v926, %v927
      %vm929 = vcmp.lt.s32.totalorder %v910, 1
      %vm930 = vcmp.lt.s32.totalorder %v910, 2
      %vm931 = vcmp.lt.s32.totalorder %v910, 3
      %vm932 = vcmp.lt.s32.totalorder %v910, 4
      %v933 = vsel %vm929, %v913, %v916
      %v934 = vsel %vm932, %v922, 2102212464
      %v935 = vsel %vm931, %v919, %v934
      %v936 = vsel %vm930, %v933, %v935
      %v937 = vsel %vm929, %v916, %v919
      %v938 = vsel %vm932, %v925, 920167782
      %v939 = vsel %vm931, %v922, %v938
      %v940 = vsel %vm930, %v937, %v939
      %v941 = vsel %vm929, %v919, %v922
      %v942 = vsel %vm932, %v928, 1326507024
      %v943 = vsel %vm931, %v925, %v942
      %v944 = vsel %vm930, %v941, %v943
      %v945 = vshll.u32 %v905, 8
      %v946 = vmul.u32.u64.compose %v945, %v944
      %v947 = vextract.low.u32 %v946
      %v948 = vextract.high.u32 %v946
      %v949 = vmul.u32.u64.compose %v945, %v940
      %v950 = vextract.low.u32 %v949
      %v951 = vextract.high.u32 %v949
      %v952 = vmul.u32 %v945, %v936
      %v953 = vadd.s32 %v948, %v950
      %vm954 = vc.u32 %v948, %v950
      %v955 = vadd.s32 %v951, 1
      %v956 = vsel %vm954, %v955, %v951
      %v957 = vadd.s32 %v952, %v956
      %v958 = vadd.s32 %v957, 536870912
      %v959 = vshrl.u32 %v958, 30
      %v960 = vshll.u32 %v959, 30
      %v961 = vsub.s32 %v957, %v960
      %vm962 = vcmp.lt.s32.totalorder %v961, 0
      %v963 = vsub.s32 0, %v961
      %v964 = vsel %vm962, %v963, %v961
      %v965 = vclz %v964
      %v966 = vsub.s32 %v965, 2
      %vm967 = vcmp.gt.s32.totalorder 0, %v966
      %v968 = vsel %vm967, 0, %v966
      %v969 = vsub.s32 32, %v968
      %v970 = vshll.u32 %v961, %v968
      %v971 = vshrl.u32 %v953, %v969
      %v972 = vor.u32 %v970, %v971
      %v973 = vsub.s32 4294967266, %v968
      %v974 = vadd.s32 %v973, 127
      %v975 = vshll.u32 %v974, 23
      %v976 = vor.u32 4788187, %v975
      %v977 = vand.u32 2147483647, %v976
      %v979 = vcvt.s32.f32 %v972
      %v980 = vmul.f32 %v979, %v977
      %v981 = vxor.u32 %v980, 2147483648
      %v982 = vsel %vm899, %v981, %v980
      %v983 = vsub.s32 4, %v959
      %v984 = vsel %vm899, %v983, %v959
      %v985 = vsel %vm898, %v779, %v982
      %v986 = vsel %vm898, 0, %v984
      %v987 = vcosq.f32.pop %v985
      %v988 = vsinq.f32.pop %v985
      %vm989 = vweird.f32 %v779
      %v990 = vand.u32 %v986, 3
      %vm991 = vcmp.lt.s32.totalorder %v990, 2
      %vm992 = vcmp.eq.s32.totalorder %v990, 0
      %v993 = vxor.u32 %v988, 2147483648
      %v994 = vsel %vm992, %v987, %v993
      %vm995 = vcmp.eq.s32.totalorder %v990, 2
      %v996 = vxor.u32 %v987, 2147483648
      %v997 = vsel %vm995, %v996, %v988
      %v998 = vsel %vm991, %v994, %v997
      %v999 = vsel %vm989, nan, %v998
      %v1000 = vand.u32 2147483647, %v780
      %vm1001 = vcmp.le.f32.partialorder %v1000, 0.7853982
      %vm1002 = vcmp.lt.s32.totalorder %v780, 0
      %v1003 = vand.u32 %v780, 2139095040
      %v1004 = vshrl.u32 %v1003, 23
      %v1005 = vsub.s32 %v1004, 127
      %v1006 = vand.u32 2147483647, %v780
      %v1007 = vand.u32 %v1006, 8388607
      %v1008 = vor.u32 %v1007, 8388608
      %v1009 = vsub.s32 0, %v1008
      %v1010 = vadd.s32 %v1005, 1
      %vm1011 = vcmp.gt.s32.totalorder %v1010, 0
      %v1012 = vsel %vm1011, %v1010, 0
      %v1013 = vshrl.u32 %v1012, 5
      %v1014 = vand.u32 %v1012, 31
      %v1015 = vsub.s32 32, %v1014
      %v1016 = vshrl.u32 683565275, %v1015
      %v1017 = vshll.u32 683565275, %v1014
      %v1018 = vshrl.u32 2475754826, %v1015
      %v1019 = vor.u32 %v1017, %v1018
      %v1020 = vshll.u32 2475754826, %v1014
      %v1021 = vshrl.u32 2131351028, %v1015
      %v1022 = vor.u32 %v1020, %v1021
      %v1023 = vshll.u32 2131351028, %v1014
      %v1024 = vshrl.u32 2102212464, %v1015
      %v1025 = vor.u32 %v1023, %v1024
      %v1026 = vshll.u32 2102212464, %v1014
      %v1027 = vshrl.u32 920167782, %v1015
      %v1028 = vor.u32 %v1026, %v1027
      %v1029 = vshll.u32 920167782, %v1014
      %v1030 = vshrl.u32 1326507024, %v1015
      %v1031 = vor.u32 %v1029, %v1030
      %vm1032 = vcmp.lt.s32.totalorder %v1013, 1
      %vm1033 = vcmp.lt.s32.totalorder %v1013, 2
      %vm1034 = vcmp.lt.s32.totalorder %v1013, 3
      %vm1035 = vcmp.lt.s32.totalorder %v1013, 4
      %v1036 = vsel %vm1032, %v1016, %v1019
      %v1037 = vsel %vm1035, %v1025, 2102212464
      %v1038 = vsel %vm1034, %v1022, %v1037
      %v1039 = vsel %vm1033, %v1036, %v1038
      %v1040 = vsel %vm1032, %v1019, %v1022
      %v1041 = vsel %vm1035, %v1028, 920167782
      %v1042 = vsel %vm1034, %v1025, %v1041
      %v1043 = vsel %vm1033, %v1040, %v1042
      %v1044 = vsel %vm1032, %v1022, %v1025
      %v1045 = vsel %vm1035, %v1031, 1326507024
      %v1046 = vsel %vm1034, %v1028, %v1045
      %v1047 = vsel %vm1033, %v1044, %v1046
      %v1048 = vshll.u32 %v1008, 8
      %v1049 = vmul.u32.u64.compose %v1048, %v1047
      %v1050 = vextract.low.u32 %v1049
      %v1051 = vextract.high.u32 %v1049
      %v1052 = vmul.u32.u64.compose %v1048, %v1043
      %v1053 = vextract.low.u32 %v1052
      %v1054 = vextract.high.u32 %v1052
      %v1055 = vmul.u32 %v1048, %v1039
      %v1056 = vadd.s32 %v1051, %v1053
      %vm1057 = vc.u32 %v1051, %v1053
      %v1058 = vadd.s32 %v1054, 1
      %v1059 = vsel %vm1057, %v1058, %v1054
      %v1060 = vadd.s32 %v1055, %v1059
      %v1061 = vadd.s32 %v1060, 536870912
      %v1062 = vshrl.u32 %v1061, 30
      %v1063 = vshll.u32 %v1062, 30
      %v1064 = vsub.s32 %v1060, %v1063
      %vm1065 = vcmp.lt.s32.totalorder %v1064, 0
      %v1066 = vsub.s32 0, %v1064
      %v1067 = vsel %vm1065, %v1066, %v1064
      %v1068 = vclz %v1067
      %v1069 = vsub.s32 %v1068, 2
      %vm1070 = vcmp.gt.s32.totalorder 0, %v1069
      %v1071 = vsel %vm1070, 0, %v1069
      %v1072 = vsub.s32 32, %v1071
      %v1073 = vshll.u32 %v1064, %v1071
      %v1074 = vshrl.u32 %v1056, %v1072
      %v1075 = vor.u32 %v1073, %v1074
      %v1076 = vsub.s32 4294967266, %v1071
      %v1077 = vadd.s32 %v1076, 127
      %v1078 = vshll.u32 %v1077, 23
      %v1079 = vor.u32 4788187, %v1078
      %v1080 = vand.u32 2147483647, %v1079
      %v1082 = vcvt.s32.f32 %v1075
      %v1083 = vmul.f32 %v1082, %v1080
      %v1084 = vxor.u32 %v1083, 2147483648
      %v1085 = vsel %vm1002, %v1084, %v1083
      %v1086 = vsub.s32 4, %v1062
      %v1087 = vsel %vm1002, %v1086, %v1062
      %v1088 = vsel %vm1001, %v780, %v1085
      %v1089 = vsel %vm1001, 0, %v1087
      %v1090 = vcosq.f32.pop %v1088
      %v1091 = vsinq.f32.pop %v1088
      %vm1092 = vweird.f32 %v780
      %v1093 = vand.u32 %v1089, 3
      %vm1094 = vcmp.lt.s32.totalorder %v1093, 2
      %vm1095 = vcmp.eq.s32.totalorder %v1093, 0
      %v1096 = vxor.u32 %v1091, 2147483648
      %v1097 = vsel %vm1095, %v1090, %v1096
      %vm1098 = vcmp.eq.s32.totalorder %v1093, 2
      %v1099 = vxor.u32 %v1090, 2147483648
      %v1100 = vsel %vm1098, %v1099, %v1091
      %v1101 = vsel %vm1094, %v1097, %v1100
      %v1102 = vsel %vm1092, nan, %v1101
      %v1103 = vand.u32 2147483647, %v781
      %vm1104 = vcmp.le.f32.partialorder %v1103, 0.7853982
      %vm1105 = vcmp.lt.s32.totalorder %v781, 0
      %v1106 = vand.u32 %v781, 2139095040
      %v1107 = vshrl.u32 %v1106, 23
      %v1108 = vsub.s32 %v1107, 127
      %v1109 = vand.u32 2147483647, %v781
      %v1110 = vand.u32 %v1109, 8388607
      %v1111 = vor.u32 %v1110, 8388608
      %v1112 = vsub.s32 0, %v1111
      %v1113 = vadd.s32 %v1108, 1
      %vm1114 = vcmp.gt.s32.totalorder %v1113, 0
      %v1115 = vsel %vm1114, %v1113, 0
      %v1116 = vshrl.u32 %v1115, 5
      %v1117 = vand.u32 %v1115, 31
      %v1118 = vsub.s32 32, %v1117
      %v1119 = vshrl.u32 683565275, %v1118
      %v1120 = vshll.u32 683565275, %v1117
      %v1121 = vshrl.u32 2475754826, %v1118
      %v1122 = vor.u32 %v1120, %v1121
      %v1123 = vshll.u32 2475754826, %v1117
      %v1124 = vshrl.u32 2131351028, %v1118
      %v1125 = vor.u32 %v1123, %v1124
      %v1126 = vshll.u32 2131351028, %v1117
      %v1127 = vshrl.u32 2102212464, %v1118
      %v1128 = vor.u32 %v1126, %v1127
      %v1129 = vshll.u32 2102212464, %v1117
      %v1130 = vshrl.u32 920167782, %v1118
      %v1131 = vor.u32 %v1129, %v1130
      %v1132 = vshll.u32 920167782, %v1117
      %v1133 = vshrl.u32 1326507024, %v1118
      %v1134 = vor.u32 %v1132, %v1133
      %vm1135 = vcmp.lt.s32.totalorder %v1116, 1
      %vm1136 = vcmp.lt.s32.totalorder %v1116, 2
      %vm1137 = vcmp.lt.s32.totalorder %v1116, 3
      %vm1138 = vcmp.lt.s32.totalorder %v1116, 4
      %v1139 = vsel %vm1135, %v1119, %v1122
      %v1140 = vsel %vm1138, %v1128, 2102212464
      %v1141 = vsel %vm1137, %v1125, %v1140
      %v1142 = vsel %vm1136, %v1139, %v1141
      %v1143 = vsel %vm1135, %v1122, %v1125
      %v1144 = vsel %vm1138, %v1131, 920167782
      %v1145 = vsel %vm1137, %v1128, %v1144
      %v1146 = vsel %vm1136, %v1143, %v1145
      %v1147 = vsel %vm1135, %v1125, %v1128
      %v1148 = vsel %vm1138, %v1134, 1326507024
      %v1149 = vsel %vm1137, %v1131, %v1148
      %v1150 = vsel %vm1136, %v1147, %v1149
      %v1151 = vshll.u32 %v1111, 8
      %v1152 = vmul.u32.u64.compose %v1151, %v1150
      %v1153 = vextract.low.u32 %v1152
      %v1154 = vextract.high.u32 %v1152
      %v1155 = vmul.u32.u64.compose %v1151, %v1146
      %v1156 = vextract.low.u32 %v1155
      %v1157 = vextract.high.u32 %v1155
      %v1158 = vmul.u32 %v1151, %v1142
      %v1159 = vadd.s32 %v1154, %v1156
      %vm1160 = vc.u32 %v1154, %v1156
      %v1161 = vadd.s32 %v1157, 1
      %v1162 = vsel %vm1160, %v1161, %v1157
      %v1163 = vadd.s32 %v1158, %v1162
      %v1164 = vadd.s32 %v1163, 536870912
      %v1165 = vshrl.u32 %v1164, 30
      %v1166 = vshll.u32 %v1165, 30
      %v1167 = vsub.s32 %v1163, %v1166
      %vm1168 = vcmp.lt.s32.totalorder %v1167, 0
      %v1169 = vsub.s32 0, %v1167
      %v1170 = vsel %vm1168, %v1169, %v1167
      %v1171 = vclz %v1170
      %v1172 = vsub.s32 %v1171, 2
      %vm1173 = vcmp.gt.s32.totalorder 0, %v1172
      %v1174 = vsel %vm1173, 0, %v1172
      %v1175 = vsub.s32 32, %v1174
      %v1176 = vshll.u32 %v1167, %v1174
      %v1177 = vshrl.u32 %v1159, %v1175
      %v1178 = vor.u32 %v1176, %v1177
      %v1179 = vsub.s32 4294967266, %v1174
      %v1180 = vadd.s32 %v1179, 127
      %v1181 = vshll.u32 %v1180, 23
      %v1182 = vor.u32 4788187, %v1181
      %v1183 = vand.u32 2147483647, %v1182
      %v1185 = vcvt.s32.f32 %v1178
      %v1186 = vmul.f32 %v1185, %v1183
      %v1187 = vxor.u32 %v1186, 2147483648
      %v1188 = vsel %vm1105, %v1187, %v1186
      %v1189 = vsub.s32 4, %v1165
      %v1190 = vsel %vm1105, %v1189, %v1165
      %v1191 = vsel %vm1104, %v781, %v1188
      %v1192 = vsel %vm1104, 0, %v1190
      %v1193 = vcosq.f32.pop %v1191
      %v1194 = vsinq.f32.pop %v1191
      %vm1195 = vweird.f32 %v781
      %v1196 = vand.u32 %v1192, 3
      %vm1197 = vcmp.lt.s32.totalorder %v1196, 2
      %vm1198 = vcmp.eq.s32.totalorder %v1196, 0
      %v1199 = vxor.u32 %v1194, 2147483648
      %v1200 = vsel %vm1198, %v1193, %v1199
      %vm1201 = vcmp.eq.s32.totalorder %v1196, 2
      %v1202 = vxor.u32 %v1193, 2147483648
      %v1203 = vsel %vm1201, %v1202, %v1194
      %v1204 = vsel %vm1197, %v1200, %v1203
      %v1205 = vsel %vm1195, nan, %v1204
      %v1206 = vand.u32 2147483647, %v782
      %vm1207 = vcmp.le.f32.partialorder %v1206, 0.7853982
      %vm1208 = vcmp.lt.s32.totalorder %v782, 0
      %v1209 = vand.u32 %v782, 2139095040
      %v1210 = vshrl.u32 %v1209, 23
      %v1211 = vsub.s32 %v1210, 127
      %v1212 = vand.u32 2147483647, %v782
      %v1213 = vand.u32 %v1212, 8388607
      %v1214 = vor.u32 %v1213, 8388608
      %v1215 = vsub.s32 0, %v1214
      %v1216 = vadd.s32 %v1211, 1
      %vm1217 = vcmp.gt.s32.totalorder %v1216, 0
      %v1218 = vsel %vm1217, %v1216, 0
      %v1219 = vshrl.u32 %v1218, 5
      %v1220 = vand.u32 %v1218, 31
      %v1221 = vsub.s32 32, %v1220
      %v1222 = vshrl.u32 683565275, %v1221
      %v1223 = vshll.u32 683565275, %v1220
      %v1224 = vshrl.u32 2475754826, %v1221
      %v1225 = vor.u32 %v1223, %v1224
      %v1226 = vshll.u32 2475754826, %v1220
      %v1227 = vshrl.u32 2131351028, %v1221
      %v1228 = vor.u32 %v1226, %v1227
      %v1229 = vshll.u32 2131351028, %v1220
      %v1230 = vshrl.u32 2102212464, %v1221
      %v1231 = vor.u32 %v1229, %v1230
      %v1232 = vshll.u32 2102212464, %v1220
      %v1233 = vshrl.u32 920167782, %v1221
      %v1234 = vor.u32 %v1232, %v1233
      %v1235 = vshll.u32 920167782, %v1220
      %v1236 = vshrl.u32 1326507024, %v1221
      %v1237 = vor.u32 %v1235, %v1236
      %vm1238 = vcmp.lt.s32.totalorder %v1219, 1
      %vm1239 = vcmp.lt.s32.totalorder %v1219, 2
      %vm1240 = vcmp.lt.s32.totalorder %v1219, 3
      %vm1241 = vcmp.lt.s32.totalorder %v1219, 4
      %v1242 = vsel %vm1238, %v1222, %v1225
      %v1243 = vsel %vm1241, %v1231, 2102212464
      %v1244 = vsel %vm1240, %v1228, %v1243
      %v1245 = vsel %vm1239, %v1242, %v1244
      %v1246 = vsel %vm1238, %v1225, %v1228
      %v1247 = vsel %vm1241, %v1234, 920167782
      %v1248 = vsel %vm1240, %v1231, %v1247
      %v1249 = vsel %vm1239, %v1246, %v1248
      %v1250 = vsel %vm1238, %v1228, %v1231
      %v1251 = vsel %vm1241, %v1237, 1326507024
      %v1252 = vsel %vm1240, %v1234, %v1251
      %v1253 = vsel %vm1239, %v1250, %v1252
      %v1254 = vshll.u32 %v1214, 8
      %v1255 = vmul.u32.u64.compose %v1254, %v1253
      %v1256 = vextract.low.u32 %v1255
      %v1257 = vextract.high.u32 %v1255
      %v1258 = vmul.u32.u64.compose %v1254, %v1249
      %v1259 = vextract.low.u32 %v1258
      %v1260 = vextract.high.u32 %v1258
      %v1261 = vmul.u32 %v1254, %v1245
      %v1262 = vadd.s32 %v1257, %v1259
      %vm1263 = vc.u32 %v1257, %v1259
      %v1264 = vadd.s32 %v1260, 1
      %v1265 = vsel %vm1263, %v1264, %v1260
      %v1266 = vadd.s32 %v1261, %v1265
      %v1267 = vadd.s32 %v1266, 536870912
      %v1268 = vshrl.u32 %v1267, 30
      %v1269 = vshll.u32 %v1268, 30
      %v1270 = vsub.s32 %v1266, %v1269
      %vm1271 = vcmp.lt.s32.totalorder %v1270, 0
      %v1272 = vsub.s32 0, %v1270
      %v1273 = vsel %vm1271, %v1272, %v1270
      %v1274 = vclz %v1273
      %v1275 = vsub.s32 %v1274, 2
      %vm1276 = vcmp.gt.s32.totalorder 0, %v1275
      %v1277 = vsel %vm1276, 0, %v1275
      %v1278 = vsub.s32 32, %v1277
      %v1279 = vshll.u32 %v1270, %v1277
      %v1280 = vshrl.u32 %v1262, %v1278
      %v1281 = vor.u32 %v1279, %v1280
      %v1282 = vsub.s32 4294967266, %v1277
      %v1283 = vadd.s32 %v1282, 127
      %v1284 = vshll.u32 %v1283, 23
      %v1285 = vor.u32 4788187, %v1284
      %v1286 = vand.u32 2147483647, %v1285
      %v1288 = vcvt.s32.f32 %v1281
      %v1289 = vmul.f32 %v1288, %v1286
      %v1290 = vxor.u32 %v1289, 2147483648
      %v1291 = vsel %vm1208, %v1290, %v1289
      %v1292 = vsub.s32 4, %v1268
      %v1293 = vsel %vm1208, %v1292, %v1268
      %v1294 = vsel %vm1207, %v782, %v1291
      %v1295 = vsel %vm1207, 0, %v1293
      %v1296 = vcosq.f32.pop %v1294
      %v1297 = vsinq.f32.pop %v1294
      %vm1298 = vweird.f32 %v782
      %v1299 = vand.u32 %v1295, 3
      %vm1300 = vcmp.lt.s32.totalorder %v1299, 2
      %vm1301 = vcmp.eq.s32.totalorder %v1299, 0
      %v1302 = vxor.u32 %v1297, 2147483648
      %v1303 = vsel %vm1301, %v1296, %v1302
      %vm1304 = vcmp.eq.s32.totalorder %v1299, 2
      %v1305 = vxor.u32 %v1296, 2147483648
      %v1306 = vsel %vm1304, %v1305, %v1297
      %v1307 = vsel %vm1300, %v1303, %v1306
      %v1308 = vsel %vm1298, nan, %v1307
      %v1309 = vand.u32 2147483647, %v783
      %vm1310 = vcmp.le.f32.partialorder %v1309, 0.7853982
      %vm1311 = vcmp.lt.s32.totalorder %v783, 0
      %v1312 = vand.u32 %v783, 2139095040
      %v1313 = vshrl.u32 %v1312, 23
      %v1314 = vsub.s32 %v1313, 127
      %v1315 = vand.u32 2147483647, %v783
      %v1316 = vand.u32 %v1315, 8388607
      %v1317 = vor.u32 %v1316, 8388608
      %v1318 = vsub.s32 0, %v1317
      %v1319 = vadd.s32 %v1314, 1
      %vm1320 = vcmp.gt.s32.totalorder %v1319, 0
      %v1321 = vsel %vm1320, %v1319, 0
      %v1322 = vshrl.u32 %v1321, 5
      %v1323 = vand.u32 %v1321, 31
      %v1324 = vsub.s32 32, %v1323
      %v1325 = vshrl.u32 683565275, %v1324
      %v1326 = vshll.u32 683565275, %v1323
      %v1327 = vshrl.u32 2475754826, %v1324
      %v1328 = vor.u32 %v1326, %v1327
      %v1329 = vshll.u32 2475754826, %v1323
      %v1330 = vshrl.u32 2131351028, %v1324
      %v1331 = vor.u32 %v1329, %v1330
      %v1332 = vshll.u32 2131351028, %v1323
      %v1333 = vshrl.u32 2102212464, %v1324
      %v1334 = vor.u32 %v1332, %v1333
      %v1335 = vshll.u32 2102212464, %v1323
      %v1336 = vshrl.u32 920167782, %v1324
      %v1337 = vor.u32 %v1335, %v1336
      %v1338 = vshll.u32 920167782, %v1323
      %v1339 = vshrl.u32 1326507024, %v1324
      %v1340 = vor.u32 %v1338, %v1339
      %vm1341 = vcmp.lt.s32.totalorder %v1322, 1
      %vm1342 = vcmp.lt.s32.totalorder %v1322, 2
      %vm1343 = vcmp.lt.s32.totalorder %v1322, 3
      %vm1344 = vcmp.lt.s32.totalorder %v1322, 4
      %v1345 = vsel %vm1341, %v1325, %v1328
      %v1346 = vsel %vm1344, %v1334, 2102212464
      %v1347 = vsel %vm1343, %v1331, %v1346
      %v1348 = vsel %vm1342, %v1345, %v1347
      %v1349 = vsel %vm1341, %v1328, %v1331
      %v1350 = vsel %vm1344, %v1337, 920167782
      %v1351 = vsel %vm1343, %v1334, %v1350
      %v1352 = vsel %vm1342, %v1349, %v1351
      %v1353 = vsel %vm1341, %v1331, %v1334
      %v1354 = vsel %vm1344, %v1340, 1326507024
      %v1355 = vsel %vm1343, %v1337, %v1354
      %v1356 = vsel %vm1342, %v1353, %v1355
      %v1357 = vshll.u32 %v1317, 8
      %v1358 = vmul.u32.u64.compose %v1357, %v1356
      %v1359 = vextract.low.u32 %v1358
      %v1360 = vextract.high.u32 %v1358
      %v1361 = vmul.u32.u64.compose %v1357, %v1352
      %v1362 = vextract.low.u32 %v1361
      %v1363 = vextract.high.u32 %v1361
      %v1364 = vmul.u32 %v1357, %v1348
      %v1365 = vadd.s32 %v1360, %v1362
      %vm1366 = vc.u32 %v1360, %v1362
      %v1367 = vadd.s32 %v1363, 1
      %v1368 = vsel %vm1366, %v1367, %v1363
      %v1369 = vadd.s32 %v1364, %v1368
      %v1370 = vadd.s32 %v1369, 536870912
      %v1371 = vshrl.u32 %v1370, 30
      %v1372 = vshll.u32 %v1371, 30
      %v1373 = vsub.s32 %v1369, %v1372
      %vm1374 = vcmp.lt.s32.totalorder %v1373, 0
      %v1375 = vsub.s32 0, %v1373
      %v1376 = vsel %vm1374, %v1375, %v1373
      %v1377 = vclz %v1376
      %v1378 = vsub.s32 %v1377, 2
      %vm1379 = vcmp.gt.s32.totalorder 0, %v1378
      %v1380 = vsel %vm1379, 0, %v1378
      %v1381 = vsub.s32 32, %v1380
      %v1382 = vshll.u32 %v1373, %v1380
      %v1383 = vshrl.u32 %v1365, %v1381
      %v1384 = vor.u32 %v1382, %v1383
      %v1385 = vsub.s32 4294967266, %v1380
      %v1386 = vadd.s32 %v1385, 127
      %v1387 = vshll.u32 %v1386, 23
      %v1388 = vor.u32 4788187, %v1387
      %v1389 = vand.u32 2147483647, %v1388
      %v1391 = vcvt.s32.f32 %v1384
      %v1392 = vmul.f32 %v1391, %v1389
      %v1393 = vxor.u32 %v1392, 2147483648
      %v1394 = vsel %vm1311, %v1393, %v1392
      %v1395 = vsub.s32 4, %v1371
      %v1396 = vsel %vm1311, %v1395, %v1371
      %v1397 = vsel %vm1310, %v783, %v1394
      %v1398 = vsel %vm1310, 0, %v1396
      %v1399 = vcosq.f32.pop %v1397
      %v1400 = vsinq.f32.pop %v1397
      %vm1401 = vweird.f32 %v783
      %v1402 = vand.u32 %v1398, 3
      %vm1403 = vcmp.lt.s32.totalorder %v1402, 2
      %vm1404 = vcmp.eq.s32.totalorder %v1402, 0
      %v1405 = vxor.u32 %v1400, 2147483648
      %v1406 = vsel %vm1404, %v1399, %v1405
      %vm1407 = vcmp.eq.s32.totalorder %v1402, 2
      %v1408 = vxor.u32 %v1399, 2147483648
      %v1409 = vsel %vm1407, %v1408, %v1400
      %v1410 = vsel %vm1403, %v1406, %v1409
      %v1411 = vsel %vm1401, nan, %v1410
      %v1412 = vand.u32 2147483647, %v784
      %vm1413 = vcmp.le.f32.partialorder %v1412, 0.7853982
      %vm1414 = vcmp.lt.s32.totalorder %v784, 0
      %v1415 = vand.u32 %v784, 2139095040
      %v1416 = vshrl.u32 %v1415, 23
      %v1417 = vsub.s32 %v1416, 127
      %v1418 = vand.u32 2147483647, %v784
      %v1419 = vand.u32 %v1418, 8388607
      %v1420 = vor.u32 %v1419, 8388608
      %v1421 = vsub.s32 0, %v1420
      %v1422 = vadd.s32 %v1417, 1
      %vm1423 = vcmp.gt.s32.totalorder %v1422, 0
      %v1424 = vsel %vm1423, %v1422, 0
      %v1425 = vshrl.u32 %v1424, 5
      %v1426 = vand.u32 %v1424, 31
      %v1427 = vsub.s32 32, %v1426
      %v1428 = vshrl.u32 683565275, %v1427
      %v1429 = vshll.u32 683565275, %v1426
      %v1430 = vshrl.u32 2475754826, %v1427
      %v1431 = vor.u32 %v1429, %v1430
      %v1432 = vshll.u32 2475754826, %v1426
      %v1433 = vshrl.u32 2131351028, %v1427
      %v1434 = vor.u32 %v1432, %v1433
      %v1435 = vshll.u32 2131351028, %v1426
      %v1436 = vshrl.u32 2102212464, %v1427
      %v1437 = vor.u32 %v1435, %v1436
      %v1438 = vshll.u32 2102212464, %v1426
      %v1439 = vshrl.u32 920167782, %v1427
      %v1440 = vor.u32 %v1438, %v1439
      %v1441 = vshll.u32 920167782, %v1426
      %v1442 = vshrl.u32 1326507024, %v1427
      %v1443 = vor.u32 %v1441, %v1442
      %vm1444 = vcmp.lt.s32.totalorder %v1425, 1
      %vm1445 = vcmp.lt.s32.totalorder %v1425, 2
      %vm1446 = vcmp.lt.s32.totalorder %v1425, 3
      %vm1447 = vcmp.lt.s32.totalorder %v1425, 4
      %v1448 = vsel %vm1444, %v1428, %v1431
      %v1449 = vsel %vm1447, %v1437, 2102212464
      %v1450 = vsel %vm1446, %v1434, %v1449
      %v1451 = vsel %vm1445, %v1448, %v1450
      %v1452 = vsel %vm1444, %v1431, %v1434
      %v1453 = vsel %vm1447, %v1440, 920167782
      %v1454 = vsel %vm1446, %v1437, %v1453
      %v1455 = vsel %vm1445, %v1452, %v1454
      %v1456 = vsel %vm1444, %v1434, %v1437
      %v1457 = vsel %vm1447, %v1443, 1326507024
      %v1458 = vsel %vm1446, %v1440, %v1457
      %v1459 = vsel %vm1445, %v1456, %v1458
      %v1460 = vshll.u32 %v1420, 8
      %v1461 = vmul.u32.u64.compose %v1460, %v1459
      %v1462 = vextract.low.u32 %v1461
      %v1463 = vextract.high.u32 %v1461
      %v1464 = vmul.u32.u64.compose %v1460, %v1455
      %v1465 = vextract.low.u32 %v1464
      %v1466 = vextract.high.u32 %v1464
      %v1467 = vmul.u32 %v1460, %v1451
      %v1468 = vadd.s32 %v1463, %v1465
      %vm1469 = vc.u32 %v1463, %v1465
      %v1470 = vadd.s32 %v1466, 1
      %v1471 = vsel %vm1469, %v1470, %v1466
      %v1472 = vadd.s32 %v1467, %v1471
      %v1473 = vadd.s32 %v1472, 536870912
      %v1474 = vshrl.u32 %v1473, 30
      %v1475 = vshll.u32 %v1474, 30
      %v1476 = vsub.s32 %v1472, %v1475
      %vm1477 = vcmp.lt.s32.totalorder %v1476, 0
      %v1478 = vsub.s32 0, %v1476
      %v1479 = vsel %vm1477, %v1478, %v1476
      %v1480 = vclz %v1479
      %v1481 = vsub.s32 %v1480, 2
      %vm1482 = vcmp.gt.s32.totalorder 0, %v1481
      %v1483 = vsel %vm1482, 0, %v1481
      %v1484 = vsub.s32 32, %v1483
      %v1485 = vshll.u32 %v1476, %v1483
      %v1486 = vshrl.u32 %v1468, %v1484
      %v1487 = vor.u32 %v1485, %v1486
      %v1488 = vsub.s32 4294967266, %v1483
      %v1489 = vadd.s32 %v1488, 127
      %v1490 = vshll.u32 %v1489, 23
      %v1491 = vor.u32 4788187, %v1490
      %v1492 = vand.u32 2147483647, %v1491
      %v1494 = vcvt.s32.f32 %v1487
      %v1495 = vmul.f32 %v1494, %v1492
      %v1496 = vxor.u32 %v1495, 2147483648
      %v1497 = vsel %vm1414, %v1496, %v1495
      %v1498 = vsub.s32 4, %v1474
      %v1499 = vsel %vm1414, %v1498, %v1474
      %v1500 = vsel %vm1413, %v784, %v1497
      %v1501 = vsel %vm1413, 0, %v1499
      %v1502 = vcosq.f32.pop %v1500
      %v1503 = vsinq.f32.pop %v1500
      %vm1504 = vweird.f32 %v784
      %v1505 = vand.u32 %v1501, 3
      %vm1506 = vcmp.lt.s32.totalorder %v1505, 2
      %vm1507 = vcmp.eq.s32.totalorder %v1505, 0
      %v1508 = vxor.u32 %v1503, 2147483648
      %v1509 = vsel %vm1507, %v1502, %v1508
      %vm1510 = vcmp.eq.s32.totalorder %v1505, 2
      %v1511 = vxor.u32 %v1502, 2147483648
      %v1512 = vsel %vm1510, %v1511, %v1503
      %v1513 = vsel %vm1506, %v1509, %v1512
      %v1514 = vsel %vm1504, nan, %v1513
      %v1515 = vand.u32 2147483647, %v785
      %vm1516 = vcmp.le.f32.partialorder %v1515, 0.7853982
      %vm1517 = vcmp.lt.s32.totalorder %v785, 0
      %v1518 = vand.u32 %v785, 2139095040
      %v1519 = vshrl.u32 %v1518, 23
      %v1520 = vsub.s32 %v1519, 127
      %v1521 = vand.u32 2147483647, %v785
      %v1522 = vand.u32 %v1521, 8388607
      %v1523 = vor.u32 %v1522, 8388608
      %v1524 = vsub.s32 0, %v1523
      %v1525 = vadd.s32 %v1520, 1
      %vm1526 = vcmp.gt.s32.totalorder %v1525, 0
      %v1527 = vsel %vm1526, %v1525, 0
      %v1528 = vshrl.u32 %v1527, 5
      %v1529 = vand.u32 %v1527, 31
      %v1530 = vsub.s32 32, %v1529
      %v1531 = vshrl.u32 683565275, %v1530
      %v1532 = vshll.u32 683565275, %v1529
      %v1533 = vshrl.u32 2475754826, %v1530
      %v1534 = vor.u32 %v1532, %v1533
      %v1535 = vshll.u32 2475754826, %v1529
      %v1536 = vshrl.u32 2131351028, %v1530
      %v1537 = vor.u32 %v1535, %v1536
      %v1538 = vshll.u32 2131351028, %v1529
      %v1539 = vshrl.u32 2102212464, %v1530
      %v1540 = vor.u32 %v1538, %v1539
      %v1541 = vshll.u32 2102212464, %v1529
      %v1542 = vshrl.u32 920167782, %v1530
      %v1543 = vor.u32 %v1541, %v1542
      %v1544 = vshll.u32 920167782, %v1529
      %v1545 = vshrl.u32 1326507024, %v1530
      %v1546 = vor.u32 %v1544, %v1545
      %vm1547 = vcmp.lt.s32.totalorder %v1528, 1
      %vm1548 = vcmp.lt.s32.totalorder %v1528, 2
      %vm1549 = vcmp.lt.s32.totalorder %v1528, 3
      %vm1550 = vcmp.lt.s32.totalorder %v1528, 4
      %v1551 = vsel %vm1547, %v1531, %v1534
      %v1552 = vsel %vm1550, %v1540, 2102212464
      %v1553 = vsel %vm1549, %v1537, %v1552
      %v1554 = vsel %vm1548, %v1551, %v1553
      %v1555 = vsel %vm1547, %v1534, %v1537
      %v1556 = vsel %vm1550, %v1543, 920167782
      %v1557 = vsel %vm1549, %v1540, %v1556
      %v1558 = vsel %vm1548, %v1555, %v1557
      %v1559 = vsel %vm1547, %v1537, %v1540
      %v1560 = vsel %vm1550, %v1546, 1326507024
      %v1561 = vsel %vm1549, %v1543, %v1560
      %v1562 = vsel %vm1548, %v1559, %v1561
      %v1563 = vshll.u32 %v1523, 8
      %v1564 = vmul.u32.u64.compose %v1563, %v1562
      %v1565 = vextract.low.u32 %v1564
      %v1566 = vextract.high.u32 %v1564
      %v1567 = vmul.u32.u64.compose %v1563, %v1558
      %v1568 = vextract.low.u32 %v1567
      %v1569 = vextract.high.u32 %v1567
      %v1570 = vmul.u32 %v1563, %v1554
      %v1571 = vadd.s32 %v1566, %v1568
      %vm1572 = vc.u32 %v1566, %v1568
      %v1573 = vadd.s32 %v1569, 1
      %v1574 = vsel %vm1572, %v1573, %v1569
      %v1575 = vadd.s32 %v1570, %v1574
      %v1576 = vadd.s32 %v1575, 536870912
      %v1577 = vshrl.u32 %v1576, 30
      %v1578 = vshll.u32 %v1577, 30
      %v1579 = vsub.s32 %v1575, %v1578
      %vm1580 = vcmp.lt.s32.totalorder %v1579, 0
      %v1581 = vsub.s32 0, %v1579
      %v1582 = vsel %vm1580, %v1581, %v1579
      %v1583 = vclz %v1582
      %v1584 = vsub.s32 %v1583, 2
      %vm1585 = vcmp.gt.s32.totalorder 0, %v1584
      %v1586 = vsel %vm1585, 0, %v1584
      %v1587 = vsub.s32 32, %v1586
      %v1588 = vshll.u32 %v1579, %v1586
      %v1589 = vshrl.u32 %v1571, %v1587
      %v1590 = vor.u32 %v1588, %v1589
      %v1591 = vsub.s32 4294967266, %v1586
      %v1592 = vadd.s32 %v1591, 127
      %v1593 = vshll.u32 %v1592, 23
      %v1594 = vor.u32 4788187, %v1593
      %v1595 = vand.u32 2147483647, %v1594
      %v1597 = vcvt.s32.f32 %v1590
      %v1598 = vmul.f32 %v1597, %v1595
      %v1599 = vxor.u32 %v1598, 2147483648
      %v1600 = vsel %vm1517, %v1599, %v1598
      %v1601 = vsub.s32 4, %v1577
      %v1602 = vsel %vm1517, %v1601, %v1577
      %v1603 = vsel %vm1516, %v785, %v1600
      %v1604 = vsel %vm1516, 0, %v1602
      %v1605 = vcosq.f32.pop %v1603
      %v1606 = vsinq.f32.pop %v1603
      %vm1607 = vweird.f32 %v785
      %v1608 = vand.u32 %v1604, 3
      %vm1609 = vcmp.lt.s32.totalorder %v1608, 2
      %vm1610 = vcmp.eq.s32.totalorder %v1608, 0
      %v1611 = vxor.u32 %v1606, 2147483648
      %v1612 = vsel %vm1610, %v1605, %v1611
      %vm1613 = vcmp.eq.s32.totalorder %v1608, 2
      %v1614 = vxor.u32 %v1605, 2147483648
      %v1615 = vsel %vm1613, %v1614, %v1606
      %v1616 = vsel %vm1609, %v1612, %v1615
      %v1617 = vsel %vm1607, nan, %v1616
      %v1618 = vand.u32 2147483647, %v786
      %vm1619 = vcmp.le.f32.partialorder %v1618, 0.7853982
      %vm1620 = vcmp.lt.s32.totalorder %v786, 0
      %v1621 = vand.u32 %v786, 2139095040
      %v1622 = vshrl.u32 %v1621, 23
      %v1623 = vsub.s32 %v1622, 127
      %v1624 = vand.u32 2147483647, %v786
      %v1625 = vand.u32 %v1624, 8388607
      %v1626 = vor.u32 %v1625, 8388608
      %v1627 = vsub.s32 0, %v1626
      %v1628 = vadd.s32 %v1623, 1
      %vm1629 = vcmp.gt.s32.totalorder %v1628, 0
      %v1630 = vsel %vm1629, %v1628, 0
      %v1631 = vshrl.u32 %v1630, 5
      %v1632 = vand.u32 %v1630, 31
      %v1633 = vsub.s32 32, %v1632
      %v1634 = vshrl.u32 683565275, %v1633
      %v1635 = vshll.u32 683565275, %v1632
      %v1636 = vshrl.u32 2475754826, %v1633
      %v1637 = vor.u32 %v1635, %v1636
      %v1638 = vshll.u32 2475754826, %v1632
      %v1639 = vshrl.u32 2131351028, %v1633
      %v1640 = vor.u32 %v1638, %v1639
      %v1641 = vshll.u32 2131351028, %v1632
      %v1642 = vshrl.u32 2102212464, %v1633
      %v1643 = vor.u32 %v1641, %v1642
      %v1644 = vshll.u32 2102212464, %v1632
      %v1645 = vshrl.u32 920167782, %v1633
      %v1646 = vor.u32 %v1644, %v1645
      %v1647 = vshll.u32 920167782, %v1632
      %v1648 = vshrl.u32 1326507024, %v1633
      %v1649 = vor.u32 %v1647, %v1648
      %vm1650 = vcmp.lt.s32.totalorder %v1631, 1
      %vm1651 = vcmp.lt.s32.totalorder %v1631, 2
      %vm1652 = vcmp.lt.s32.totalorder %v1631, 3
      %vm1653 = vcmp.lt.s32.totalorder %v1631, 4
      %v1654 = vsel %vm1650, %v1634, %v1637
      %v1655 = vsel %vm1653, %v1643, 2102212464
      %v1656 = vsel %vm1652, %v1640, %v1655
      %v1657 = vsel %vm1651, %v1654, %v1656
      %v1658 = vsel %vm1650, %v1637, %v1640
      %v1659 = vsel %vm1653, %v1646, 920167782
      %v1660 = vsel %vm1652, %v1643, %v1659
      %v1661 = vsel %vm1651, %v1658, %v1660
      %v1662 = vsel %vm1650, %v1640, %v1643
      %v1663 = vsel %vm1653, %v1649, 1326507024
      %v1664 = vsel %vm1652, %v1646, %v1663
      %v1665 = vsel %vm1651, %v1662, %v1664
      %v1666 = vshll.u32 %v1626, 8
      %v1667 = vmul.u32.u64.compose %v1666, %v1665
      %v1668 = vextract.low.u32 %v1667
      %v1669 = vextract.high.u32 %v1667
      %v1670 = vmul.u32.u64.compose %v1666, %v1661
      %v1671 = vextract.low.u32 %v1670
      %v1672 = vextract.high.u32 %v1670
      %v1673 = vmul.u32 %v1666, %v1657
      %v1674 = vadd.s32 %v1669, %v1671
      %vm1675 = vc.u32 %v1669, %v1671
      %v1676 = vadd.s32 %v1672, 1
      %v1677 = vsel %vm1675, %v1676, %v1672
      %v1678 = vadd.s32 %v1673, %v1677
      %v1679 = vadd.s32 %v1678, 536870912
      %v1680 = vshrl.u32 %v1679, 30
      %v1681 = vshll.u32 %v1680, 30
      %v1682 = vsub.s32 %v1678, %v1681
      %vm1683 = vcmp.lt.s32.totalorder %v1682, 0
      %v1684 = vsub.s32 0, %v1682
      %v1685 = vsel %vm1683, %v1684, %v1682
      %v1686 = vclz %v1685
      %v1687 = vsub.s32 %v1686, 2
      %vm1688 = vcmp.gt.s32.totalorder 0, %v1687
      %v1689 = vsel %vm1688, 0, %v1687
      %v1690 = vsub.s32 32, %v1689
      %v1691 = vshll.u32 %v1682, %v1689
      %v1692 = vshrl.u32 %v1674, %v1690
      %v1693 = vor.u32 %v1691, %v1692
      %v1694 = vsub.s32 4294967266, %v1689
      %v1695 = vadd.s32 %v1694, 127
      %v1696 = vshll.u32 %v1695, 23
      %v1697 = vor.u32 4788187, %v1696
      %v1698 = vand.u32 2147483647, %v1697
      %v1700 = vcvt.s32.f32 %v1693
      %v1701 = vmul.f32 %v1700, %v1698
      %v1702 = vxor.u32 %v1701, 2147483648
      %v1703 = vsel %vm1620, %v1702, %v1701
      %v1704 = vsub.s32 4, %v1680
      %v1705 = vsel %vm1620, %v1704, %v1680
      %v1706 = vsel %vm1619, %v786, %v1703
      %v1707 = vsel %vm1619, 0, %v1705
      %v1708 = vcosq.f32.pop %v1706
      %v1709 = vsinq.f32.pop %v1706
      %vm1710 = vweird.f32 %v786
      %v1711 = vand.u32 %v1707, 3
      %vm1712 = vcmp.lt.s32.totalorder %v1711, 2
      %vm1713 = vcmp.eq.s32.totalorder %v1711, 0
      %v1714 = vxor.u32 %v1709, 2147483648
      %v1715 = vsel %vm1713, %v1708, %v1714
      %vm1716 = vcmp.eq.s32.totalorder %v1711, 2
      %v1717 = vxor.u32 %v1708, 2147483648
      %v1718 = vsel %vm1716, %v1717, %v1709
      %v1719 = vsel %vm1712, %v1715, %v1718
      %v1720 = vsel %vm1710, nan, %v1719
      %v1721 = vand.u32 2147483647, %v787
      %vm1722 = vcmp.le.f32.partialorder %v1721, 0.7853982
      %vm1723 = vcmp.lt.s32.totalorder %v787, 0
      %v1724 = vand.u32 %v787, 2139095040
      %v1725 = vshrl.u32 %v1724, 23
      %v1726 = vsub.s32 %v1725, 127
      %v1727 = vand.u32 2147483647, %v787
      %v1728 = vand.u32 %v1727, 8388607
      %v1729 = vor.u32 %v1728, 8388608
      %v1730 = vsub.s32 0, %v1729
      %v1731 = vadd.s32 %v1726, 1
      %vm1732 = vcmp.gt.s32.totalorder %v1731, 0
      %v1733 = vsel %vm1732, %v1731, 0
      %v1734 = vshrl.u32 %v1733, 5
      %v1735 = vand.u32 %v1733, 31
      %v1736 = vsub.s32 32, %v1735
      %v1737 = vshrl.u32 683565275, %v1736
      %v1738 = vshll.u32 683565275, %v1735
      %v1739 = vshrl.u32 2475754826, %v1736
      %v1740 = vor.u32 %v1738, %v1739
      %v1741 = vshll.u32 2475754826, %v1735
      %v1742 = vshrl.u32 2131351028, %v1736
      %v1743 = vor.u32 %v1741, %v1742
      %v1744 = vshll.u32 2131351028, %v1735
      %v1745 = vshrl.u32 2102212464, %v1736
      %v1746 = vor.u32 %v1744, %v1745
      %v1747 = vshll.u32 2102212464, %v1735
      %v1748 = vshrl.u32 920167782, %v1736
      %v1749 = vor.u32 %v1747, %v1748
      %v1750 = vshll.u32 920167782, %v1735
      %v1751 = vshrl.u32 1326507024, %v1736
      %v1752 = vor.u32 %v1750, %v1751
      %vm1753 = vcmp.lt.s32.totalorder %v1734, 1
      %vm1754 = vcmp.lt.s32.totalorder %v1734, 2
      %vm1755 = vcmp.lt.s32.totalorder %v1734, 3
      %vm1756 = vcmp.lt.s32.totalorder %v1734, 4
      %v1757 = vsel %vm1753, %v1737, %v1740
      %v1758 = vsel %vm1756, %v1746, 2102212464
      %v1759 = vsel %vm1755, %v1743, %v1758
      %v1760 = vsel %vm1754, %v1757, %v1759
      %v1761 = vsel %vm1753, %v1740, %v1743
      %v1762 = vsel %vm1756, %v1749, 920167782
      %v1763 = vsel %vm1755, %v1746, %v1762
      %v1764 = vsel %vm1754, %v1761, %v1763
      %v1765 = vsel %vm1753, %v1743, %v1746
      %v1766 = vsel %vm1756, %v1752, 1326507024
      %v1767 = vsel %vm1755, %v1749, %v1766
      %v1768 = vsel %vm1754, %v1765, %v1767
      %v1769 = vshll.u32 %v1729, 8
      %v1770 = vmul.u32.u64.compose %v1769, %v1768
      %v1771 = vextract.low.u32 %v1770
      %v1772 = vextract.high.u32 %v1770
      %v1773 = vmul.u32.u64.compose %v1769, %v1764
      %v1774 = vextract.low.u32 %v1773
      %v1775 = vextract.high.u32 %v1773
      %v1776 = vmul.u32 %v1769, %v1760
      %v1777 = vadd.s32 %v1772, %v1774
      %vm1778 = vc.u32 %v1772, %v1774
      %v1779 = vadd.s32 %v1775, 1
      %v1780 = vsel %vm1778, %v1779, %v1775
      %v1781 = vadd.s32 %v1776, %v1780
      %v1782 = vadd.s32 %v1781, 536870912
      %v1783 = vshrl.u32 %v1782, 30
      %v1784 = vshll.u32 %v1783, 30
      %v1785 = vsub.s32 %v1781, %v1784
      %vm1786 = vcmp.lt.s32.totalorder %v1785, 0
      %v1787 = vsub.s32 0, %v1785
      %v1788 = vsel %vm1786, %v1787, %v1785
      %v1789 = vclz %v1788
      %v1790 = vsub.s32 %v1789, 2
      %vm1791 = vcmp.gt.s32.totalorder 0, %v1790
      %v1792 = vsel %vm1791, 0, %v1790
      %v1793 = vsub.s32 32, %v1792
      %v1794 = vshll.u32 %v1785, %v1792
      %v1795 = vshrl.u32 %v1777, %v1793
      %v1796 = vor.u32 %v1794, %v1795
      %v1797 = vsub.s32 4294967266, %v1792
      %v1798 = vadd.s32 %v1797, 127
      %v1799 = vshll.u32 %v1798, 23
      %v1800 = vor.u32 4788187, %v1799
      %v1801 = vand.u32 2147483647, %v1800
      %v1803 = vcvt.s32.f32 %v1796
      %v1804 = vmul.f32 %v1803, %v1801
      %v1805 = vxor.u32 %v1804, 2147483648
      %v1806 = vsel %vm1723, %v1805, %v1804
      %v1807 = vsub.s32 4, %v1783
      %v1808 = vsel %vm1723, %v1807, %v1783
      %v1809 = vsel %vm1722, %v787, %v1806
      %v1810 = vsel %vm1722, 0, %v1808
      %v1811 = vcosq.f32.pop %v1809
      %v1812 = vsinq.f32.pop %v1809
      %vm1813 = vweird.f32 %v787
      %v1814 = vand.u32 %v1810, 3
      %vm1815 = vcmp.lt.s32.totalorder %v1814, 2
      %vm1816 = vcmp.eq.s32.totalorder %v1814, 0
      %v1817 = vxor.u32 %v1812, 2147483648
      %v1818 = vsel %vm1816, %v1811, %v1817
      %vm1819 = vcmp.eq.s32.totalorder %v1814, 2
      %v1820 = vxor.u32 %v1811, 2147483648
      %v1821 = vsel %vm1819, %v1820, %v1812
      %v1822 = vsel %vm1815, %v1818, %v1821
      %v1823 = vsel %vm1813, nan, %v1822
      %v1824 = vand.u32 2147483647, %v788
      %vm1825 = vcmp.le.f32.partialorder %v1824, 0.7853982
      %vm1826 = vcmp.lt.s32.totalorder %v788, 0
      %v1827 = vand.u32 %v788, 2139095040
      %v1828 = vshrl.u32 %v1827, 23
      %v1829 = vsub.s32 %v1828, 127
      %v1830 = vand.u32 2147483647, %v788
      %v1831 = vand.u32 %v1830, 8388607
      %v1832 = vor.u32 %v1831, 8388608
      %v1833 = vsub.s32 0, %v1832
      %v1834 = vadd.s32 %v1829, 1
      %vm1835 = vcmp.gt.s32.totalorder %v1834, 0
      %v1836 = vsel %vm1835, %v1834, 0
      %v1837 = vshrl.u32 %v1836, 5
      %v1838 = vand.u32 %v1836, 31
      %v1839 = vsub.s32 32, %v1838
      %v1840 = vshrl.u32 683565275, %v1839
      %v1841 = vshll.u32 683565275, %v1838
      %v1842 = vshrl.u32 2475754826, %v1839
      %v1843 = vor.u32 %v1841, %v1842
      %v1844 = vshll.u32 2475754826, %v1838
      %v1845 = vshrl.u32 2131351028, %v1839
      %v1846 = vor.u32 %v1844, %v1845
      %v1847 = vshll.u32 2131351028, %v1838
      %v1848 = vshrl.u32 2102212464, %v1839
      %v1849 = vor.u32 %v1847, %v1848
      %v1850 = vshll.u32 2102212464, %v1838
      %v1851 = vshrl.u32 920167782, %v1839
      %v1852 = vor.u32 %v1850, %v1851
      %v1853 = vshll.u32 920167782, %v1838
      %v1854 = vshrl.u32 1326507024, %v1839
      %v1855 = vor.u32 %v1853, %v1854
      %vm1856 = vcmp.lt.s32.totalorder %v1837, 1
      %vm1857 = vcmp.lt.s32.totalorder %v1837, 2
      %vm1858 = vcmp.lt.s32.totalorder %v1837, 3
      %vm1859 = vcmp.lt.s32.totalorder %v1837, 4
      %v1860 = vsel %vm1856, %v1840, %v1843
      %v1861 = vsel %vm1859, %v1849, 2102212464
      %v1862 = vsel %vm1858, %v1846, %v1861
      %v1863 = vsel %vm1857, %v1860, %v1862
      %v1864 = vsel %vm1856, %v1843, %v1846
      %v1865 = vsel %vm1859, %v1852, 920167782
      %v1866 = vsel %vm1858, %v1849, %v1865
      %v1867 = vsel %vm1857, %v1864, %v1866
      %v1868 = vsel %vm1856, %v1846, %v1849
      %v1869 = vsel %vm1859, %v1855, 1326507024
      %v1870 = vsel %vm1858, %v1852, %v1869
      %v1871 = vsel %vm1857, %v1868, %v1870
      %v1872 = vshll.u32 %v1832, 8
      %v1873 = vmul.u32.u64.compose %v1872, %v1871
      %v1874 = vextract.low.u32 %v1873
      %v1875 = vextract.high.u32 %v1873
      %v1876 = vmul.u32.u64.compose %v1872, %v1867
      %v1877 = vextract.low.u32 %v1876
      %v1878 = vextract.high.u32 %v1876
      %v1879 = vmul.u32 %v1872, %v1863
      %v1880 = vadd.s32 %v1875, %v1877
      %vm1881 = vc.u32 %v1875, %v1877
      %v1882 = vadd.s32 %v1878, 1
      %v1883 = vsel %vm1881, %v1882, %v1878
      %v1884 = vadd.s32 %v1879, %v1883
      %v1885 = vadd.s32 %v1884, 536870912
      %v1886 = vshrl.u32 %v1885, 30
      %v1887 = vshll.u32 %v1886, 30
      %v1888 = vsub.s32 %v1884, %v1887
      %vm1889 = vcmp.lt.s32.totalorder %v1888, 0
      %v1890 = vsub.s32 0, %v1888
      %v1891 = vsel %vm1889, %v1890, %v1888
      %v1892 = vclz %v1891
      %v1893 = vsub.s32 %v1892, 2
      %vm1894 = vcmp.gt.s32.totalorder 0, %v1893
      %v1895 = vsel %vm1894, 0, %v1893
      %v1896 = vsub.s32 32, %v1895
      %v1897 = vshll.u32 %v1888, %v1895
      %v1898 = vshrl.u32 %v1880, %v1896
      %v1899 = vor.u32 %v1897, %v1898
      %v1900 = vsub.s32 4294967266, %v1895
      %v1901 = vadd.s32 %v1900, 127
      %v1902 = vshll.u32 %v1901, 23
      %v1903 = vor.u32 4788187, %v1902
      %v1904 = vand.u32 2147483647, %v1903
      %v1906 = vcvt.s32.f32 %v1899
      %v1907 = vmul.f32 %v1906, %v1904
      %v1908 = vxor.u32 %v1907, 2147483648
      %v1909 = vsel %vm1826, %v1908, %v1907
      %v1910 = vsub.s32 4, %v1886
      %v1911 = vsel %vm1826, %v1910, %v1886
      %v1912 = vsel %vm1825, %v788, %v1909
      %v1913 = vsel %vm1825, 0, %v1911
      %v1914 = vcosq.f32.pop %v1912
      %v1915 = vsinq.f32.pop %v1912
      %vm1916 = vweird.f32 %v788
      %v1917 = vand.u32 %v1913, 3
      %vm1918 = vcmp.lt.s32.totalorder %v1917, 2
      %vm1919 = vcmp.eq.s32.totalorder %v1917, 0
      %v1920 = vxor.u32 %v1915, 2147483648
      %v1921 = vsel %vm1919, %v1914, %v1920
      %vm1922 = vcmp.eq.s32.totalorder %v1917, 2
      %v1923 = vxor.u32 %v1914, 2147483648
      %v1924 = vsel %vm1922, %v1923, %v1915
      %v1925 = vsel %vm1918, %v1921, %v1924
      %v1926 = vsel %vm1916, nan, %v1925
      %v1927 = vand.u32 2147483647, %v789
      %vm1928 = vcmp.le.f32.partialorder %v1927, 0.7853982
      %vm1929 = vcmp.lt.s32.totalorder %v789, 0
      %v1930 = vand.u32 %v789, 2139095040
      %v1931 = vshrl.u32 %v1930, 23
      %v1932 = vsub.s32 %v1931, 127
      %v1933 = vand.u32 2147483647, %v789
      %v1934 = vand.u32 %v1933, 8388607
      %v1935 = vor.u32 %v1934, 8388608
      %v1936 = vsub.s32 0, %v1935
      %v1937 = vadd.s32 %v1932, 1
      %vm1938 = vcmp.gt.s32.totalorder %v1937, 0
      %v1939 = vsel %vm1938, %v1937, 0
      %v1940 = vshrl.u32 %v1939, 5
      %v1941 = vand.u32 %v1939, 31
      %v1942 = vsub.s32 32, %v1941
      %v1943 = vshrl.u32 683565275, %v1942
      %v1944 = vshll.u32 683565275, %v1941
      %v1945 = vshrl.u32 2475754826, %v1942
      %v1946 = vor.u32 %v1944, %v1945
      %v1947 = vshll.u32 2475754826, %v1941
      %v1948 = vshrl.u32 2131351028, %v1942
      %v1949 = vor.u32 %v1947, %v1948
      %v1950 = vshll.u32 2131351028, %v1941
      %v1951 = vshrl.u32 2102212464, %v1942
      %v1952 = vor.u32 %v1950, %v1951
      %v1953 = vshll.u32 2102212464, %v1941
      %v1954 = vshrl.u32 920167782, %v1942
      %v1955 = vor.u32 %v1953, %v1954
      %v1956 = vshll.u32 920167782, %v1941
      %v1957 = vshrl.u32 1326507024, %v1942
      %v1958 = vor.u32 %v1956, %v1957
      %vm1959 = vcmp.lt.s32.totalorder %v1940, 1
      %vm1960 = vcmp.lt.s32.totalorder %v1940, 2
      %vm1961 = vcmp.lt.s32.totalorder %v1940, 3
      %vm1962 = vcmp.lt.s32.totalorder %v1940, 4
      %v1963 = vsel %vm1959, %v1943, %v1946
      %v1964 = vsel %vm1962, %v1952, 2102212464
      %v1965 = vsel %vm1961, %v1949, %v1964
      %v1966 = vsel %vm1960, %v1963, %v1965
      %v1967 = vsel %vm1959, %v1946, %v1949
      %v1968 = vsel %vm1962, %v1955, 920167782
      %v1969 = vsel %vm1961, %v1952, %v1968
      %v1970 = vsel %vm1960, %v1967, %v1969
      %v1971 = vsel %vm1959, %v1949, %v1952
      %v1972 = vsel %vm1962, %v1958, 1326507024
      %v1973 = vsel %vm1961, %v1955, %v1972
      %v1974 = vsel %vm1960, %v1971, %v1973
      %v1975 = vshll.u32 %v1935, 8
      %v1976 = vmul.u32.u64.compose %v1975, %v1974
      %v1977 = vextract.low.u32 %v1976
      %v1978 = vextract.high.u32 %v1976
      %v1979 = vmul.u32.u64.compose %v1975, %v1970
      %v1980 = vextract.low.u32 %v1979
      %v1981 = vextract.high.u32 %v1979
      %v1982 = vmul.u32 %v1975, %v1966
      %v1983 = vadd.s32 %v1978, %v1980
      %vm1984 = vc.u32 %v1978, %v1980
      %v1985 = vadd.s32 %v1981, 1
      %v1986 = vsel %vm1984, %v1985, %v1981
      %v1987 = vadd.s32 %v1982, %v1986
      %v1988 = vadd.s32 %v1987, 536870912
      %v1989 = vshrl.u32 %v1988, 30
      %v1990 = vshll.u32 %v1989, 30
      %v1991 = vsub.s32 %v1987, %v1990
      %vm1992 = vcmp.lt.s32.totalorder %v1991, 0
      %v1993 = vsub.s32 0, %v1991
      %v1994 = vsel %vm1992, %v1993, %v1991
      %v1995 = vclz %v1994
      %v1996 = vsub.s32 %v1995, 2
      %vm1997 = vcmp.gt.s32.totalorder 0, %v1996
      %v1998 = vsel %vm1997, 0, %v1996
      %v1999 = vsub.s32 32, %v1998
      %v2000 = vshll.u32 %v1991, %v1998
      %v2001 = vshrl.u32 %v1983, %v1999
      %v2002 = vor.u32 %v2000, %v2001
      %v2003 = vsub.s32 4294967266, %v1998
      %v2004 = vadd.s32 %v2003, 127
      %v2005 = vshll.u32 %v2004, 23
      %v2006 = vor.u32 4788187, %v2005
      %v2007 = vand.u32 2147483647, %v2006
      %v2009 = vcvt.s32.f32 %v2002
      %v2010 = vmul.f32 %v2009, %v2007
      %v2011 = vxor.u32 %v2010, 2147483648
      %v2012 = vsel %vm1929, %v2011, %v2010
      %v2013 = vsub.s32 4, %v1989
      %v2014 = vsel %vm1929, %v2013, %v1989
      %v2015 = vsel %vm1928, %v789, %v2012
      %v2016 = vsel %vm1928, 0, %v2014
      %v2017 = vcosq.f32.pop %v2015
      %v2018 = vsinq.f32.pop %v2015
      %vm2019 = vweird.f32 %v789
      %v2020 = vand.u32 %v2016, 3
      %vm2021 = vcmp.lt.s32.totalorder %v2020, 2
      %vm2022 = vcmp.eq.s32.totalorder %v2020, 0
      %v2023 = vxor.u32 %v2018, 2147483648
      %v2024 = vsel %vm2022, %v2017, %v2023
      %vm2025 = vcmp.eq.s32.totalorder %v2020, 2
      %v2026 = vxor.u32 %v2017, 2147483648
      %v2027 = vsel %vm2025, %v2026, %v2018
      %v2028 = vsel %vm2021, %v2024, %v2027
      %v2029 = vsel %vm2019, nan, %v2028
      %v2030 = vand.u32 2147483647, %v790
      %vm2031 = vcmp.le.f32.partialorder %v2030, 0.7853982
      %vm2032 = vcmp.lt.s32.totalorder %v790, 0
      %v2033 = vand.u32 %v790, 2139095040
      %v2034 = vshrl.u32 %v2033, 23
      %v2035 = vsub.s32 %v2034, 127
      %v2036 = vand.u32 2147483647, %v790
      %v2037 = vand.u32 %v2036, 8388607
      %v2038 = vor.u32 %v2037, 8388608
      %v2039 = vsub.s32 0, %v2038
      %v2040 = vadd.s32 %v2035, 1
      %vm2041 = vcmp.gt.s32.totalorder %v2040, 0
      %v2042 = vsel %vm2041, %v2040, 0
      %v2043 = vshrl.u32 %v2042, 5
      %v2044 = vand.u32 %v2042, 31
      %v2045 = vsub.s32 32, %v2044
      %v2046 = vshrl.u32 683565275, %v2045
      %v2047 = vshll.u32 683565275, %v2044
      %v2048 = vshrl.u32 2475754826, %v2045
      %v2049 = vor.u32 %v2047, %v2048
      %v2050 = vshll.u32 2475754826, %v2044
      %v2051 = vshrl.u32 2131351028, %v2045
      %v2052 = vor.u32 %v2050, %v2051
      %v2053 = vshll.u32 2131351028, %v2044
      %v2054 = vshrl.u32 2102212464, %v2045
      %v2055 = vor.u32 %v2053, %v2054
      %v2056 = vshll.u32 2102212464, %v2044
      %v2057 = vshrl.u32 920167782, %v2045
      %v2058 = vor.u32 %v2056, %v2057
      %v2059 = vshll.u32 920167782, %v2044
      %v2060 = vshrl.u32 1326507024, %v2045
      %v2061 = vor.u32 %v2059, %v2060
      %vm2062 = vcmp.lt.s32.totalorder %v2043, 1
      %vm2063 = vcmp.lt.s32.totalorder %v2043, 2
      %vm2064 = vcmp.lt.s32.totalorder %v2043, 3
      %vm2065 = vcmp.lt.s32.totalorder %v2043, 4
      %v2066 = vsel %vm2062, %v2046, %v2049
      %v2067 = vsel %vm2065, %v2055, 2102212464
      %v2068 = vsel %vm2064, %v2052, %v2067
      %v2069 = vsel %vm2063, %v2066, %v2068
      %v2070 = vsel %vm2062, %v2049, %v2052
      %v2071 = vsel %vm2065, %v2058, 920167782
      %v2072 = vsel %vm2064, %v2055, %v2071
      %v2073 = vsel %vm2063, %v2070, %v2072
      %v2074 = vsel %vm2062, %v2052, %v2055
      %v2075 = vsel %vm2065, %v2061, 1326507024
      %v2076 = vsel %vm2064, %v2058, %v2075
      %v2077 = vsel %vm2063, %v2074, %v2076
      %v2078 = vshll.u32 %v2038, 8
      %v2079 = vmul.u32.u64.compose %v2078, %v2077
      %v2080 = vextract.low.u32 %v2079
      %v2081 = vextract.high.u32 %v2079
      %v2082 = vmul.u32.u64.compose %v2078, %v2073
      %v2083 = vextract.low.u32 %v2082
      %v2084 = vextract.high.u32 %v2082
      %v2085 = vmul.u32 %v2078, %v2069
      %v2086 = vadd.s32 %v2081, %v2083
      %vm2087 = vc.u32 %v2081, %v2083
      %v2088 = vadd.s32 %v2084, 1
      %v2089 = vsel %vm2087, %v2088, %v2084
      %v2090 = vadd.s32 %v2085, %v2089
      %v2091 = vadd.s32 %v2090, 536870912
      %v2092 = vshrl.u32 %v2091, 30
      %v2093 = vshll.u32 %v2092, 30
      %v2094 = vsub.s32 %v2090, %v2093
      %vm2095 = vcmp.lt.s32.totalorder %v2094, 0
      %v2096 = vsub.s32 0, %v2094
      %v2097 = vsel %vm2095, %v2096, %v2094
      %v2098 = vclz %v2097
      %v2099 = vsub.s32 %v2098, 2
      %vm2100 = vcmp.gt.s32.totalorder 0, %v2099
      %v2101 = vsel %vm2100, 0, %v2099
      %v2102 = vsub.s32 32, %v2101
      %v2103 = vshll.u32 %v2094, %v2101
      %v2104 = vshrl.u32 %v2086, %v2102
      %v2105 = vor.u32 %v2103, %v2104
      %v2106 = vsub.s32 4294967266, %v2101
      %v2107 = vadd.s32 %v2106, 127
      %v2108 = vshll.u32 %v2107, 23
      %v2109 = vor.u32 4788187, %v2108
      %v2110 = vand.u32 2147483647, %v2109
      %v2112 = vcvt.s32.f32 %v2105
      %v2113 = vmul.f32 %v2112, %v2110
      %v2114 = vxor.u32 %v2113, 2147483648
      %v2115 = vsel %vm2032, %v2114, %v2113
      %v2116 = vsub.s32 4, %v2092
      %v2117 = vsel %vm2032, %v2116, %v2092
      %v2118 = vsel %vm2031, %v790, %v2115
      %v2119 = vsel %vm2031, 0, %v2117
      %v2120 = vcosq.f32.pop %v2118
      %v2121 = vsinq.f32.pop %v2118
      %vm2122 = vweird.f32 %v790
      %v2123 = vand.u32 %v2119, 3
      %vm2124 = vcmp.lt.s32.totalorder %v2123, 2
      %vm2125 = vcmp.eq.s32.totalorder %v2123, 0
      %v2126 = vxor.u32 %v2121, 2147483648
      %v2127 = vsel %vm2125, %v2120, %v2126
      %vm2128 = vcmp.eq.s32.totalorder %v2123, 2
      %v2129 = vxor.u32 %v2120, 2147483648
      %v2130 = vsel %vm2128, %v2129, %v2121
      %v2131 = vsel %vm2124, %v2127, %v2130
      %v2132 = vsel %vm2122, nan, %v2131
      %v2133 = vand.u32 2147483647, %v791
      %vm2134 = vcmp.le.f32.partialorder %v2133, 0.7853982
      %vm2135 = vcmp.lt.s32.totalorder %v791, 0
      %v2136 = vand.u32 %v791, 2139095040
      %v2137 = vshrl.u32 %v2136, 23
      %v2138 = vsub.s32 %v2137, 127
      %v2139 = vand.u32 2147483647, %v791
      %v2140 = vand.u32 %v2139, 8388607
      %v2141 = vor.u32 %v2140, 8388608
      %v2142 = vsub.s32 0, %v2141
      %v2143 = vadd.s32 %v2138, 1
      %vm2144 = vcmp.gt.s32.totalorder %v2143, 0
      %v2145 = vsel %vm2144, %v2143, 0
      %v2146 = vshrl.u32 %v2145, 5
      %v2147 = vand.u32 %v2145, 31
      %v2148 = vsub.s32 32, %v2147
      %v2149 = vshrl.u32 683565275, %v2148
      %v2150 = vshll.u32 683565275, %v2147
      %v2151 = vshrl.u32 2475754826, %v2148
      %v2152 = vor.u32 %v2150, %v2151
      %v2153 = vshll.u32 2475754826, %v2147
      %v2154 = vshrl.u32 2131351028, %v2148
      %v2155 = vor.u32 %v2153, %v2154
      %v2156 = vshll.u32 2131351028, %v2147
      %v2157 = vshrl.u32 2102212464, %v2148
      %v2158 = vor.u32 %v2156, %v2157
      %v2159 = vshll.u32 2102212464, %v2147
      %v2160 = vshrl.u32 920167782, %v2148
      %v2161 = vor.u32 %v2159, %v2160
      %v2162 = vshll.u32 920167782, %v2147
      %v2163 = vshrl.u32 1326507024, %v2148
      %v2164 = vor.u32 %v2162, %v2163
      %vm2165 = vcmp.lt.s32.totalorder %v2146, 1
      %vm2166 = vcmp.lt.s32.totalorder %v2146, 2
      %vm2167 = vcmp.lt.s32.totalorder %v2146, 3
      %vm2168 = vcmp.lt.s32.totalorder %v2146, 4
      %v2169 = vsel %vm2165, %v2149, %v2152
      %v2170 = vsel %vm2168, %v2158, 2102212464
      %v2171 = vsel %vm2167, %v2155, %v2170
      %v2172 = vsel %vm2166, %v2169, %v2171
      %v2173 = vsel %vm2165, %v2152, %v2155
      %v2174 = vsel %vm2168, %v2161, 920167782
      %v2175 = vsel %vm2167, %v2158, %v2174
      %v2176 = vsel %vm2166, %v2173, %v2175
      %v2177 = vsel %vm2165, %v2155, %v2158
      %v2178 = vsel %vm2168, %v2164, 1326507024
      %v2179 = vsel %vm2167, %v2161, %v2178
      %v2180 = vsel %vm2166, %v2177, %v2179
      %v2181 = vshll.u32 %v2141, 8
      %v2182 = vmul.u32.u64.compose %v2181, %v2180
      %v2183 = vextract.low.u32 %v2182
      %v2184 = vextract.high.u32 %v2182
      %v2185 = vmul.u32.u64.compose %v2181, %v2176
      %v2186 = vextract.low.u32 %v2185
      %v2187 = vextract.high.u32 %v2185
      %v2188 = vmul.u32 %v2181, %v2172
      %v2189 = vadd.s32 %v2184, %v2186
      %vm2190 = vc.u32 %v2184, %v2186
      %v2191 = vadd.s32 %v2187, 1
      %v2192 = vsel %vm2190, %v2191, %v2187
      %v2193 = vadd.s32 %v2188, %v2192
      %v2194 = vadd.s32 %v2193, 536870912
      %v2195 = vshrl.u32 %v2194, 30
      %v2196 = vshll.u32 %v2195, 30
      %v2197 = vsub.s32 %v2193, %v2196
      %vm2198 = vcmp.lt.s32.totalorder %v2197, 0
      %v2199 = vsub.s32 0, %v2197
      %v2200 = vsel %vm2198, %v2199, %v2197
      %v2201 = vclz %v2200
      %v2202 = vsub.s32 %v2201, 2
      %vm2203 = vcmp.gt.s32.totalorder 0, %v2202
      %v2204 = vsel %vm2203, 0, %v2202
      %v2205 = vsub.s32 32, %v2204
      %v2206 = vshll.u32 %v2197, %v2204
      %v2207 = vshrl.u32 %v2189, %v2205
      %v2208 = vor.u32 %v2206, %v2207
      %v2209 = vsub.s32 4294967266, %v2204
      %v2210 = vadd.s32 %v2209, 127
      %v2211 = vshll.u32 %v2210, 23
      %v2212 = vor.u32 4788187, %v2211
      %v2213 = vand.u32 2147483647, %v2212
      %v2215 = vcvt.s32.f32 %v2208
      %v2216 = vmul.f32 %v2215, %v2213
      %v2217 = vxor.u32 %v2216, 2147483648
      %v2218 = vsel %vm2135, %v2217, %v2216
      %v2219 = vsub.s32 4, %v2195
      %v2220 = vsel %vm2135, %v2219, %v2195
      %v2221 = vsel %vm2134, %v791, %v2218
      %v2222 = vsel %vm2134, 0, %v2220
      %v2223 = vcosq.f32.pop %v2221
      %v2224 = vsinq.f32.pop %v2221
      %vm2225 = vweird.f32 %v791
      %v2226 = vand.u32 %v2222, 3
      %vm2227 = vcmp.lt.s32.totalorder %v2226, 2
      %vm2228 = vcmp.eq.s32.totalorder %v2226, 0
      %v2229 = vxor.u32 %v2224, 2147483648
      %v2230 = vsel %vm2228, %v2223, %v2229
      %vm2231 = vcmp.eq.s32.totalorder %v2226, 2
      %v2232 = vxor.u32 %v2223, 2147483648
      %v2233 = vsel %vm2231, %v2232, %v2224
      %v2234 = vsel %vm2227, %v2230, %v2233
      %v2235 = vsel %vm2225, nan, %v2234
      %v2236 = vand.u32 2147483647, %v792
      %vm2237 = vcmp.le.f32.partialorder %v2236, 0.7853982
      %vm2238 = vcmp.lt.s32.totalorder %v792, 0
      %v2239 = vand.u32 %v792, 2139095040
      %v2240 = vshrl.u32 %v2239, 23
      %v2241 = vsub.s32 %v2240, 127
      %v2242 = vand.u32 2147483647, %v792
      %v2243 = vand.u32 %v2242, 8388607
      %v2244 = vor.u32 %v2243, 8388608
      %v2245 = vsub.s32 0, %v2244
      %v2246 = vadd.s32 %v2241, 1
      %vm2247 = vcmp.gt.s32.totalorder %v2246, 0
      %v2248 = vsel %vm2247, %v2246, 0
      %v2249 = vshrl.u32 %v2248, 5
      %v2250 = vand.u32 %v2248, 31
      %v2251 = vsub.s32 32, %v2250
      %v2252 = vshrl.u32 683565275, %v2251
      %v2253 = vshll.u32 683565275, %v2250
      %v2254 = vshrl.u32 2475754826, %v2251
      %v2255 = vor.u32 %v2253, %v2254
      %v2256 = vshll.u32 2475754826, %v2250
      %v2257 = vshrl.u32 2131351028, %v2251
      %v2258 = vor.u32 %v2256, %v2257
      %v2259 = vshll.u32 2131351028, %v2250
      %v2260 = vshrl.u32 2102212464, %v2251
      %v2261 = vor.u32 %v2259, %v2260
      %v2262 = vshll.u32 2102212464, %v2250
      %v2263 = vshrl.u32 920167782, %v2251
      %v2264 = vor.u32 %v2262, %v2263
      %v2265 = vshll.u32 920167782, %v2250
      %v2266 = vshrl.u32 1326507024, %v2251
      %v2267 = vor.u32 %v2265, %v2266
      %vm2268 = vcmp.lt.s32.totalorder %v2249, 1
      %vm2269 = vcmp.lt.s32.totalorder %v2249, 2
      %vm2270 = vcmp.lt.s32.totalorder %v2249, 3
      %vm2271 = vcmp.lt.s32.totalorder %v2249, 4
      %v2272 = vsel %vm2268, %v2252, %v2255
      %v2273 = vsel %vm2271, %v2261, 2102212464
      %v2274 = vsel %vm2270, %v2258, %v2273
      %v2275 = vsel %vm2269, %v2272, %v2274
      %v2276 = vsel %vm2268, %v2255, %v2258
      %v2277 = vsel %vm2271, %v2264, 920167782
      %v2278 = vsel %vm2270, %v2261, %v2277
      %v2279 = vsel %vm2269, %v2276, %v2278
      %v2280 = vsel %vm2268, %v2258, %v2261
      %v2281 = vsel %vm2271, %v2267, 1326507024
      %v2282 = vsel %vm2270, %v2264, %v2281
      %v2283 = vsel %vm2269, %v2280, %v2282
      %v2284 = vshll.u32 %v2244, 8
      %v2285 = vmul.u32.u64.compose %v2284, %v2283
      %v2286 = vextract.low.u32 %v2285
      %v2287 = vextract.high.u32 %v2285
      %v2288 = vmul.u32.u64.compose %v2284, %v2279
      %v2289 = vextract.low.u32 %v2288
      %v2290 = vextract.high.u32 %v2288
      %v2291 = vmul.u32 %v2284, %v2275
      %v2292 = vadd.s32 %v2287, %v2289
      %vm2293 = vc.u32 %v2287, %v2289
      %v2294 = vadd.s32 %v2290, 1
      %v2295 = vsel %vm2293, %v2294, %v2290
      %v2296 = vadd.s32 %v2291, %v2295
      %v2297 = vadd.s32 %v2296, 536870912
      %v2298 = vshrl.u32 %v2297, 30
      %v2299 = vshll.u32 %v2298, 30
      %v2300 = vsub.s32 %v2296, %v2299
      %vm2301 = vcmp.lt.s32.totalorder %v2300, 0
      %v2302 = vsub.s32 0, %v2300
      %v2303 = vsel %vm2301, %v2302, %v2300
      %v2304 = vclz %v2303
      %v2305 = vsub.s32 %v2304, 2
      %vm2306 = vcmp.gt.s32.totalorder 0, %v2305
      %v2307 = vsel %vm2306, 0, %v2305
      %v2308 = vsub.s32 32, %v2307
      %v2309 = vshll.u32 %v2300, %v2307
      %v2310 = vshrl.u32 %v2292, %v2308
      %v2311 = vor.u32 %v2309, %v2310
      %v2312 = vsub.s32 4294967266, %v2307
      %v2313 = vadd.s32 %v2312, 127
      %v2314 = vshll.u32 %v2313, 23
      %v2315 = vor.u32 4788187, %v2314
      %v2316 = vand.u32 2147483647, %v2315
      %v2318 = vcvt.s32.f32 %v2311
      %v2319 = vmul.f32 %v2318, %v2316
      %v2320 = vxor.u32 %v2319, 2147483648
      %v2321 = vsel %vm2238, %v2320, %v2319
      %v2322 = vsub.s32 4, %v2298
      %v2323 = vsel %vm2238, %v2322, %v2298
      %v2324 = vsel %vm2237, %v792, %v2321
      %v2325 = vsel %vm2237, 0, %v2323
      %v2326 = vcosq.f32.pop %v2324
      %v2327 = vsinq.f32.pop %v2324
      %vm2328 = vweird.f32 %v792
      %v2329 = vand.u32 %v2325, 3
      %vm2330 = vcmp.lt.s32.totalorder %v2329, 2
      %vm2331 = vcmp.eq.s32.totalorder %v2329, 0
      %v2332 = vxor.u32 %v2327, 2147483648
      %v2333 = vsel %vm2331, %v2326, %v2332
      %vm2334 = vcmp.eq.s32.totalorder %v2329, 2
      %v2335 = vxor.u32 %v2326, 2147483648
      %v2336 = vsel %vm2334, %v2335, %v2327
      %v2337 = vsel %vm2330, %v2333, %v2336
      %v2338 = vsel %vm2328, nan, %v2337
      %v2339 = vand.u32 2147483647, %v793
      %vm2340 = vcmp.le.f32.partialorder %v2339, 0.7853982
      %vm2341 = vcmp.lt.s32.totalorder %v793, 0
      %v2342 = vand.u32 %v793, 2139095040
      %v2343 = vshrl.u32 %v2342, 23
      %v2344 = vsub.s32 %v2343, 127
      %v2345 = vand.u32 2147483647, %v793
      %v2346 = vand.u32 %v2345, 8388607
      %v2347 = vor.u32 %v2346, 8388608
      %v2348 = vsub.s32 0, %v2347
      %v2349 = vadd.s32 %v2344, 1
      %vm2350 = vcmp.gt.s32.totalorder %v2349, 0
      %v2351 = vsel %vm2350, %v2349, 0
      %v2352 = vshrl.u32 %v2351, 5
      %v2353 = vand.u32 %v2351, 31
      %v2354 = vsub.s32 32, %v2353
      %v2355 = vshrl.u32 683565275, %v2354
      %v2356 = vshll.u32 683565275, %v2353
      %v2357 = vshrl.u32 2475754826, %v2354
      %v2358 = vor.u32 %v2356, %v2357
      %v2359 = vshll.u32 2475754826, %v2353
      %v2360 = vshrl.u32 2131351028, %v2354
      %v2361 = vor.u32 %v2359, %v2360
      %v2362 = vshll.u32 2131351028, %v2353
      %v2363 = vshrl.u32 2102212464, %v2354
      %v2364 = vor.u32 %v2362, %v2363
      %v2365 = vshll.u32 2102212464, %v2353
      %v2366 = vshrl.u32 920167782, %v2354
      %v2367 = vor.u32 %v2365, %v2366
      %v2368 = vshll.u32 920167782, %v2353
      %v2369 = vshrl.u32 1326507024, %v2354
      %v2370 = vor.u32 %v2368, %v2369
      %vm2371 = vcmp.lt.s32.totalorder %v2352, 1
      %vm2372 = vcmp.lt.s32.totalorder %v2352, 2
      %vm2373 = vcmp.lt.s32.totalorder %v2352, 3
      %vm2374 = vcmp.lt.s32.totalorder %v2352, 4
      %v2375 = vsel %vm2371, %v2355, %v2358
      %v2376 = vsel %vm2374, %v2364, 2102212464
      %v2377 = vsel %vm2373, %v2361, %v2376
      %v2378 = vsel %vm2372, %v2375, %v2377
      %v2379 = vsel %vm2371, %v2358, %v2361
      %v2380 = vsel %vm2374, %v2367, 920167782
      %v2381 = vsel %vm2373, %v2364, %v2380
      %v2382 = vsel %vm2372, %v2379, %v2381
      %v2383 = vsel %vm2371, %v2361, %v2364
      %v2384 = vsel %vm2374, %v2370, 1326507024
      %v2385 = vsel %vm2373, %v2367, %v2384
      %v2386 = vsel %vm2372, %v2383, %v2385
      %v2387 = vshll.u32 %v2347, 8
      %v2388 = vmul.u32.u64.compose %v2387, %v2386
      %v2389 = vextract.low.u32 %v2388
      %v2390 = vextract.high.u32 %v2388
      %v2391 = vmul.u32.u64.compose %v2387, %v2382
      %v2392 = vextract.low.u32 %v2391
      %v2393 = vextract.high.u32 %v2391
      %v2394 = vmul.u32 %v2387, %v2378
      %v2395 = vadd.s32 %v2390, %v2392
      %vm2396 = vc.u32 %v2390, %v2392
      %v2397 = vadd.s32 %v2393, 1
      %v2398 = vsel %vm2396, %v2397, %v2393
      %v2399 = vadd.s32 %v2394, %v2398
      %v2400 = vadd.s32 %v2399, 536870912
      %v2401 = vshrl.u32 %v2400, 30
      %v2402 = vshll.u32 %v2401, 30
      %v2403 = vsub.s32 %v2399, %v2402
      %vm2404 = vcmp.lt.s32.totalorder %v2403, 0
      %v2405 = vsub.s32 0, %v2403
      %v2406 = vsel %vm2404, %v2405, %v2403
      %v2407 = vclz %v2406
      %v2408 = vsub.s32 %v2407, 2
      %vm2409 = vcmp.gt.s32.totalorder 0, %v2408
      %v2410 = vsel %vm2409, 0, %v2408
      %v2411 = vsub.s32 32, %v2410
      %v2412 = vshll.u32 %v2403, %v2410
      %v2413 = vshrl.u32 %v2395, %v2411
      %v2414 = vor.u32 %v2412, %v2413
      %v2415 = vsub.s32 4294967266, %v2410
      %v2416 = vadd.s32 %v2415, 127
      %v2417 = vshll.u32 %v2416, 23
      %v2418 = vor.u32 4788187, %v2417
      %v2419 = vand.u32 2147483647, %v2418
      %v2421 = vcvt.s32.f32 %v2414
      %v2422 = vmul.f32 %v2421, %v2419
      %v2423 = vxor.u32 %v2422, 2147483648
      %v2424 = vsel %vm2341, %v2423, %v2422
      %v2425 = vsub.s32 4, %v2401
      %v2426 = vsel %vm2341, %v2425, %v2401
      %v2427 = vsel %vm2340, %v793, %v2424
      %v2428 = vsel %vm2340, 0, %v2426
      %v2429 = vcosq.f32.pop %v2427
      %v2430 = vsinq.f32.pop %v2427
      %vm2431 = vweird.f32 %v793
      %v2432 = vand.u32 %v2428, 3
      %vm2433 = vcmp.lt.s32.totalorder %v2432, 2
      %vm2434 = vcmp.eq.s32.totalorder %v2432, 0
      %v2435 = vxor.u32 %v2430, 2147483648
      %v2436 = vsel %vm2434, %v2429, %v2435
      %vm2437 = vcmp.eq.s32.totalorder %v2432, 2
      %v2438 = vxor.u32 %v2429, 2147483648
      %v2439 = vsel %vm2437, %v2438, %v2430
      %v2440 = vsel %vm2433, %v2436, %v2439
      %v2441 = vsel %vm2431, nan, %v2440
      %v2442 = vpack.c.bf16 %v999, %v896
      %v2443 = vpack.c.bf16 %v1205, %v1102
      %v2444 = vpack.c.bf16 %v1411, %v1308
      %v2445 = vpack.c.bf16 %v1617, %v1514
      %v2446 = vpack.c.bf16 %v1823, %v1720
      %v2447 = vpack.c.bf16 %v2029, %v1926
      %v2448 = vpack.c.bf16 %v2235, %v2132
      %v2449 = vpack.c.bf16 %v2441, %v2338
      %v2450 = vand.u32 2147483647, %v778
      %vm2451 = vcmp.le.f32.partialorder %v2450, 0.7853982
      %vm2452 = vcmp.lt.s32.totalorder %v778, 0
      %v2453 = vand.u32 %v778, 2139095040
      %v2454 = vshrl.u32 %v2453, 23
      %v2455 = vsub.s32 %v2454, 127
      %v2456 = vand.u32 2147483647, %v778
      %v2457 = vand.u32 %v2456, 8388607
      %v2458 = vor.u32 %v2457, 8388608
      %v2459 = vsub.s32 0, %v2458
      %v2460 = vadd.s32 %v2455, 1
      %vm2461 = vcmp.gt.s32.totalorder %v2460, 0
      %v2462 = vsel %vm2461, %v2460, 0
      %v2463 = vshrl.u32 %v2462, 5
      %v2464 = vand.u32 %v2462, 31
      %v2465 = vsub.s32 32, %v2464
      %v2466 = vshrl.u32 683565275, %v2465
      %v2467 = vshll.u32 683565275, %v2464
      %v2468 = vshrl.u32 2475754826, %v2465
      %v2469 = vor.u32 %v2467, %v2468
      %v2470 = vshll.u32 2475754826, %v2464
      %v2471 = vshrl.u32 2131351028, %v2465
      %v2472 = vor.u32 %v2470, %v2471
      %v2473 = vshll.u32 2131351028, %v2464
      %v2474 = vshrl.u32 2102212464, %v2465
      %v2475 = vor.u32 %v2473, %v2474
      %v2476 = vshll.u32 2102212464, %v2464
      %v2477 = vshrl.u32 920167782, %v2465
      %v2478 = vor.u32 %v2476, %v2477
      %v2479 = vshll.u32 920167782, %v2464
      %v2480 = vshrl.u32 1326507024, %v2465
      %v2481 = vor.u32 %v2479, %v2480
      %vm2482 = vcmp.lt.s32.totalorder %v2463, 1
      %vm2483 = vcmp.lt.s32.totalorder %v2463, 2
      %vm2484 = vcmp.lt.s32.totalorder %v2463, 3
      %vm2485 = vcmp.lt.s32.totalorder %v2463, 4
      %v2486 = vsel %vm2482, %v2466, %v2469
      %v2487 = vsel %vm2485, %v2475, 2102212464
      %v2488 = vsel %vm2484, %v2472, %v2487
      %v2489 = vsel %vm2483, %v2486, %v2488
      %v2490 = vsel %vm2482, %v2469, %v2472
      %v2491 = vsel %vm2485, %v2478, 920167782
      %v2492 = vsel %vm2484, %v2475, %v2491
      %v2493 = vsel %vm2483, %v2490, %v2492
      %v2494 = vsel %vm2482, %v2472, %v2475
      %v2495 = vsel %vm2485, %v2481, 1326507024
      %v2496 = vsel %vm2484, %v2478, %v2495
      %v2497 = vsel %vm2483, %v2494, %v2496
      %v2498 = vshll.u32 %v2458, 8
      %v2499 = vmul.u32.u64.compose %v2498, %v2497
      %v2500 = vextract.low.u32 %v2499
      %v2501 = vextract.high.u32 %v2499
      %v2502 = vmul.u32.u64.compose %v2498, %v2493
      %v2503 = vextract.low.u32 %v2502
      %v2504 = vextract.high.u32 %v2502
      %v2505 = vmul.u32 %v2498, %v2489
      %v2506 = vadd.s32 %v2501, %v2503
      %vm2507 = vc.u32 %v2501, %v2503
      %v2508 = vadd.s32 %v2504, 1
      %v2509 = vsel %vm2507, %v2508, %v2504
      %v2510 = vadd.s32 %v2505, %v2509
      %v2511 = vadd.s32 %v2510, 536870912
      %v2512 = vshrl.u32 %v2511, 30
      %v2513 = vshll.u32 %v2512, 30
      %v2514 = vsub.s32 %v2510, %v2513
      %vm2515 = vcmp.lt.s32.totalorder %v2514, 0
      %v2516 = vsub.s32 0, %v2514
      %v2517 = vsel %vm2515, %v2516, %v2514
      %v2518 = vclz %v2517
      %v2519 = vsub.s32 %v2518, 2
      %vm2520 = vcmp.gt.s32.totalorder 0, %v2519
      %v2521 = vsel %vm2520, 0, %v2519
      %v2522 = vsub.s32 32, %v2521
      %v2523 = vshll.u32 %v2514, %v2521
      %v2524 = vshrl.u32 %v2506, %v2522
      %v2525 = vor.u32 %v2523, %v2524
      %v2526 = vsub.s32 4294967266, %v2521
      %v2527 = vadd.s32 %v2526, 127
      %v2528 = vshll.u32 %v2527, 23
      %v2529 = vor.u32 4788187, %v2528
      %v2530 = vand.u32 2147483647, %v2529
      %v2532 = vcvt.s32.f32 %v2525
      %v2533 = vmul.f32 %v2532, %v2530
      %v2534 = vxor.u32 %v2533, 2147483648
      %v2535 = vsel %vm2452, %v2534, %v2533
      %v2536 = vsub.s32 4, %v2512
      %v2537 = vsel %vm2452, %v2536, %v2512
      %v2538 = vsel %vm2451, %v778, %v2535
      %v2539 = vsel %vm2451, 0, %v2537
      %v2540 = vcosq.f32.pop %v2538
      %v2541 = vsinq.f32.pop %v2538
      %vm2542 = vweird.f32 %v778
      %v2543 = vadd.s32 %v2539, 3
      %v2544 = vand.u32 %v2543, 3
      %vm2545 = vcmp.lt.s32.totalorder %v2544, 2
      %vm2546 = vcmp.eq.s32.totalorder %v2544, 0
      %v2547 = vxor.u32 %v2541, 2147483648
      %v2548 = vsel %vm2546, %v2540, %v2547
      %vm2549 = vcmp.eq.s32.totalorder %v2544, 2
      %v2550 = vxor.u32 %v2540, 2147483648
      %v2551 = vsel %vm2549, %v2550, %v2541
      %v2552 = vsel %vm2545, %v2548, %v2551
      %v2553 = vsel %vm2542, nan, %v2552
      %v2554 = vand.u32 2147483647, %v779
      %vm2555 = vcmp.le.f32.partialorder %v2554, 0.7853982
      %vm2556 = vcmp.lt.s32.totalorder %v779, 0
      %v2557 = vand.u32 %v779, 2139095040
      %v2558 = vshrl.u32 %v2557, 23
      %v2559 = vsub.s32 %v2558, 127
      %v2560 = vand.u32 2147483647, %v779
      %v2561 = vand.u32 %v2560, 8388607
      %v2562 = vor.u32 %v2561, 8388608
      %v2563 = vsub.s32 0, %v2562
      %v2564 = vadd.s32 %v2559, 1
      %vm2565 = vcmp.gt.s32.totalorder %v2564, 0
      %v2566 = vsel %vm2565, %v2564, 0
      %v2567 = vshrl.u32 %v2566, 5
      %v2568 = vand.u32 %v2566, 31
      %v2569 = vsub.s32 32, %v2568
      %v2570 = vshrl.u32 683565275, %v2569
      %v2571 = vshll.u32 683565275, %v2568
      %v2572 = vshrl.u32 2475754826, %v2569
      %v2573 = vor.u32 %v2571, %v2572
      %v2574 = vshll.u32 2475754826, %v2568
      %v2575 = vshrl.u32 2131351028, %v2569
      %v2576 = vor.u32 %v2574, %v2575
      %v2577 = vshll.u32 2131351028, %v2568
      %v2578 = vshrl.u32 2102212464, %v2569
      %v2579 = vor.u32 %v2577, %v2578
      %v2580 = vshll.u32 2102212464, %v2568
      %v2581 = vshrl.u32 920167782, %v2569
      %v2582 = vor.u32 %v2580, %v2581
      %v2583 = vshll.u32 920167782, %v2568
      %v2584 = vshrl.u32 1326507024, %v2569
      %v2585 = vor.u32 %v2583, %v2584
      %vm2586 = vcmp.lt.s32.totalorder %v2567, 1
      %vm2587 = vcmp.lt.s32.totalorder %v2567, 2
      %vm2588 = vcmp.lt.s32.totalorder %v2567, 3
      %vm2589 = vcmp.lt.s32.totalorder %v2567, 4
      %v2590 = vsel %vm2586, %v2570, %v2573
      %v2591 = vsel %vm2589, %v2579, 2102212464
      %v2592 = vsel %vm2588, %v2576, %v2591
      %v2593 = vsel %vm2587, %v2590, %v2592
      %v2594 = vsel %vm2586, %v2573, %v2576
      %v2595 = vsel %vm2589, %v2582, 920167782
      %v2596 = vsel %vm2588, %v2579, %v2595
      %v2597 = vsel %vm2587, %v2594, %v2596
      %v2598 = vsel %vm2586, %v2576, %v2579
      %v2599 = vsel %vm2589, %v2585, 1326507024
      %v2600 = vsel %vm2588, %v2582, %v2599
      %v2601 = vsel %vm2587, %v2598, %v2600
      %v2602 = vshll.u32 %v2562, 8
      %v2603 = vmul.u32.u64.compose %v2602, %v2601
      %v2604 = vextract.low.u32 %v2603
      %v2605 = vextract.high.u32 %v2603
      %v2606 = vmul.u32.u64.compose %v2602, %v2597
      %v2607 = vextract.low.u32 %v2606
      %v2608 = vextract.high.u32 %v2606
      %v2609 = vmul.u32 %v2602, %v2593
      %v2610 = vadd.s32 %v2605, %v2607
      %vm2611 = vc.u32 %v2605, %v2607
      %v2612 = vadd.s32 %v2608, 1
      %v2613 = vsel %vm2611, %v2612, %v2608
      %v2614 = vadd.s32 %v2609, %v2613
      %v2615 = vadd.s32 %v2614, 536870912
      %v2616 = vshrl.u32 %v2615, 30
      %v2617 = vshll.u32 %v2616, 30
      %v2618 = vsub.s32 %v2614, %v2617
      %vm2619 = vcmp.lt.s32.totalorder %v2618, 0
      %v2620 = vsub.s32 0, %v2618
      %v2621 = vsel %vm2619, %v2620, %v2618
      %v2622 = vclz %v2621
      %v2623 = vsub.s32 %v2622, 2
      %vm2624 = vcmp.gt.s32.totalorder 0, %v2623
      %v2625 = vsel %vm2624, 0, %v2623
      %v2626 = vsub.s32 32, %v2625
      %v2627 = vshll.u32 %v2618, %v2625
      %v2628 = vshrl.u32 %v2610, %v2626
      %v2629 = vor.u32 %v2627, %v2628
      %v2630 = vsub.s32 4294967266, %v2625
      %v2631 = vadd.s32 %v2630, 127
      %v2632 = vshll.u32 %v2631, 23
      %v2633 = vor.u32 4788187, %v2632
      %v2634 = vand.u32 2147483647, %v2633
      %v2636 = vcvt.s32.f32 %v2629
      %v2637 = vmul.f32 %v2636, %v2634
      %v2638 = vxor.u32 %v2637, 2147483648
      %v2639 = vsel %vm2556, %v2638, %v2637
      %v2640 = vsub.s32 4, %v2616
      %v2641 = vsel %vm2556, %v2640, %v2616
      %v2642 = vsel %vm2555, %v779, %v2639
      %v2643 = vsel %vm2555, 0, %v2641
      %v2644 = vcosq.f32.pop %v2642
      %v2645 = vsinq.f32.pop %v2642
      %vm2646 = vweird.f32 %v779
      %v2647 = vadd.s32 %v2643, 3
      %v2648 = vand.u32 %v2647, 3
      %vm2649 = vcmp.lt.s32.totalorder %v2648, 2
      %vm2650 = vcmp.eq.s32.totalorder %v2648, 0
      %v2651 = vxor.u32 %v2645, 2147483648
      %v2652 = vsel %vm2650, %v2644, %v2651
      %vm2653 = vcmp.eq.s32.totalorder %v2648, 2
      %v2654 = vxor.u32 %v2644, 2147483648
      %v2655 = vsel %vm2653, %v2654, %v2645
      %v2656 = vsel %vm2649, %v2652, %v2655
      %v2657 = vsel %vm2646, nan, %v2656
      %v2658 = vand.u32 2147483647, %v780
      %vm2659 = vcmp.le.f32.partialorder %v2658, 0.7853982
      %vm2660 = vcmp.lt.s32.totalorder %v780, 0
      %v2661 = vand.u32 %v780, 2139095040
      %v2662 = vshrl.u32 %v2661, 23
      %v2663 = vsub.s32 %v2662, 127
      %v2664 = vand.u32 2147483647, %v780
      %v2665 = vand.u32 %v2664, 8388607
      %v2666 = vor.u32 %v2665, 8388608
      %v2667 = vsub.s32 0, %v2666
      %v2668 = vadd.s32 %v2663, 1
      %vm2669 = vcmp.gt.s32.totalorder %v2668, 0
      %v2670 = vsel %vm2669, %v2668, 0
      %v2671 = vshrl.u32 %v2670, 5
      %v2672 = vand.u32 %v2670, 31
      %v2673 = vsub.s32 32, %v2672
      %v2674 = vshrl.u32 683565275, %v2673
      %v2675 = vshll.u32 683565275, %v2672
      %v2676 = vshrl.u32 2475754826, %v2673
      %v2677 = vor.u32 %v2675, %v2676
      %v2678 = vshll.u32 2475754826, %v2672
      %v2679 = vshrl.u32 2131351028, %v2673
      %v2680 = vor.u32 %v2678, %v2679
      %v2681 = vshll.u32 2131351028, %v2672
      %v2682 = vshrl.u32 2102212464, %v2673
      %v2683 = vor.u32 %v2681, %v2682
      %v2684 = vshll.u32 2102212464, %v2672
      %v2685 = vshrl.u32 920167782, %v2673
      %v2686 = vor.u32 %v2684, %v2685
      %v2687 = vshll.u32 920167782, %v2672
      %v2688 = vshrl.u32 1326507024, %v2673
      %v2689 = vor.u32 %v2687, %v2688
      %vm2690 = vcmp.lt.s32.totalorder %v2671, 1
      %vm2691 = vcmp.lt.s32.totalorder %v2671, 2
      %vm2692 = vcmp.lt.s32.totalorder %v2671, 3
      %vm2693 = vcmp.lt.s32.totalorder %v2671, 4
      %v2694 = vsel %vm2690, %v2674, %v2677
      %v2695 = vsel %vm2693, %v2683, 2102212464
      %v2696 = vsel %vm2692, %v2680, %v2695
      %v2697 = vsel %vm2691, %v2694, %v2696
      %v2698 = vsel %vm2690, %v2677, %v2680
      %v2699 = vsel %vm2693, %v2686, 920167782
      %v2700 = vsel %vm2692, %v2683, %v2699
      %v2701 = vsel %vm2691, %v2698, %v2700
      %v2702 = vsel %vm2690, %v2680, %v2683
      %v2703 = vsel %vm2693, %v2689, 1326507024
      %v2704 = vsel %vm2692, %v2686, %v2703
      %v2705 = vsel %vm2691, %v2702, %v2704
      %v2706 = vshll.u32 %v2666, 8
      %v2707 = vmul.u32.u64.compose %v2706, %v2705
      %v2708 = vextract.low.u32 %v2707
      %v2709 = vextract.high.u32 %v2707
      %v2710 = vmul.u32.u64.compose %v2706, %v2701
      %v2711 = vextract.low.u32 %v2710
      %v2712 = vextract.high.u32 %v2710
      %v2713 = vmul.u32 %v2706, %v2697
      %v2714 = vadd.s32 %v2709, %v2711
      %vm2715 = vc.u32 %v2709, %v2711
      %v2716 = vadd.s32 %v2712, 1
      %v2717 = vsel %vm2715, %v2716, %v2712
      %v2718 = vadd.s32 %v2713, %v2717
      %v2719 = vadd.s32 %v2718, 536870912
      %v2720 = vshrl.u32 %v2719, 30
      %v2721 = vshll.u32 %v2720, 30
      %v2722 = vsub.s32 %v2718, %v2721
      %vm2723 = vcmp.lt.s32.totalorder %v2722, 0
      %v2724 = vsub.s32 0, %v2722
      %v2725 = vsel %vm2723, %v2724, %v2722
      %v2726 = vclz %v2725
      %v2727 = vsub.s32 %v2726, 2
      %vm2728 = vcmp.gt.s32.totalorder 0, %v2727
      %v2729 = vsel %vm2728, 0, %v2727
      %v2730 = vsub.s32 32, %v2729
      %v2731 = vshll.u32 %v2722, %v2729
      %v2732 = vshrl.u32 %v2714, %v2730
      %v2733 = vor.u32 %v2731, %v2732
      %v2734 = vsub.s32 4294967266, %v2729
      %v2735 = vadd.s32 %v2734, 127
      %v2736 = vshll.u32 %v2735, 23
      %v2737 = vor.u32 4788187, %v2736
      %v2738 = vand.u32 2147483647, %v2737
      %v2740 = vcvt.s32.f32 %v2733
      %v2741 = vmul.f32 %v2740, %v2738
      %v2742 = vxor.u32 %v2741, 2147483648
      %v2743 = vsel %vm2660, %v2742, %v2741
      %v2744 = vsub.s32 4, %v2720
      %v2745 = vsel %vm2660, %v2744, %v2720
      %v2746 = vsel %vm2659, %v780, %v2743
      %v2747 = vsel %vm2659, 0, %v2745
      %v2748 = vcosq.f32.pop %v2746
      %v2749 = vsinq.f32.pop %v2746
      %vm2750 = vweird.f32 %v780
      %v2751 = vadd.s32 %v2747, 3
      %v2752 = vand.u32 %v2751, 3
      %vm2753 = vcmp.lt.s32.totalorder %v2752, 2
      %vm2754 = vcmp.eq.s32.totalorder %v2752, 0
      %v2755 = vxor.u32 %v2749, 2147483648
      %v2756 = vsel %vm2754, %v2748, %v2755
      %vm2757 = vcmp.eq.s32.totalorder %v2752, 2
      %v2758 = vxor.u32 %v2748, 2147483648
      %v2759 = vsel %vm2757, %v2758, %v2749
      %v2760 = vsel %vm2753, %v2756, %v2759
      %v2761 = vsel %vm2750, nan, %v2760
      %v2762 = vand.u32 2147483647, %v781
      %vm2763 = vcmp.le.f32.partialorder %v2762, 0.7853982
      %vm2764 = vcmp.lt.s32.totalorder %v781, 0
      %v2765 = vand.u32 %v781, 2139095040
      %v2766 = vshrl.u32 %v2765, 23
      %v2767 = vsub.s32 %v2766, 127
      %v2768 = vand.u32 2147483647, %v781
      %v2769 = vand.u32 %v2768, 8388607
      %v2770 = vor.u32 %v2769, 8388608
      %v2771 = vsub.s32 0, %v2770
      %v2772 = vadd.s32 %v2767, 1
      %vm2773 = vcmp.gt.s32.totalorder %v2772, 0
      %v2774 = vsel %vm2773, %v2772, 0
      %v2775 = vshrl.u32 %v2774, 5
      %v2776 = vand.u32 %v2774, 31
      %v2777 = vsub.s32 32, %v2776
      %v2778 = vshrl.u32 683565275, %v2777
      %v2779 = vshll.u32 683565275, %v2776
      %v2780 = vshrl.u32 2475754826, %v2777
      %v2781 = vor.u32 %v2779, %v2780
      %v2782 = vshll.u32 2475754826, %v2776
      %v2783 = vshrl.u32 2131351028, %v2777
      %v2784 = vor.u32 %v2782, %v2783
      %v2785 = vshll.u32 2131351028, %v2776
      %v2786 = vshrl.u32 2102212464, %v2777
      %v2787 = vor.u32 %v2785, %v2786
      %v2788 = vshll.u32 2102212464, %v2776
      %v2789 = vshrl.u32 920167782, %v2777
      %v2790 = vor.u32 %v2788, %v2789
      %v2791 = vshll.u32 920167782, %v2776
      %v2792 = vshrl.u32 1326507024, %v2777
      %v2793 = vor.u32 %v2791, %v2792
      %vm2794 = vcmp.lt.s32.totalorder %v2775, 1
      %vm2795 = vcmp.lt.s32.totalorder %v2775, 2
      %vm2796 = vcmp.lt.s32.totalorder %v2775, 3
      %vm2797 = vcmp.lt.s32.totalorder %v2775, 4
      %v2798 = vsel %vm2794, %v2778, %v2781
      %v2799 = vsel %vm2797, %v2787, 2102212464
      %v2800 = vsel %vm2796, %v2784, %v2799
      %v2801 = vsel %vm2795, %v2798, %v2800
      %v2802 = vsel %vm2794, %v2781, %v2784
      %v2803 = vsel %vm2797, %v2790, 920167782
      %v2804 = vsel %vm2796, %v2787, %v2803
      %v2805 = vsel %vm2795, %v2802, %v2804
      %v2806 = vsel %vm2794, %v2784, %v2787
      %v2807 = vsel %vm2797, %v2793, 1326507024
      %v2808 = vsel %vm2796, %v2790, %v2807
      %v2809 = vsel %vm2795, %v2806, %v2808
      %v2810 = vshll.u32 %v2770, 8
      %v2811 = vmul.u32.u64.compose %v2810, %v2809
      %v2812 = vextract.low.u32 %v2811
      %v2813 = vextract.high.u32 %v2811
      %v2814 = vmul.u32.u64.compose %v2810, %v2805
      %v2815 = vextract.low.u32 %v2814
      %v2816 = vextract.high.u32 %v2814
      %v2817 = vmul.u32 %v2810, %v2801
      %v2818 = vadd.s32 %v2813, %v2815
      %vm2819 = vc.u32 %v2813, %v2815
      %v2820 = vadd.s32 %v2816, 1
      %v2821 = vsel %vm2819, %v2820, %v2816
      %v2822 = vadd.s32 %v2817, %v2821
      %v2823 = vadd.s32 %v2822, 536870912
      %v2824 = vshrl.u32 %v2823, 30
      %v2825 = vshll.u32 %v2824, 30
      %v2826 = vsub.s32 %v2822, %v2825
      %vm2827 = vcmp.lt.s32.totalorder %v2826, 0
      %v2828 = vsub.s32 0, %v2826
      %v2829 = vsel %vm2827, %v2828, %v2826
      %v2830 = vclz %v2829
      %v2831 = vsub.s32 %v2830, 2
      %vm2832 = vcmp.gt.s32.totalorder 0, %v2831
      %v2833 = vsel %vm2832, 0, %v2831
      %v2834 = vsub.s32 32, %v2833
      %v2835 = vshll.u32 %v2826, %v2833
      %v2836 = vshrl.u32 %v2818, %v2834
      %v2837 = vor.u32 %v2835, %v2836
      %v2838 = vsub.s32 4294967266, %v2833
      %v2839 = vadd.s32 %v2838, 127
      %v2840 = vshll.u32 %v2839, 23
      %v2841 = vor.u32 4788187, %v2840
      %v2842 = vand.u32 2147483647, %v2841
      %v2844 = vcvt.s32.f32 %v2837
      %v2845 = vmul.f32 %v2844, %v2842
      %v2846 = vxor.u32 %v2845, 2147483648
      %v2847 = vsel %vm2764, %v2846, %v2845
      %v2848 = vsub.s32 4, %v2824
      %v2849 = vsel %vm2764, %v2848, %v2824
      %v2850 = vsel %vm2763, %v781, %v2847
      %v2851 = vsel %vm2763, 0, %v2849
      %v2852 = vcosq.f32.pop %v2850
      %v2853 = vsinq.f32.pop %v2850
      %vm2854 = vweird.f32 %v781
      %v2855 = vadd.s32 %v2851, 3
      %v2856 = vand.u32 %v2855, 3
      %vm2857 = vcmp.lt.s32.totalorder %v2856, 2
      %vm2858 = vcmp.eq.s32.totalorder %v2856, 0
      %v2859 = vxor.u32 %v2853, 2147483648
      %v2860 = vsel %vm2858, %v2852, %v2859
      %vm2861 = vcmp.eq.s32.totalorder %v2856, 2
      %v2862 = vxor.u32 %v2852, 2147483648
      %v2863 = vsel %vm2861, %v2862, %v2853
      %v2864 = vsel %vm2857, %v2860, %v2863
      %v2865 = vsel %vm2854, nan, %v2864
      %v2866 = vand.u32 2147483647, %v782
      %vm2867 = vcmp.le.f32.partialorder %v2866, 0.7853982
      %vm2868 = vcmp.lt.s32.totalorder %v782, 0
      %v2869 = vand.u32 %v782, 2139095040
      %v2870 = vshrl.u32 %v2869, 23
      %v2871 = vsub.s32 %v2870, 127
      %v2872 = vand.u32 2147483647, %v782
      %v2873 = vand.u32 %v2872, 8388607
      %v2874 = vor.u32 %v2873, 8388608
      %v2875 = vsub.s32 0, %v2874
      %v2876 = vadd.s32 %v2871, 1
      %vm2877 = vcmp.gt.s32.totalorder %v2876, 0
      %v2878 = vsel %vm2877, %v2876, 0
      %v2879 = vshrl.u32 %v2878, 5
      %v2880 = vand.u32 %v2878, 31
      %v2881 = vsub.s32 32, %v2880
      %v2882 = vshrl.u32 683565275, %v2881
      %v2883 = vshll.u32 683565275, %v2880
      %v2884 = vshrl.u32 2475754826, %v2881
      %v2885 = vor.u32 %v2883, %v2884
      %v2886 = vshll.u32 2475754826, %v2880
      %v2887 = vshrl.u32 2131351028, %v2881
      %v2888 = vor.u32 %v2886, %v2887
      %v2889 = vshll.u32 2131351028, %v2880
      %v2890 = vshrl.u32 2102212464, %v2881
      %v2891 = vor.u32 %v2889, %v2890
      %v2892 = vshll.u32 2102212464, %v2880
      %v2893 = vshrl.u32 920167782, %v2881
      %v2894 = vor.u32 %v2892, %v2893
      %v2895 = vshll.u32 920167782, %v2880
      %v2896 = vshrl.u32 1326507024, %v2881
      %v2897 = vor.u32 %v2895, %v2896
      %vm2898 = vcmp.lt.s32.totalorder %v2879, 1
      %vm2899 = vcmp.lt.s32.totalorder %v2879, 2
      %vm2900 = vcmp.lt.s32.totalorder %v2879, 3
      %vm2901 = vcmp.lt.s32.totalorder %v2879, 4
      %v2902 = vsel %vm2898, %v2882, %v2885
      %v2903 = vsel %vm2901, %v2891, 2102212464
      %v2904 = vsel %vm2900, %v2888, %v2903
      %v2905 = vsel %vm2899, %v2902, %v2904
      %v2906 = vsel %vm2898, %v2885, %v2888
      %v2907 = vsel %vm2901, %v2894, 920167782
      %v2908 = vsel %vm2900, %v2891, %v2907
      %v2909 = vsel %vm2899, %v2906, %v2908
      %v2910 = vsel %vm2898, %v2888, %v2891
      %v2911 = vsel %vm2901, %v2897, 1326507024
      %v2912 = vsel %vm2900, %v2894, %v2911
      %v2913 = vsel %vm2899, %v2910, %v2912
      %v2914 = vshll.u32 %v2874, 8
      %v2915 = vmul.u32.u64.compose %v2914, %v2913
      %v2916 = vextract.low.u32 %v2915
      %v2917 = vextract.high.u32 %v2915
      %v2918 = vmul.u32.u64.compose %v2914, %v2909
      %v2919 = vextract.low.u32 %v2918
      %v2920 = vextract.high.u32 %v2918
      %v2921 = vmul.u32 %v2914, %v2905
      %v2922 = vadd.s32 %v2917, %v2919
      %vm2923 = vc.u32 %v2917, %v2919
      %v2924 = vadd.s32 %v2920, 1
      %v2925 = vsel %vm2923, %v2924, %v2920
      %v2926 = vadd.s32 %v2921, %v2925
      %v2927 = vadd.s32 %v2926, 536870912
      %v2928 = vshrl.u32 %v2927, 30
      %v2929 = vshll.u32 %v2928, 30
      %v2930 = vsub.s32 %v2926, %v2929
      %vm2931 = vcmp.lt.s32.totalorder %v2930, 0
      %v2932 = vsub.s32 0, %v2930
      %v2933 = vsel %vm2931, %v2932, %v2930
      %v2934 = vclz %v2933
      %v2935 = vsub.s32 %v2934, 2
      %vm2936 = vcmp.gt.s32.totalorder 0, %v2935
      %v2937 = vsel %vm2936, 0, %v2935
      %v2938 = vsub.s32 32, %v2937
      %v2939 = vshll.u32 %v2930, %v2937
      %v2940 = vshrl.u32 %v2922, %v2938
      %v2941 = vor.u32 %v2939, %v2940
      %v2942 = vsub.s32 4294967266, %v2937
      %v2943 = vadd.s32 %v2942, 127
      %v2944 = vshll.u32 %v2943, 23
      %v2945 = vor.u32 4788187, %v2944
      %v2946 = vand.u32 2147483647, %v2945
      %v2948 = vcvt.s32.f32 %v2941
      %v2949 = vmul.f32 %v2948, %v2946
      %v2950 = vxor.u32 %v2949, 2147483648
      %v2951 = vsel %vm2868, %v2950, %v2949
      %v2952 = vsub.s32 4, %v2928
      %v2953 = vsel %vm2868, %v2952, %v2928
      %v2954 = vsel %vm2867, %v782, %v2951
      %v2955 = vsel %vm2867, 0, %v2953
      %v2956 = vcosq.f32.pop %v2954
      %v2957 = vsinq.f32.pop %v2954
      %vm2958 = vweird.f32 %v782
      %v2959 = vadd.s32 %v2955, 3
      %v2960 = vand.u32 %v2959, 3
      %vm2961 = vcmp.lt.s32.totalorder %v2960, 2
      %vm2962 = vcmp.eq.s32.totalorder %v2960, 0
      %v2963 = vxor.u32 %v2957, 2147483648
      %v2964 = vsel %vm2962, %v2956, %v2963
      %vm2965 = vcmp.eq.s32.totalorder %v2960, 2
      %v2966 = vxor.u32 %v2956, 2147483648
      %v2967 = vsel %vm2965, %v2966, %v2957
      %v2968 = vsel %vm2961, %v2964, %v2967
      %v2969 = vsel %vm2958, nan, %v2968
      %v2970 = vand.u32 2147483647, %v783
      %vm2971 = vcmp.le.f32.partialorder %v2970, 0.7853982
      %vm2972 = vcmp.lt.s32.totalorder %v783, 0
      %v2973 = vand.u32 %v783, 2139095040
      %v2974 = vshrl.u32 %v2973, 23
      %v2975 = vsub.s32 %v2974, 127
      %v2976 = vand.u32 2147483647, %v783
      %v2977 = vand.u32 %v2976, 8388607
      %v2978 = vor.u32 %v2977, 8388608
      %v2979 = vsub.s32 0, %v2978
      %v2980 = vadd.s32 %v2975, 1
      %vm2981 = vcmp.gt.s32.totalorder %v2980, 0
      %v2982 = vsel %vm2981, %v2980, 0
      %v2983 = vshrl.u32 %v2982, 5
      %v2984 = vand.u32 %v2982, 31
      %v2985 = vsub.s32 32, %v2984
      %v2986 = vshrl.u32 683565275, %v2985
      %v2987 = vshll.u32 683565275, %v2984
      %v2988 = vshrl.u32 2475754826, %v2985
      %v2989 = vor.u32 %v2987, %v2988
      %v2990 = vshll.u32 2475754826, %v2984
      %v2991 = vshrl.u32 2131351028, %v2985
      %v2992 = vor.u32 %v2990, %v2991
      %v2993 = vshll.u32 2131351028, %v2984
      %v2994 = vshrl.u32 2102212464, %v2985
      %v2995 = vor.u32 %v2993, %v2994
      %v2996 = vshll.u32 2102212464, %v2984
      %v2997 = vshrl.u32 920167782, %v2985
      %v2998 = vor.u32 %v2996, %v2997
      %v2999 = vshll.u32 920167782, %v2984
      %v3000 = vshrl.u32 1326507024, %v2985
      %v3001 = vor.u32 %v2999, %v3000
      %vm3002 = vcmp.lt.s32.totalorder %v2983, 1
      %vm3003 = vcmp.lt.s32.totalorder %v2983, 2
      %vm3004 = vcmp.lt.s32.totalorder %v2983, 3
      %vm3005 = vcmp.lt.s32.totalorder %v2983, 4
      %v3006 = vsel %vm3002, %v2986, %v2989
      %v3007 = vsel %vm3005, %v2995, 2102212464
      %v3008 = vsel %vm3004, %v2992, %v3007
      %v3009 = vsel %vm3003, %v3006, %v3008
      %v3010 = vsel %vm3002, %v2989, %v2992
      %v3011 = vsel %vm3005, %v2998, 920167782
      %v3012 = vsel %vm3004, %v2995, %v3011
      %v3013 = vsel %vm3003, %v3010, %v3012
      %v3014 = vsel %vm3002, %v2992, %v2995
      %v3015 = vsel %vm3005, %v3001, 1326507024
      %v3016 = vsel %vm3004, %v2998, %v3015
      %v3017 = vsel %vm3003, %v3014, %v3016
      %v3018 = vshll.u32 %v2978, 8
      %v3019 = vmul.u32.u64.compose %v3018, %v3017
      %v3020 = vextract.low.u32 %v3019
      %v3021 = vextract.high.u32 %v3019
      %v3022 = vmul.u32.u64.compose %v3018, %v3013
      %v3023 = vextract.low.u32 %v3022
      %v3024 = vextract.high.u32 %v3022
      %v3025 = vmul.u32 %v3018, %v3009
      %v3026 = vadd.s32 %v3021, %v3023
      %vm3027 = vc.u32 %v3021, %v3023
      %v3028 = vadd.s32 %v3024, 1
      %v3029 = vsel %vm3027, %v3028, %v3024
      %v3030 = vadd.s32 %v3025, %v3029
      %v3031 = vadd.s32 %v3030, 536870912
      %v3032 = vshrl.u32 %v3031, 30
      %v3033 = vshll.u32 %v3032, 30
      %v3034 = vsub.s32 %v3030, %v3033
      %vm3035 = vcmp.lt.s32.totalorder %v3034, 0
      %v3036 = vsub.s32 0, %v3034
      %v3037 = vsel %vm3035, %v3036, %v3034
      %v3038 = vclz %v3037
      %v3039 = vsub.s32 %v3038, 2
      %vm3040 = vcmp.gt.s32.totalorder 0, %v3039
      %v3041 = vsel %vm3040, 0, %v3039
      %v3042 = vsub.s32 32, %v3041
      %v3043 = vshll.u32 %v3034, %v3041
      %v3044 = vshrl.u32 %v3026, %v3042
      %v3045 = vor.u32 %v3043, %v3044
      %v3046 = vsub.s32 4294967266, %v3041
      %v3047 = vadd.s32 %v3046, 127
      %v3048 = vshll.u32 %v3047, 23
      %v3049 = vor.u32 4788187, %v3048
      %v3050 = vand.u32 2147483647, %v3049
      %v3052 = vcvt.s32.f32 %v3045
      %v3053 = vmul.f32 %v3052, %v3050
      %v3054 = vxor.u32 %v3053, 2147483648
      %v3055 = vsel %vm2972, %v3054, %v3053
      %v3056 = vsub.s32 4, %v3032
      %v3057 = vsel %vm2972, %v3056, %v3032
      %v3058 = vsel %vm2971, %v783, %v3055
      %v3059 = vsel %vm2971, 0, %v3057
      %v3060 = vcosq.f32.pop %v3058
      %v3061 = vsinq.f32.pop %v3058
      %vm3062 = vweird.f32 %v783
      %v3063 = vadd.s32 %v3059, 3
      %v3064 = vand.u32 %v3063, 3
      %vm3065 = vcmp.lt.s32.totalorder %v3064, 2
      %vm3066 = vcmp.eq.s32.totalorder %v3064, 0
      %v3067 = vxor.u32 %v3061, 2147483648
      %v3068 = vsel %vm3066, %v3060, %v3067
      %vm3069 = vcmp.eq.s32.totalorder %v3064, 2
      %v3070 = vxor.u32 %v3060, 2147483648
      %v3071 = vsel %vm3069, %v3070, %v3061
      %v3072 = vsel %vm3065, %v3068, %v3071
      %v3073 = vsel %vm3062, nan, %v3072
      %v3074 = vand.u32 2147483647, %v784
      %vm3075 = vcmp.le.f32.partialorder %v3074, 0.7853982
      %vm3076 = vcmp.lt.s32.totalorder %v784, 0
      %v3077 = vand.u32 %v784, 2139095040
      %v3078 = vshrl.u32 %v3077, 23
      %v3079 = vsub.s32 %v3078, 127
      %v3080 = vand.u32 2147483647, %v784
      %v3081 = vand.u32 %v3080, 8388607
      %v3082 = vor.u32 %v3081, 8388608
      %v3083 = vsub.s32 0, %v3082
      %v3084 = vadd.s32 %v3079, 1
      %vm3085 = vcmp.gt.s32.totalorder %v3084, 0
      %v3086 = vsel %vm3085, %v3084, 0
      %v3087 = vshrl.u32 %v3086, 5
      %v3088 = vand.u32 %v3086, 31
      %v3089 = vsub.s32 32, %v3088
      %v3090 = vshrl.u32 683565275, %v3089
      %v3091 = vshll.u32 683565275, %v3088
      %v3092 = vshrl.u32 2475754826, %v3089
      %v3093 = vor.u32 %v3091, %v3092
      %v3094 = vshll.u32 2475754826, %v3088
      %v3095 = vshrl.u32 2131351028, %v3089
      %v3096 = vor.u32 %v3094, %v3095
      %v3097 = vshll.u32 2131351028, %v3088
      %v3098 = vshrl.u32 2102212464, %v3089
      %v3099 = vor.u32 %v3097, %v3098
      %v3100 = vshll.u32 2102212464, %v3088
      %v3101 = vshrl.u32 920167782, %v3089
      %v3102 = vor.u32 %v3100, %v3101
      %v3103 = vshll.u32 920167782, %v3088
      %v3104 = vshrl.u32 1326507024, %v3089
      %v3105 = vor.u32 %v3103, %v3104
      %vm3106 = vcmp.lt.s32.totalorder %v3087, 1
      %vm3107 = vcmp.lt.s32.totalorder %v3087, 2
      %vm3108 = vcmp.lt.s32.totalorder %v3087, 3
      %vm3109 = vcmp.lt.s32.totalorder %v3087, 4
      %v3110 = vsel %vm3106, %v3090, %v3093
      %v3111 = vsel %vm3109, %v3099, 2102212464
      %v3112 = vsel %vm3108, %v3096, %v3111
      %v3113 = vsel %vm3107, %v3110, %v3112
      %v3114 = vsel %vm3106, %v3093, %v3096
      %v3115 = vsel %vm3109, %v3102, 920167782
      %v3116 = vsel %vm3108, %v3099, %v3115
      %v3117 = vsel %vm3107, %v3114, %v3116
      %v3118 = vsel %vm3106, %v3096, %v3099
      %v3119 = vsel %vm3109, %v3105, 1326507024
      %v3120 = vsel %vm3108, %v3102, %v3119
      %v3121 = vsel %vm3107, %v3118, %v3120
      %v3122 = vshll.u32 %v3082, 8
      %v3123 = vmul.u32.u64.compose %v3122, %v3121
      %v3124 = vextract.low.u32 %v3123
      %v3125 = vextract.high.u32 %v3123
      %v3126 = vmul.u32.u64.compose %v3122, %v3117
      %v3127 = vextract.low.u32 %v3126
      %v3128 = vextract.high.u32 %v3126
      %v3129 = vmul.u32 %v3122, %v3113
      %v3130 = vadd.s32 %v3125, %v3127
      %vm3131 = vc.u32 %v3125, %v3127
      %v3132 = vadd.s32 %v3128, 1
      %v3133 = vsel %vm3131, %v3132, %v3128
      %v3134 = vadd.s32 %v3129, %v3133
      %v3135 = vadd.s32 %v3134, 536870912
      %v3136 = vshrl.u32 %v3135, 30
      %v3137 = vshll.u32 %v3136, 30
      %v3138 = vsub.s32 %v3134, %v3137
      %vm3139 = vcmp.lt.s32.totalorder %v3138, 0
      %v3140 = vsub.s32 0, %v3138
      %v3141 = vsel %vm3139, %v3140, %v3138
      %v3142 = vclz %v3141
      %v3143 = vsub.s32 %v3142, 2
      %vm3144 = vcmp.gt.s32.totalorder 0, %v3143
      %v3145 = vsel %vm3144, 0, %v3143
      %v3146 = vsub.s32 32, %v3145
      %v3147 = vshll.u32 %v3138, %v3145
      %v3148 = vshrl.u32 %v3130, %v3146
      %v3149 = vor.u32 %v3147, %v3148
      %v3150 = vsub.s32 4294967266, %v3145
      %v3151 = vadd.s32 %v3150, 127
      %v3152 = vshll.u32 %v3151, 23
      %v3153 = vor.u32 4788187, %v3152
      %v3154 = vand.u32 2147483647, %v3153
      %v3156 = vcvt.s32.f32 %v3149
      %v3157 = vmul.f32 %v3156, %v3154
      %v3158 = vxor.u32 %v3157, 2147483648
      %v3159 = vsel %vm3076, %v3158, %v3157
      %v3160 = vsub.s32 4, %v3136
      %v3161 = vsel %vm3076, %v3160, %v3136
      %v3162 = vsel %vm3075, %v784, %v3159
      %v3163 = vsel %vm3075, 0, %v3161
      %v3164 = vcosq.f32.pop %v3162
      %v3165 = vsinq.f32.pop %v3162
      %vm3166 = vweird.f32 %v784
      %v3167 = vadd.s32 %v3163, 3
      %v3168 = vand.u32 %v3167, 3
      %vm3169 = vcmp.lt.s32.totalorder %v3168, 2
      %vm3170 = vcmp.eq.s32.totalorder %v3168, 0
      %v3171 = vxor.u32 %v3165, 2147483648
      %v3172 = vsel %vm3170, %v3164, %v3171
      %vm3173 = vcmp.eq.s32.totalorder %v3168, 2
      %v3174 = vxor.u32 %v3164, 2147483648
      %v3175 = vsel %vm3173, %v3174, %v3165
      %v3176 = vsel %vm3169, %v3172, %v3175
      %v3177 = vsel %vm3166, nan, %v3176
      %v3178 = vand.u32 2147483647, %v785
      %vm3179 = vcmp.le.f32.partialorder %v3178, 0.7853982
      %vm3180 = vcmp.lt.s32.totalorder %v785, 0
      %v3181 = vand.u32 %v785, 2139095040
      %v3182 = vshrl.u32 %v3181, 23
      %v3183 = vsub.s32 %v3182, 127
      %v3184 = vand.u32 2147483647, %v785
      %v3185 = vand.u32 %v3184, 8388607
      %v3186 = vor.u32 %v3185, 8388608
      %v3187 = vsub.s32 0, %v3186
      %v3188 = vadd.s32 %v3183, 1
      %vm3189 = vcmp.gt.s32.totalorder %v3188, 0
      %v3190 = vsel %vm3189, %v3188, 0
      %v3191 = vshrl.u32 %v3190, 5
      %v3192 = vand.u32 %v3190, 31
      %v3193 = vsub.s32 32, %v3192
      %v3194 = vshrl.u32 683565275, %v3193
      %v3195 = vshll.u32 683565275, %v3192
      %v3196 = vshrl.u32 2475754826, %v3193
      %v3197 = vor.u32 %v3195, %v3196
      %v3198 = vshll.u32 2475754826, %v3192
      %v3199 = vshrl.u32 2131351028, %v3193
      %v3200 = vor.u32 %v3198, %v3199
      %v3201 = vshll.u32 2131351028, %v3192
      %v3202 = vshrl.u32 2102212464, %v3193
      %v3203 = vor.u32 %v3201, %v3202
      %v3204 = vshll.u32 2102212464, %v3192
      %v3205 = vshrl.u32 920167782, %v3193
      %v3206 = vor.u32 %v3204, %v3205
      %v3207 = vshll.u32 920167782, %v3192
      %v3208 = vshrl.u32 1326507024, %v3193
      %v3209 = vor.u32 %v3207, %v3208
      %vm3210 = vcmp.lt.s32.totalorder %v3191, 1
      %vm3211 = vcmp.lt.s32.totalorder %v3191, 2
      %vm3212 = vcmp.lt.s32.totalorder %v3191, 3
      %vm3213 = vcmp.lt.s32.totalorder %v3191, 4
      %v3214 = vsel %vm3210, %v3194, %v3197
      %v3215 = vsel %vm3213, %v3203, 2102212464
      %v3216 = vsel %vm3212, %v3200, %v3215
      %v3217 = vsel %vm3211, %v3214, %v3216
      %v3218 = vsel %vm3210, %v3197, %v3200
      %v3219 = vsel %vm3213, %v3206, 920167782
      %v3220 = vsel %vm3212, %v3203, %v3219
      %v3221 = vsel %vm3211, %v3218, %v3220
      %v3222 = vsel %vm3210, %v3200, %v3203
      %v3223 = vsel %vm3213, %v3209, 1326507024
      %v3224 = vsel %vm3212, %v3206, %v3223
      %v3225 = vsel %vm3211, %v3222, %v3224
      %v3226 = vshll.u32 %v3186, 8
      %v3227 = vmul.u32.u64.compose %v3226, %v3225
      %v3228 = vextract.low.u32 %v3227
      %v3229 = vextract.high.u32 %v3227
      %v3230 = vmul.u32.u64.compose %v3226, %v3221
      %v3231 = vextract.low.u32 %v3230
      %v3232 = vextract.high.u32 %v3230
      %v3233 = vmul.u32 %v3226, %v3217
      %v3234 = vadd.s32 %v3229, %v3231
      %vm3235 = vc.u32 %v3229, %v3231
      %v3236 = vadd.s32 %v3232, 1
      %v3237 = vsel %vm3235, %v3236, %v3232
      %v3238 = vadd.s32 %v3233, %v3237
      %v3239 = vadd.s32 %v3238, 536870912
      %v3240 = vshrl.u32 %v3239, 30
      %v3241 = vshll.u32 %v3240, 30
      %v3242 = vsub.s32 %v3238, %v3241
      %vm3243 = vcmp.lt.s32.totalorder %v3242, 0
      %v3244 = vsub.s32 0, %v3242
      %v3245 = vsel %vm3243, %v3244, %v3242
      %v3246 = vclz %v3245
      %v3247 = vsub.s32 %v3246, 2
      %vm3248 = vcmp.gt.s32.totalorder 0, %v3247
      %v3249 = vsel %vm3248, 0, %v3247
      %v3250 = vsub.s32 32, %v3249
      %v3251 = vshll.u32 %v3242, %v3249
      %v3252 = vshrl.u32 %v3234, %v3250
      %v3253 = vor.u32 %v3251, %v3252
      %v3254 = vsub.s32 4294967266, %v3249
      %v3255 = vadd.s32 %v3254, 127
      %v3256 = vshll.u32 %v3255, 23
      %v3257 = vor.u32 4788187, %v3256
      %v3258 = vand.u32 2147483647, %v3257
      %v3260 = vcvt.s32.f32 %v3253
      %v3261 = vmul.f32 %v3260, %v3258
      %v3262 = vxor.u32 %v3261, 2147483648
      %v3263 = vsel %vm3180, %v3262, %v3261
      %v3264 = vsub.s32 4, %v3240
      %v3265 = vsel %vm3180, %v3264, %v3240
      %v3266 = vsel %vm3179, %v785, %v3263
      %v3267 = vsel %vm3179, 0, %v3265
      %v3268 = vcosq.f32.pop %v3266
      %v3269 = vsinq.f32.pop %v3266
      %vm3270 = vweird.f32 %v785
      %v3271 = vadd.s32 %v3267, 3
      %v3272 = vand.u32 %v3271, 3
      %vm3273 = vcmp.lt.s32.totalorder %v3272, 2
      %vm3274 = vcmp.eq.s32.totalorder %v3272, 0
      %v3275 = vxor.u32 %v3269, 2147483648
      %v3276 = vsel %vm3274, %v3268, %v3275
      %vm3277 = vcmp.eq.s32.totalorder %v3272, 2
      %v3278 = vxor.u32 %v3268, 2147483648
      %v3279 = vsel %vm3277, %v3278, %v3269
      %v3280 = vsel %vm3273, %v3276, %v3279
      %v3281 = vsel %vm3270, nan, %v3280
      %v3282 = vand.u32 2147483647, %v786
      %vm3283 = vcmp.le.f32.partialorder %v3282, 0.7853982
      %vm3284 = vcmp.lt.s32.totalorder %v786, 0
      %v3285 = vand.u32 %v786, 2139095040
      %v3286 = vshrl.u32 %v3285, 23
      %v3287 = vsub.s32 %v3286, 127
      %v3288 = vand.u32 2147483647, %v786
      %v3289 = vand.u32 %v3288, 8388607
      %v3290 = vor.u32 %v3289, 8388608
      %v3291 = vsub.s32 0, %v3290
      %v3292 = vadd.s32 %v3287, 1
      %vm3293 = vcmp.gt.s32.totalorder %v3292, 0
      %v3294 = vsel %vm3293, %v3292, 0
      %v3295 = vshrl.u32 %v3294, 5
      %v3296 = vand.u32 %v3294, 31
      %v3297 = vsub.s32 32, %v3296
      %v3298 = vshrl.u32 683565275, %v3297
      %v3299 = vshll.u32 683565275, %v3296
      %v3300 = vshrl.u32 2475754826, %v3297
      %v3301 = vor.u32 %v3299, %v3300
      %v3302 = vshll.u32 2475754826, %v3296
      %v3303 = vshrl.u32 2131351028, %v3297
      %v3304 = vor.u32 %v3302, %v3303
      %v3305 = vshll.u32 2131351028, %v3296
      %v3306 = vshrl.u32 2102212464, %v3297
      %v3307 = vor.u32 %v3305, %v3306
      %v3308 = vshll.u32 2102212464, %v3296
      %v3309 = vshrl.u32 920167782, %v3297
      %v3310 = vor.u32 %v3308, %v3309
      %v3311 = vshll.u32 920167782, %v3296
      %v3312 = vshrl.u32 1326507024, %v3297
      %v3313 = vor.u32 %v3311, %v3312
      %vm3314 = vcmp.lt.s32.totalorder %v3295, 1
      %vm3315 = vcmp.lt.s32.totalorder %v3295, 2
      %vm3316 = vcmp.lt.s32.totalorder %v3295, 3
      %vm3317 = vcmp.lt.s32.totalorder %v3295, 4
      %v3318 = vsel %vm3314, %v3298, %v3301
      %v3319 = vsel %vm3317, %v3307, 2102212464
      %v3320 = vsel %vm3316, %v3304, %v3319
      %v3321 = vsel %vm3315, %v3318, %v3320
      %v3322 = vsel %vm3314, %v3301, %v3304
      %v3323 = vsel %vm3317, %v3310, 920167782
      %v3324 = vsel %vm3316, %v3307, %v3323
      %v3325 = vsel %vm3315, %v3322, %v3324
      %v3326 = vsel %vm3314, %v3304, %v3307
      %v3327 = vsel %vm3317, %v3313, 1326507024
      %v3328 = vsel %vm3316, %v3310, %v3327
      %v3329 = vsel %vm3315, %v3326, %v3328
      %v3330 = vshll.u32 %v3290, 8
      %v3331 = vmul.u32.u64.compose %v3330, %v3329
      %v3332 = vextract.low.u32 %v3331
      %v3333 = vextract.high.u32 %v3331
      %v3334 = vmul.u32.u64.compose %v3330, %v3325
      %v3335 = vextract.low.u32 %v3334
      %v3336 = vextract.high.u32 %v3334
      %v3337 = vmul.u32 %v3330, %v3321
      %v3338 = vadd.s32 %v3333, %v3335
      %vm3339 = vc.u32 %v3333, %v3335
      %v3340 = vadd.s32 %v3336, 1
      %v3341 = vsel %vm3339, %v3340, %v3336
      %v3342 = vadd.s32 %v3337, %v3341
      %v3343 = vadd.s32 %v3342, 536870912
      %v3344 = vshrl.u32 %v3343, 30
      %v3345 = vshll.u32 %v3344, 30
      %v3346 = vsub.s32 %v3342, %v3345
      %vm3347 = vcmp.lt.s32.totalorder %v3346, 0
      %v3348 = vsub.s32 0, %v3346
      %v3349 = vsel %vm3347, %v3348, %v3346
      %v3350 = vclz %v3349
      %v3351 = vsub.s32 %v3350, 2
      %vm3352 = vcmp.gt.s32.totalorder 0, %v3351
      %v3353 = vsel %vm3352, 0, %v3351
      %v3354 = vsub.s32 32, %v3353
      %v3355 = vshll.u32 %v3346, %v3353
      %v3356 = vshrl.u32 %v3338, %v3354
      %v3357 = vor.u32 %v3355, %v3356
      %v3358 = vsub.s32 4294967266, %v3353
      %v3359 = vadd.s32 %v3358, 127
      %v3360 = vshll.u32 %v3359, 23
      %v3361 = vor.u32 4788187, %v3360
      %v3362 = vand.u32 2147483647, %v3361
      %v3364 = vcvt.s32.f32 %v3357
      %v3365 = vmul.f32 %v3364, %v3362
      %v3366 = vxor.u32 %v3365, 2147483648
      %v3367 = vsel %vm3284, %v3366, %v3365
      %v3368 = vsub.s32 4, %v3344
      %v3369 = vsel %vm3284, %v3368, %v3344
      %v3370 = vsel %vm3283, %v786, %v3367
      %v3371 = vsel %vm3283, 0, %v3369
      %v3372 = vcosq.f32.pop %v3370
      %v3373 = vsinq.f32.pop %v3370
      %vm3374 = vweird.f32 %v786
      %v3375 = vadd.s32 %v3371, 3
      %v3376 = vand.u32 %v3375, 3
      %vm3377 = vcmp.lt.s32.totalorder %v3376, 2
      %vm3378 = vcmp.eq.s32.totalorder %v3376, 0
      %v3379 = vxor.u32 %v3373, 2147483648
      %v3380 = vsel %vm3378, %v3372, %v3379
      %vm3381 = vcmp.eq.s32.totalorder %v3376, 2
      %v3382 = vxor.u32 %v3372, 2147483648
      %v3383 = vsel %vm3381, %v3382, %v3373
      %v3384 = vsel %vm3377, %v3380, %v3383
      %v3385 = vsel %vm3374, nan, %v3384
      %v3386 = vand.u32 2147483647, %v787
      %vm3387 = vcmp.le.f32.partialorder %v3386, 0.7853982
      %vm3388 = vcmp.lt.s32.totalorder %v787, 0
      %v3389 = vand.u32 %v787, 2139095040
      %v3390 = vshrl.u32 %v3389, 23
      %v3391 = vsub.s32 %v3390, 127
      %v3392 = vand.u32 2147483647, %v787
      %v3393 = vand.u32 %v3392, 8388607
      %v3394 = vor.u32 %v3393, 8388608
      %v3395 = vsub.s32 0, %v3394
      %v3396 = vadd.s32 %v3391, 1
      %vm3397 = vcmp.gt.s32.totalorder %v3396, 0
      %v3398 = vsel %vm3397, %v3396, 0
      %v3399 = vshrl.u32 %v3398, 5
      %v3400 = vand.u32 %v3398, 31
      %v3401 = vsub.s32 32, %v3400
      %v3402 = vshrl.u32 683565275, %v3401
      %v3403 = vshll.u32 683565275, %v3400
      %v3404 = vshrl.u32 2475754826, %v3401
      %v3405 = vor.u32 %v3403, %v3404
      %v3406 = vshll.u32 2475754826, %v3400
      %v3407 = vshrl.u32 2131351028, %v3401
      %v3408 = vor.u32 %v3406, %v3407
      %v3409 = vshll.u32 2131351028, %v3400
      %v3410 = vshrl.u32 2102212464, %v3401
      %v3411 = vor.u32 %v3409, %v3410
      %v3412 = vshll.u32 2102212464, %v3400
      %v3413 = vshrl.u32 920167782, %v3401
      %v3414 = vor.u32 %v3412, %v3413
      %v3415 = vshll.u32 920167782, %v3400
      %v3416 = vshrl.u32 1326507024, %v3401
      %v3417 = vor.u32 %v3415, %v3416
      %vm3418 = vcmp.lt.s32.totalorder %v3399, 1
      %vm3419 = vcmp.lt.s32.totalorder %v3399, 2
      %vm3420 = vcmp.lt.s32.totalorder %v3399, 3
      %vm3421 = vcmp.lt.s32.totalorder %v3399, 4
      %v3422 = vsel %vm3418, %v3402, %v3405
      %v3423 = vsel %vm3421, %v3411, 2102212464
      %v3424 = vsel %vm3420, %v3408, %v3423
      %v3425 = vsel %vm3419, %v3422, %v3424
      %v3426 = vsel %vm3418, %v3405, %v3408
      %v3427 = vsel %vm3421, %v3414, 920167782
      %v3428 = vsel %vm3420, %v3411, %v3427
      %v3429 = vsel %vm3419, %v3426, %v3428
      %v3430 = vsel %vm3418, %v3408, %v3411
      %v3431 = vsel %vm3421, %v3417, 1326507024
      %v3432 = vsel %vm3420, %v3414, %v3431
      %v3433 = vsel %vm3419, %v3430, %v3432
      %v3434 = vshll.u32 %v3394, 8
      %v3435 = vmul.u32.u64.compose %v3434, %v3433
      %v3436 = vextract.low.u32 %v3435
      %v3437 = vextract.high.u32 %v3435
      %v3438 = vmul.u32.u64.compose %v3434, %v3429
      %v3439 = vextract.low.u32 %v3438
      %v3440 = vextract.high.u32 %v3438
      %v3441 = vmul.u32 %v3434, %v3425
      %v3442 = vadd.s32 %v3437, %v3439
      %vm3443 = vc.u32 %v3437, %v3439
      %v3444 = vadd.s32 %v3440, 1
      %v3445 = vsel %vm3443, %v3444, %v3440
      %v3446 = vadd.s32 %v3441, %v3445
      %v3447 = vadd.s32 %v3446, 536870912
      %v3448 = vshrl.u32 %v3447, 30
      %v3449 = vshll.u32 %v3448, 30
      %v3450 = vsub.s32 %v3446, %v3449
      %vm3451 = vcmp.lt.s32.totalorder %v3450, 0
      %v3452 = vsub.s32 0, %v3450
      %v3453 = vsel %vm3451, %v3452, %v3450
      %v3454 = vclz %v3453
      %v3455 = vsub.s32 %v3454, 2
      %vm3456 = vcmp.gt.s32.totalorder 0, %v3455
      %v3457 = vsel %vm3456, 0, %v3455
      %v3458 = vsub.s32 32, %v3457
      %v3459 = vshll.u32 %v3450, %v3457
      %v3460 = vshrl.u32 %v3442, %v3458
      %v3461 = vor.u32 %v3459, %v3460
      %v3462 = vsub.s32 4294967266, %v3457
      %v3463 = vadd.s32 %v3462, 127
      %v3464 = vshll.u32 %v3463, 23
      %v3465 = vor.u32 4788187, %v3464
      %v3466 = vand.u32 2147483647, %v3465
      %v3468 = vcvt.s32.f32 %v3461
      %v3469 = vmul.f32 %v3468, %v3466
      %v3470 = vxor.u32 %v3469, 2147483648
      %v3471 = vsel %vm3388, %v3470, %v3469
      %v3472 = vsub.s32 4, %v3448
      %v3473 = vsel %vm3388, %v3472, %v3448
      %v3474 = vsel %vm3387, %v787, %v3471
      %v3475 = vsel %vm3387, 0, %v3473
      %v3476 = vcosq.f32.pop %v3474
      %v3477 = vsinq.f32.pop %v3474
      %vm3478 = vweird.f32 %v787
      %v3479 = vadd.s32 %v3475, 3
      %v3480 = vand.u32 %v3479, 3
      %vm3481 = vcmp.lt.s32.totalorder %v3480, 2
      %vm3482 = vcmp.eq.s32.totalorder %v3480, 0
      %v3483 = vxor.u32 %v3477, 2147483648
      %v3484 = vsel %vm3482, %v3476, %v3483
      %vm3485 = vcmp.eq.s32.totalorder %v3480, 2
      %v3486 = vxor.u32 %v3476, 2147483648
      %v3487 = vsel %vm3485, %v3486, %v3477
      %v3488 = vsel %vm3481, %v3484, %v3487
      %v3489 = vsel %vm3478, nan, %v3488
      %v3490 = vand.u32 2147483647, %v788
      %vm3491 = vcmp.le.f32.partialorder %v3490, 0.7853982
      %vm3492 = vcmp.lt.s32.totalorder %v788, 0
      %v3493 = vand.u32 %v788, 2139095040
      %v3494 = vshrl.u32 %v3493, 23
      %v3495 = vsub.s32 %v3494, 127
      %v3496 = vand.u32 2147483647, %v788
      %v3497 = vand.u32 %v3496, 8388607
      %v3498 = vor.u32 %v3497, 8388608
      %v3499 = vsub.s32 0, %v3498
      %v3500 = vadd.s32 %v3495, 1
      %vm3501 = vcmp.gt.s32.totalorder %v3500, 0
      %v3502 = vsel %vm3501, %v3500, 0
      %v3503 = vshrl.u32 %v3502, 5
      %v3504 = vand.u32 %v3502, 31
      %v3505 = vsub.s32 32, %v3504
      %v3506 = vshrl.u32 683565275, %v3505
      %v3507 = vshll.u32 683565275, %v3504
      %v3508 = vshrl.u32 2475754826, %v3505
      %v3509 = vor.u32 %v3507, %v3508
      %v3510 = vshll.u32 2475754826, %v3504
      %v3511 = vshrl.u32 2131351028, %v3505
      %v3512 = vor.u32 %v3510, %v3511
      %v3513 = vshll.u32 2131351028, %v3504
      %v3514 = vshrl.u32 2102212464, %v3505
      %v3515 = vor.u32 %v3513, %v3514
      %v3516 = vshll.u32 2102212464, %v3504
      %v3517 = vshrl.u32 920167782, %v3505
      %v3518 = vor.u32 %v3516, %v3517
      %v3519 = vshll.u32 920167782, %v3504
      %v3520 = vshrl.u32 1326507024, %v3505
      %v3521 = vor.u32 %v3519, %v3520
      %vm3522 = vcmp.lt.s32.totalorder %v3503, 1
      %vm3523 = vcmp.lt.s32.totalorder %v3503, 2
      %vm3524 = vcmp.lt.s32.totalorder %v3503, 3
      %vm3525 = vcmp.lt.s32.totalorder %v3503, 4
      %v3526 = vsel %vm3522, %v3506, %v3509
      %v3527 = vsel %vm3525, %v3515, 2102212464
      %v3528 = vsel %vm3524, %v3512, %v3527
      %v3529 = vsel %vm3523, %v3526, %v3528
      %v3530 = vsel %vm3522, %v3509, %v3512
      %v3531 = vsel %vm3525, %v3518, 920167782
      %v3532 = vsel %vm3524, %v3515, %v3531
      %v3533 = vsel %vm3523, %v3530, %v3532
      %v3534 = vsel %vm3522, %v3512, %v3515
      %v3535 = vsel %vm3525, %v3521, 1326507024
      %v3536 = vsel %vm3524, %v3518, %v3535
      %v3537 = vsel %vm3523, %v3534, %v3536
      %v3538 = vshll.u32 %v3498, 8
      %v3539 = vmul.u32.u64.compose %v3538, %v3537
      %v3540 = vextract.low.u32 %v3539
      %v3541 = vextract.high.u32 %v3539
      %v3542 = vmul.u32.u64.compose %v3538, %v3533
      %v3543 = vextract.low.u32 %v3542
      %v3544 = vextract.high.u32 %v3542
      %v3545 = vmul.u32 %v3538, %v3529
      %v3546 = vadd.s32 %v3541, %v3543
      %vm3547 = vc.u32 %v3541, %v3543
      %v3548 = vadd.s32 %v3544, 1
      %v3549 = vsel %vm3547, %v3548, %v3544
      %v3550 = vadd.s32 %v3545, %v3549
      %v3551 = vadd.s32 %v3550, 536870912
      %v3552 = vshrl.u32 %v3551, 30
      %v3553 = vshll.u32 %v3552, 30
      %v3554 = vsub.s32 %v3550, %v3553
      %vm3555 = vcmp.lt.s32.totalorder %v3554, 0
      %v3556 = vsub.s32 0, %v3554
      %v3557 = vsel %vm3555, %v3556, %v3554
      %v3558 = vclz %v3557
      %v3559 = vsub.s32 %v3558, 2
      %vm3560 = vcmp.gt.s32.totalorder 0, %v3559
      %v3561 = vsel %vm3560, 0, %v3559
      %v3562 = vsub.s32 32, %v3561
      %v3563 = vshll.u32 %v3554, %v3561
      %v3564 = vshrl.u32 %v3546, %v3562
      %v3565 = vor.u32 %v3563, %v3564
      %v3566 = vsub.s32 4294967266, %v3561
      %v3567 = vadd.s32 %v3566, 127
      %v3568 = vshll.u32 %v3567, 23
      %v3569 = vor.u32 4788187, %v3568
      %v3570 = vand.u32 2147483647, %v3569
      %v3572 = vcvt.s32.f32 %v3565
      %v3573 = vmul.f32 %v3572, %v3570
      %v3574 = vxor.u32 %v3573, 2147483648
      %v3575 = vsel %vm3492, %v3574, %v3573
      %v3576 = vsub.s32 4, %v3552
      %v3577 = vsel %vm3492, %v3576, %v3552
      %v3578 = vsel %vm3491, %v788, %v3575
      %v3579 = vsel %vm3491, 0, %v3577
      %v3580 = vcosq.f32.pop %v3578
      %v3581 = vsinq.f32.pop %v3578
      %vm3582 = vweird.f32 %v788
      %v3583 = vadd.s32 %v3579, 3
      %v3584 = vand.u32 %v3583, 3
      %vm3585 = vcmp.lt.s32.totalorder %v3584, 2
      %vm3586 = vcmp.eq.s32.totalorder %v3584, 0
      %v3587 = vxor.u32 %v3581, 2147483648
      %v3588 = vsel %vm3586, %v3580, %v3587
      %vm3589 = vcmp.eq.s32.totalorder %v3584, 2
      %v3590 = vxor.u32 %v3580, 2147483648
      %v3591 = vsel %vm3589, %v3590, %v3581
      %v3592 = vsel %vm3585, %v3588, %v3591
      %v3593 = vsel %vm3582, nan, %v3592
      %v3594 = vand.u32 2147483647, %v789
      %vm3595 = vcmp.le.f32.partialorder %v3594, 0.7853982
      %vm3596 = vcmp.lt.s32.totalorder %v789, 0
      %v3597 = vand.u32 %v789, 2139095040
      %v3598 = vshrl.u32 %v3597, 23
      %v3599 = vsub.s32 %v3598, 127
      %v3600 = vand.u32 2147483647, %v789
      %v3601 = vand.u32 %v3600, 8388607
      %v3602 = vor.u32 %v3601, 8388608
      %v3603 = vsub.s32 0, %v3602
      %v3604 = vadd.s32 %v3599, 1
      %vm3605 = vcmp.gt.s32.totalorder %v3604, 0
      %v3606 = vsel %vm3605, %v3604, 0
      %v3607 = vshrl.u32 %v3606, 5
      %v3608 = vand.u32 %v3606, 31
      %v3609 = vsub.s32 32, %v3608
      %v3610 = vshrl.u32 683565275, %v3609
      %v3611 = vshll.u32 683565275, %v3608
      %v3612 = vshrl.u32 2475754826, %v3609
      %v3613 = vor.u32 %v3611, %v3612
      %v3614 = vshll.u32 2475754826, %v3608
      %v3615 = vshrl.u32 2131351028, %v3609
      %v3616 = vor.u32 %v3614, %v3615
      %v3617 = vshll.u32 2131351028, %v3608
      %v3618 = vshrl.u32 2102212464, %v3609
      %v3619 = vor.u32 %v3617, %v3618
      %v3620 = vshll.u32 2102212464, %v3608
      %v3621 = vshrl.u32 920167782, %v3609
      %v3622 = vor.u32 %v3620, %v3621
      %v3623 = vshll.u32 920167782, %v3608
      %v3624 = vshrl.u32 1326507024, %v3609
      %v3625 = vor.u32 %v3623, %v3624
      %vm3626 = vcmp.lt.s32.totalorder %v3607, 1
      %vm3627 = vcmp.lt.s32.totalorder %v3607, 2
      %vm3628 = vcmp.lt.s32.totalorder %v3607, 3
      %vm3629 = vcmp.lt.s32.totalorder %v3607, 4
      %v3630 = vsel %vm3626, %v3610, %v3613
      %v3631 = vsel %vm3629, %v3619, 2102212464
      %v3632 = vsel %vm3628, %v3616, %v3631
      %v3633 = vsel %vm3627, %v3630, %v3632
      %v3634 = vsel %vm3626, %v3613, %v3616
      %v3635 = vsel %vm3629, %v3622, 920167782
      %v3636 = vsel %vm3628, %v3619, %v3635
      %v3637 = vsel %vm3627, %v3634, %v3636
      %v3638 = vsel %vm3626, %v3616, %v3619
      %v3639 = vsel %vm3629, %v3625, 1326507024
      %v3640 = vsel %vm3628, %v3622, %v3639
      %v3641 = vsel %vm3627, %v3638, %v3640
      %v3642 = vshll.u32 %v3602, 8
      %v3643 = vmul.u32.u64.compose %v3642, %v3641
      %v3644 = vextract.low.u32 %v3643
      %v3645 = vextract.high.u32 %v3643
      %v3646 = vmul.u32.u64.compose %v3642, %v3637
      %v3647 = vextract.low.u32 %v3646
      %v3648 = vextract.high.u32 %v3646
      %v3649 = vmul.u32 %v3642, %v3633
      %v3650 = vadd.s32 %v3645, %v3647
      %vm3651 = vc.u32 %v3645, %v3647
      %v3652 = vadd.s32 %v3648, 1
      %v3653 = vsel %vm3651, %v3652, %v3648
      %v3654 = vadd.s32 %v3649, %v3653
      %v3655 = vadd.s32 %v3654, 536870912
      %v3656 = vshrl.u32 %v3655, 30
      %v3657 = vshll.u32 %v3656, 30
      %v3658 = vsub.s32 %v3654, %v3657
      %vm3659 = vcmp.lt.s32.totalorder %v3658, 0
      %v3660 = vsub.s32 0, %v3658
      %v3661 = vsel %vm3659, %v3660, %v3658
      %v3662 = vclz %v3661
      %v3663 = vsub.s32 %v3662, 2
      %vm3664 = vcmp.gt.s32.totalorder 0, %v3663
      %v3665 = vsel %vm3664, 0, %v3663
      %v3666 = vsub.s32 32, %v3665
      %v3667 = vshll.u32 %v3658, %v3665
      %v3668 = vshrl.u32 %v3650, %v3666
      %v3669 = vor.u32 %v3667, %v3668
      %v3670 = vsub.s32 4294967266, %v3665
      %v3671 = vadd.s32 %v3670, 127
      %v3672 = vshll.u32 %v3671, 23
      %v3673 = vor.u32 4788187, %v3672
      %v3674 = vand.u32 2147483647, %v3673
      %v3676 = vcvt.s32.f32 %v3669
      %v3677 = vmul.f32 %v3676, %v3674
      %v3678 = vxor.u32 %v3677, 2147483648
      %v3679 = vsel %vm3596, %v3678, %v3677
      %v3680 = vsub.s32 4, %v3656
      %v3681 = vsel %vm3596, %v3680, %v3656
      %v3682 = vsel %vm3595, %v789, %v3679
      %v3683 = vsel %vm3595, 0, %v3681
      %v3684 = vcosq.f32.pop %v3682
      %v3685 = vsinq.f32.pop %v3682
      %vm3686 = vweird.f32 %v789
      %v3687 = vadd.s32 %v3683, 3
      %v3688 = vand.u32 %v3687, 3
      %vm3689 = vcmp.lt.s32.totalorder %v3688, 2
      %vm3690 = vcmp.eq.s32.totalorder %v3688, 0
      %v3691 = vxor.u32 %v3685, 2147483648
      %v3692 = vsel %vm3690, %v3684, %v3691
      %vm3693 = vcmp.eq.s32.totalorder %v3688, 2
      %v3694 = vxor.u32 %v3684, 2147483648
      %v3695 = vsel %vm3693, %v3694, %v3685
      %v3696 = vsel %vm3689, %v3692, %v3695
      %v3697 = vsel %vm3686, nan, %v3696
      %v3698 = vand.u32 2147483647, %v790
      %vm3699 = vcmp.le.f32.partialorder %v3698, 0.7853982
      %vm3700 = vcmp.lt.s32.totalorder %v790, 0
      %v3701 = vand.u32 %v790, 2139095040
      %v3702 = vshrl.u32 %v3701, 23
      %v3703 = vsub.s32 %v3702, 127
      %v3704 = vand.u32 2147483647, %v790
      %v3705 = vand.u32 %v3704, 8388607
      %v3706 = vor.u32 %v3705, 8388608
      %v3707 = vsub.s32 0, %v3706
      %v3708 = vadd.s32 %v3703, 1
      %vm3709 = vcmp.gt.s32.totalorder %v3708, 0
      %v3710 = vsel %vm3709, %v3708, 0
      %v3711 = vshrl.u32 %v3710, 5
      %v3712 = vand.u32 %v3710, 31
      %v3713 = vsub.s32 32, %v3712
      %v3714 = vshrl.u32 683565275, %v3713
      %v3715 = vshll.u32 683565275, %v3712
      %v3716 = vshrl.u32 2475754826, %v3713
      %v3717 = vor.u32 %v3715, %v3716
      %v3718 = vshll.u32 2475754826, %v3712
      %v3719 = vshrl.u32 2131351028, %v3713
      %v3720 = vor.u32 %v3718, %v3719
      %v3721 = vshll.u32 2131351028, %v3712
      %v3722 = vshrl.u32 2102212464, %v3713
      %v3723 = vor.u32 %v3721, %v3722
      %v3724 = vshll.u32 2102212464, %v3712
      %v3725 = vshrl.u32 920167782, %v3713
      %v3726 = vor.u32 %v3724, %v3725
      %v3727 = vshll.u32 920167782, %v3712
      %v3728 = vshrl.u32 1326507024, %v3713
      %v3729 = vor.u32 %v3727, %v3728
      %vm3730 = vcmp.lt.s32.totalorder %v3711, 1
      %vm3731 = vcmp.lt.s32.totalorder %v3711, 2
      %vm3732 = vcmp.lt.s32.totalorder %v3711, 3
      %vm3733 = vcmp.lt.s32.totalorder %v3711, 4
      %v3734 = vsel %vm3730, %v3714, %v3717
      %v3735 = vsel %vm3733, %v3723, 2102212464
      %v3736 = vsel %vm3732, %v3720, %v3735
      %v3737 = vsel %vm3731, %v3734, %v3736
      %v3738 = vsel %vm3730, %v3717, %v3720
      %v3739 = vsel %vm3733, %v3726, 920167782
      %v3740 = vsel %vm3732, %v3723, %v3739
      %v3741 = vsel %vm3731, %v3738, %v3740
      %v3742 = vsel %vm3730, %v3720, %v3723
      %v3743 = vsel %vm3733, %v3729, 1326507024
      %v3744 = vsel %vm3732, %v3726, %v3743
      %v3745 = vsel %vm3731, %v3742, %v3744
      %v3746 = vshll.u32 %v3706, 8
      %v3747 = vmul.u32.u64.compose %v3746, %v3745
      %v3748 = vextract.low.u32 %v3747
      %v3749 = vextract.high.u32 %v3747
      %v3750 = vmul.u32.u64.compose %v3746, %v3741
      %v3751 = vextract.low.u32 %v3750
      %v3752 = vextract.high.u32 %v3750
      %v3753 = vmul.u32 %v3746, %v3737
      %v3754 = vadd.s32 %v3749, %v3751
      %vm3755 = vc.u32 %v3749, %v3751
      %v3756 = vadd.s32 %v3752, 1
      %v3757 = vsel %vm3755, %v3756, %v3752
      %v3758 = vadd.s32 %v3753, %v3757
      %v3759 = vadd.s32 %v3758, 536870912
      %v3760 = vshrl.u32 %v3759, 30
      %v3761 = vshll.u32 %v3760, 30
      %v3762 = vsub.s32 %v3758, %v3761
      %vm3763 = vcmp.lt.s32.totalorder %v3762, 0
      %v3764 = vsub.s32 0, %v3762
      %v3765 = vsel %vm3763, %v3764, %v3762
      %v3766 = vclz %v3765
      %v3767 = vsub.s32 %v3766, 2
      %vm3768 = vcmp.gt.s32.totalorder 0, %v3767
      %v3769 = vsel %vm3768, 0, %v3767
      %v3770 = vsub.s32 32, %v3769
      %v3771 = vshll.u32 %v3762, %v3769
      %v3772 = vshrl.u32 %v3754, %v3770
      %v3773 = vor.u32 %v3771, %v3772
      %v3774 = vsub.s32 4294967266, %v3769
      %v3775 = vadd.s32 %v3774, 127
      %v3776 = vshll.u32 %v3775, 23
      %v3777 = vor.u32 4788187, %v3776
      %v3778 = vand.u32 2147483647, %v3777
      %v3780 = vcvt.s32.f32 %v3773
      %v3781 = vmul.f32 %v3780, %v3778
      %v3782 = vxor.u32 %v3781, 2147483648
      %v3783 = vsel %vm3700, %v3782, %v3781
      %v3784 = vsub.s32 4, %v3760
      %v3785 = vsel %vm3700, %v3784, %v3760
      %v3786 = vsel %vm3699, %v790, %v3783
      %v3787 = vsel %vm3699, 0, %v3785
      %v3788 = vcosq.f32.pop %v3786
      %v3789 = vsinq.f32.pop %v3786
      %vm3790 = vweird.f32 %v790
      %v3791 = vadd.s32 %v3787, 3
      %v3792 = vand.u32 %v3791, 3
      %vm3793 = vcmp.lt.s32.totalorder %v3792, 2
      %vm3794 = vcmp.eq.s32.totalorder %v3792, 0
      %v3795 = vxor.u32 %v3789, 2147483648
      %v3796 = vsel %vm3794, %v3788, %v3795
      %vm3797 = vcmp.eq.s32.totalorder %v3792, 2
      %v3798 = vxor.u32 %v3788, 2147483648
      %v3799 = vsel %vm3797, %v3798, %v3789
      %v3800 = vsel %vm3793, %v3796, %v3799
      %v3801 = vsel %vm3790, nan, %v3800
      %v3802 = vand.u32 2147483647, %v791
      %vm3803 = vcmp.le.f32.partialorder %v3802, 0.7853982
      %vm3804 = vcmp.lt.s32.totalorder %v791, 0
      %v3805 = vand.u32 %v791, 2139095040
      %v3806 = vshrl.u32 %v3805, 23
      %v3807 = vsub.s32 %v3806, 127
      %v3808 = vand.u32 2147483647, %v791
      %v3809 = vand.u32 %v3808, 8388607
      %v3810 = vor.u32 %v3809, 8388608
      %v3811 = vsub.s32 0, %v3810
      %v3812 = vadd.s32 %v3807, 1
      %vm3813 = vcmp.gt.s32.totalorder %v3812, 0
      %v3814 = vsel %vm3813, %v3812, 0
      %v3815 = vshrl.u32 %v3814, 5
      %v3816 = vand.u32 %v3814, 31
      %v3817 = vsub.s32 32, %v3816
      %v3818 = vshrl.u32 683565275, %v3817
      %v3819 = vshll.u32 683565275, %v3816
      %v3820 = vshrl.u32 2475754826, %v3817
      %v3821 = vor.u32 %v3819, %v3820
      %v3822 = vshll.u32 2475754826, %v3816
      %v3823 = vshrl.u32 2131351028, %v3817
      %v3824 = vor.u32 %v3822, %v3823
      %v3825 = vshll.u32 2131351028, %v3816
      %v3826 = vshrl.u32 2102212464, %v3817
      %v3827 = vor.u32 %v3825, %v3826
      %v3828 = vshll.u32 2102212464, %v3816
      %v3829 = vshrl.u32 920167782, %v3817
      %v3830 = vor.u32 %v3828, %v3829
      %v3831 = vshll.u32 920167782, %v3816
      %v3832 = vshrl.u32 1326507024, %v3817
      %v3833 = vor.u32 %v3831, %v3832
      %vm3834 = vcmp.lt.s32.totalorder %v3815, 1
      %vm3835 = vcmp.lt.s32.totalorder %v3815, 2
      %vm3836 = vcmp.lt.s32.totalorder %v3815, 3
      %vm3837 = vcmp.lt.s32.totalorder %v3815, 4
      %v3838 = vsel %vm3834, %v3818, %v3821
      %v3839 = vsel %vm3837, %v3827, 2102212464
      %v3840 = vsel %vm3836, %v3824, %v3839
      %v3841 = vsel %vm3835, %v3838, %v3840
      %v3842 = vsel %vm3834, %v3821, %v3824
      %v3843 = vsel %vm3837, %v3830, 920167782
      %v3844 = vsel %vm3836, %v3827, %v3843
      %v3845 = vsel %vm3835, %v3842, %v3844
      %v3846 = vsel %vm3834, %v3824, %v3827
      %v3847 = vsel %vm3837, %v3833, 1326507024
      %v3848 = vsel %vm3836, %v3830, %v3847
      %v3849 = vsel %vm3835, %v3846, %v3848
      %v3850 = vshll.u32 %v3810, 8
      %v3851 = vmul.u32.u64.compose %v3850, %v3849
      %v3852 = vextract.low.u32 %v3851
      %v3853 = vextract.high.u32 %v3851
      %v3854 = vmul.u32.u64.compose %v3850, %v3845
      %v3855 = vextract.low.u32 %v3854
      %v3856 = vextract.high.u32 %v3854
      %v3857 = vmul.u32 %v3850, %v3841
      %v3858 = vadd.s32 %v3853, %v3855
      %vm3859 = vc.u32 %v3853, %v3855
      %v3860 = vadd.s32 %v3856, 1
      %v3861 = vsel %vm3859, %v3860, %v3856
      %v3862 = vadd.s32 %v3857, %v3861
      %v3863 = vadd.s32 %v3862, 536870912
      %v3864 = vshrl.u32 %v3863, 30
      %v3865 = vshll.u32 %v3864, 30
      %v3866 = vsub.s32 %v3862, %v3865
      %vm3867 = vcmp.lt.s32.totalorder %v3866, 0
      %v3868 = vsub.s32 0, %v3866
      %v3869 = vsel %vm3867, %v3868, %v3866
      %v3870 = vclz %v3869
      %v3871 = vsub.s32 %v3870, 2
      %vm3872 = vcmp.gt.s32.totalorder 0, %v3871
      %v3873 = vsel %vm3872, 0, %v3871
      %v3874 = vsub.s32 32, %v3873
      %v3875 = vshll.u32 %v3866, %v3873
      %v3876 = vshrl.u32 %v3858, %v3874
      %v3877 = vor.u32 %v3875, %v3876
      %v3878 = vsub.s32 4294967266, %v3873
      %v3879 = vadd.s32 %v3878, 127
      %v3880 = vshll.u32 %v3879, 23
      %v3881 = vor.u32 4788187, %v3880
      %v3882 = vand.u32 2147483647, %v3881
      %v3884 = vcvt.s32.f32 %v3877
      %v3885 = vmul.f32 %v3884, %v3882
      %v3886 = vxor.u32 %v3885, 2147483648
      %v3887 = vsel %vm3804, %v3886, %v3885
      %v3888 = vsub.s32 4, %v3864
      %v3889 = vsel %vm3804, %v3888, %v3864
      %v3890 = vsel %vm3803, %v791, %v3887
      %v3891 = vsel %vm3803, 0, %v3889
      %v3892 = vcosq.f32.pop %v3890
      %v3893 = vsinq.f32.pop %v3890
      %vm3894 = vweird.f32 %v791
      %v3895 = vadd.s32 %v3891, 3
      %v3896 = vand.u32 %v3895, 3
      %vm3897 = vcmp.lt.s32.totalorder %v3896, 2
      %vm3898 = vcmp.eq.s32.totalorder %v3896, 0
      %v3899 = vxor.u32 %v3893, 2147483648
      %v3900 = vsel %vm3898, %v3892, %v3899
      %vm3901 = vcmp.eq.s32.totalorder %v3896, 2
      %v3902 = vxor.u32 %v3892, 2147483648
      %v3903 = vsel %vm3901, %v3902, %v3893
      %v3904 = vsel %vm3897, %v3900, %v3903
      %v3905 = vsel %vm3894, nan, %v3904
      %v3906 = vand.u32 2147483647, %v792
      %vm3907 = vcmp.le.f32.partialorder %v3906, 0.7853982
      %vm3908 = vcmp.lt.s32.totalorder %v792, 0
      %v3909 = vand.u32 %v792, 2139095040
      %v3910 = vshrl.u32 %v3909, 23
      %v3911 = vsub.s32 %v3910, 127
      %v3912 = vand.u32 2147483647, %v792
      %v3913 = vand.u32 %v3912, 8388607
      %v3914 = vor.u32 %v3913, 8388608
      %v3915 = vsub.s32 0, %v3914
      %v3916 = vadd.s32 %v3911, 1
      %vm3917 = vcmp.gt.s32.totalorder %v3916, 0
      %v3918 = vsel %vm3917, %v3916, 0
      %v3919 = vshrl.u32 %v3918, 5
      %v3920 = vand.u32 %v3918, 31
      %v3921 = vsub.s32 32, %v3920
      %v3922 = vshrl.u32 683565275, %v3921
      %v3923 = vshll.u32 683565275, %v3920
      %v3924 = vshrl.u32 2475754826, %v3921
      %v3925 = vor.u32 %v3923, %v3924
      %v3926 = vshll.u32 2475754826, %v3920
      %v3927 = vshrl.u32 2131351028, %v3921
      %v3928 = vor.u32 %v3926, %v3927
      %v3929 = vshll.u32 2131351028, %v3920
      %v3930 = vshrl.u32 2102212464, %v3921
      %v3931 = vor.u32 %v3929, %v3930
      %v3932 = vshll.u32 2102212464, %v3920
      %v3933 = vshrl.u32 920167782, %v3921
      %v3934 = vor.u32 %v3932, %v3933
      %v3935 = vshll.u32 920167782, %v3920
      %v3936 = vshrl.u32 1326507024, %v3921
      %v3937 = vor.u32 %v3935, %v3936
      %vm3938 = vcmp.lt.s32.totalorder %v3919, 1
      %vm3939 = vcmp.lt.s32.totalorder %v3919, 2
      %vm3940 = vcmp.lt.s32.totalorder %v3919, 3
      %vm3941 = vcmp.lt.s32.totalorder %v3919, 4
      %v3942 = vsel %vm3938, %v3922, %v3925
      %v3943 = vsel %vm3941, %v3931, 2102212464
      %v3944 = vsel %vm3940, %v3928, %v3943
      %v3945 = vsel %vm3939, %v3942, %v3944
      %v3946 = vsel %vm3938, %v3925, %v3928
      %v3947 = vsel %vm3941, %v3934, 920167782
      %v3948 = vsel %vm3940, %v3931, %v3947
      %v3949 = vsel %vm3939, %v3946, %v3948
      %v3950 = vsel %vm3938, %v3928, %v3931
      %v3951 = vsel %vm3941, %v3937, 1326507024
      %v3952 = vsel %vm3940, %v3934, %v3951
      %v3953 = vsel %vm3939, %v3950, %v3952
      %v3954 = vshll.u32 %v3914, 8
      %v3955 = vmul.u32.u64.compose %v3954, %v3953
      %v3956 = vextract.low.u32 %v3955
      %v3957 = vextract.high.u32 %v3955
      %v3958 = vmul.u32.u64.compose %v3954, %v3949
      %v3959 = vextract.low.u32 %v3958
      %v3960 = vextract.high.u32 %v3958
      %v3961 = vmul.u32 %v3954, %v3945
      %v3962 = vadd.s32 %v3957, %v3959
      %vm3963 = vc.u32 %v3957, %v3959
      %v3964 = vadd.s32 %v3960, 1
      %v3965 = vsel %vm3963, %v3964, %v3960
      %v3966 = vadd.s32 %v3961, %v3965
      %v3967 = vadd.s32 %v3966, 536870912
      %v3968 = vshrl.u32 %v3967, 30
      %v3969 = vshll.u32 %v3968, 30
      %v3970 = vsub.s32 %v3966, %v3969
      %vm3971 = vcmp.lt.s32.totalorder %v3970, 0
      %v3972 = vsub.s32 0, %v3970
      %v3973 = vsel %vm3971, %v3972, %v3970
      %v3974 = vclz %v3973
      %v3975 = vsub.s32 %v3974, 2
      %vm3976 = vcmp.gt.s32.totalorder 0, %v3975
      %v3977 = vsel %vm3976, 0, %v3975
      %v3978 = vsub.s32 32, %v3977
      %v3979 = vshll.u32 %v3970, %v3977
      %v3980 = vshrl.u32 %v3962, %v3978
      %v3981 = vor.u32 %v3979, %v3980
      %v3982 = vsub.s32 4294967266, %v3977
      %v3983 = vadd.s32 %v3982, 127
      %v3984 = vshll.u32 %v3983, 23
      %v3985 = vor.u32 4788187, %v3984
      %v3986 = vand.u32 2147483647, %v3985
      %v3988 = vcvt.s32.f32 %v3981
      %v3989 = vmul.f32 %v3988, %v3986
      %v3990 = vxor.u32 %v3989, 2147483648
      %v3991 = vsel %vm3908, %v3990, %v3989
      %v3992 = vsub.s32 4, %v3968
      %v3993 = vsel %vm3908, %v3992, %v3968
      %v3994 = vsel %vm3907, %v792, %v3991
      %v3995 = vsel %vm3907, 0, %v3993
      %v3996 = vcosq.f32.pop %v3994
      %v3997 = vsinq.f32.pop %v3994
      %vm3998 = vweird.f32 %v792
      %v3999 = vadd.s32 %v3995, 3
      %v4000 = vand.u32 %v3999, 3
      %vm4001 = vcmp.lt.s32.totalorder %v4000, 2
      %vm4002 = vcmp.eq.s32.totalorder %v4000, 0
      %v4003 = vxor.u32 %v3997, 2147483648
      %v4004 = vsel %vm4002, %v3996, %v4003
      %vm4005 = vcmp.eq.s32.totalorder %v4000, 2
      %v4006 = vxor.u32 %v3996, 2147483648
      %v4007 = vsel %vm4005, %v4006, %v3997
      %v4008 = vsel %vm4001, %v4004, %v4007
      %v4009 = vsel %vm3998, nan, %v4008
      %v4010 = vand.u32 2147483647, %v793
      %vm4011 = vcmp.le.f32.partialorder %v4010, 0.7853982
      %vm4012 = vcmp.lt.s32.totalorder %v793, 0
      %v4013 = vand.u32 %v793, 2139095040
      %v4014 = vshrl.u32 %v4013, 23
      %v4015 = vsub.s32 %v4014, 127
      %v4016 = vand.u32 2147483647, %v793
      %v4017 = vand.u32 %v4016, 8388607
      %v4018 = vor.u32 %v4017, 8388608
      %v4019 = vsub.s32 0, %v4018
      %v4020 = vadd.s32 %v4015, 1
      %vm4021 = vcmp.gt.s32.totalorder %v4020, 0
      %v4022 = vsel %vm4021, %v4020, 0
      %v4023 = vshrl.u32 %v4022, 5
      %v4024 = vand.u32 %v4022, 31
      %v4025 = vsub.s32 32, %v4024
      %v4026 = vshrl.u32 683565275, %v4025
      %v4027 = vshll.u32 683565275, %v4024
      %v4028 = vshrl.u32 2475754826, %v4025
      %v4029 = vor.u32 %v4027, %v4028
      %v4030 = vshll.u32 2475754826, %v4024
      %v4031 = vshrl.u32 2131351028, %v4025
      %v4032 = vor.u32 %v4030, %v4031
      %v4033 = vshll.u32 2131351028, %v4024
      %v4034 = vshrl.u32 2102212464, %v4025
      %v4035 = vor.u32 %v4033, %v4034
      %v4036 = vshll.u32 2102212464, %v4024
      %v4037 = vshrl.u32 920167782, %v4025
      %v4038 = vor.u32 %v4036, %v4037
      %v4039 = vshll.u32 920167782, %v4024
      %v4040 = vshrl.u32 1326507024, %v4025
      %v4041 = vor.u32 %v4039, %v4040
      %vm4042 = vcmp.lt.s32.totalorder %v4023, 1
      %vm4043 = vcmp.lt.s32.totalorder %v4023, 2
      %vm4044 = vcmp.lt.s32.totalorder %v4023, 3
      %vm4045 = vcmp.lt.s32.totalorder %v4023, 4
      %v4046 = vsel %vm4042, %v4026, %v4029
      %v4047 = vsel %vm4045, %v4035, 2102212464
      %v4048 = vsel %vm4044, %v4032, %v4047
      %v4049 = vsel %vm4043, %v4046, %v4048
      %v4050 = vsel %vm4042, %v4029, %v4032
      %v4051 = vsel %vm4045, %v4038, 920167782
      %v4052 = vsel %vm4044, %v4035, %v4051
      %v4053 = vsel %vm4043, %v4050, %v4052
      %v4054 = vsel %vm4042, %v4032, %v4035
      %v4055 = vsel %vm4045, %v4041, 1326507024
      %v4056 = vsel %vm4044, %v4038, %v4055
      %v4057 = vsel %vm4043, %v4054, %v4056
      %v4058 = vshll.u32 %v4018, 8
      %v4059 = vmul.u32.u64.compose %v4058, %v4057
      %v4060 = vextract.low.u32 %v4059
      %v4061 = vextract.high.u32 %v4059
      %v4062 = vmul.u32.u64.compose %v4058, %v4053
      %v4063 = vextract.low.u32 %v4062
      %v4064 = vextract.high.u32 %v4062
      %v4065 = vmul.u32 %v4058, %v4049
      %v4066 = vadd.s32 %v4061, %v4063
      %vm4067 = vc.u32 %v4061, %v4063
      %v4068 = vadd.s32 %v4064, 1
      %v4069 = vsel %vm4067, %v4068, %v4064
      %v4070 = vadd.s32 %v4065, %v4069
      %v4071 = vadd.s32 %v4070, 536870912
      %v4072 = vshrl.u32 %v4071, 30
      %v4073 = vshll.u32 %v4072, 30
      %v4074 = vsub.s32 %v4070, %v4073
      %vm4075 = vcmp.lt.s32.totalorder %v4074, 0
      %v4076 = vsub.s32 0, %v4074
      %v4077 = vsel %vm4075, %v4076, %v4074
      %v4078 = vclz %v4077
      %v4079 = vsub.s32 %v4078, 2
      %vm4080 = vcmp.gt.s32.totalorder 0, %v4079
      %v4081 = vsel %vm4080, 0, %v4079
      %v4082 = vsub.s32 32, %v4081
      %v4083 = vshll.u32 %v4074, %v4081
      %v4084 = vshrl.u32 %v4066, %v4082
      %v4085 = vor.u32 %v4083, %v4084
      %v4086 = vsub.s32 4294967266, %v4081
      %v4087 = vadd.s32 %v4086, 127
      %v4088 = vshll.u32 %v4087, 23
      %v4089 = vor.u32 4788187, %v4088
      %v4090 = vand.u32 2147483647, %v4089
      %v4092 = vcvt.s32.f32 %v4085
      %v4093 = vmul.f32 %v4092, %v4090
      %v4094 = vxor.u32 %v4093, 2147483648
      %v4095 = vsel %vm4012, %v4094, %v4093
      %v4096 = vsub.s32 4, %v4072
      %v4097 = vsel %vm4012, %v4096, %v4072
      %v4098 = vsel %vm4011, %v793, %v4095
      %v4099 = vsel %vm4011, 0, %v4097
      %v4100 = vcosq.f32.pop %v4098
      %v4101 = vsinq.f32.pop %v4098
      %vm4102 = vweird.f32 %v793
      %v4103 = vadd.s32 %v4099, 3
      %v4104 = vand.u32 %v4103, 3
      %vm4105 = vcmp.lt.s32.totalorder %v4104, 2
      %vm4106 = vcmp.eq.s32.totalorder %v4104, 0
      %v4107 = vxor.u32 %v4101, 2147483648
      %v4108 = vsel %vm4106, %v4100, %v4107
      %vm4109 = vcmp.eq.s32.totalorder %v4104, 2
      %v4110 = vxor.u32 %v4100, 2147483648
      %v4111 = vsel %vm4109, %v4110, %v4101
      %v4112 = vsel %vm4105, %v4108, %v4111
      %v4113 = vsel %vm4102, nan, %v4112
      %v4114 = vpack.c.bf16 %v2657, %v2553
      %v4115 = vpack.c.bf16 %v2865, %v2761
      %v4116 = vpack.c.bf16 %v3073, %v2969
      %v4117 = vpack.c.bf16 %v3281, %v3177
      %v4118 = vpack.c.bf16 %v3489, %v3385
      %v4119 = vpack.c.bf16 %v3697, %v3593
      %v4120 = vpack.c.bf16 %v3905, %v3801
      %v4121 = vpack.c.bf16 %v4113, %v4009
      %v4138 = vunpack.c.l.b16 %v410
      %v4139 = vunpack.c.l.b16 %v411
      %v4140 = vunpack.c.l.b16 %v412
      %v4141 = vunpack.c.l.b16 %v413
      %v4142 = vunpack.c.l.b16 %v414
      %v4143 = vunpack.c.l.b16 %v415
      %v4144 = vunpack.c.l.b16 %v416
      %v4145 = vunpack.c.l.b16 %v417
      %v4146 = vunpack.c.l.b16 %v418
      %v4147 = vunpack.c.l.b16 %v419
      %v4148 = vunpack.c.l.b16 %v420
      %v4149 = vunpack.c.l.b16 %v421
      %v4150 = vunpack.c.l.b16 %v422
      %v4151 = vunpack.c.l.b16 %v423
      %v4152 = vunpack.c.l.b16 %v424
      %v4153 = vunpack.c.l.b16 %v425
      %v4154 = vpack.c.b16 %v4139, %v4138
      %v4155 = vpack.c.b16 %v4141, %v4140
      %v4156 = vpack.c.b16 %v4143, %v4142
      %v4157 = vpack.c.b16 %v4145, %v4144
      %v4158 = vpack.c.b16 %v4147, %v4146
      %v4159 = vpack.c.b16 %v4149, %v4148
      %v4160 = vpack.c.b16 %v4151, %v4150
      %v4161 = vpack.c.b16 %v4153, %v4152
      %4170 = vmatprep.subr.bf16.mxu0 0
      %4171 = vmatpush1.bf16.msra.mxu0 %v4154
      %4172 = vmatprep.subr.bf16.mxu0 0
      %4173 = vmatpush1.bf16.msra.mxu0 %v4155
      %4174 = vmatprep.subr.bf16.mxu0 0
      %4175 = vmatpush1.bf16.msra.mxu0 %v4156
      %4176 = vmatprep.subr.bf16.mxu0 0
      %4177 = vmatpush1.bf16.msra.mxu0 %v4157
      %4178 = vmatprep.subr.bf16.mxu0 0
      %4179 = vmatpush1.bf16.msra.mxu0 %v4158
      %4180 = vmatprep.subr.bf16.mxu0 0
      %4181 = vmatpush1.bf16.msra.mxu0 %v4159
      %4182 = vmatprep.subr.bf16.mxu0 0
      %4183 = vmatpush1.bf16.msra.mxu0 %v4160
      %4184 = vmatprep.subr.bf16.mxu0 0
      %4185 = vmatpush1.bf16.msra.mxu0 %v4161
      %4186 = vmatprep.subr.bf16.mxu0 0
      %4187 = vmatpush1.bf16.msra.mxu0 0
      %4188 = vmatprep.subr.bf16.mxu0 0
      %4189 = vmatpush1.bf16.msra.mxu0 0
      %4190 = vmatprep.subr.bf16.mxu0 0
      %4191 = vmatpush1.bf16.msra.mxu0 0
      %4192 = vmatprep.subr.bf16.mxu0 0
      %4193 = vmatpush1.bf16.msra.mxu0 0
      %4194 = vmatprep.subr.bf16.mxu0 0
      %4195 = vmatpush1.bf16.msra.mxu0 0
      %4196 = vmatprep.subr.bf16.mxu0 0
      %4197 = vmatpush1.bf16.msra.mxu0 0
      %4198 = vmatprep.subr.bf16.mxu0 0
      %4199 = vmatpush1.bf16.msra.mxu0 0
      %4200 = vmatprep.subr.bf16.mxu0 0
      %4201 = vmatpush1.bf16.msra.mxu0 0
      %4202 = vmatprep.mubr.bf16.mxu0 0
      %4203 = vmatmul.mubr.bf16.gmra.mrb[0].mxu0 %v4114
      %v4204 = vpop.f32.mrb[0].mxu0
      %v4205 = vadd.f32 0.0, %v4204
      %v4206 = vpop.f32.mrb[0].mxu0
      %v4207 = vpop.f32.mrb[0].mxu0
      %v4208 = vadd.f32 0.0, %v4207
      %v4209 = vpop.f32.mrb[0].mxu0
      %4210 = vmatprep.mubr.bf16.mxu0 0
      %4211 = vmatmul.mubr.bf16.gmra.mrb[0].mxu0 %v4115
      %v4212 = vpop.f32.mrb[0].mxu0
      %v4213 = vadd.f32 0.0, %v4212
      %v4214 = vpop.f32.mrb[0].mxu0
      %v4215 = vpop.f32.mrb[0].mxu0
      %v4216 = vadd.f32 0.0, %v4215
      %v4217 = vpop.f32.mrb[0].mxu0
      %4218 = vmatprep.mubr.bf16.mxu0 0
      %4219 = vmatmul.mubr.bf16.gmra.mrb[0].mxu0 %v4116
      %v4220 = vpop.f32.mrb[0].mxu0
      %v4221 = vadd.f32 0.0, %v4220
      %v4222 = vpop.f32.mrb[0].mxu0
      %v4223 = vpop.f32.mrb[0].mxu0
      %v4224 = vadd.f32 0.0, %v4223
      %v4225 = vpop.f32.mrb[0].mxu0
      %4226 = vmatprep.mubr.bf16.mxu0 0
      %4227 = vmatmul.mubr.bf16.gmra.mrb[0].mxu0 %v4117
      %v4228 = vpop.f32.mrb[0].mxu0
      %v4229 = vadd.f32 0.0, %v4228
      %v4230 = vpop.f32.mrb[0].mxu0
      %v4231 = vpop.f32.mrb[0].mxu0
      %v4232 = vadd.f32 0.0, %v4231
      %v4233 = vpop.f32.mrb[0].mxu0
      %4234 = vmatprep.mubr.bf16.mxu0 0
      %4235 = vmatmul.mubr.bf16.gmra.mrb[0].mxu0 %v4118
      %v4236 = vpop.f32.mrb[0].mxu0
      %v4237 = vadd.f32 0.0, %v4236
      %v4238 = vpop.f32.mrb[0].mxu0
      %v4239 = vpop.f32.mrb[0].mxu0
      %v4240 = vadd.f32 0.0, %v4239
      %v4241 = vpop.f32.mrb[0].mxu0
      %4242 = vmatprep.mubr.bf16.mxu0 0
      %4243 = vmatmul.mubr.bf16.gmra.mrb[0].mxu0 %v4119
      %v4244 = vpop.f32.mrb[0].mxu0
      %v4245 = vadd.f32 0.0, %v4244
      %v4246 = vpop.f32.mrb[0].mxu0
      %v4247 = vpop.f32.mrb[0].mxu0
      %v4248 = vadd.f32 0.0, %v4247
      %v4249 = vpop.f32.mrb[0].mxu0
      %4250 = vmatprep.mubr.bf16.mxu0 0
      %4251 = vmatmul.mubr.bf16.gmra.mrb[0].mxu0 %v4120
      %v4252 = vpop.f32.mrb[0].mxu0
      %v4253 = vadd.f32 0.0, %v4252
      %v4254 = vpop.f32.mrb[0].mxu0
      %v4255 = vpop.f32.mrb[0].mxu0
      %v4256 = vadd.f32 0.0, %v4255
      %v4257 = vpop.f32.mrb[0].mxu0
      %4258 = vmatprep.mubr.bf16.mxu0 0
      %4259 = vmatmul.mubr.bf16.gmra.mrb[0].mxu0 %v4121
      %v4260 = vpop.f32.mrb[0].mxu0
      %v4261 = vadd.f32 0.0, %v4260
      %v4262 = vpop.f32.mrb[0].mxu0
      %v4263 = vpop.f32.mrb[0].mxu0
      %v4264 = vadd.f32 0.0, %v4263
      %v4265 = vpop.f32.mrb[0].mxu0
      %4266 = vdwg.mxu0
      %v4283 = vunpack.c.l.b16 %v394
      %v4284 = vunpack.c.l.b16 %v395
      %v4285 = vunpack.c.l.b16 %v396
      %v4286 = vunpack.c.l.b16 %v397
      %v4287 = vunpack.c.l.b16 %v398
      %v4288 = vunpack.c.l.b16 %v399
      %v4289 = vunpack.c.l.b16 %v400
      %v4290 = vunpack.c.l.b16 %v401
      %v4291 = vunpack.c.l.b16 %v402
      %v4292 = vunpack.c.l.b16 %v403
      %v4293 = vunpack.c.l.b16 %v404
      %v4294 = vunpack.c.l.b16 %v405
      %v4295 = vunpack.c.l.b16 %v406
      %v4296 = vunpack.c.l.b16 %v407
      %v4297 = vunpack.c.l.b16 %v408
      %v4298 = vunpack.c.l.b16 %v409
      %v4299 = vpack.c.b16 %v4284, %v4283
      %v4300 = vpack.c.b16 %v4286, %v4285
      %v4301 = vpack.c.b16 %v4288, %v4287
      %v4302 = vpack.c.b16 %v4290, %v4289
      %v4303 = vpack.c.b16 %v4292, %v4291
      %v4304 = vpack.c.b16 %v4294, %v4293
      %v4305 = vpack.c.b16 %v4296, %v4295
      %v4306 = vpack.c.b16 %v4298, %v4297
      %4315 = vmatprep.subr.bf16.mxu0 0
      %4316 = vmatpush1.bf16.msra.mxu0 %v4299
      %4317 = vmatprep.subr.bf16.mxu0 0
      %4318 = vmatpush1.bf16.msra.mxu0 %v4300
      %4319 = vmatprep.subr.bf16.mxu0 0
      %4320 = vmatpush1.bf16.msra.mxu0 %v4301
      %4321 = vmatprep.subr.bf16.mxu0 0
      %4322 = vmatpush1.bf16.msra.mxu0 %v4302
      %4323 = vmatprep.subr.bf16.mxu0 0
      %4324 = vmatpush1.bf16.msra.mxu0 %v4303
      %4325 = vmatprep.subr.bf16.mxu0 0
      %4326 = vmatpush1.bf16.msra.mxu0 %v4304
      %4327 = vmatprep.subr.bf16.mxu0 0
      %4328 = vmatpush1.bf16.msra.mxu0 %v4305
      %4329 = vmatprep.subr.bf16.mxu0 0
      %4330 = vmatpush1.bf16.msra.mxu0 %v4306
      %4331 = vmatprep.subr.bf16.mxu0 0
      %4332 = vmatpush1.bf16.msra.mxu0 0
      %4333 = vmatprep.subr.bf16.mxu0 0
      %4334 = vmatpush1.bf16.msra.mxu0 0
      %4335 = vmatprep.subr.bf16.mxu0 0
      %4336 = vmatpush1.bf16.msra.mxu0 0
      %4337 = vmatprep.subr.bf16.mxu0 0
      %4338 = vmatpush1.bf16.msra.mxu0 0
      %4339 = vmatprep.subr.bf16.mxu0 0
      %4340 = vmatpush1.bf16.msra.mxu0 0
      %4341 = vmatprep.subr.bf16.mxu0 0
      %4342 = vmatpush1.bf16.msra.mxu0 0
      %4343 = vmatprep.subr.bf16.mxu0 0
      %4344 = vmatpush1.bf16.msra.mxu0 0
      %4345 = vmatprep.subr.bf16.mxu0 0
      %4346 = vmatpush1.bf16.msra.mxu0 0
      %4347 = vmatprep.mubr.bf16.mxu0 0
      %4348 = vmatmul.mubr.bf16.gmra.mrb[0].mxu0 %v2442
      %v4349 = vpop.f32.mrb[0].mxu0
      %v4350 = vadd.f32 %v4205, %v4349
      %v4351 = vpop.f32.mrb[0].mxu0
      %v4352 = vpop.f32.mrb[0].mxu0
      %v4353 = vadd.f32 %v4208, %v4352
      %v4354 = vpop.f32.mrb[0].mxu0
      %4355 = vmatprep.mubr.bf16.mxu0 0
      %4356 = vmatmul.mubr.bf16.gmra.mrb[0].mxu0 %v2443
      %v4357 = vpop.f32.mrb[0].mxu0
      %v4358 = vadd.f32 %v4213, %v4357
      %v4359 = vpop.f32.mrb[0].mxu0
      %v4360 = vpop.f32.mrb[0].mxu0
      %v4361 = vadd.f32 %v4216, %v4360
      %v4362 = vpop.f32.mrb[0].mxu0
      %4363 = vmatprep.mubr.bf16.mxu0 0
      %4364 = vmatmul.mubr.bf16.gmra.mrb[0].mxu0 %v2444
      %v4365 = vpop.f32.mrb[0].mxu0
      %v4366 = vadd.f32 %v4221, %v4365
      %v4367 = vpop.f32.mrb[0].mxu0
      %v4368 = vpop.f32.mrb[0].mxu0
      %v4369 = vadd.f32 %v4224, %v4368
      %v4370 = vpop.f32.mrb[0].mxu0
      %4371 = vmatprep.mubr.bf16.mxu0 0
      %4372 = vmatmul.mubr.bf16.gmra.mrb[0].mxu0 %v2445
      %v4373 = vpop.f32.mrb[0].mxu0
      %v4374 = vadd.f32 %v4229, %v4373
      %v4375 = vpop.f32.mrb[0].mxu0
      %v4376 = vpop.f32.mrb[0].mxu0
      %v4377 = vadd.f32 %v4232, %v4376
      %v4378 = vpop.f32.mrb[0].mxu0
      %4379 = vmatprep.mubr.bf16.mxu0 0
      %4380 = vmatmul.mubr.bf16.gmra.mrb[0].mxu0 %v2446
      %v4381 = vpop.f32.mrb[0].mxu0
      %v4382 = vadd.f32 %v4237, %v4381
      %v4383 = vpop.f32.mrb[0].mxu0
      %v4384 = vpop.f32.mrb[0].mxu0
      %v4385 = vadd.f32 %v4240, %v4384
      %v4386 = vpop.f32.mrb[0].mxu0
      %4387 = vmatprep.mubr.bf16.mxu0 0
      %4388 = vmatmul.mubr.bf16.gmra.mrb[0].mxu0 %v2447
      %v4389 = vpop.f32.mrb[0].mxu0
      %v4390 = vadd.f32 %v4245, %v4389
      %v4391 = vpop.f32.mrb[0].mxu0
      %v4392 = vpop.f32.mrb[0].mxu0
      %v4393 = vadd.f32 %v4248, %v4392
      %v4394 = vpop.f32.mrb[0].mxu0
      %4395 = vmatprep.mubr.bf16.mxu0 0
      %4396 = vmatmul.mubr.bf16.gmra.mrb[0].mxu0 %v2448
      %v4397 = vpop.f32.mrb[0].mxu0
      %v4398 = vadd.f32 %v4253, %v4397
      %v4399 = vpop.f32.mrb[0].mxu0
      %v4400 = vpop.f32.mrb[0].mxu0
      %v4401 = vadd.f32 %v4256, %v4400
      %v4402 = vpop.f32.mrb[0].mxu0
      %4403 = vmatprep.mubr.bf16.mxu0 0
      %4404 = vmatmul.mubr.bf16.gmra.mrb[0].mxu0 %v2449
      %v4405 = vpop.f32.mrb[0].mxu0
      %v4406 = vadd.f32 %v4261, %v4405
      %v4407 = vpop.f32.mrb[0].mxu0
      %v4408 = vpop.f32.mrb[0].mxu0
      %v4409 = vadd.f32 %v4264, %v4408
      %v4410 = vpop.f32.mrb[0].mxu0
      %4411 = vdwg.mxu0
      %v4413 = vlaneseq
      %v4414 = vshrl.u32 %v4413, 7
      %v4415 = vsub.s32 0, %v4414
      %v4416 = vrot.slane %v426, %v4415
      %v4418 = vadd.f32 %v4350, %v4416
      %v4419 = vadd.f32 %v4353, %v4416
      %v4420 = vadd.f32 %v4358, %v4416
      %v4421 = vadd.f32 %v4361, %v4416
      %v4422 = vadd.f32 %v4366, %v4416
      %v4423 = vadd.f32 %v4369, %v4416
      %v4424 = vadd.f32 %v4374, %v4416
      %v4425 = vadd.f32 %v4377, %v4416
      %v4426 = vadd.f32 %v4382, %v4416
      %v4427 = vadd.f32 %v4385, %v4416
      %v4428 = vadd.f32 %v4390, %v4416
      %v4429 = vadd.f32 %v4393, %v4416
      %v4430 = vadd.f32 %v4398, %v4416
      %v4431 = vadd.f32 %v4401, %v4416
      %v4432 = vadd.f32 %v4406, %v4416
      %v4433 = vadd.f32 %v4409, %v4416
      %v4434 = vmax.f32 %v4418, 0.0
      %v4435 = vmax.f32 %v4419, 0.0
      %v4436 = vmax.f32 %v4420, 0.0
      %v4437 = vmax.f32 %v4421, 0.0
      %v4438 = vmax.f32 %v4422, 0.0
      %v4439 = vmax.f32 %v4423, 0.0
      %v4440 = vmax.f32 %v4424, 0.0
      %v4441 = vmax.f32 %v4425, 0.0
      %v4442 = vmax.f32 %v4426, 0.0
      %v4443 = vmax.f32 %v4427, 0.0
      %v4444 = vmax.f32 %v4428, 0.0
      %v4445 = vmax.f32 %v4429, 0.0
      %v4446 = vmax.f32 %v4430, 0.0
      %v4447 = vmax.f32 %v4431, 0.0
      %v4448 = vmax.f32 %v4432, 0.0
      %v4449 = vmax.f32 %v4433, 0.0
      %v4450 = vpack.c.bf16 %v4435, %v4434
      %v4451 = vpack.c.bf16 %v4437, %v4436
      %v4452 = vpack.c.bf16 %v4439, %v4438
      %v4453 = vpack.c.bf16 %v4441, %v4440
      %v4454 = vpack.c.bf16 %v4443, %v4442
      %v4455 = vpack.c.bf16 %v4445, %v4444
      %v4456 = vpack.c.bf16 %v4447, %v4446
      %v4457 = vpack.c.bf16 %v4449, %v4448
      %v4459 = vlaneseq
      %v4460 = vshrl.u32 %v4459, 7
      %v4461 = vsub.s32 0, %v4460
      %v4462 = vrot.slane %v443, %v4461
      %v4480 = vunpack.c.l.b16 %v427
      %v4481 = vunpack.c.l.b16 %v428
      %v4482 = vunpack.c.l.b16 %v429
      %v4483 = vunpack.c.l.b16 %v430
      %v4484 = vunpack.c.l.b16 %v431
      %v4485 = vunpack.c.l.b16 %v432
      %v4486 = vunpack.c.l.b16 %v433
      %v4487 = vunpack.c.l.b16 %v434
      %v4488 = vunpack.c.l.b16 %v435
      %v4489 = vunpack.c.l.b16 %v436
      %v4490 = vunpack.c.l.b16 %v437
      %v4491 = vunpack.c.l.b16 %v438
      %v4492 = vunpack.c.l.b16 %v439
      %v4493 = vunpack.c.l.b16 %v440
      %v4494 = vunpack.c.l.b16 %v441
      %v4495 = vunpack.c.l.b16 %v442
      %v4496 = vpack.c.b16 %v4481, %v4480
      %v4497 = vpack.c.b16 %v4483, %v4482
      %v4498 = vpack.c.b16 %v4485, %v4484
      %v4499 = vpack.c.b16 %v4487, %v4486
      %v4500 = vpack.c.b16 %v4489, %v4488
      %v4501 = vpack.c.b16 %v4491, %v4490
      %v4502 = vpack.c.b16 %v4493, %v4492
      %v4503 = vpack.c.b16 %v4495, %v4494
      %4512 = vmatprep.subr.bf16.mxu0 0
      %4513 = vmatpush1.bf16.msra.mxu0 %v4496
      %4514 = vmatprep.subr.bf16.mxu0 0
      %4515 = vmatpush1.bf16.msra.mxu0 %v4497
      %4516 = vmatprep.subr.bf16.mxu0 0
      %4517 = vmatpush1.bf16.msra.mxu0 %v4498
      %4518 = vmatprep.subr.bf16.mxu0 0
      %4519 = vmatpush1.bf16.msra.mxu0 %v4499
      %4520 = vmatprep.subr.bf16.mxu0 0
      %4521 = vmatpush1.bf16.msra.mxu0 %v4500
      %4522 = vmatprep.subr.bf16.mxu0 0
      %4523 = vmatpush1.bf16.msra.mxu0 %v4501
      %4524 = vmatprep.subr.bf16.mxu0 0
      %4525 = vmatpush1.bf16.msra.mxu0 %v4502
      %4526 = vmatprep.subr.bf16.mxu0 0
      %4527 = vmatpush1.bf16.msra.mxu0 %v4503
      %4528 = vmatprep.subr.bf16.mxu0 0
      %4529 = vmatpush1.bf16.msra.mxu0 0
      %4530 = vmatprep.subr.bf16.mxu0 0
      %4531 = vmatpush1.bf16.msra.mxu0 0
      %4532 = vmatprep.subr.bf16.mxu0 0
      %4533 = vmatpush1.bf16.msra.mxu0 0
      %4534 = vmatprep.subr.bf16.mxu0 0
      %4535 = vmatpush1.bf16.msra.mxu0 0
      %4536 = vmatprep.subr.bf16.mxu0 0
      %4537 = vmatpush1.bf16.msra.mxu0 0
      %4538 = vmatprep.subr.bf16.mxu0 0
      %4539 = vmatpush1.bf16.msra.mxu0 0
      %4540 = vmatprep.subr.bf16.mxu0 0
      %4541 = vmatpush1.bf16.msra.mxu0 0
      %4542 = vmatprep.subr.bf16.mxu0 0
      %4543 = vmatpush1.bf16.msra.mxu0 0
      %4544 = vmatprep.mubr.bf16.mxu0 0
      %4545 = vmatmul.mubr.bf16.gmra.mrb[0].mxu0 %v4450
      %v4546 = vpop.f32.mrb[0].mxu0
      %v4547 = vadd.f32 %v4462, %v4546
      %v4548 = vpop.f32.mrb[0].mxu0
      %v4549 = vpop.f32.mrb[0].mxu0
      %v4550 = vadd.f32 %v4462, %v4549
      %v4551 = vpop.f32.mrb[0].mxu0
      %4552 = vmatprep.mubr.bf16.mxu0 0
      %4553 = vmatmul.mubr.bf16.gmra.mrb[0].mxu0 %v4451
      %v4554 = vpop.f32.mrb[0].mxu0
      %v4555 = vadd.f32 %v4462, %v4554
      %v4556 = vpop.f32.mrb[0].mxu0
      %v4557 = vpop.f32.mrb[0].mxu0
      %v4558 = vadd.f32 %v4462, %v4557
      %v4559 = vpop.f32.mrb[0].mxu0
      %4560 = vmatprep.mubr.bf16.mxu0 0
      %4561 = vmatmul.mubr.bf16.gmra.mrb[0].mxu0 %v4452
      %v4562 = vpop.f32.mrb[0].mxu0
      %v4563 = vadd.f32 %v4462, %v4562
      %v4564 = vpop.f32.mrb[0].mxu0
      %v4565 = vpop.f32.mrb[0].mxu0
      %v4566 = vadd.f32 %v4462, %v4565
      %v4567 = vpop.f32.mrb[0].mxu0
      %4568 = vmatprep.mubr.bf16.mxu0 0
      %4569 = vmatmul.mubr.bf16.gmra.mrb[0].mxu0 %v4453
      %v4570 = vpop.f32.mrb[0].mxu0
      %v4571 = vadd.f32 %v4462, %v4570
      %v4572 = vpop.f32.mrb[0].mxu0
      %v4573 = vpop.f32.mrb[0].mxu0
      %v4574 = vadd.f32 %v4462, %v4573
      %v4575 = vpop.f32.mrb[0].mxu0
      %4576 = vmatprep.mubr.bf16.mxu0 0
      %4577 = vmatmul.mubr.bf16.gmra.mrb[0].mxu0 %v4454
      %v4578 = vpop.f32.mrb[0].mxu0
      %v4579 = vadd.f32 %v4462, %v4578
      %v4580 = vpop.f32.mrb[0].mxu0
      %v4581 = vpop.f32.mrb[0].mxu0
      %v4582 = vadd.f32 %v4462, %v4581
      %v4583 = vpop.f32.mrb[0].mxu0
      %4584 = vmatprep.mubr.bf16.mxu0 0
      %4585 = vmatmul.mubr.bf16.gmra.mrb[0].mxu0 %v4455
      %v4586 = vpop.f32.mrb[0].mxu0
      %v4587 = vadd.f32 %v4462, %v4586
      %v4588 = vpop.f32.mrb[0].mxu0
      %v4589 = vpop.f32.mrb[0].mxu0
      %v4590 = vadd.f32 %v4462, %v4589
      %v4591 = vpop.f32.mrb[0].mxu0
      %4592 = vmatprep.mubr.bf16.mxu0 0
      %4593 = vmatmul.mubr.bf16.gmra.mrb[0].mxu0 %v4456
      %v4594 = vpop.f32.mrb[0].mxu0
      %v4595 = vadd.f32 %v4462, %v4594
      %v4596 = vpop.f32.mrb[0].mxu0
      %v4597 = vpop.f32.mrb[0].mxu0
      %v4598 = vadd.f32 %v4462, %v4597
      %v4599 = vpop.f32.mrb[0].mxu0
      %4600 = vmatprep.mubr.bf16.mxu0 0
      %4601 = vmatmul.mubr.bf16.gmra.mrb[0].mxu0 %v4457
      %v4602 = vpop.f32.mrb[0].mxu0
      %v4603 = vadd.f32 %v4462, %v4602
      %v4604 = vpop.f32.mrb[0].mxu0
      %v4605 = vpop.f32.mrb[0].mxu0
      %v4606 = vadd.f32 %v4462, %v4605
      %v4607 = vpop.f32.mrb[0].mxu0
      %4608 = vdwg.mxu0
      %v4609 = vmax.f32 %v4547, 0.0
      %v4610 = vmax.f32 %v4550, 0.0
      %v4611 = vmax.f32 %v4555, 0.0
      %v4612 = vmax.f32 %v4558, 0.0
      %v4613 = vmax.f32 %v4563, 0.0
      %v4614 = vmax.f32 %v4566, 0.0
      %v4615 = vmax.f32 %v4571, 0.0
      %v4616 = vmax.f32 %v4574, 0.0
      %v4617 = vmax.f32 %v4579, 0.0
      %v4618 = vmax.f32 %v4582, 0.0
      %v4619 = vmax.f32 %v4587, 0.0
      %v4620 = vmax.f32 %v4590, 0.0
      %v4621 = vmax.f32 %v4595, 0.0
      %v4622 = vmax.f32 %v4598, 0.0
      %v4623 = vmax.f32 %v4603, 0.0
      %v4624 = vmax.f32 %v4606, 0.0
      %v4625 = vpack.c.bf16 %v4610, %v4609
      %v4626 = vpack.c.bf16 %v4612, %v4611
      %v4627 = vpack.c.bf16 %v4614, %v4613
      %v4628 = vpack.c.bf16 %v4616, %v4615
      %v4629 = vpack.c.bf16 %v4618, %v4617
      %v4630 = vpack.c.bf16 %v4620, %v4619
      %v4631 = vpack.c.bf16 %v4622, %v4621
      %v4632 = vpack.c.bf16 %v4624, %v4623
      %v4634 = vlaneseq
      %v4635 = vshrl.u32 %v4634, 7
      %v4636 = vsub.s32 0, %v4635
      %v4637 = vrot.slane %v460, %v4636
      %v4655 = vunpack.c.l.b16 %v444
      %v4656 = vunpack.c.l.b16 %v445
      %v4657 = vunpack.c.l.b16 %v446
      %v4658 = vunpack.c.l.b16 %v447
      %v4659 = vunpack.c.l.b16 %v448
      %v4660 = vunpack.c.l.b16 %v449
      %v4661 = vunpack.c.l.b16 %v450
      %v4662 = vunpack.c.l.b16 %v451
      %v4663 = vunpack.c.l.b16 %v452
      %v4664 = vunpack.c.l.b16 %v453
      %v4665 = vunpack.c.l.b16 %v454
      %v4666 = vunpack.c.l.b16 %v455
      %v4667 = vunpack.c.l.b16 %v456
      %v4668 = vunpack.c.l.b16 %v457
      %v4669 = vunpack.c.l.b16 %v458
      %v4670 = vunpack.c.l.b16 %v459
      %v4671 = vpack.c.b16 %v4656, %v4655
      %v4672 = vpack.c.b16 %v4658, %v4657
      %v4673 = vpack.c.b16 %v4660, %v4659
      %v4674 = vpack.c.b16 %v4662, %v4661
      %v4675 = vpack.c.b16 %v4664, %v4663
      %v4676 = vpack.c.b16 %v4666, %v4665
      %v4677 = vpack.c.b16 %v4668, %v4667
      %v4678 = vpack.c.b16 %v4670, %v4669
      %4687 = vmatprep.subr.bf16.mxu0 0
      %4688 = vmatpush1.bf16.msra.mxu0 %v4671
      %4689 = vmatprep.subr.bf16.mxu0 0
      %4690 = vmatpush1.bf16.msra.mxu0 %v4672
      %4691 = vmatprep.subr.bf16.mxu0 0
      %4692 = vmatpush1.bf16.msra.mxu0 %v4673
      %4693 = vmatprep.subr.bf16.mxu0 0
      %4694 = vmatpush1.bf16.msra.mxu0 %v4674
      %4695 = vmatprep.subr.bf16.mxu0 0
      %4696 = vmatpush1.bf16.msra.mxu0 %v4675
      %4697 = vmatprep.subr.bf16.mxu0 0
      %4698 = vmatpush1.bf16.msra.mxu0 %v4676
      %4699 = vmatprep.subr.bf16.mxu0 0
      %4700 = vmatpush1.bf16.msra.mxu0 %v4677
      %4701 = vmatprep.subr.bf16.mxu0 0
      %4702 = vmatpush1.bf16.msra.mxu0 %v4678
      %4703 = vmatprep.subr.bf16.mxu0 0
      %4704 = vmatpush1.bf16.msra.mxu0 0
      %4705 = vmatprep.subr.bf16.mxu0 0
      %4706 = vmatpush1.bf16.msra.mxu0 0
      %4707 = vmatprep.subr.bf16.mxu0 0
      %4708 = vmatpush1.bf16.msra.mxu0 0
      %4709 = vmatprep.subr.bf16.mxu0 0
      %4710 = vmatpush1.bf16.msra.mxu0 0
      %4711 = vmatprep.subr.bf16.mxu0 0
      %4712 = vmatpush1.bf16.msra.mxu0 0
      %4713 = vmatprep.subr.bf16.mxu0 0
      %4714 = vmatpush1.bf16.msra.mxu0 0
      %4715 = vmatprep.subr.bf16.mxu0 0
      %4716 = vmatpush1.bf16.msra.mxu0 0
      %4717 = vmatprep.subr.bf16.mxu0 0
      %4718 = vmatpush1.bf16.msra.mxu0 0
      %4719 = vmatprep.mubr.bf16.mxu0 0
      %4720 = vmatmul.mubr.bf16.gmra.mrb[0].mxu0 %v4625
      %v4721 = vpop.f32.mrb[0].mxu0
      %v4722 = vadd.f32 %v4637, %v4721
      %v4723 = vpop.f32.mrb[0].mxu0
      %v4724 = vpop.f32.mrb[0].mxu0
      %v4725 = vadd.f32 %v4637, %v4724
      %v4726 = vpop.f32.mrb[0].mxu0
      %4727 = vmatprep.mubr.bf16.mxu0 0
      %4728 = vmatmul.mubr.bf16.gmra.mrb[0].mxu0 %v4626
      %v4729 = vpop.f32.mrb[0].mxu0
      %v4730 = vadd.f32 %v4637, %v4729
      %v4731 = vpop.f32.mrb[0].mxu0
      %v4732 = vpop.f32.mrb[0].mxu0
      %v4733 = vadd.f32 %v4637, %v4732
      %v4734 = vpop.f32.mrb[0].mxu0
      %4735 = vmatprep.mubr.bf16.mxu0 0
      %4736 = vmatmul.mubr.bf16.gmra.mrb[0].mxu0 %v4627
      %v4737 = vpop.f32.mrb[0].mxu0
      %v4738 = vadd.f32 %v4637, %v4737
      %v4739 = vpop.f32.mrb[0].mxu0
      %v4740 = vpop.f32.mrb[0].mxu0
      %v4741 = vadd.f32 %v4637, %v4740
      %v4742 = vpop.f32.mrb[0].mxu0
      %4743 = vmatprep.mubr.bf16.mxu0 0
      %4744 = vmatmul.mubr.bf16.gmra.mrb[0].mxu0 %v4628
      %v4745 = vpop.f32.mrb[0].mxu0
      %v4746 = vadd.f32 %v4637, %v4745
      %v4747 = vpop.f32.mrb[0].mxu0
      %v4748 = vpop.f32.mrb[0].mxu0
      %v4749 = vadd.f32 %v4637, %v4748
      %v4750 = vpop.f32.mrb[0].mxu0
      %4751 = vmatprep.mubr.bf16.mxu0 0
      %4752 = vmatmul.mubr.bf16.gmra.mrb[0].mxu0 %v4629
      %v4753 = vpop.f32.mrb[0].mxu0
      %v4754 = vadd.f32 %v4637, %v4753
      %v4755 = vpop.f32.mrb[0].mxu0
      %v4756 = vpop.f32.mrb[0].mxu0
      %v4757 = vadd.f32 %v4637, %v4756
      %v4758 = vpop.f32.mrb[0].mxu0
      %4759 = vmatprep.mubr.bf16.mxu0 0
      %4760 = vmatmul.mubr.bf16.gmra.mrb[0].mxu0 %v4630
      %v4761 = vpop.f32.mrb[0].mxu0
      %v4762 = vadd.f32 %v4637, %v4761
      %v4763 = vpop.f32.mrb[0].mxu0
      %v4764 = vpop.f32.mrb[0].mxu0
      %v4765 = vadd.f32 %v4637, %v4764
      %v4766 = vpop.f32.mrb[0].mxu0
      %4767 = vmatprep.mubr.bf16.mxu0 0
      %4768 = vmatmul.mubr.bf16.gmra.mrb[0].mxu0 %v4631
      %v4769 = vpop.f32.mrb[0].mxu0
      %v4770 = vadd.f32 %v4637, %v4769
      %v4771 = vpop.f32.mrb[0].mxu0
      %v4772 = vpop.f32.mrb[0].mxu0
      %v4773 = vadd.f32 %v4637, %v4772
      %v4774 = vpop.f32.mrb[0].mxu0
      %4775 = vmatprep.mubr.bf16.mxu0 0
      %4776 = vmatmul.mubr.bf16.gmra.mrb[0].mxu0 %v4632
      %v4777 = vpop.f32.mrb[0].mxu0
      %v4778 = vadd.f32 %v4637, %v4777
      %v4779 = vpop.f32.mrb[0].mxu0
      %v4780 = vpop.f32.mrb[0].mxu0
      %v4781 = vadd.f32 %v4637, %v4780
      %v4782 = vpop.f32.mrb[0].mxu0
      %4783 = vdwg.mxu0
      %v4784 = vmax.f32 %v4722, 0.0
      %v4785 = vmax.f32 %v4725, 0.0
      %v4786 = vmax.f32 %v4730, 0.0
      %v4787 = vmax.f32 %v4733, 0.0
      %v4788 = vmax.f32 %v4738, 0.0
      %v4789 = vmax.f32 %v4741, 0.0
      %v4790 = vmax.f32 %v4746, 0.0
      %v4791 = vmax.f32 %v4749, 0.0
      %v4792 = vmax.f32 %v4754, 0.0
      %v4793 = vmax.f32 %v4757, 0.0
      %v4794 = vmax.f32 %v4762, 0.0
      %v4795 = vmax.f32 %v4765, 0.0
      %v4796 = vmax.f32 %v4770, 0.0
      %v4797 = vmax.f32 %v4773, 0.0
      %v4798 = vmax.f32 %v4778, 0.0
      %v4799 = vmax.f32 %v4781, 0.0
      %v4800 = vpack.c.bf16 %v4785, %v4784
      %v4801 = vpack.c.bf16 %v4787, %v4786
      %v4802 = vpack.c.bf16 %v4789, %v4788
      %v4803 = vpack.c.bf16 %v4791, %v4790
      %v4804 = vpack.c.bf16 %v4793, %v4792
      %v4805 = vpack.c.bf16 %v4795, %v4794
      %v4806 = vpack.c.bf16 %v4797, %v4796
      %v4807 = vpack.c.bf16 %v4799, %v4798
      %v4809 = vlaneseq
      %v4810 = vshrl.u32 %v4809, 7
      %v4811 = vsub.s32 0, %v4810
      %v4812 = vrot.slane %v477, %v4811
      %v4830 = vunpack.c.l.b16 %v461
      %v4831 = vunpack.c.l.b16 %v462
      %v4832 = vunpack.c.l.b16 %v463
      %v4833 = vunpack.c.l.b16 %v464
      %v4834 = vunpack.c.l.b16 %v465
      %v4835 = vunpack.c.l.b16 %v466
      %v4836 = vunpack.c.l.b16 %v467
      %v4837 = vunpack.c.l.b16 %v468
      %v4838 = vunpack.c.l.b16 %v469
      %v4839 = vunpack.c.l.b16 %v470
      %v4840 = vunpack.c.l.b16 %v471
      %v4841 = vunpack.c.l.b16 %v472
      %v4842 = vunpack.c.l.b16 %v473
      %v4843 = vunpack.c.l.b16 %v474
      %v4844 = vunpack.c.l.b16 %v475
      %v4845 = vunpack.c.l.b16 %v476
      %v4846 = vpack.c.b16 %v4831, %v4830
      %v4847 = vpack.c.b16 %v4833, %v4832
      %v4848 = vpack.c.b16 %v4835, %v4834
      %v4849 = vpack.c.b16 %v4837, %v4836
      %v4850 = vpack.c.b16 %v4839, %v4838
      %v4851 = vpack.c.b16 %v4841, %v4840
      %v4852 = vpack.c.b16 %v4843, %v4842
      %v4853 = vpack.c.b16 %v4845, %v4844
      %4862 = vmatprep.subr.bf16.mxu0 0
      %4863 = vmatpush1.bf16.msra.mxu0 %v4846
      %4864 = vmatprep.subr.bf16.mxu0 0
      %4865 = vmatpush1.bf16.msra.mxu0 %v4847
      %4866 = vmatprep.subr.bf16.mxu0 0
      %4867 = vmatpush1.bf16.msra.mxu0 %v4848
      %4868 = vmatprep.subr.bf16.mxu0 0
      %4869 = vmatpush1.bf16.msra.mxu0 %v4849
      %4870 = vmatprep.subr.bf16.mxu0 0
      %4871 = vmatpush1.bf16.msra.mxu0 %v4850
      %4872 = vmatprep.subr.bf16.mxu0 0
      %4873 = vmatpush1.bf16.msra.mxu0 %v4851
      %4874 = vmatprep.subr.bf16.mxu0 0
      %4875 = vmatpush1.bf16.msra.mxu0 %v4852
      %4876 = vmatprep.subr.bf16.mxu0 0
      %4877 = vmatpush1.bf16.msra.mxu0 %v4853
      %4878 = vmatprep.subr.bf16.mxu0 0
      %4879 = vmatpush1.bf16.msra.mxu0 0
      %4880 = vmatprep.subr.bf16.mxu0 0
      %4881 = vmatpush1.bf16.msra.mxu0 0
      %4882 = vmatprep.subr.bf16.mxu0 0
      %4883 = vmatpush1.bf16.msra.mxu0 0
      %4884 = vmatprep.subr.bf16.mxu0 0
      %4885 = vmatpush1.bf16.msra.mxu0 0
      %4886 = vmatprep.subr.bf16.mxu0 0
      %4887 = vmatpush1.bf16.msra.mxu0 0
      %4888 = vmatprep.subr.bf16.mxu0 0
      %4889 = vmatpush1.bf16.msra.mxu0 0
      %4890 = vmatprep.subr.bf16.mxu0 0
      %4891 = vmatpush1.bf16.msra.mxu0 0
      %4892 = vmatprep.subr.bf16.mxu0 0
      %4893 = vmatpush1.bf16.msra.mxu0 0
      %4894 = vmatprep.mubr.bf16.mxu0 0
      %4895 = vmatmul.mubr.bf16.gmra.mrb[0].mxu0 %v4800
      %v4896 = vpop.f32.mrb[0].mxu0
      %v4897 = vadd.f32 %v4812, %v4896
      %v4898 = vpop.f32.mrb[0].mxu0
      %v4899 = vpop.f32.mrb[0].mxu0
      %v4900 = vadd.f32 %v4812, %v4899
      %v4901 = vpop.f32.mrb[0].mxu0
      %4902 = vmatprep.mubr.bf16.mxu0 0
      %4903 = vmatmul.mubr.bf16.gmra.mrb[0].mxu0 %v4801
      %v4904 = vpop.f32.mrb[0].mxu0
      %v4905 = vadd.f32 %v4812, %v4904
      %v4906 = vpop.f32.mrb[0].mxu0
      %v4907 = vpop.f32.mrb[0].mxu0
      %v4908 = vadd.f32 %v4812, %v4907
      %v4909 = vpop.f32.mrb[0].mxu0
      %4910 = vmatprep.mubr.bf16.mxu0 0
      %4911 = vmatmul.mubr.bf16.gmra.mrb[0].mxu0 %v4802
      %v4912 = vpop.f32.mrb[0].mxu0
      %v4913 = vadd.f32 %v4812, %v4912
      %v4914 = vpop.f32.mrb[0].mxu0
      %v4915 = vpop.f32.mrb[0].mxu0
      %v4916 = vadd.f32 %v4812, %v4915
      %v4917 = vpop.f32.mrb[0].mxu0
      %4918 = vmatprep.mubr.bf16.mxu0 0
      %4919 = vmatmul.mubr.bf16.gmra.mrb[0].mxu0 %v4803
      %v4920 = vpop.f32.mrb[0].mxu0
      %v4921 = vadd.f32 %v4812, %v4920
      %v4922 = vpop.f32.mrb[0].mxu0
      %v4923 = vpop.f32.mrb[0].mxu0
      %v4924 = vadd.f32 %v4812, %v4923
      %v4925 = vpop.f32.mrb[0].mxu0
      %4926 = vmatprep.mubr.bf16.mxu0 0
      %4927 = vmatmul.mubr.bf16.gmra.mrb[0].mxu0 %v4804
      %v4928 = vpop.f32.mrb[0].mxu0
      %v4929 = vadd.f32 %v4812, %v4928
      %v4930 = vpop.f32.mrb[0].mxu0
      %v4931 = vpop.f32.mrb[0].mxu0
      %v4932 = vadd.f32 %v4812, %v4931
      %v4933 = vpop.f32.mrb[0].mxu0
      %4934 = vmatprep.mubr.bf16.mxu0 0
      %4935 = vmatmul.mubr.bf16.gmra.mrb[0].mxu0 %v4805
      %v4936 = vpop.f32.mrb[0].mxu0
      %v4937 = vadd.f32 %v4812, %v4936
      %v4938 = vpop.f32.mrb[0].mxu0
      %v4939 = vpop.f32.mrb[0].mxu0
      %v4940 = vadd.f32 %v4812, %v4939
      %v4941 = vpop.f32.mrb[0].mxu0
      %4942 = vmatprep.mubr.bf16.mxu0 0
      %4943 = vmatmul.mubr.bf16.gmra.mrb[0].mxu0 %v4806
      %v4944 = vpop.f32.mrb[0].mxu0
      %v4945 = vadd.f32 %v4812, %v4944
      %v4946 = vpop.f32.mrb[0].mxu0
      %v4947 = vpop.f32.mrb[0].mxu0
      %v4948 = vadd.f32 %v4812, %v4947
      %v4949 = vpop.f32.mrb[0].mxu0
      %4950 = vmatprep.mubr.bf16.mxu0 0
      %4951 = vmatmul.mubr.bf16.gmra.mrb[0].mxu0 %v4807
      %v4952 = vpop.f32.mrb[0].mxu0
      %v4953 = vadd.f32 %v4812, %v4952
      %v4954 = vpop.f32.mrb[0].mxu0
      %v4955 = vpop.f32.mrb[0].mxu0
      %v4956 = vadd.f32 %v4812, %v4955
      %v4957 = vpop.f32.mrb[0].mxu0
      %4958 = vdwg.mxu0
      %vm4959 = vcmask 130048
      %4960 = vst.msk [vmem:[%s388] sm:$0xff] %vm4959, %v4897
      %4961 = vst.msk [vmem:[%s388 + $0x8] sm:$0xff] %vm4959, %v4900
      %4962 = vst.msk [vmem:[%s388 + $0x10] sm:$0xff] %vm4959, %v4905
      %4963 = vst.msk [vmem:[%s388 + $0x18] sm:$0xff] %vm4959, %v4908
      %4964 = vst.msk [vmem:[%s388 + $0x20] sm:$0xff] %vm4959, %v4913
      %4965 = vst.msk [vmem:[%s388 + $0x28] sm:$0xff] %vm4959, %v4916
      %4966 = vst.msk [vmem:[%s388 + $0x30] sm:$0xff] %vm4959, %v4921
      %4967 = vst.msk [vmem:[%s388 + $0x38] sm:$0xff] %vm4959, %v4924
      %4968 = vst.msk [vmem:[%s388 + $0x40] sm:$0xff] %vm4959, %v4929
      %4969 = vst.msk [vmem:[%s388 + $0x48] sm:$0xff] %vm4959, %v4932
      %4970 = vst.msk [vmem:[%s388 + $0x50] sm:$0xff] %vm4959, %v4937
      %4971 = vst.msk [vmem:[%s388 + $0x58] sm:$0xff] %vm4959, %v4940
      %4972 = vst.msk [vmem:[%s388 + $0x60] sm:$0xff] %vm4959, %v4945
      %4973 = vst.msk [vmem:[%s388 + $0x68] sm:$0xff] %vm4959, %v4948
      %4974 = vst.msk [vmem:[%s388 + $0x70] sm:$0xff] %vm4959, %v4953
      %4975 = vst.msk [vmem:[%s388 + $0x78] sm:$0xff] %vm4959, %v4956
      %v4976 = vld [vmem:[%s382 + $0x80] sm:$0xff]
      %v4977 = vld [vmem:[%s382 + $0x88] sm:$0xff]
      %v4978 = vld [vmem:[%s382 + $0x90] sm:$0xff]
      %v4979 = vld [vmem:[%s382 + $0x98] sm:$0xff]
      %v4980 = vld [vmem:[%s382 + $0xa0] sm:$0xff]
      %v4981 = vld [vmem:[%s382 + $0xa8] sm:$0xff]
      %v4982 = vld [vmem:[%s382 + $0xb0] sm:$0xff]
      %v4983 = vld [vmem:[%s382 + $0xb8] sm:$0xff]
      %v4984 = vld [vmem:[%s382 + $0xc0] sm:$0xff]
      %v4985 = vld [vmem:[%s382 + $0xc8] sm:$0xff]
      %v4986 = vld [vmem:[%s382 + $0xd0] sm:$0xff]
      %v4987 = vld [vmem:[%s382 + $0xd8] sm:$0xff]
      %v4988 = vld [vmem:[%s382 + $0xe0] sm:$0xff]
      %v4989 = vld [vmem:[%s382 + $0xe8] sm:$0xff]
      %v4990 = vld [vmem:[%s382 + $0xf0] sm:$0xff]
      %v4991 = vld [vmem:[%s382 + $0xf8] sm:$0xff]
      %4993 = vset.pattern.permute.xlu0 0
      %4994 = vperm.xlu0 %4993, %v4976
      %v4995 = vpop.permute.xlu0 %4994
      %4998 = vset.pattern.permute.xlu0 0
      %4999 = vperm.xlu0 %4998, %v4977
      %v5000 = vpop.permute.xlu0 %4999
      %5003 = vset.pattern.permute.xlu0 0
      %5004 = vperm.xlu0 %5003, %v4978
      %v5005 = vpop.permute.xlu0 %5004
      %5008 = vset.pattern.permute.xlu0 0
      %5009 = vperm.xlu0 %5008, %v4979
      %v5010 = vpop.permute.xlu0 %5009
      %5013 = vset.pattern.permute.xlu0 0
      %5014 = vperm.xlu0 %5013, %v4980
      %v5015 = vpop.permute.xlu0 %5014
      %5018 = vset.pattern.permute.xlu0 0
      %5019 = vperm.xlu0 %5018, %v4981
      %v5020 = vpop.permute.xlu0 %5019
      %5023 = vset.pattern.permute.xlu0 0
      %5024 = vperm.xlu0 %5023, %v4982
      %v5025 = vpop.permute.xlu0 %5024
      %5028 = vset.pattern.permute.xlu0 0
      %5029 = vperm.xlu0 %5028, %v4983
      %v5030 = vpop.permute.xlu0 %5029
      %5033 = vset.pattern.permute.xlu0 0
      %5034 = vperm.xlu0 %5033, %v4984
      %v5035 = vpop.permute.xlu0 %5034
      %5038 = vset.pattern.permute.xlu0 0
      %5039 = vperm.xlu0 %5038, %v4985
      %v5040 = vpop.permute.xlu0 %5039
      %5043 = vset.pattern.permute.xlu0 0
      %5044 = vperm.xlu0 %5043, %v4986
      %v5045 = vpop.permute.xlu0 %5044
      %5048 = vset.pattern.permute.xlu0 0
      %5049 = vperm.xlu0 %5048, %v4987
      %v5050 = vpop.permute.xlu0 %5049
      %5053 = vset.pattern.permute.xlu0 0
      %5054 = vperm.xlu0 %5053, %v4988
      %v5055 = vpop.permute.xlu0 %5054
      %5058 = vset.pattern.permute.xlu0 0
      %5059 = vperm.xlu0 %5058, %v4989
      %v5060 = vpop.permute.xlu0 %5059
      %5063 = vset.pattern.permute.xlu0 0
      %5064 = vperm.xlu0 %5063, %v4990
      %v5065 = vpop.permute.xlu0 %5064
      %5068 = vset.pattern.permute.xlu0 0
      %5069 = vperm.xlu0 %5068, %v4991
      %v5070 = vpop.permute.xlu0 %5069
      %v5072 = vmul.f32 %v4995, %v577
      %v5073 = vmul.f32 %v5000, %v577
      %v5074 = vmul.f32 %v5005, %v577
      %v5075 = vmul.f32 %v5010, %v577
      %v5076 = vmul.f32 %v5015, %v577
      %v5077 = vmul.f32 %v5020, %v577
      %v5078 = vmul.f32 %v5025, %v577
      %v5079 = vmul.f32 %v5030, %v577
      %v5080 = vmul.f32 %v5035, %v577
      %v5081 = vmul.f32 %v5040, %v577
      %v5082 = vmul.f32 %v5045, %v577
      %v5083 = vmul.f32 %v5050, %v577
      %v5084 = vmul.f32 %v5055, %v577
      %v5085 = vmul.f32 %v5060, %v577
      %v5086 = vmul.f32 %v5065, %v577
      %v5087 = vmul.f32 %v5070, %v577
      %5088 = vset.pattern.permute.xlu0 1
      %5089 = vperm.xlu0 %5088, %v4976
      %v5090 = vpop.permute.xlu0 %5089
      %5092 = vset.pattern.permute.xlu0 1
      %5093 = vperm.xlu0 %5092, %v4977
      %v5094 = vpop.permute.xlu0 %5093
      %5096 = vset.pattern.permute.xlu0 1
      %5097 = vperm.xlu0 %5096, %v4978
      %v5098 = vpop.permute.xlu0 %5097
      %5100 = vset.pattern.permute.xlu0 1
      %5101 = vperm.xlu0 %5100, %v4979
      %v5102 = vpop.permute.xlu0 %5101
      %5104 = vset.pattern.permute.xlu0 1
      %5105 = vperm.xlu0 %5104, %v4980
      %v5106 = vpop.permute.xlu0 %5105
      %5108 = vset.pattern.permute.xlu0 1
      %5109 = vperm.xlu0 %5108, %v4981
      %v5110 = vpop.permute.xlu0 %5109
      %5112 = vset.pattern.permute.xlu0 1
      %5113 = vperm.xlu0 %5112, %v4982
      %v5114 = vpop.permute.xlu0 %5113
      %5116 = vset.pattern.permute.xlu0 1
      %5117 = vperm.xlu0 %5116, %v4983
      %v5118 = vpop.permute.xlu0 %5117
      %5120 = vset.pattern.permute.xlu0 1
      %5121 = vperm.xlu0 %5120, %v4984
      %v5122 = vpop.permute.xlu0 %5121
      %5124 = vset.pattern.permute.xlu0 1
      %5125 = vperm.xlu0 %5124, %v4985
      %v5126 = vpop.permute.xlu0 %5125
      %5128 = vset.pattern.permute.xlu0 1
      %5129 = vperm.xlu0 %5128, %v4986
      %v5130 = vpop.permute.xlu0 %5129
      %5132 = vset.pattern.permute.xlu0 1
      %5133 = vperm.xlu0 %5132, %v4987
      %v5134 = vpop.permute.xlu0 %5133
      %5136 = vset.pattern.permute.xlu0 1
      %5137 = vperm.xlu0 %5136, %v4988
      %v5138 = vpop.permute.xlu0 %5137
      %5140 = vset.pattern.permute.xlu0 1
      %5141 = vperm.xlu0 %5140, %v4989
      %v5142 = vpop.permute.xlu0 %5141
      %5144 = vset.pattern.permute.xlu0 1
      %5145 = vperm.xlu0 %5144, %v4990
      %v5146 = vpop.permute.xlu0 %5145
      %5148 = vset.pattern.permute.xlu0 1
      %5149 = vperm.xlu0 %5148, %v4991
      %v5150 = vpop.permute.xlu0 %5149
      %v5152 = vmul.f32 %v5090, %v661
      %v5153 = vmul.f32 %v5094, %v661
      %v5154 = vmul.f32 %v5098, %v661
      %v5155 = vmul.f32 %v5102, %v661
      %v5156 = vmul.f32 %v5106, %v661
      %v5157 = vmul.f32 %v5110, %v661
      %v5158 = vmul.f32 %v5114, %v661
      %v5159 = vmul.f32 %v5118, %v661
      %v5160 = vmul.f32 %v5122, %v661
      %v5161 = vmul.f32 %v5126, %v661
      %v5162 = vmul.f32 %v5130, %v661
      %v5163 = vmul.f32 %v5134, %v661
      %v5164 = vmul.f32 %v5138, %v661
      %v5165 = vmul.f32 %v5142, %v661
      %v5166 = vmul.f32 %v5146, %v661
      %v5167 = vmul.f32 %v5150, %v661
      %v5168 = vadd.f32 %v5072, %v5152
      %v5169 = vadd.f32 %v5073, %v5153
      %v5170 = vadd.f32 %v5074, %v5154
      %v5171 = vadd.f32 %v5075, %v5155
      %v5172 = vadd.f32 %v5076, %v5156
      %v5173 = vadd.f32 %v5077, %v5157
      %v5174 = vadd.f32 %v5078, %v5158
      %v5175 = vadd.f32 %v5079, %v5159
      %v5176 = vadd.f32 %v5080, %v5160
      %v5177 = vadd.f32 %v5081, %v5161
      %v5178 = vadd.f32 %v5082, %v5162
      %v5179 = vadd.f32 %v5083, %v5163
      %v5180 = vadd.f32 %v5084, %v5164
      %v5181 = vadd.f32 %v5085, %v5165
      %v5182 = vadd.f32 %v5086, %v5166
      %v5183 = vadd.f32 %v5087, %v5167
      %5184 = vset.pattern.permute.xlu0 2
      %5185 = vperm.xlu0 %5184, %v4976
      %v5186 = vpop.permute.xlu0 %5185
      %5188 = vset.pattern.permute.xlu0 2
      %5189 = vperm.xlu0 %5188, %v4977
      %v5190 = vpop.permute.xlu0 %5189
      %5192 = vset.pattern.permute.xlu0 2
      %5193 = vperm.xlu0 %5192, %v4978
      %v5194 = vpop.permute.xlu0 %5193
      %5196 = vset.pattern.permute.xlu0 2
      %5197 = vperm.xlu0 %5196, %v4979
      %v5198 = vpop.permute.xlu0 %5197
      %5200 = vset.pattern.permute.xlu0 2
      %5201 = vperm.xlu0 %5200, %v4980
      %v5202 = vpop.permute.xlu0 %5201
      %5204 = vset.pattern.permute.xlu0 2
      %5205 = vperm.xlu0 %5204, %v4981
      %v5206 = vpop.permute.xlu0 %5205
      %5208 = vset.pattern.permute.xlu0 2
      %5209 = vperm.xlu0 %5208, %v4982
      %v5210 = vpop.permute.xlu0 %5209
      %5212 = vset.pattern.permute.xlu0 2
      %5213 = vperm.xlu0 %5212, %v4983
      %v5214 = vpop.permute.xlu0 %5213
      %5216 = vset.pattern.permute.xlu0 2
      %5217 = vperm.xlu0 %5216, %v4984
      %v5218 = vpop.permute.xlu0 %5217
      %5220 = vset.pattern.permute.xlu0 2
      %5221 = vperm.xlu0 %5220, %v4985
      %v5222 = vpop.permute.xlu0 %5221
      %5224 = vset.pattern.permute.xlu0 2
      %5225 = vperm.xlu0 %5224, %v4986
      %v5226 = vpop.permute.xlu0 %5225
      %5228 = vset.pattern.permute.xlu0 2
      %5229 = vperm.xlu0 %5228, %v4987
      %v5230 = vpop.permute.xlu0 %5229
      %5232 = vset.pattern.permute.xlu0 2
      %5233 = vperm.xlu0 %5232, %v4988
      %v5234 = vpop.permute.xlu0 %5233
      %5236 = vset.pattern.permute.xlu0 2
      %5237 = vperm.xlu0 %5236, %v4989
      %v5238 = vpop.permute.xlu0 %5237
      %5240 = vset.pattern.permute.xlu0 2
      %5241 = vperm.xlu0 %5240, %v4990
      %v5242 = vpop.permute.xlu0 %5241
      %5244 = vset.pattern.permute.xlu0 2
      %5245 = vperm.xlu0 %5244, %v4991
      %v5246 = vpop.permute.xlu0 %5245
      %v5248 = vmul.f32 %v5186, %v761
      %v5249 = vmul.f32 %v5190, %v761
      %v5250 = vmul.f32 %v5194, %v761
      %v5251 = vmul.f32 %v5198, %v761
      %v5252 = vmul.f32 %v5202, %v761
      %v5253 = vmul.f32 %v5206, %v761
      %v5254 = vmul.f32 %v5210, %v761
      %v5255 = vmul.f32 %v5214, %v761
      %v5256 = vmul.f32 %v5218, %v761
      %v5257 = vmul.f32 %v5222, %v761
      %v5258 = vmul.f32 %v5226, %v761
      %v5259 = vmul.f32 %v5230, %v761
      %v5260 = vmul.f32 %v5234, %v761
      %v5261 = vmul.f32 %v5238, %v761
      %v5262 = vmul.f32 %v5242, %v761
      %v5263 = vmul.f32 %v5246, %v761
      %v5264 = vadd.f32 %v5168, %v5248
      %v5265 = vadd.f32 %v5169, %v5249
      %v5266 = vadd.f32 %v5170, %v5250
      %v5267 = vadd.f32 %v5171, %v5251
      %v5268 = vadd.f32 %v5172, %v5252
      %v5269 = vadd.f32 %v5173, %v5253
      %v5270 = vadd.f32 %v5174, %v5254
      %v5271 = vadd.f32 %v5175, %v5255
      %v5272 = vadd.f32 %v5176, %v5256
      %v5273 = vadd.f32 %v5177, %v5257
      %v5274 = vadd.f32 %v5178, %v5258
      %v5275 = vadd.f32 %v5179, %v5259
      %v5276 = vadd.f32 %v5180, %v5260
      %v5277 = vadd.f32 %v5181, %v5261
      %v5278 = vadd.f32 %v5182, %v5262
      %v5279 = vadd.f32 %v5183, %v5263
      %v5280 = vand.u32 2147483647, %v5264
      %vm5281 = vcmp.le.f32.partialorder %v5280, 0.7853982
      %vm5282 = vcmp.lt.s32.totalorder %v5264, 0
      %v5283 = vand.u32 %v5264, 2139095040
      %v5284 = vshrl.u32 %v5283, 23
      %v5285 = vsub.s32 %v5284, 127
      %v5286 = vand.u32 2147483647, %v5264
      %v5287 = vand.u32 %v5286, 8388607
      %v5288 = vor.u32 %v5287, 8388608
      %v5289 = vsub.s32 0, %v5288
      %v5290 = vadd.s32 %v5285, 1
      %vm5291 = vcmp.gt.s32.totalorder %v5290, 0
      %v5292 = vsel %vm5291, %v5290, 0
      %v5293 = vshrl.u32 %v5292, 5
      %v5294 = vand.u32 %v5292, 31
      %v5295 = vsub.s32 32, %v5294
      %v5296 = vshrl.u32 683565275, %v5295
      %v5297 = vshll.u32 683565275, %v5294
      %v5298 = vshrl.u32 2475754826, %v5295
      %v5299 = vor.u32 %v5297, %v5298
      %v5300 = vshll.u32 2475754826, %v5294
      %v5301 = vshrl.u32 2131351028, %v5295
      %v5302 = vor.u32 %v5300, %v5301
      %v5303 = vshll.u32 2131351028, %v5294
      %v5304 = vshrl.u32 2102212464, %v5295
      %v5305 = vor.u32 %v5303, %v5304
      %v5306 = vshll.u32 2102212464, %v5294
      %v5307 = vshrl.u32 920167782, %v5295
      %v5308 = vor.u32 %v5306, %v5307
      %v5309 = vshll.u32 920167782, %v5294
      %v5310 = vshrl.u32 1326507024, %v5295
      %v5311 = vor.u32 %v5309, %v5310
      %vm5312 = vcmp.lt.s32.totalorder %v5293, 1
      %vm5313 = vcmp.lt.s32.totalorder %v5293, 2
      %vm5314 = vcmp.lt.s32.totalorder %v5293, 3
      %vm5315 = vcmp.lt.s32.totalorder %v5293, 4
      %v5316 = vsel %vm5312, %v5296, %v5299
      %v5317 = vsel %vm5315, %v5305, 2102212464
      %v5318 = vsel %vm5314, %v5302, %v5317
      %v5319 = vsel %vm5313, %v5316, %v5318
      %v5320 = vsel %vm5312, %v5299, %v5302
      %v5321 = vsel %vm5315, %v5308, 920167782
      %v5322 = vsel %vm5314, %v5305, %v5321
      %v5323 = vsel %vm5313, %v5320, %v5322
      %v5324 = vsel %vm5312, %v5302, %v5305
      %v5325 = vsel %vm5315, %v5311, 1326507024
      %v5326 = vsel %vm5314, %v5308, %v5325
      %v5327 = vsel %vm5313, %v5324, %v5326
      %v5328 = vshll.u32 %v5288, 8
      %v5329 = vmul.u32.u64.compose %v5328, %v5327
      %v5330 = vextract.low.u32 %v5329
      %v5331 = vextract.high.u32 %v5329
      %v5332 = vmul.u32.u64.compose %v5328, %v5323
      %v5333 = vextract.low.u32 %v5332
      %v5334 = vextract.high.u32 %v5332
      %v5335 = vmul.u32 %v5328, %v5319
      %v5336 = vadd.s32 %v5331, %v5333
      %vm5337 = vc.u32 %v5331, %v5333
      %v5338 = vadd.s32 %v5334, 1
      %v5339 = vsel %vm5337, %v5338, %v5334
      %v5340 = vadd.s32 %v5335, %v5339
      %v5341 = vadd.s32 %v5340, 536870912
      %v5342 = vshrl.u32 %v5341, 30
      %v5343 = vshll.u32 %v5342, 30
      %v5344 = vsub.s32 %v5340, %v5343
      %vm5345 = vcmp.lt.s32.totalorder %v5344, 0
      %v5346 = vsub.s32 0, %v5344
      %v5347 = vsel %vm5345, %v5346, %v5344
      %v5348 = vclz %v5347
      %v5349 = vsub.s32 %v5348, 2
      %vm5350 = vcmp.gt.s32.totalorder 0, %v5349
      %v5351 = vsel %vm5350, 0, %v5349
      %v5352 = vsub.s32 32, %v5351
      %v5353 = vshll.u32 %v5344, %v5351
      %v5354 = vshrl.u32 %v5336, %v5352
      %v5355 = vor.u32 %v5353, %v5354
      %v5356 = vsub.s32 4294967266, %v5351
      %v5357 = vadd.s32 %v5356, 127
      %v5358 = vshll.u32 %v5357, 23
      %v5359 = vor.u32 4788187, %v5358
      %v5360 = vand.u32 2147483647, %v5359
      %v5362 = vcvt.s32.f32 %v5355
      %v5363 = vmul.f32 %v5362, %v5360
      %v5364 = vxor.u32 %v5363, 2147483648
      %v5365 = vsel %vm5282, %v5364, %v5363
      %v5366 = vsub.s32 4, %v5342
      %v5367 = vsel %vm5282, %v5366, %v5342
      %v5368 = vsel %vm5281, %v5264, %v5365
      %v5369 = vsel %vm5281, 0, %v5367
      %v5370 = vcosq.f32.pop %v5368
      %v5371 = vsinq.f32.pop %v5368
      %vm5372 = vweird.f32 %v5264
      %v5373 = vand.u32 %v5369, 3
      %vm5374 = vcmp.lt.s32.totalorder %v5373, 2
      %vm5375 = vcmp.eq.s32.totalorder %v5373, 0
      %v5376 = vxor.u32 %v5371, 2147483648
      %v5377 = vsel %vm5375, %v5370, %v5376
      %vm5378 = vcmp.eq.s32.totalorder %v5373, 2
      %v5379 = vxor.u32 %v5370, 2147483648
      %v5380 = vsel %vm5378, %v5379, %v5371
      %v5381 = vsel %vm5374, %v5377, %v5380
      %v5382 = vsel %vm5372, nan, %v5381
      %v5383 = vand.u32 2147483647, %v5265
      %vm5384 = vcmp.le.f32.partialorder %v5383, 0.7853982
      %vm5385 = vcmp.lt.s32.totalorder %v5265, 0
      %v5386 = vand.u32 %v5265, 2139095040
      %v5387 = vshrl.u32 %v5386, 23
      %v5388 = vsub.s32 %v5387, 127
      %v5389 = vand.u32 2147483647, %v5265
      %v5390 = vand.u32 %v5389, 8388607
      %v5391 = vor.u32 %v5390, 8388608
      %v5392 = vsub.s32 0, %v5391
      %v5393 = vadd.s32 %v5388, 1
      %vm5394 = vcmp.gt.s32.totalorder %v5393, 0
      %v5395 = vsel %vm5394, %v5393, 0
      %v5396 = vshrl.u32 %v5395, 5
      %v5397 = vand.u32 %v5395, 31
      %v5398 = vsub.s32 32, %v5397
      %v5399 = vshrl.u32 683565275, %v5398
      %v5400 = vshll.u32 683565275, %v5397
      %v5401 = vshrl.u32 2475754826, %v5398
      %v5402 = vor.u32 %v5400, %v5401
      %v5403 = vshll.u32 2475754826, %v5397
      %v5404 = vshrl.u32 2131351028, %v5398
      %v5405 = vor.u32 %v5403, %v5404
      %v5406 = vshll.u32 2131351028, %v5397
      %v5407 = vshrl.u32 2102212464, %v5398
      %v5408 = vor.u32 %v5406, %v5407
      %v5409 = vshll.u32 2102212464, %v5397
      %v5410 = vshrl.u32 920167782, %v5398
      %v5411 = vor.u32 %v5409, %v5410
      %v5412 = vshll.u32 920167782, %v5397
      %v5413 = vshrl.u32 1326507024, %v5398
      %v5414 = vor.u32 %v5412, %v5413
      %vm5415 = vcmp.lt.s32.totalorder %v5396, 1
      %vm5416 = vcmp.lt.s32.totalorder %v5396, 2
      %vm5417 = vcmp.lt.s32.totalorder %v5396, 3
      %vm5418 = vcmp.lt.s32.totalorder %v5396, 4
      %v5419 = vsel %vm5415, %v5399, %v5402
      %v5420 = vsel %vm5418, %v5408, 2102212464
      %v5421 = vsel %vm5417, %v5405, %v5420
      %v5422 = vsel %vm5416, %v5419, %v5421
      %v5423 = vsel %vm5415, %v5402, %v5405
      %v5424 = vsel %vm5418, %v5411, 920167782
      %v5425 = vsel %vm5417, %v5408, %v5424
      %v5426 = vsel %vm5416, %v5423, %v5425
      %v5427 = vsel %vm5415, %v5405, %v5408
      %v5428 = vsel %vm5418, %v5414, 1326507024
      %v5429 = vsel %vm5417, %v5411, %v5428
      %v5430 = vsel %vm5416, %v5427, %v5429
      %v5431 = vshll.u32 %v5391, 8
      %v5432 = vmul.u32.u64.compose %v5431, %v5430
      %v5433 = vextract.low.u32 %v5432
      %v5434 = vextract.high.u32 %v5432
      %v5435 = vmul.u32.u64.compose %v5431, %v5426
      %v5436 = vextract.low.u32 %v5435
      %v5437 = vextract.high.u32 %v5435
      %v5438 = vmul.u32 %v5431, %v5422
      %v5439 = vadd.s32 %v5434, %v5436
      %vm5440 = vc.u32 %v5434, %v5436
      %v5441 = vadd.s32 %v5437, 1
      %v5442 = vsel %vm5440, %v5441, %v5437
      %v5443 = vadd.s32 %v5438, %v5442
      %v5444 = vadd.s32 %v5443, 536870912
      %v5445 = vshrl.u32 %v5444, 30
      %v5446 = vshll.u32 %v5445, 30
      %v5447 = vsub.s32 %v5443, %v5446
      %vm5448 = vcmp.lt.s32.totalorder %v5447, 0
      %v5449 = vsub.s32 0, %v5447
      %v5450 = vsel %vm5448, %v5449, %v5447
      %v5451 = vclz %v5450
      %v5452 = vsub.s32 %v5451, 2
      %vm5453 = vcmp.gt.s32.totalorder 0, %v5452
      %v5454 = vsel %vm5453, 0, %v5452
      %v5455 = vsub.s32 32, %v5454
      %v5456 = vshll.u32 %v5447, %v5454
      %v5457 = vshrl.u32 %v5439, %v5455
      %v5458 = vor.u32 %v5456, %v5457
      %v5459 = vsub.s32 4294967266, %v5454
      %v5460 = vadd.s32 %v5459, 127
      %v5461 = vshll.u32 %v5460, 23
      %v5462 = vor.u32 4788187, %v5461
      %v5463 = vand.u32 2147483647, %v5462
      %v5465 = vcvt.s32.f32 %v5458
      %v5466 = vmul.f32 %v5465, %v5463
      %v5467 = vxor.u32 %v5466, 2147483648
      %v5468 = vsel %vm5385, %v5467, %v5466
      %v5469 = vsub.s32 4, %v5445
      %v5470 = vsel %vm5385, %v5469, %v5445
      %v5471 = vsel %vm5384, %v5265, %v5468
      %v5472 = vsel %vm5384, 0, %v5470
      %v5473 = vcosq.f32.pop %v5471
      %v5474 = vsinq.f32.pop %v5471
      %vm5475 = vweird.f32 %v5265
      %v5476 = vand.u32 %v5472, 3
      %vm5477 = vcmp.lt.s32.totalorder %v5476, 2
      %vm5478 = vcmp.eq.s32.totalorder %v5476, 0
      %v5479 = vxor.u32 %v5474, 2147483648
      %v5480 = vsel %vm5478, %v5473, %v5479
      %vm5481 = vcmp.eq.s32.totalorder %v5476, 2
      %v5482 = vxor.u32 %v5473, 2147483648
      %v5483 = vsel %vm5481, %v5482, %v5474
      %v5484 = vsel %vm5477, %v5480, %v5483
      %v5485 = vsel %vm5475, nan, %v5484
      %v5486 = vand.u32 2147483647, %v5266
      %vm5487 = vcmp.le.f32.partialorder %v5486, 0.7853982
      %vm5488 = vcmp.lt.s32.totalorder %v5266, 0
      %v5489 = vand.u32 %v5266, 2139095040
      %v5490 = vshrl.u32 %v5489, 23
      %v5491 = vsub.s32 %v5490, 127
      %v5492 = vand.u32 2147483647, %v5266
      %v5493 = vand.u32 %v5492, 8388607
      %v5494 = vor.u32 %v5493, 8388608
      %v5495 = vsub.s32 0, %v5494
      %v5496 = vadd.s32 %v5491, 1
      %vm5497 = vcmp.gt.s32.totalorder %v5496, 0
      %v5498 = vsel %vm5497, %v5496, 0
      %v5499 = vshrl.u32 %v5498, 5
      %v5500 = vand.u32 %v5498, 31
      %v5501 = vsub.s32 32, %v5500
      %v5502 = vshrl.u32 683565275, %v5501
      %v5503 = vshll.u32 683565275, %v5500
      %v5504 = vshrl.u32 2475754826, %v5501
      %v5505 = vor.u32 %v5503, %v5504
      %v5506 = vshll.u32 2475754826, %v5500
      %v5507 = vshrl.u32 2131351028, %v5501
      %v5508 = vor.u32 %v5506, %v5507
      %v5509 = vshll.u32 2131351028, %v5500
      %v5510 = vshrl.u32 2102212464, %v5501
      %v5511 = vor.u32 %v5509, %v5510
      %v5512 = vshll.u32 2102212464, %v5500
      %v5513 = vshrl.u32 920167782, %v5501
      %v5514 = vor.u32 %v5512, %v5513
      %v5515 = vshll.u32 920167782, %v5500
      %v5516 = vshrl.u32 1326507024, %v5501
      %v5517 = vor.u32 %v5515, %v5516
      %vm5518 = vcmp.lt.s32.totalorder %v5499, 1
      %vm5519 = vcmp.lt.s32.totalorder %v5499, 2
      %vm5520 = vcmp.lt.s32.totalorder %v5499, 3
      %vm5521 = vcmp.lt.s32.totalorder %v5499, 4
      %v5522 = vsel %vm5518, %v5502, %v5505
      %v5523 = vsel %vm5521, %v5511, 2102212464
      %v5524 = vsel %vm5520, %v5508, %v5523
      %v5525 = vsel %vm5519, %v5522, %v5524
      %v5526 = vsel %vm5518, %v5505, %v5508
      %v5527 = vsel %vm5521, %v5514, 920167782
      %v5528 = vsel %vm5520, %v5511, %v5527
      %v5529 = vsel %vm5519, %v5526, %v5528
      %v5530 = vsel %vm5518, %v5508, %v5511
      %v5531 = vsel %vm5521, %v5517, 1326507024
      %v5532 = vsel %vm5520, %v5514, %v5531
      %v5533 = vsel %vm5519, %v5530, %v5532
      %v5534 = vshll.u32 %v5494, 8
      %v5535 = vmul.u32.u64.compose %v5534, %v5533
      %v5536 = vextract.low.u32 %v5535
      %v5537 = vextract.high.u32 %v5535
      %v5538 = vmul.u32.u64.compose %v5534, %v5529
      %v5539 = vextract.low.u32 %v5538
      %v5540 = vextract.high.u32 %v5538
      %v5541 = vmul.u32 %v5534, %v5525
      %v5542 = vadd.s32 %v5537, %v5539
      %vm5543 = vc.u32 %v5537, %v5539
      %v5544 = vadd.s32 %v5540, 1
      %v5545 = vsel %vm5543, %v5544, %v5540
      %v5546 = vadd.s32 %v5541, %v5545
      %v5547 = vadd.s32 %v5546, 536870912
      %v5548 = vshrl.u32 %v5547, 30
      %v5549 = vshll.u32 %v5548, 30
      %v5550 = vsub.s32 %v5546, %v5549
      %vm5551 = vcmp.lt.s32.totalorder %v5550, 0
      %v5552 = vsub.s32 0, %v5550
      %v5553 = vsel %vm5551, %v5552, %v5550
      %v5554 = vclz %v5553
      %v5555 = vsub.s32 %v5554, 2
      %vm5556 = vcmp.gt.s32.totalorder 0, %v5555
      %v5557 = vsel %vm5556, 0, %v5555
      %v5558 = vsub.s32 32, %v5557
      %v5559 = vshll.u32 %v5550, %v5557
      %v5560 = vshrl.u32 %v5542, %v5558
      %v5561 = vor.u32 %v5559, %v5560
      %v5562 = vsub.s32 4294967266, %v5557
      %v5563 = vadd.s32 %v5562, 127
      %v5564 = vshll.u32 %v5563, 23
      %v5565 = vor.u32 4788187, %v5564
      %v5566 = vand.u32 2147483647, %v5565
      %v5568 = vcvt.s32.f32 %v5561
      %v5569 = vmul.f32 %v5568, %v5566
      %v5570 = vxor.u32 %v5569, 2147483648
      %v5571 = vsel %vm5488, %v5570, %v5569
      %v5572 = vsub.s32 4, %v5548
      %v5573 = vsel %vm5488, %v5572, %v5548
      %v5574 = vsel %vm5487, %v5266, %v5571
      %v5575 = vsel %vm5487, 0, %v5573
      %v5576 = vcosq.f32.pop %v5574
      %v5577 = vsinq.f32.pop %v5574
      %vm5578 = vweird.f32 %v5266
      %v5579 = vand.u32 %v5575, 3
      %vm5580 = vcmp.lt.s32.totalorder %v5579, 2
      %vm5581 = vcmp.eq.s32.totalorder %v5579, 0
      %v5582 = vxor.u32 %v5577, 2147483648
      %v5583 = vsel %vm5581, %v5576, %v5582
      %vm5584 = vcmp.eq.s32.totalorder %v5579, 2
      %v5585 = vxor.u32 %v5576, 2147483648
      %v5586 = vsel %vm5584, %v5585, %v5577
      %v5587 = vsel %vm5580, %v5583, %v5586
      %v5588 = vsel %vm5578, nan, %v5587
      %v5589 = vand.u32 2147483647, %v5267
      %vm5590 = vcmp.le.f32.partialorder %v5589, 0.7853982
      %vm5591 = vcmp.lt.s32.totalorder %v5267, 0
      %v5592 = vand.u32 %v5267, 2139095040
      %v5593 = vshrl.u32 %v5592, 23
      %v5594 = vsub.s32 %v5593, 127
      %v5595 = vand.u32 2147483647, %v5267
      %v5596 = vand.u32 %v5595, 8388607
      %v5597 = vor.u32 %v5596, 8388608
      %v5598 = vsub.s32 0, %v5597
      %v5599 = vadd.s32 %v5594, 1
      %vm5600 = vcmp.gt.s32.totalorder %v5599, 0
      %v5601 = vsel %vm5600, %v5599, 0
      %v5602 = vshrl.u32 %v5601, 5
      %v5603 = vand.u32 %v5601, 31
      %v5604 = vsub.s32 32, %v5603
      %v5605 = vshrl.u32 683565275, %v5604
      %v5606 = vshll.u32 683565275, %v5603
      %v5607 = vshrl.u32 2475754826, %v5604
      %v5608 = vor.u32 %v5606, %v5607
      %v5609 = vshll.u32 2475754826, %v5603
      %v5610 = vshrl.u32 2131351028, %v5604
      %v5611 = vor.u32 %v5609, %v5610
      %v5612 = vshll.u32 2131351028, %v5603
      %v5613 = vshrl.u32 2102212464, %v5604
      %v5614 = vor.u32 %v5612, %v5613
      %v5615 = vshll.u32 2102212464, %v5603
      %v5616 = vshrl.u32 920167782, %v5604
      %v5617 = vor.u32 %v5615, %v5616
      %v5618 = vshll.u32 920167782, %v5603
      %v5619 = vshrl.u32 1326507024, %v5604
      %v5620 = vor.u32 %v5618, %v5619
      %vm5621 = vcmp.lt.s32.totalorder %v5602, 1
      %vm5622 = vcmp.lt.s32.totalorder %v5602, 2
      %vm5623 = vcmp.lt.s32.totalorder %v5602, 3
      %vm5624 = vcmp.lt.s32.totalorder %v5602, 4
      %v5625 = vsel %vm5621, %v5605, %v5608
      %v5626 = vsel %vm5624, %v5614, 2102212464
      %v5627 = vsel %vm5623, %v5611, %v5626
      %v5628 = vsel %vm5622, %v5625, %v5627
      %v5629 = vsel %vm5621, %v5608, %v5611
      %v5630 = vsel %vm5624, %v5617, 920167782
      %v5631 = vsel %vm5623, %v5614, %v5630
      %v5632 = vsel %vm5622, %v5629, %v5631
      %v5633 = vsel %vm5621, %v5611, %v5614
      %v5634 = vsel %vm5624, %v5620, 1326507024
      %v5635 = vsel %vm5623, %v5617, %v5634
      %v5636 = vsel %vm5622, %v5633, %v5635
      %v5637 = vshll.u32 %v5597, 8
      %v5638 = vmul.u32.u64.compose %v5637, %v5636
      %v5639 = vextract.low.u32 %v5638
      %v5640 = vextract.high.u32 %v5638
      %v5641 = vmul.u32.u64.compose %v5637, %v5632
      %v5642 = vextract.low.u32 %v5641
      %v5643 = vextract.high.u32 %v5641
      %v5644 = vmul.u32 %v5637, %v5628
      %v5645 = vadd.s32 %v5640, %v5642
      %vm5646 = vc.u32 %v5640, %v5642
      %v5647 = vadd.s32 %v5643, 1
      %v5648 = vsel %vm5646, %v5647, %v5643
      %v5649 = vadd.s32 %v5644, %v5648
      %v5650 = vadd.s32 %v5649, 536870912
      %v5651 = vshrl.u32 %v5650, 30
      %v5652 = vshll.u32 %v5651, 30
      %v5653 = vsub.s32 %v5649, %v5652
      %vm5654 = vcmp.lt.s32.totalorder %v5653, 0
      %v5655 = vsub.s32 0, %v5653
      %v5656 = vsel %vm5654, %v5655, %v5653
      %v5657 = vclz %v5656
      %v5658 = vsub.s32 %v5657, 2
      %vm5659 = vcmp.gt.s32.totalorder 0, %v5658
      %v5660 = vsel %vm5659, 0, %v5658
      %v5661 = vsub.s32 32, %v5660
      %v5662 = vshll.u32 %v5653, %v5660
      %v5663 = vshrl.u32 %v5645, %v5661
      %v5664 = vor.u32 %v5662, %v5663
      %v5665 = vsub.s32 4294967266, %v5660
      %v5666 = vadd.s32 %v5665, 127
      %v5667 = vshll.u32 %v5666, 23
      %v5668 = vor.u32 4788187, %v5667
      %v5669 = vand.u32 2147483647, %v5668
      %v5671 = vcvt.s32.f32 %v5664
      %v5672 = vmul.f32 %v5671, %v5669
      %v5673 = vxor.u32 %v5672, 2147483648
      %v5674 = vsel %vm5591, %v5673, %v5672
      %v5675 = vsub.s32 4, %v5651
      %v5676 = vsel %vm5591, %v5675, %v5651
      %v5677 = vsel %vm5590, %v5267, %v5674
      %v5678 = vsel %vm5590, 0, %v5676
      %v5679 = vcosq.f32.pop %v5677
      %v5680 = vsinq.f32.pop %v5677
      %vm5681 = vweird.f32 %v5267
      %v5682 = vand.u32 %v5678, 3
      %vm5683 = vcmp.lt.s32.totalorder %v5682, 2
      %vm5684 = vcmp.eq.s32.totalorder %v5682, 0
      %v5685 = vxor.u32 %v5680, 2147483648
      %v5686 = vsel %vm5684, %v5679, %v5685
      %vm5687 = vcmp.eq.s32.totalorder %v5682, 2
      %v5688 = vxor.u32 %v5679, 2147483648
      %v5689 = vsel %vm5687, %v5688, %v5680
      %v5690 = vsel %vm5683, %v5686, %v5689
      %v5691 = vsel %vm5681, nan, %v5690
      %v5692 = vand.u32 2147483647, %v5268
      %vm5693 = vcmp.le.f32.partialorder %v5692, 0.7853982
      %vm5694 = vcmp.lt.s32.totalorder %v5268, 0
      %v5695 = vand.u32 %v5268, 2139095040
      %v5696 = vshrl.u32 %v5695, 23
      %v5697 = vsub.s32 %v5696, 127
      %v5698 = vand.u32 2147483647, %v5268
      %v5699 = vand.u32 %v5698, 8388607
      %v5700 = vor.u32 %v5699, 8388608
      %v5701 = vsub.s32 0, %v5700
      %v5702 = vadd.s32 %v5697, 1
      %vm5703 = vcmp.gt.s32.totalorder %v5702, 0
      %v5704 = vsel %vm5703, %v5702, 0
      %v5705 = vshrl.u32 %v5704, 5
      %v5706 = vand.u32 %v5704, 31
      %v5707 = vsub.s32 32, %v5706
      %v5708 = vshrl.u32 683565275, %v5707
      %v5709 = vshll.u32 683565275, %v5706
      %v5710 = vshrl.u32 2475754826, %v5707
      %v5711 = vor.u32 %v5709, %v5710
      %v5712 = vshll.u32 2475754826, %v5706
      %v5713 = vshrl.u32 2131351028, %v5707
      %v5714 = vor.u32 %v5712, %v5713
      %v5715 = vshll.u32 2131351028, %v5706
      %v5716 = vshrl.u32 2102212464, %v5707
      %v5717 = vor.u32 %v5715, %v5716
      %v5718 = vshll.u32 2102212464, %v5706
      %v5719 = vshrl.u32 920167782, %v5707
      %v5720 = vor.u32 %v5718, %v5719
      %v5721 = vshll.u32 920167782, %v5706
      %v5722 = vshrl.u32 1326507024, %v5707
      %v5723 = vor.u32 %v5721, %v5722
      %vm5724 = vcmp.lt.s32.totalorder %v5705, 1
      %vm5725 = vcmp.lt.s32.totalorder %v5705, 2
      %vm5726 = vcmp.lt.s32.totalorder %v5705, 3
      %vm5727 = vcmp.lt.s32.totalorder %v5705, 4
      %v5728 = vsel %vm5724, %v5708, %v5711
      %v5729 = vsel %vm5727, %v5717, 2102212464
      %v5730 = vsel %vm5726, %v5714, %v5729
      %v5731 = vsel %vm5725, %v5728, %v5730
      %v5732 = vsel %vm5724, %v5711, %v5714
      %v5733 = vsel %vm5727, %v5720, 920167782
      %v5734 = vsel %vm5726, %v5717, %v5733
      %v5735 = vsel %vm5725, %v5732, %v5734
      %v5736 = vsel %vm5724, %v5714, %v5717
      %v5737 = vsel %vm5727, %v5723, 1326507024
      %v5738 = vsel %vm5726, %v5720, %v5737
      %v5739 = vsel %vm5725, %v5736, %v5738
      %v5740 = vshll.u32 %v5700, 8
      %v5741 = vmul.u32.u64.compose %v5740, %v5739
      %v5742 = vextract.low.u32 %v5741
      %v5743 = vextract.high.u32 %v5741
      %v5744 = vmul.u32.u64.compose %v5740, %v5735
      %v5745 = vextract.low.u32 %v5744
      %v5746 = vextract.high.u32 %v5744
      %v5747 = vmul.u32 %v5740, %v5731
      %v5748 = vadd.s32 %v5743, %v5745
      %vm5749 = vc.u32 %v5743, %v5745
      %v5750 = vadd.s32 %v5746, 1
      %v5751 = vsel %vm5749, %v5750, %v5746
      %v5752 = vadd.s32 %v5747, %v5751
      %v5753 = vadd.s32 %v5752, 536870912
      %v5754 = vshrl.u32 %v5753, 30
      %v5755 = vshll.u32 %v5754, 30
      %v5756 = vsub.s32 %v5752, %v5755
      %vm5757 = vcmp.lt.s32.totalorder %v5756, 0
      %v5758 = vsub.s32 0, %v5756
      %v5759 = vsel %vm5757, %v5758, %v5756
      %v5760 = vclz %v5759
      %v5761 = vsub.s32 %v5760, 2
      %vm5762 = vcmp.gt.s32.totalorder 0, %v5761
      %v5763 = vsel %vm5762, 0, %v5761
      %v5764 = vsub.s32 32, %v5763
      %v5765 = vshll.u32 %v5756, %v5763
      %v5766 = vshrl.u32 %v5748, %v5764
      %v5767 = vor.u32 %v5765, %v5766
      %v5768 = vsub.s32 4294967266, %v5763
      %v5769 = vadd.s32 %v5768, 127
      %v5770 = vshll.u32 %v5769, 23
      %v5771 = vor.u32 4788187, %v5770
      %v5772 = vand.u32 2147483647, %v5771
      %v5774 = vcvt.s32.f32 %v5767
      %v5775 = vmul.f32 %v5774, %v5772
      %v5776 = vxor.u32 %v5775, 2147483648
      %v5777 = vsel %vm5694, %v5776, %v5775
      %v5778 = vsub.s32 4, %v5754
      %v5779 = vsel %vm5694, %v5778, %v5754
      %v5780 = vsel %vm5693, %v5268, %v5777
      %v5781 = vsel %vm5693, 0, %v5779
      %v5782 = vcosq.f32.pop %v5780
      %v5783 = vsinq.f32.pop %v5780
      %vm5784 = vweird.f32 %v5268
      %v5785 = vand.u32 %v5781, 3
      %vm5786 = vcmp.lt.s32.totalorder %v5785, 2
      %vm5787 = vcmp.eq.s32.totalorder %v5785, 0
      %v5788 = vxor.u32 %v5783, 2147483648
      %v5789 = vsel %vm5787, %v5782, %v5788
      %vm5790 = vcmp.eq.s32.totalorder %v5785, 2
      %v5791 = vxor.u32 %v5782, 2147483648
      %v5792 = vsel %vm5790, %v5791, %v5783
      %v5793 = vsel %vm5786, %v5789, %v5792
      %v5794 = vsel %vm5784, nan, %v5793
      %v5795 = vand.u32 2147483647, %v5269
      %vm5796 = vcmp.le.f32.partialorder %v5795, 0.7853982
      %vm5797 = vcmp.lt.s32.totalorder %v5269, 0
      %v5798 = vand.u32 %v5269, 2139095040
      %v5799 = vshrl.u32 %v5798, 23
      %v5800 = vsub.s32 %v5799, 127
      %v5801 = vand.u32 2147483647, %v5269
      %v5802 = vand.u32 %v5801, 8388607
      %v5803 = vor.u32 %v5802, 8388608
      %v5804 = vsub.s32 0, %v5803
      %v5805 = vadd.s32 %v5800, 1
      %vm5806 = vcmp.gt.s32.totalorder %v5805, 0
      %v5807 = vsel %vm5806, %v5805, 0
      %v5808 = vshrl.u32 %v5807, 5
      %v5809 = vand.u32 %v5807, 31
      %v5810 = vsub.s32 32, %v5809
      %v5811 = vshrl.u32 683565275, %v5810
      %v5812 = vshll.u32 683565275, %v5809
      %v5813 = vshrl.u32 2475754826, %v5810
      %v5814 = vor.u32 %v5812, %v5813
      %v5815 = vshll.u32 2475754826, %v5809
      %v5816 = vshrl.u32 2131351028, %v5810
      %v5817 = vor.u32 %v5815, %v5816
      %v5818 = vshll.u32 2131351028, %v5809
      %v5819 = vshrl.u32 2102212464, %v5810
      %v5820 = vor.u32 %v5818, %v5819
      %v5821 = vshll.u32 2102212464, %v5809
      %v5822 = vshrl.u32 920167782, %v5810
      %v5823 = vor.u32 %v5821, %v5822
      %v5824 = vshll.u32 920167782, %v5809
      %v5825 = vshrl.u32 1326507024, %v5810
      %v5826 = vor.u32 %v5824, %v5825
      %vm5827 = vcmp.lt.s32.totalorder %v5808, 1
      %vm5828 = vcmp.lt.s32.totalorder %v5808, 2
      %vm5829 = vcmp.lt.s32.totalorder %v5808, 3
      %vm5830 = vcmp.lt.s32.totalorder %v5808, 4
      %v5831 = vsel %vm5827, %v5811, %v5814
      %v5832 = vsel %vm5830, %v5820, 2102212464
      %v5833 = vsel %vm5829, %v5817, %v5832
      %v5834 = vsel %vm5828, %v5831, %v5833
      %v5835 = vsel %vm5827, %v5814, %v5817
      %v5836 = vsel %vm5830, %v5823, 920167782
      %v5837 = vsel %vm5829, %v5820, %v5836
      %v5838 = vsel %vm5828, %v5835, %v5837
      %v5839 = vsel %vm5827, %v5817, %v5820
      %v5840 = vsel %vm5830, %v5826, 1326507024
      %v5841 = vsel %vm5829, %v5823, %v5840
      %v5842 = vsel %vm5828, %v5839, %v5841
      %v5843 = vshll.u32 %v5803, 8
      %v5844 = vmul.u32.u64.compose %v5843, %v5842
      %v5845 = vextract.low.u32 %v5844
      %v5846 = vextract.high.u32 %v5844
      %v5847 = vmul.u32.u64.compose %v5843, %v5838
      %v5848 = vextract.low.u32 %v5847
      %v5849 = vextract.high.u32 %v5847
      %v5850 = vmul.u32 %v5843, %v5834
      %v5851 = vadd.s32 %v5846, %v5848
      %vm5852 = vc.u32 %v5846, %v5848
      %v5853 = vadd.s32 %v5849, 1
      %v5854 = vsel %vm5852, %v5853, %v5849
      %v5855 = vadd.s32 %v5850, %v5854
      %v5856 = vadd.s32 %v5855, 536870912
      %v5857 = vshrl.u32 %v5856, 30
      %v5858 = vshll.u32 %v5857, 30
      %v5859 = vsub.s32 %v5855, %v5858
      %vm5860 = vcmp.lt.s32.totalorder %v5859, 0
      %v5861 = vsub.s32 0, %v5859
      %v5862 = vsel %vm5860, %v5861, %v5859
      %v5863 = vclz %v5862
      %v5864 = vsub.s32 %v5863, 2
      %vm5865 = vcmp.gt.s32.totalorder 0, %v5864
      %v5866 = vsel %vm5865, 0, %v5864
      %v5867 = vsub.s32 32, %v5866
      %v5868 = vshll.u32 %v5859, %v5866
      %v5869 = vshrl.u32 %v5851, %v5867
      %v5870 = vor.u32 %v5868, %v5869
      %v5871 = vsub.s32 4294967266, %v5866
      %v5872 = vadd.s32 %v5871, 127
      %v5873 = vshll.u32 %v5872, 23
      %v5874 = vor.u32 4788187, %v5873
      %v5875 = vand.u32 2147483647, %v5874
      %v5877 = vcvt.s32.f32 %v5870
      %v5878 = vmul.f32 %v5877, %v5875
      %v5879 = vxor.u32 %v5878, 2147483648
      %v5880 = vsel %vm5797, %v5879, %v5878
      %v5881 = vsub.s32 4, %v5857
      %v5882 = vsel %vm5797, %v5881, %v5857
      %v5883 = vsel %vm5796, %v5269, %v5880
      %v5884 = vsel %vm5796, 0, %v5882
      %v5885 = vcosq.f32.pop %v5883
      %v5886 = vsinq.f32.pop %v5883
      %vm5887 = vweird.f32 %v5269
      %v5888 = vand.u32 %v5884, 3
      %vm5889 = vcmp.lt.s32.totalorder %v5888, 2
      %vm5890 = vcmp.eq.s32.totalorder %v5888, 0
      %v5891 = vxor.u32 %v5886, 2147483648
      %v5892 = vsel %vm5890, %v5885, %v5891
      %vm5893 = vcmp.eq.s32.totalorder %v5888, 2
      %v5894 = vxor.u32 %v5885, 2147483648
      %v5895 = vsel %vm5893, %v5894, %v5886
      %v5896 = vsel %vm5889, %v5892, %v5895
      %v5897 = vsel %vm5887, nan, %v5896
      %v5898 = vand.u32 2147483647, %v5270
      %vm5899 = vcmp.le.f32.partialorder %v5898, 0.7853982
      %vm5900 = vcmp.lt.s32.totalorder %v5270, 0
      %v5901 = vand.u32 %v5270, 2139095040
      %v5902 = vshrl.u32 %v5901, 23
      %v5903 = vsub.s32 %v5902, 127
      %v5904 = vand.u32 2147483647, %v5270
      %v5905 = vand.u32 %v5904, 8388607
      %v5906 = vor.u32 %v5905, 8388608
      %v5907 = vsub.s32 0, %v5906
      %v5908 = vadd.s32 %v5903, 1
      %vm5909 = vcmp.gt.s32.totalorder %v5908, 0
      %v5910 = vsel %vm5909, %v5908, 0
      %v5911 = vshrl.u32 %v5910, 5
      %v5912 = vand.u32 %v5910, 31
      %v5913 = vsub.s32 32, %v5912
      %v5914 = vshrl.u32 683565275, %v5913
      %v5915 = vshll.u32 683565275, %v5912
      %v5916 = vshrl.u32 2475754826, %v5913
      %v5917 = vor.u32 %v5915, %v5916
      %v5918 = vshll.u32 2475754826, %v5912
      %v5919 = vshrl.u32 2131351028, %v5913
      %v5920 = vor.u32 %v5918, %v5919
      %v5921 = vshll.u32 2131351028, %v5912
      %v5922 = vshrl.u32 2102212464, %v5913
      %v5923 = vor.u32 %v5921, %v5922
      %v5924 = vshll.u32 2102212464, %v5912
      %v5925 = vshrl.u32 920167782, %v5913
      %v5926 = vor.u32 %v5924, %v5925
      %v5927 = vshll.u32 920167782, %v5912
      %v5928 = vshrl.u32 1326507024, %v5913
      %v5929 = vor.u32 %v5927, %v5928
      %vm5930 = vcmp.lt.s32.totalorder %v5911, 1
      %vm5931 = vcmp.lt.s32.totalorder %v5911, 2
      %vm5932 = vcmp.lt.s32.totalorder %v5911, 3
      %vm5933 = vcmp.lt.s32.totalorder %v5911, 4
      %v5934 = vsel %vm5930, %v5914, %v5917
      %v5935 = vsel %vm5933, %v5923, 2102212464
      %v5936 = vsel %vm5932, %v5920, %v5935
      %v5937 = vsel %vm5931, %v5934, %v5936
      %v5938 = vsel %vm5930, %v5917, %v5920
      %v5939 = vsel %vm5933, %v5926, 920167782
      %v5940 = vsel %vm5932, %v5923, %v5939
      %v5941 = vsel %vm5931, %v5938, %v5940
      %v5942 = vsel %vm5930, %v5920, %v5923
      %v5943 = vsel %vm5933, %v5929, 1326507024
      %v5944 = vsel %vm5932, %v5926, %v5943
      %v5945 = vsel %vm5931, %v5942, %v5944
      %v5946 = vshll.u32 %v5906, 8
      %v5947 = vmul.u32.u64.compose %v5946, %v5945
      %v5948 = vextract.low.u32 %v5947
      %v5949 = vextract.high.u32 %v5947
      %v5950 = vmul.u32.u64.compose %v5946, %v5941
      %v5951 = vextract.low.u32 %v5950
      %v5952 = vextract.high.u32 %v5950
      %v5953 = vmul.u32 %v5946, %v5937
      %v5954 = vadd.s32 %v5949, %v5951
      %vm5955 = vc.u32 %v5949, %v5951
      %v5956 = vadd.s32 %v5952, 1
      %v5957 = vsel %vm5955, %v5956, %v5952
      %v5958 = vadd.s32 %v5953, %v5957
      %v5959 = vadd.s32 %v5958, 536870912
      %v5960 = vshrl.u32 %v5959, 30
      %v5961 = vshll.u32 %v5960, 30
      %v5962 = vsub.s32 %v5958, %v5961
      %vm5963 = vcmp.lt.s32.totalorder %v5962, 0
      %v5964 = vsub.s32 0, %v5962
      %v5965 = vsel %vm5963, %v5964, %v5962
      %v5966 = vclz %v5965
      %v5967 = vsub.s32 %v5966, 2
      %vm5968 = vcmp.gt.s32.totalorder 0, %v5967
      %v5969 = vsel %vm5968, 0, %v5967
      %v5970 = vsub.s32 32, %v5969
      %v5971 = vshll.u32 %v5962, %v5969
      %v5972 = vshrl.u32 %v5954, %v5970
      %v5973 = vor.u32 %v5971, %v5972
      %v5974 = vsub.s32 4294967266, %v5969
      %v5975 = vadd.s32 %v5974, 127
      %v5976 = vshll.u32 %v5975, 23
      %v5977 = vor.u32 4788187, %v5976
      %v5978 = vand.u32 2147483647, %v5977
      %v5980 = vcvt.s32.f32 %v5973
      %v5981 = vmul.f32 %v5980, %v5978
      %v5982 = vxor.u32 %v5981, 2147483648
      %v5983 = vsel %vm5900, %v5982, %v5981
      %v5984 = vsub.s32 4, %v5960
      %v5985 = vsel %vm5900, %v5984, %v5960
      %v5986 = vsel %vm5899, %v5270, %v5983
      %v5987 = vsel %vm5899, 0, %v5985
      %v5988 = vcosq.f32.pop %v5986
      %v5989 = vsinq.f32.pop %v5986
      %vm5990 = vweird.f32 %v5270
      %v5991 = vand.u32 %v5987, 3
      %vm5992 = vcmp.lt.s32.totalorder %v5991, 2
      %vm5993 = vcmp.eq.s32.totalorder %v5991, 0
      %v5994 = vxor.u32 %v5989, 2147483648
      %v5995 = vsel %vm5993, %v5988, %v5994
      %vm5996 = vcmp.eq.s32.totalorder %v5991, 2
      %v5997 = vxor.u32 %v5988, 2147483648
      %v5998 = vsel %vm5996, %v5997, %v5989
      %v5999 = vsel %vm5992, %v5995, %v5998
      %v6000 = vsel %vm5990, nan, %v5999
      %v6001 = vand.u32 2147483647, %v5271
      %vm6002 = vcmp.le.f32.partialorder %v6001, 0.7853982
      %vm6003 = vcmp.lt.s32.totalorder %v5271, 0
      %v6004 = vand.u32 %v5271, 2139095040
      %v6005 = vshrl.u32 %v6004, 23
      %v6006 = vsub.s32 %v6005, 127
      %v6007 = vand.u32 2147483647, %v5271
      %v6008 = vand.u32 %v6007, 8388607
      %v6009 = vor.u32 %v6008, 8388608
      %v6010 = vsub.s32 0, %v6009
      %v6011 = vadd.s32 %v6006, 1
      %vm6012 = vcmp.gt.s32.totalorder %v6011, 0
      %v6013 = vsel %vm6012, %v6011, 0
      %v6014 = vshrl.u32 %v6013, 5
      %v6015 = vand.u32 %v6013, 31
      %v6016 = vsub.s32 32, %v6015
      %v6017 = vshrl.u32 683565275, %v6016
      %v6018 = vshll.u32 683565275, %v6015
      %v6019 = vshrl.u32 2475754826, %v6016
      %v6020 = vor.u32 %v6018, %v6019
      %v6021 = vshll.u32 2475754826, %v6015
      %v6022 = vshrl.u32 2131351028, %v6016
      %v6023 = vor.u32 %v6021, %v6022
      %v6024 = vshll.u32 2131351028, %v6015
      %v6025 = vshrl.u32 2102212464, %v6016
      %v6026 = vor.u32 %v6024, %v6025
      %v6027 = vshll.u32 2102212464, %v6015
      %v6028 = vshrl.u32 920167782, %v6016
      %v6029 = vor.u32 %v6027, %v6028
      %v6030 = vshll.u32 920167782, %v6015
      %v6031 = vshrl.u32 1326507024, %v6016
      %v6032 = vor.u32 %v6030, %v6031
      %vm6033 = vcmp.lt.s32.totalorder %v6014, 1
      %vm6034 = vcmp.lt.s32.totalorder %v6014, 2
      %vm6035 = vcmp.lt.s32.totalorder %v6014, 3
      %vm6036 = vcmp.lt.s32.totalorder %v6014, 4
      %v6037 = vsel %vm6033, %v6017, %v6020
      %v6038 = vsel %vm6036, %v6026, 2102212464
      %v6039 = vsel %vm6035, %v6023, %v6038
      %v6040 = vsel %vm6034, %v6037, %v6039
      %v6041 = vsel %vm6033, %v6020, %v6023
      %v6042 = vsel %vm6036, %v6029, 920167782
      %v6043 = vsel %vm6035, %v6026, %v6042
      %v6044 = vsel %vm6034, %v6041, %v6043
      %v6045 = vsel %vm6033, %v6023, %v6026
      %v6046 = vsel %vm6036, %v6032, 1326507024
      %v6047 = vsel %vm6035, %v6029, %v6046
      %v6048 = vsel %vm6034, %v6045, %v6047
      %v6049 = vshll.u32 %v6009, 8
      %v6050 = vmul.u32.u64.compose %v6049, %v6048
      %v6051 = vextract.low.u32 %v6050
      %v6052 = vextract.high.u32 %v6050
      %v6053 = vmul.u32.u64.compose %v6049, %v6044
      %v6054 = vextract.low.u32 %v6053
      %v6055 = vextract.high.u32 %v6053
      %v6056 = vmul.u32 %v6049, %v6040
      %v6057 = vadd.s32 %v6052, %v6054
      %vm6058 = vc.u32 %v6052, %v6054
      %v6059 = vadd.s32 %v6055, 1
      %v6060 = vsel %vm6058, %v6059, %v6055
      %v6061 = vadd.s32 %v6056, %v6060
      %v6062 = vadd.s32 %v6061, 536870912
      %v6063 = vshrl.u32 %v6062, 30
      %v6064 = vshll.u32 %v6063, 30
      %v6065 = vsub.s32 %v6061, %v6064
      %vm6066 = vcmp.lt.s32.totalorder %v6065, 0
      %v6067 = vsub.s32 0, %v6065
      %v6068 = vsel %vm6066, %v6067, %v6065
      %v6069 = vclz %v6068
      %v6070 = vsub.s32 %v6069, 2
      %vm6071 = vcmp.gt.s32.totalorder 0, %v6070
      %v6072 = vsel %vm6071, 0, %v6070
      %v6073 = vsub.s32 32, %v6072
      %v6074 = vshll.u32 %v6065, %v6072
      %v6075 = vshrl.u32 %v6057, %v6073
      %v6076 = vor.u32 %v6074, %v6075
      %v6077 = vsub.s32 4294967266, %v6072
      %v6078 = vadd.s32 %v6077, 127
      %v6079 = vshll.u32 %v6078, 23
      %v6080 = vor.u32 4788187, %v6079
      %v6081 = vand.u32 2147483647, %v6080
      %v6083 = vcvt.s32.f32 %v6076
      %v6084 = vmul.f32 %v6083, %v6081
      %v6085 = vxor.u32 %v6084, 2147483648
      %v6086 = vsel %vm6003, %v6085, %v6084
      %v6087 = vsub.s32 4, %v6063
      %v6088 = vsel %vm6003, %v6087, %v6063
      %v6089 = vsel %vm6002, %v5271, %v6086
      %v6090 = vsel %vm6002, 0, %v6088
      %v6091 = vcosq.f32.pop %v6089
      %v6092 = vsinq.f32.pop %v6089
      %vm6093 = vweird.f32 %v5271
      %v6094 = vand.u32 %v6090, 3
      %vm6095 = vcmp.lt.s32.totalorder %v6094, 2
      %vm6096 = vcmp.eq.s32.totalorder %v6094, 0
      %v6097 = vxor.u32 %v6092, 2147483648
      %v6098 = vsel %vm6096, %v6091, %v6097
      %vm6099 = vcmp.eq.s32.totalorder %v6094, 2
      %v6100 = vxor.u32 %v6091, 2147483648
      %v6101 = vsel %vm6099, %v6100, %v6092
      %v6102 = vsel %vm6095, %v6098, %v6101
      %v6103 = vsel %vm6093, nan, %v6102
      %v6104 = vand.u32 2147483647, %v5272
      %vm6105 = vcmp.le.f32.partialorder %v6104, 0.7853982
      %vm6106 = vcmp.lt.s32.totalorder %v5272, 0
      %v6107 = vand.u32 %v5272, 2139095040
      %v6108 = vshrl.u32 %v6107, 23
      %v6109 = vsub.s32 %v6108, 127
      %v6110 = vand.u32 2147483647, %v5272
      %v6111 = vand.u32 %v6110, 8388607
      %v6112 = vor.u32 %v6111, 8388608
      %v6113 = vsub.s32 0, %v6112
      %v6114 = vadd.s32 %v6109, 1
      %vm6115 = vcmp.gt.s32.totalorder %v6114, 0
      %v6116 = vsel %vm6115, %v6114, 0
      %v6117 = vshrl.u32 %v6116, 5
      %v6118 = vand.u32 %v6116, 31
      %v6119 = vsub.s32 32, %v6118
      %v6120 = vshrl.u32 683565275, %v6119
      %v6121 = vshll.u32 683565275, %v6118
      %v6122 = vshrl.u32 2475754826, %v6119
      %v6123 = vor.u32 %v6121, %v6122
      %v6124 = vshll.u32 2475754826, %v6118
      %v6125 = vshrl.u32 2131351028, %v6119
      %v6126 = vor.u32 %v6124, %v6125
      %v6127 = vshll.u32 2131351028, %v6118
      %v6128 = vshrl.u32 2102212464, %v6119
      %v6129 = vor.u32 %v6127, %v6128
      %v6130 = vshll.u32 2102212464, %v6118
      %v6131 = vshrl.u32 920167782, %v6119
      %v6132 = vor.u32 %v6130, %v6131
      %v6133 = vshll.u32 920167782, %v6118
      %v6134 = vshrl.u32 1326507024, %v6119
      %v6135 = vor.u32 %v6133, %v6134
      %vm6136 = vcmp.lt.s32.totalorder %v6117, 1
      %vm6137 = vcmp.lt.s32.totalorder %v6117, 2
      %vm6138 = vcmp.lt.s32.totalorder %v6117, 3
      %vm6139 = vcmp.lt.s32.totalorder %v6117, 4
      %v6140 = vsel %vm6136, %v6120, %v6123
      %v6141 = vsel %vm6139, %v6129, 2102212464
      %v6142 = vsel %vm6138, %v6126, %v6141
      %v6143 = vsel %vm6137, %v6140, %v6142
      %v6144 = vsel %vm6136, %v6123, %v6126
      %v6145 = vsel %vm6139, %v6132, 920167782
      %v6146 = vsel %vm6138, %v6129, %v6145
      %v6147 = vsel %vm6137, %v6144, %v6146
      %v6148 = vsel %vm6136, %v6126, %v6129
      %v6149 = vsel %vm6139, %v6135, 1326507024
      %v6150 = vsel %vm6138, %v6132, %v6149
      %v6151 = vsel %vm6137, %v6148, %v6150
      %v6152 = vshll.u32 %v6112, 8
      %v6153 = vmul.u32.u64.compose %v6152, %v6151
      %v6154 = vextract.low.u32 %v6153
      %v6155 = vextract.high.u32 %v6153
      %v6156 = vmul.u32.u64.compose %v6152, %v6147
      %v6157 = vextract.low.u32 %v6156
      %v6158 = vextract.high.u32 %v6156
      %v6159 = vmul.u32 %v6152, %v6143
      %v6160 = vadd.s32 %v6155, %v6157
      %vm6161 = vc.u32 %v6155, %v6157
      %v6162 = vadd.s32 %v6158, 1
      %v6163 = vsel %vm6161, %v6162, %v6158
      %v6164 = vadd.s32 %v6159, %v6163
      %v6165 = vadd.s32 %v6164, 536870912
      %v6166 = vshrl.u32 %v6165, 30
      %v6167 = vshll.u32 %v6166, 30
      %v6168 = vsub.s32 %v6164, %v6167
      %vm6169 = vcmp.lt.s32.totalorder %v6168, 0
      %v6170 = vsub.s32 0, %v6168
      %v6171 = vsel %vm6169, %v6170, %v6168
      %v6172 = vclz %v6171
      %v6173 = vsub.s32 %v6172, 2
      %vm6174 = vcmp.gt.s32.totalorder 0, %v6173
      %v6175 = vsel %vm6174, 0, %v6173
      %v6176 = vsub.s32 32, %v6175
      %v6177 = vshll.u32 %v6168, %v6175
      %v6178 = vshrl.u32 %v6160, %v6176
      %v6179 = vor.u32 %v6177, %v6178
      %v6180 = vsub.s32 4294967266, %v6175
      %v6181 = vadd.s32 %v6180, 127
      %v6182 = vshll.u32 %v6181, 23
      %v6183 = vor.u32 4788187, %v6182
      %v6184 = vand.u32 2147483647, %v6183
      %v6186 = vcvt.s32.f32 %v6179
      %v6187 = vmul.f32 %v6186, %v6184
      %v6188 = vxor.u32 %v6187, 2147483648
      %v6189 = vsel %vm6106, %v6188, %v6187
      %v6190 = vsub.s32 4, %v6166
      %v6191 = vsel %vm6106, %v6190, %v6166
      %v6192 = vsel %vm6105, %v5272, %v6189
      %v6193 = vsel %vm6105, 0, %v6191
      %v6194 = vcosq.f32.pop %v6192
      %v6195 = vsinq.f32.pop %v6192
      %vm6196 = vweird.f32 %v5272
      %v6197 = vand.u32 %v6193, 3
      %vm6198 = vcmp.lt.s32.totalorder %v6197, 2
      %vm6199 = vcmp.eq.s32.totalorder %v6197, 0
      %v6200 = vxor.u32 %v6195, 2147483648
      %v6201 = vsel %vm6199, %v6194, %v6200
      %vm6202 = vcmp.eq.s32.totalorder %v6197, 2
      %v6203 = vxor.u32 %v6194, 2147483648
      %v6204 = vsel %vm6202, %v6203, %v6195
      %v6205 = vsel %vm6198, %v6201, %v6204
      %v6206 = vsel %vm6196, nan, %v6205
      %v6207 = vand.u32 2147483647, %v5273
      %vm6208 = vcmp.le.f32.partialorder %v6207, 0.7853982
      %vm6209 = vcmp.lt.s32.totalorder %v5273, 0
      %v6210 = vand.u32 %v5273, 2139095040
      %v6211 = vshrl.u32 %v6210, 23
      %v6212 = vsub.s32 %v6211, 127
      %v6213 = vand.u32 2147483647, %v5273
      %v6214 = vand.u32 %v6213, 8388607
      %v6215 = vor.u32 %v6214, 8388608
      %v6216 = vsub.s32 0, %v6215
      %v6217 = vadd.s32 %v6212, 1
      %vm6218 = vcmp.gt.s32.totalorder %v6217, 0
      %v6219 = vsel %vm6218, %v6217, 0
      %v6220 = vshrl.u32 %v6219, 5
      %v6221 = vand.u32 %v6219, 31
      %v6222 = vsub.s32 32, %v6221
      %v6223 = vshrl.u32 683565275, %v6222
      %v6224 = vshll.u32 683565275, %v6221
      %v6225 = vshrl.u32 2475754826, %v6222
      %v6226 = vor.u32 %v6224, %v6225
      %v6227 = vshll.u32 2475754826, %v6221
      %v6228 = vshrl.u32 2131351028, %v6222
      %v6229 = vor.u32 %v6227, %v6228
      %v6230 = vshll.u32 2131351028, %v6221
      %v6231 = vshrl.u32 2102212464, %v6222
      %v6232 = vor.u32 %v6230, %v6231
      %v6233 = vshll.u32 2102212464, %v6221
      %v6234 = vshrl.u32 920167782, %v6222
      %v6235 = vor.u32 %v6233, %v6234
      %v6236 = vshll.u32 920167782, %v6221
      %v6237 = vshrl.u32 1326507024, %v6222
      %v6238 = vor.u32 %v6236, %v6237
      %vm6239 = vcmp.lt.s32.totalorder %v6220, 1
      %vm6240 = vcmp.lt.s32.totalorder %v6220, 2
      %vm6241 = vcmp.lt.s32.totalorder %v6220, 3
      %vm6242 = vcmp.lt.s32.totalorder %v6220, 4
      %v6243 = vsel %vm6239, %v6223, %v6226
      %v6244 = vsel %vm6242, %v6232, 2102212464
      %v6245 = vsel %vm6241, %v6229, %v6244
      %v6246 = vsel %vm6240, %v6243, %v6245
      %v6247 = vsel %vm6239, %v6226, %v6229
      %v6248 = vsel %vm6242, %v6235, 920167782
      %v6249 = vsel %vm6241, %v6232, %v6248
      %v6250 = vsel %vm6240, %v6247, %v6249
      %v6251 = vsel %vm6239, %v6229, %v6232
      %v6252 = vsel %vm6242, %v6238, 1326507024
      %v6253 = vsel %vm6241, %v6235, %v6252
      %v6254 = vsel %vm6240, %v6251, %v6253
      %v6255 = vshll.u32 %v6215, 8
      %v6256 = vmul.u32.u64.compose %v6255, %v6254
      %v6257 = vextract.low.u32 %v6256
      %v6258 = vextract.high.u32 %v6256
      %v6259 = vmul.u32.u64.compose %v6255, %v6250
      %v6260 = vextract.low.u32 %v6259
      %v6261 = vextract.high.u32 %v6259
      %v6262 = vmul.u32 %v6255, %v6246
      %v6263 = vadd.s32 %v6258, %v6260
      %vm6264 = vc.u32 %v6258, %v6260
      %v6265 = vadd.s32 %v6261, 1
      %v6266 = vsel %vm6264, %v6265, %v6261
      %v6267 = vadd.s32 %v6262, %v6266
      %v6268 = vadd.s32 %v6267, 536870912
      %v6269 = vshrl.u32 %v6268, 30
      %v6270 = vshll.u32 %v6269, 30
      %v6271 = vsub.s32 %v6267, %v6270
      %vm6272 = vcmp.lt.s32.totalorder %v6271, 0
      %v6273 = vsub.s32 0, %v6271
      %v6274 = vsel %vm6272, %v6273, %v6271
      %v6275 = vclz %v6274
      %v6276 = vsub.s32 %v6275, 2
      %vm6277 = vcmp.gt.s32.totalorder 0, %v6276
      %v6278 = vsel %vm6277, 0, %v6276
      %v6279 = vsub.s32 32, %v6278
      %v6280 = vshll.u32 %v6271, %v6278
      %v6281 = vshrl.u32 %v6263, %v6279
      %v6282 = vor.u32 %v6280, %v6281
      %v6283 = vsub.s32 4294967266, %v6278
      %v6284 = vadd.s32 %v6283, 127
      %v6285 = vshll.u32 %v6284, 23
      %v6286 = vor.u32 4788187, %v6285
      %v6287 = vand.u32 2147483647, %v6286
      %v6289 = vcvt.s32.f32 %v6282
      %v6290 = vmul.f32 %v6289, %v6287
      %v6291 = vxor.u32 %v6290, 2147483648
      %v6292 = vsel %vm6209, %v6291, %v6290
      %v6293 = vsub.s32 4, %v6269
      %v6294 = vsel %vm6209, %v6293, %v6269
      %v6295 = vsel %vm6208, %v5273, %v6292
      %v6296 = vsel %vm6208, 0, %v6294
      %v6297 = vcosq.f32.pop %v6295
      %v6298 = vsinq.f32.pop %v6295
      %vm6299 = vweird.f32 %v5273
      %v6300 = vand.u32 %v6296, 3
      %vm6301 = vcmp.lt.s32.totalorder %v6300, 2
      %vm6302 = vcmp.eq.s32.totalorder %v6300, 0
      %v6303 = vxor.u32 %v6298, 2147483648
      %v6304 = vsel %vm6302, %v6297, %v6303
      %vm6305 = vcmp.eq.s32.totalorder %v6300, 2
      %v6306 = vxor.u32 %v6297, 2147483648
      %v6307 = vsel %vm6305, %v6306, %v6298
      %v6308 = vsel %vm6301, %v6304, %v6307
      %v6309 = vsel %vm6299, nan, %v6308
      %v6310 = vand.u32 2147483647, %v5274
      %vm6311 = vcmp.le.f32.partialorder %v6310, 0.7853982
      %vm6312 = vcmp.lt.s32.totalorder %v5274, 0
      %v6313 = vand.u32 %v5274, 2139095040
      %v6314 = vshrl.u32 %v6313, 23
      %v6315 = vsub.s32 %v6314, 127
      %v6316 = vand.u32 2147483647, %v5274
      %v6317 = vand.u32 %v6316, 8388607
      %v6318 = vor.u32 %v6317, 8388608
      %v6319 = vsub.s32 0, %v6318
      %v6320 = vadd.s32 %v6315, 1
      %vm6321 = vcmp.gt.s32.totalorder %v6320, 0
      %v6322 = vsel %vm6321, %v6320, 0
      %v6323 = vshrl.u32 %v6322, 5
      %v6324 = vand.u32 %v6322, 31
      %v6325 = vsub.s32 32, %v6324
      %v6326 = vshrl.u32 683565275, %v6325
      %v6327 = vshll.u32 683565275, %v6324
      %v6328 = vshrl.u32 2475754826, %v6325
      %v6329 = vor.u32 %v6327, %v6328
      %v6330 = vshll.u32 2475754826, %v6324
      %v6331 = vshrl.u32 2131351028, %v6325
      %v6332 = vor.u32 %v6330, %v6331
      %v6333 = vshll.u32 2131351028, %v6324
      %v6334 = vshrl.u32 2102212464, %v6325
      %v6335 = vor.u32 %v6333, %v6334
      %v6336 = vshll.u32 2102212464, %v6324
      %v6337 = vshrl.u32 920167782, %v6325
      %v6338 = vor.u32 %v6336, %v6337
      %v6339 = vshll.u32 920167782, %v6324
      %v6340 = vshrl.u32 1326507024, %v6325
      %v6341 = vor.u32 %v6339, %v6340
      %vm6342 = vcmp.lt.s32.totalorder %v6323, 1
      %vm6343 = vcmp.lt.s32.totalorder %v6323, 2
      %vm6344 = vcmp.lt.s32.totalorder %v6323, 3
      %vm6345 = vcmp.lt.s32.totalorder %v6323, 4
      %v6346 = vsel %vm6342, %v6326, %v6329
      %v6347 = vsel %vm6345, %v6335, 2102212464
      %v6348 = vsel %vm6344, %v6332, %v6347
      %v6349 = vsel %vm6343, %v6346, %v6348
      %v6350 = vsel %vm6342, %v6329, %v6332
      %v6351 = vsel %vm6345, %v6338, 920167782
      %v6352 = vsel %vm6344, %v6335, %v6351
      %v6353 = vsel %vm6343, %v6350, %v6352
      %v6354 = vsel %vm6342, %v6332, %v6335
      %v6355 = vsel %vm6345, %v6341, 1326507024
      %v6356 = vsel %vm6344, %v6338, %v6355
      %v6357 = vsel %vm6343, %v6354, %v6356
      %v6358 = vshll.u32 %v6318, 8
      %v6359 = vmul.u32.u64.compose %v6358, %v6357
      %v6360 = vextract.low.u32 %v6359
      %v6361 = vextract.high.u32 %v6359
      %v6362 = vmul.u32.u64.compose %v6358, %v6353
      %v6363 = vextract.low.u32 %v6362
      %v6364 = vextract.high.u32 %v6362
      %v6365 = vmul.u32 %v6358, %v6349
      %v6366 = vadd.s32 %v6361, %v6363
      %vm6367 = vc.u32 %v6361, %v6363
      %v6368 = vadd.s32 %v6364, 1
      %v6369 = vsel %vm6367, %v6368, %v6364
      %v6370 = vadd.s32 %v6365, %v6369
      %v6371 = vadd.s32 %v6370, 536870912
      %v6372 = vshrl.u32 %v6371, 30
      %v6373 = vshll.u32 %v6372, 30
      %v6374 = vsub.s32 %v6370, %v6373
      %vm6375 = vcmp.lt.s32.totalorder %v6374, 0
      %v6376 = vsub.s32 0, %v6374
      %v6377 = vsel %vm6375, %v6376, %v6374
      %v6378 = vclz %v6377
      %v6379 = vsub.s32 %v6378, 2
      %vm6380 = vcmp.gt.s32.totalorder 0, %v6379
      %v6381 = vsel %vm6380, 0, %v6379
      %v6382 = vsub.s32 32, %v6381
      %v6383 = vshll.u32 %v6374, %v6381
      %v6384 = vshrl.u32 %v6366, %v6382
      %v6385 = vor.u32 %v6383, %v6384
      %v6386 = vsub.s32 4294967266, %v6381
      %v6387 = vadd.s32 %v6386, 127
      %v6388 = vshll.u32 %v6387, 23
      %v6389 = vor.u32 4788187, %v6388
      %v6390 = vand.u32 2147483647, %v6389
      %v6392 = vcvt.s32.f32 %v6385
      %v6393 = vmul.f32 %v6392, %v6390
      %v6394 = vxor.u32 %v6393, 2147483648
      %v6395 = vsel %vm6312, %v6394, %v6393
      %v6396 = vsub.s32 4, %v6372
      %v6397 = vsel %vm6312, %v6396, %v6372
      %v6398 = vsel %vm6311, %v5274, %v6395
      %v6399 = vsel %vm6311, 0, %v6397
      %v6400 = vcosq.f32.pop %v6398
      %v6401 = vsinq.f32.pop %v6398
      %vm6402 = vweird.f32 %v5274
      %v6403 = vand.u32 %v6399, 3
      %vm6404 = vcmp.lt.s32.totalorder %v6403, 2
      %vm6405 = vcmp.eq.s32.totalorder %v6403, 0
      %v6406 = vxor.u32 %v6401, 2147483648
      %v6407 = vsel %vm6405, %v6400, %v6406
      %vm6408 = vcmp.eq.s32.totalorder %v6403, 2
      %v6409 = vxor.u32 %v6400, 2147483648
      %v6410 = vsel %vm6408, %v6409, %v6401
      %v6411 = vsel %vm6404, %v6407, %v6410
      %v6412 = vsel %vm6402, nan, %v6411
      %v6413 = vand.u32 2147483647, %v5275
      %vm6414 = vcmp.le.f32.partialorder %v6413, 0.7853982
      %vm6415 = vcmp.lt.s32.totalorder %v5275, 0
      %v6416 = vand.u32 %v5275, 2139095040
      %v6417 = vshrl.u32 %v6416, 23
      %v6418 = vsub.s32 %v6417, 127
      %v6419 = vand.u32 2147483647, %v5275
      %v6420 = vand.u32 %v6419, 8388607
      %v6421 = vor.u32 %v6420, 8388608
      %v6422 = vsub.s32 0, %v6421
      %v6423 = vadd.s32 %v6418, 1
      %vm6424 = vcmp.gt.s32.totalorder %v6423, 0
      %v6425 = vsel %vm6424, %v6423, 0
      %v6426 = vshrl.u32 %v6425, 5
      %v6427 = vand.u32 %v6425, 31
      %v6428 = vsub.s32 32, %v6427
      %v6429 = vshrl.u32 683565275, %v6428
      %v6430 = vshll.u32 683565275, %v6427
      %v6431 = vshrl.u32 2475754826, %v6428
      %v6432 = vor.u32 %v6430, %v6431
      %v6433 = vshll.u32 2475754826, %v6427
      %v6434 = vshrl.u32 2131351028, %v6428
      %v6435 = vor.u32 %v6433, %v6434
      %v6436 = vshll.u32 2131351028, %v6427
      %v6437 = vshrl.u32 2102212464, %v6428
      %v6438 = vor.u32 %v6436, %v6437
      %v6439 = vshll.u32 2102212464, %v6427
      %v6440 = vshrl.u32 920167782, %v6428
      %v6441 = vor.u32 %v6439, %v6440
      %v6442 = vshll.u32 920167782, %v6427
      %v6443 = vshrl.u32 1326507024, %v6428
      %v6444 = vor.u32 %v6442, %v6443
      %vm6445 = vcmp.lt.s32.totalorder %v6426, 1
      %vm6446 = vcmp.lt.s32.totalorder %v6426, 2
      %vm6447 = vcmp.lt.s32.totalorder %v6426, 3
      %vm6448 = vcmp.lt.s32.totalorder %v6426, 4
      %v6449 = vsel %vm6445, %v6429, %v6432
      %v6450 = vsel %vm6448, %v6438, 2102212464
      %v6451 = vsel %vm6447, %v6435, %v6450
      %v6452 = vsel %vm6446, %v6449, %v6451
      %v6453 = vsel %vm6445, %v6432, %v6435
      %v6454 = vsel %vm6448, %v6441, 920167782
      %v6455 = vsel %vm6447, %v6438, %v6454
      %v6456 = vsel %vm6446, %v6453, %v6455
      %v6457 = vsel %vm6445, %v6435, %v6438
      %v6458 = vsel %vm6448, %v6444, 1326507024
      %v6459 = vsel %vm6447, %v6441, %v6458
      %v6460 = vsel %vm6446, %v6457, %v6459
      %v6461 = vshll.u32 %v6421, 8
      %v6462 = vmul.u32.u64.compose %v6461, %v6460
      %v6463 = vextract.low.u32 %v6462
      %v6464 = vextract.high.u32 %v6462
      %v6465 = vmul.u32.u64.compose %v6461, %v6456
      %v6466 = vextract.low.u32 %v6465
      %v6467 = vextract.high.u32 %v6465
      %v6468 = vmul.u32 %v6461, %v6452
      %v6469 = vadd.s32 %v6464, %v6466
      %vm6470 = vc.u32 %v6464, %v6466
      %v6471 = vadd.s32 %v6467, 1
      %v6472 = vsel %vm6470, %v6471, %v6467
      %v6473 = vadd.s32 %v6468, %v6472
      %v6474 = vadd.s32 %v6473, 536870912
      %v6475 = vshrl.u32 %v6474, 30
      %v6476 = vshll.u32 %v6475, 30
      %v6477 = vsub.s32 %v6473, %v6476
      %vm6478 = vcmp.lt.s32.totalorder %v6477, 0
      %v6479 = vsub.s32 0, %v6477
      %v6480 = vsel %vm6478, %v6479, %v6477
      %v6481 = vclz %v6480
      %v6482 = vsub.s32 %v6481, 2
      %vm6483 = vcmp.gt.s32.totalorder 0, %v6482
      %v6484 = vsel %vm6483, 0, %v6482
      %v6485 = vsub.s32 32, %v6484
      %v6486 = vshll.u32 %v6477, %v6484
      %v6487 = vshrl.u32 %v6469, %v6485
      %v6488 = vor.u32 %v6486, %v6487
      %v6489 = vsub.s32 4294967266, %v6484
      %v6490 = vadd.s32 %v6489, 127
      %v6491 = vshll.u32 %v6490, 23
      %v6492 = vor.u32 4788187, %v6491
      %v6493 = vand.u32 2147483647, %v6492
      %v6495 = vcvt.s32.f32 %v6488
      %v6496 = vmul.f32 %v6495, %v6493
      %v6497 = vxor.u32 %v6496, 2147483648
      %v6498 = vsel %vm6415, %v6497, %v6496
      %v6499 = vsub.s32 4, %v6475
      %v6500 = vsel %vm6415, %v6499, %v6475
      %v6501 = vsel %vm6414, %v5275, %v6498
      %v6502 = vsel %vm6414, 0, %v6500
      %v6503 = vcosq.f32.pop %v6501
      %v6504 = vsinq.f32.pop %v6501
      %vm6505 = vweird.f32 %v5275
      %v6506 = vand.u32 %v6502, 3
      %vm6507 = vcmp.lt.s32.totalorder %v6506, 2
      %vm6508 = vcmp.eq.s32.totalorder %v6506, 0
      %v6509 = vxor.u32 %v6504, 2147483648
      %v6510 = vsel %vm6508, %v6503, %v6509
      %vm6511 = vcmp.eq.s32.totalorder %v6506, 2
      %v6512 = vxor.u32 %v6503, 2147483648
      %v6513 = vsel %vm6511, %v6512, %v6504
      %v6514 = vsel %vm6507, %v6510, %v6513
      %v6515 = vsel %vm6505, nan, %v6514
      %v6516 = vand.u32 2147483647, %v5276
      %vm6517 = vcmp.le.f32.partialorder %v6516, 0.7853982
      %vm6518 = vcmp.lt.s32.totalorder %v5276, 0
      %v6519 = vand.u32 %v5276, 2139095040
      %v6520 = vshrl.u32 %v6519, 23
      %v6521 = vsub.s32 %v6520, 127
      %v6522 = vand.u32 2147483647, %v5276
      %v6523 = vand.u32 %v6522, 8388607
      %v6524 = vor.u32 %v6523, 8388608
      %v6525 = vsub.s32 0, %v6524
      %v6526 = vadd.s32 %v6521, 1
      %vm6527 = vcmp.gt.s32.totalorder %v6526, 0
      %v6528 = vsel %vm6527, %v6526, 0
      %v6529 = vshrl.u32 %v6528, 5
      %v6530 = vand.u32 %v6528, 31
      %v6531 = vsub.s32 32, %v6530
      %v6532 = vshrl.u32 683565275, %v6531
      %v6533 = vshll.u32 683565275, %v6530
      %v6534 = vshrl.u32 2475754826, %v6531
      %v6535 = vor.u32 %v6533, %v6534
      %v6536 = vshll.u32 2475754826, %v6530
      %v6537 = vshrl.u32 2131351028, %v6531
      %v6538 = vor.u32 %v6536, %v6537
      %v6539 = vshll.u32 2131351028, %v6530
      %v6540 = vshrl.u32 2102212464, %v6531
      %v6541 = vor.u32 %v6539, %v6540
      %v6542 = vshll.u32 2102212464, %v6530
      %v6543 = vshrl.u32 920167782, %v6531
      %v6544 = vor.u32 %v6542, %v6543
      %v6545 = vshll.u32 920167782, %v6530
      %v6546 = vshrl.u32 1326507024, %v6531
      %v6547 = vor.u32 %v6545, %v6546
      %vm6548 = vcmp.lt.s32.totalorder %v6529, 1
      %vm6549 = vcmp.lt.s32.totalorder %v6529, 2
      %vm6550 = vcmp.lt.s32.totalorder %v6529, 3
      %vm6551 = vcmp.lt.s32.totalorder %v6529, 4
      %v6552 = vsel %vm6548, %v6532, %v6535
      %v6553 = vsel %vm6551, %v6541, 2102212464
      %v6554 = vsel %vm6550, %v6538, %v6553
      %v6555 = vsel %vm6549, %v6552, %v6554
      %v6556 = vsel %vm6548, %v6535, %v6538
      %v6557 = vsel %vm6551, %v6544, 920167782
      %v6558 = vsel %vm6550, %v6541, %v6557
      %v6559 = vsel %vm6549, %v6556, %v6558
      %v6560 = vsel %vm6548, %v6538, %v6541
      %v6561 = vsel %vm6551, %v6547, 1326507024
      %v6562 = vsel %vm6550, %v6544, %v6561
      %v6563 = vsel %vm6549, %v6560, %v6562
      %v6564 = vshll.u32 %v6524, 8
      %v6565 = vmul.u32.u64.compose %v6564, %v6563
      %v6566 = vextract.low.u32 %v6565
      %v6567 = vextract.high.u32 %v6565
      %v6568 = vmul.u32.u64.compose %v6564, %v6559
      %v6569 = vextract.low.u32 %v6568
      %v6570 = vextract.high.u32 %v6568
      %v6571 = vmul.u32 %v6564, %v6555
      %v6572 = vadd.s32 %v6567, %v6569
      %vm6573 = vc.u32 %v6567, %v6569
      %v6574 = vadd.s32 %v6570, 1
      %v6575 = vsel %vm6573, %v6574, %v6570
      %v6576 = vadd.s32 %v6571, %v6575
      %v6577 = vadd.s32 %v6576, 536870912
      %v6578 = vshrl.u32 %v6577, 30
      %v6579 = vshll.u32 %v6578, 30
      %v6580 = vsub.s32 %v6576, %v6579
      %vm6581 = vcmp.lt.s32.totalorder %v6580, 0
      %v6582 = vsub.s32 0, %v6580
      %v6583 = vsel %vm6581, %v6582, %v6580
      %v6584 = vclz %v6583
      %v6585 = vsub.s32 %v6584, 2
      %vm6586 = vcmp.gt.s32.totalorder 0, %v6585
      %v6587 = vsel %vm6586, 0, %v6585
      %v6588 = vsub.s32 32, %v6587
      %v6589 = vshll.u32 %v6580, %v6587
      %v6590 = vshrl.u32 %v6572, %v6588
      %v6591 = vor.u32 %v6589, %v6590
      %v6592 = vsub.s32 4294967266, %v6587
      %v6593 = vadd.s32 %v6592, 127
      %v6594 = vshll.u32 %v6593, 23
      %v6595 = vor.u32 4788187, %v6594
      %v6596 = vand.u32 2147483647, %v6595
      %v6598 = vcvt.s32.f32 %v6591
      %v6599 = vmul.f32 %v6598, %v6596
      %v6600 = vxor.u32 %v6599, 2147483648
      %v6601 = vsel %vm6518, %v6600, %v6599
      %v6602 = vsub.s32 4, %v6578
      %v6603 = vsel %vm6518, %v6602, %v6578
      %v6604 = vsel %vm6517, %v5276, %v6601
      %v6605 = vsel %vm6517, 0, %v6603
      %v6606 = vcosq.f32.pop %v6604
      %v6607 = vsinq.f32.pop %v6604
      %vm6608 = vweird.f32 %v5276
      %v6609 = vand.u32 %v6605, 3
      %vm6610 = vcmp.lt.s32.totalorder %v6609, 2
      %vm6611 = vcmp.eq.s32.totalorder %v6609, 0
      %v6612 = vxor.u32 %v6607, 2147483648
      %v6613 = vsel %vm6611, %v6606, %v6612
      %vm6614 = vcmp.eq.s32.totalorder %v6609, 2
      %v6615 = vxor.u32 %v6606, 2147483648
      %v6616 = vsel %vm6614, %v6615, %v6607
      %v6617 = vsel %vm6610, %v6613, %v6616
      %v6618 = vsel %vm6608, nan, %v6617
      %v6619 = vand.u32 2147483647, %v5277
      %vm6620 = vcmp.le.f32.partialorder %v6619, 0.7853982
      %vm6621 = vcmp.lt.s32.totalorder %v5277, 0
      %v6622 = vand.u32 %v5277, 2139095040
      %v6623 = vshrl.u32 %v6622, 23
      %v6624 = vsub.s32 %v6623, 127
      %v6625 = vand.u32 2147483647, %v5277
      %v6626 = vand.u32 %v6625, 8388607
      %v6627 = vor.u32 %v6626, 8388608
      %v6628 = vsub.s32 0, %v6627
      %v6629 = vadd.s32 %v6624, 1
      %vm6630 = vcmp.gt.s32.totalorder %v6629, 0
      %v6631 = vsel %vm6630, %v6629, 0
      %v6632 = vshrl.u32 %v6631, 5
      %v6633 = vand.u32 %v6631, 31
      %v6634 = vsub.s32 32, %v6633
      %v6635 = vshrl.u32 683565275, %v6634
      %v6636 = vshll.u32 683565275, %v6633
      %v6637 = vshrl.u32 2475754826, %v6634
      %v6638 = vor.u32 %v6636, %v6637
      %v6639 = vshll.u32 2475754826, %v6633
      %v6640 = vshrl.u32 2131351028, %v6634
      %v6641 = vor.u32 %v6639, %v6640
      %v6642 = vshll.u32 2131351028, %v6633
      %v6643 = vshrl.u32 2102212464, %v6634
      %v6644 = vor.u32 %v6642, %v6643
      %v6645 = vshll.u32 2102212464, %v6633
      %v6646 = vshrl.u32 920167782, %v6634
      %v6647 = vor.u32 %v6645, %v6646
      %v6648 = vshll.u32 920167782, %v6633
      %v6649 = vshrl.u32 1326507024, %v6634
      %v6650 = vor.u32 %v6648, %v6649
      %vm6651 = vcmp.lt.s32.totalorder %v6632, 1
      %vm6652 = vcmp.lt.s32.totalorder %v6632, 2
      %vm6653 = vcmp.lt.s32.totalorder %v6632, 3
      %vm6654 = vcmp.lt.s32.totalorder %v6632, 4
      %v6655 = vsel %vm6651, %v6635, %v6638
      %v6656 = vsel %vm6654, %v6644, 2102212464
      %v6657 = vsel %vm6653, %v6641, %v6656
      %v6658 = vsel %vm6652, %v6655, %v6657
      %v6659 = vsel %vm6651, %v6638, %v6641
      %v6660 = vsel %vm6654, %v6647, 920167782
      %v6661 = vsel %vm6653, %v6644, %v6660
      %v6662 = vsel %vm6652, %v6659, %v6661
      %v6663 = vsel %vm6651, %v6641, %v6644
      %v6664 = vsel %vm6654, %v6650, 1326507024
      %v6665 = vsel %vm6653, %v6647, %v6664
      %v6666 = vsel %vm6652, %v6663, %v6665
      %v6667 = vshll.u32 %v6627, 8
      %v6668 = vmul.u32.u64.compose %v6667, %v6666
      %v6669 = vextract.low.u32 %v6668
      %v6670 = vextract.high.u32 %v6668
      %v6671 = vmul.u32.u64.compose %v6667, %v6662
      %v6672 = vextract.low.u32 %v6671
      %v6673 = vextract.high.u32 %v6671
      %v6674 = vmul.u32 %v6667, %v6658
      %v6675 = vadd.s32 %v6670, %v6672
      %vm6676 = vc.u32 %v6670, %v6672
      %v6677 = vadd.s32 %v6673, 1
      %v6678 = vsel %vm6676, %v6677, %v6673
      %v6679 = vadd.s32 %v6674, %v6678
      %v6680 = vadd.s32 %v6679, 536870912
      %v6681 = vshrl.u32 %v6680, 30
      %v6682 = vshll.u32 %v6681, 30
      %v6683 = vsub.s32 %v6679, %v6682
      %vm6684 = vcmp.lt.s32.totalorder %v6683, 0
      %v6685 = vsub.s32 0, %v6683
      %v6686 = vsel %vm6684, %v6685, %v6683
      %v6687 = vclz %v6686
      %v6688 = vsub.s32 %v6687, 2
      %vm6689 = vcmp.gt.s32.totalorder 0, %v6688
      %v6690 = vsel %vm6689, 0, %v6688
      %v6691 = vsub.s32 32, %v6690
      %v6692 = vshll.u32 %v6683, %v6690
      %v6693 = vshrl.u32 %v6675, %v6691
      %v6694 = vor.u32 %v6692, %v6693
      %v6695 = vsub.s32 4294967266, %v6690
      %v6696 = vadd.s32 %v6695, 127
      %v6697 = vshll.u32 %v6696, 23
      %v6698 = vor.u32 4788187, %v6697
      %v6699 = vand.u32 2147483647, %v6698
      %v6701 = vcvt.s32.f32 %v6694
      %v6702 = vmul.f32 %v6701, %v6699
      %v6703 = vxor.u32 %v6702, 2147483648
      %v6704 = vsel %vm6621, %v6703, %v6702
      %v6705 = vsub.s32 4, %v6681
      %v6706 = vsel %vm6621, %v6705, %v6681
      %v6707 = vsel %vm6620, %v5277, %v6704
      %v6708 = vsel %vm6620, 0, %v6706
      %v6709 = vcosq.f32.pop %v6707
      %v6710 = vsinq.f32.pop %v6707
      %vm6711 = vweird.f32 %v5277
      %v6712 = vand.u32 %v6708, 3
      %vm6713 = vcmp.lt.s32.totalorder %v6712, 2
      %vm6714 = vcmp.eq.s32.totalorder %v6712, 0
      %v6715 = vxor.u32 %v6710, 2147483648
      %v6716 = vsel %vm6714, %v6709, %v6715
      %vm6717 = vcmp.eq.s32.totalorder %v6712, 2
      %v6718 = vxor.u32 %v6709, 2147483648
      %v6719 = vsel %vm6717, %v6718, %v6710
      %v6720 = vsel %vm6713, %v6716, %v6719
      %v6721 = vsel %vm6711, nan, %v6720
      %v6722 = vand.u32 2147483647, %v5278
      %vm6723 = vcmp.le.f32.partialorder %v6722, 0.7853982
      %vm6724 = vcmp.lt.s32.totalorder %v5278, 0
      %v6725 = vand.u32 %v5278, 2139095040
      %v6726 = vshrl.u32 %v6725, 23
      %v6727 = vsub.s32 %v6726, 127
      %v6728 = vand.u32 2147483647, %v5278
      %v6729 = vand.u32 %v6728, 8388607
      %v6730 = vor.u32 %v6729, 8388608
      %v6731 = vsub.s32 0, %v6730
      %v6732 = vadd.s32 %v6727, 1
      %vm6733 = vcmp.gt.s32.totalorder %v6732, 0
      %v6734 = vsel %vm6733, %v6732, 0
      %v6735 = vshrl.u32 %v6734, 5
      %v6736 = vand.u32 %v6734, 31
      %v6737 = vsub.s32 32, %v6736
      %v6738 = vshrl.u32 683565275, %v6737
      %v6739 = vshll.u32 683565275, %v6736
      %v6740 = vshrl.u32 2475754826, %v6737
      %v6741 = vor.u32 %v6739, %v6740
      %v6742 = vshll.u32 2475754826, %v6736
      %v6743 = vshrl.u32 2131351028, %v6737
      %v6744 = vor.u32 %v6742, %v6743
      %v6745 = vshll.u32 2131351028, %v6736
      %v6746 = vshrl.u32 2102212464, %v6737
      %v6747 = vor.u32 %v6745, %v6746
      %v6748 = vshll.u32 2102212464, %v6736
      %v6749 = vshrl.u32 920167782, %v6737
      %v6750 = vor.u32 %v6748, %v6749
      %v6751 = vshll.u32 920167782, %v6736
      %v6752 = vshrl.u32 1326507024, %v6737
      %v6753 = vor.u32 %v6751, %v6752
      %vm6754 = vcmp.lt.s32.totalorder %v6735, 1
      %vm6755 = vcmp.lt.s32.totalorder %v6735, 2
      %vm6756 = vcmp.lt.s32.totalorder %v6735, 3
      %vm6757 = vcmp.lt.s32.totalorder %v6735, 4
      %v6758 = vsel %vm6754, %v6738, %v6741
      %v6759 = vsel %vm6757, %v6747, 2102212464
      %v6760 = vsel %vm6756, %v6744, %v6759
      %v6761 = vsel %vm6755, %v6758, %v6760
      %v6762 = vsel %vm6754, %v6741, %v6744
      %v6763 = vsel %vm6757, %v6750, 920167782
      %v6764 = vsel %vm6756, %v6747, %v6763
      %v6765 = vsel %vm6755, %v6762, %v6764
      %v6766 = vsel %vm6754, %v6744, %v6747
      %v6767 = vsel %vm6757, %v6753, 1326507024
      %v6768 = vsel %vm6756, %v6750, %v6767
      %v6769 = vsel %vm6755, %v6766, %v6768
      %v6770 = vshll.u32 %v6730, 8
      %v6771 = vmul.u32.u64.compose %v6770, %v6769
      %v6772 = vextract.low.u32 %v6771
      %v6773 = vextract.high.u32 %v6771
      %v6774 = vmul.u32.u64.compose %v6770, %v6765
      %v6775 = vextract.low.u32 %v6774
      %v6776 = vextract.high.u32 %v6774
      %v6777 = vmul.u32 %v6770, %v6761
      %v6778 = vadd.s32 %v6773, %v6775
      %vm6779 = vc.u32 %v6773, %v6775
      %v6780 = vadd.s32 %v6776, 1
      %v6781 = vsel %vm6779, %v6780, %v6776
      %v6782 = vadd.s32 %v6777, %v6781
      %v6783 = vadd.s32 %v6782, 536870912
      %v6784 = vshrl.u32 %v6783, 30
      %v6785 = vshll.u32 %v6784, 30
      %v6786 = vsub.s32 %v6782, %v6785
      %vm6787 = vcmp.lt.s32.totalorder %v6786, 0
      %v6788 = vsub.s32 0, %v6786
      %v6789 = vsel %vm6787, %v6788, %v6786
      %v6790 = vclz %v6789
      %v6791 = vsub.s32 %v6790, 2
      %vm6792 = vcmp.gt.s32.totalorder 0, %v6791
      %v6793 = vsel %vm6792, 0, %v6791
      %v6794 = vsub.s32 32, %v6793
      %v6795 = vshll.u32 %v6786, %v6793
      %v6796 = vshrl.u32 %v6778, %v6794
      %v6797 = vor.u32 %v6795, %v6796
      %v6798 = vsub.s32 4294967266, %v6793
      %v6799 = vadd.s32 %v6798, 127
      %v6800 = vshll.u32 %v6799, 23
      %v6801 = vor.u32 4788187, %v6800
      %v6802 = vand.u32 2147483647, %v6801
      %v6804 = vcvt.s32.f32 %v6797
      %v6805 = vmul.f32 %v6804, %v6802
      %v6806 = vxor.u32 %v6805, 2147483648
      %v6807 = vsel %vm6724, %v6806, %v6805
      %v6808 = vsub.s32 4, %v6784
      %v6809 = vsel %vm6724, %v6808, %v6784
      %v6810 = vsel %vm6723, %v5278, %v6807
      %v6811 = vsel %vm6723, 0, %v6809
      %v6812 = vcosq.f32.pop %v6810
      %v6813 = vsinq.f32.pop %v6810
      %vm6814 = vweird.f32 %v5278
      %v6815 = vand.u32 %v6811, 3
      %vm6816 = vcmp.lt.s32.totalorder %v6815, 2
      %vm6817 = vcmp.eq.s32.totalorder %v6815, 0
      %v6818 = vxor.u32 %v6813, 2147483648
      %v6819 = vsel %vm6817, %v6812, %v6818
      %vm6820 = vcmp.eq.s32.totalorder %v6815, 2
      %v6821 = vxor.u32 %v6812, 2147483648
      %v6822 = vsel %vm6820, %v6821, %v6813
      %v6823 = vsel %vm6816, %v6819, %v6822
      %v6824 = vsel %vm6814, nan, %v6823
      %v6825 = vand.u32 2147483647, %v5279
      %vm6826 = vcmp.le.f32.partialorder %v6825, 0.7853982
      %vm6827 = vcmp.lt.s32.totalorder %v5279, 0
      %v6828 = vand.u32 %v5279, 2139095040
      %v6829 = vshrl.u32 %v6828, 23
      %v6830 = vsub.s32 %v6829, 127
      %v6831 = vand.u32 2147483647, %v5279
      %v6832 = vand.u32 %v6831, 8388607
      %v6833 = vor.u32 %v6832, 8388608
      %v6834 = vsub.s32 0, %v6833
      %v6835 = vadd.s32 %v6830, 1
      %vm6836 = vcmp.gt.s32.totalorder %v6835, 0
      %v6837 = vsel %vm6836, %v6835, 0
      %v6838 = vshrl.u32 %v6837, 5
      %v6839 = vand.u32 %v6837, 31
      %v6840 = vsub.s32 32, %v6839
      %v6841 = vshrl.u32 683565275, %v6840
      %v6842 = vshll.u32 683565275, %v6839
      %v6843 = vshrl.u32 2475754826, %v6840
      %v6844 = vor.u32 %v6842, %v6843
      %v6845 = vshll.u32 2475754826, %v6839
      %v6846 = vshrl.u32 2131351028, %v6840
      %v6847 = vor.u32 %v6845, %v6846
      %v6848 = vshll.u32 2131351028, %v6839
      %v6849 = vshrl.u32 2102212464, %v6840
      %v6850 = vor.u32 %v6848, %v6849
      %v6851 = vshll.u32 2102212464, %v6839
      %v6852 = vshrl.u32 920167782, %v6840
      %v6853 = vor.u32 %v6851, %v6852
      %v6854 = vshll.u32 920167782, %v6839
      %v6855 = vshrl.u32 1326507024, %v6840
      %v6856 = vor.u32 %v6854, %v6855
      %vm6857 = vcmp.lt.s32.totalorder %v6838, 1
      %vm6858 = vcmp.lt.s32.totalorder %v6838, 2
      %vm6859 = vcmp.lt.s32.totalorder %v6838, 3
      %vm6860 = vcmp.lt.s32.totalorder %v6838, 4
      %v6861 = vsel %vm6857, %v6841, %v6844
      %v6862 = vsel %vm6860, %v6850, 2102212464
      %v6863 = vsel %vm6859, %v6847, %v6862
      %v6864 = vsel %vm6858, %v6861, %v6863
      %v6865 = vsel %vm6857, %v6844, %v6847
      %v6866 = vsel %vm6860, %v6853, 920167782
      %v6867 = vsel %vm6859, %v6850, %v6866
      %v6868 = vsel %vm6858, %v6865, %v6867
      %v6869 = vsel %vm6857, %v6847, %v6850
      %v6870 = vsel %vm6860, %v6856, 1326507024
      %v6871 = vsel %vm6859, %v6853, %v6870
      %v6872 = vsel %vm6858, %v6869, %v6871
      %v6873 = vshll.u32 %v6833, 8
      %v6874 = vmul.u32.u64.compose %v6873, %v6872
      %v6875 = vextract.low.u32 %v6874
      %v6876 = vextract.high.u32 %v6874
      %v6877 = vmul.u32.u64.compose %v6873, %v6868
      %v6878 = vextract.low.u32 %v6877
      %v6879 = vextract.high.u32 %v6877
      %v6880 = vmul.u32 %v6873, %v6864
      %v6881 = vadd.s32 %v6876, %v6878
      %vm6882 = vc.u32 %v6876, %v6878
      %v6883 = vadd.s32 %v6879, 1
      %v6884 = vsel %vm6882, %v6883, %v6879
      %v6885 = vadd.s32 %v6880, %v6884
      %v6886 = vadd.s32 %v6885, 536870912
      %v6887 = vshrl.u32 %v6886, 30
      %v6888 = vshll.u32 %v6887, 30
      %v6889 = vsub.s32 %v6885, %v6888
      %vm6890 = vcmp.lt.s32.totalorder %v6889, 0
      %v6891 = vsub.s32 0, %v6889
      %v6892 = vsel %vm6890, %v6891, %v6889
      %v6893 = vclz %v6892
      %v6894 = vsub.s32 %v6893, 2
      %vm6895 = vcmp.gt.s32.totalorder 0, %v6894
      %v6896 = vsel %vm6895, 0, %v6894
      %v6897 = vsub.s32 32, %v6896
      %v6898 = vshll.u32 %v6889, %v6896
      %v6899 = vshrl.u32 %v6881, %v6897
      %v6900 = vor.u32 %v6898, %v6899
      %v6901 = vsub.s32 4294967266, %v6896
      %v6902 = vadd.s32 %v6901, 127
      %v6903 = vshll.u32 %v6902, 23
      %v6904 = vor.u32 4788187, %v6903
      %v6905 = vand.u32 2147483647, %v6904
      %v6907 = vcvt.s32.f32 %v6900
      %v6908 = vmul.f32 %v6907, %v6905
      %v6909 = vxor.u32 %v6908, 2147483648
      %v6910 = vsel %vm6827, %v6909, %v6908
      %v6911 = vsub.s32 4, %v6887
      %v6912 = vsel %vm6827, %v6911, %v6887
      %v6913 = vsel %vm6826, %v5279, %v6910
      %v6914 = vsel %vm6826, 0, %v6912
      %v6915 = vcosq.f32.pop %v6913
      %v6916 = vsinq.f32.pop %v6913
      %vm6917 = vweird.f32 %v5279
      %v6918 = vand.u32 %v6914, 3
      %vm6919 = vcmp.lt.s32.totalorder %v6918, 2
      %vm6920 = vcmp.eq.s32.totalorder %v6918, 0
      %v6921 = vxor.u32 %v6916, 2147483648
      %v6922 = vsel %vm6920, %v6915, %v6921
      %vm6923 = vcmp.eq.s32.totalorder %v6918, 2
      %v6924 = vxor.u32 %v6915, 2147483648
      %v6925 = vsel %vm6923, %v6924, %v6916
      %v6926 = vsel %vm6919, %v6922, %v6925
      %v6927 = vsel %vm6917, nan, %v6926
      %v6928 = vpack.c.bf16 %v5485, %v5382
      %v6929 = vpack.c.bf16 %v5691, %v5588
      %v6930 = vpack.c.bf16 %v5897, %v5794
      %v6931 = vpack.c.bf16 %v6103, %v6000
      %v6932 = vpack.c.bf16 %v6309, %v6206
      %v6933 = vpack.c.bf16 %v6515, %v6412
      %v6934 = vpack.c.bf16 %v6721, %v6618
      %v6935 = vpack.c.bf16 %v6927, %v6824
      %v6936 = vand.u32 2147483647, %v5264
      %vm6937 = vcmp.le.f32.partialorder %v6936, 0.7853982
      %vm6938 = vcmp.lt.s32.totalorder %v5264, 0
      %v6939 = vand.u32 %v5264, 2139095040
      %v6940 = vshrl.u32 %v6939, 23
      %v6941 = vsub.s32 %v6940, 127
      %v6942 = vand.u32 2147483647, %v5264
      %v6943 = vand.u32 %v6942, 8388607
      %v6944 = vor.u32 %v6943, 8388608
      %v6945 = vsub.s32 0, %v6944
      %v6946 = vadd.s32 %v6941, 1
      %vm6947 = vcmp.gt.s32.totalorder %v6946, 0
      %v6948 = vsel %vm6947, %v6946, 0
      %v6949 = vshrl.u32 %v6948, 5
      %v6950 = vand.u32 %v6948, 31
      %v6951 = vsub.s32 32, %v6950
      %v6952 = vshrl.u32 683565275, %v6951
      %v6953 = vshll.u32 683565275, %v6950
      %v6954 = vshrl.u32 2475754826, %v6951
      %v6955 = vor.u32 %v6953, %v6954
      %v6956 = vshll.u32 2475754826, %v6950
      %v6957 = vshrl.u32 2131351028, %v6951
      %v6958 = vor.u32 %v6956, %v6957
      %v6959 = vshll.u32 2131351028, %v6950
      %v6960 = vshrl.u32 2102212464, %v6951
      %v6961 = vor.u32 %v6959, %v6960
      %v6962 = vshll.u32 2102212464, %v6950
      %v6963 = vshrl.u32 920167782, %v6951
      %v6964 = vor.u32 %v6962, %v6963
      %v6965 = vshll.u32 920167782, %v6950
      %v6966 = vshrl.u32 1326507024, %v6951
      %v6967 = vor.u32 %v6965, %v6966
      %vm6968 = vcmp.lt.s32.totalorder %v6949, 1
      %vm6969 = vcmp.lt.s32.totalorder %v6949, 2
      %vm6970 = vcmp.lt.s32.totalorder %v6949, 3
      %vm6971 = vcmp.lt.s32.totalorder %v6949, 4
      %v6972 = vsel %vm6968, %v6952, %v6955
      %v6973 = vsel %vm6971, %v6961, 2102212464
      %v6974 = vsel %vm6970, %v6958, %v6973
      %v6975 = vsel %vm6969, %v6972, %v6974
      %v6976 = vsel %vm6968, %v6955, %v6958
      %v6977 = vsel %vm6971, %v6964, 920167782
      %v6978 = vsel %vm6970, %v6961, %v6977
      %v6979 = vsel %vm6969, %v6976, %v6978
      %v6980 = vsel %vm6968, %v6958, %v6961
      %v6981 = vsel %vm6971, %v6967, 1326507024
      %v6982 = vsel %vm6970, %v6964, %v6981
      %v6983 = vsel %vm6969, %v6980, %v6982
      %v6984 = vshll.u32 %v6944, 8
      %v6985 = vmul.u32.u64.compose %v6984, %v6983
      %v6986 = vextract.low.u32 %v6985
      %v6987 = vextract.high.u32 %v6985
      %v6988 = vmul.u32.u64.compose %v6984, %v6979
      %v6989 = vextract.low.u32 %v6988
      %v6990 = vextract.high.u32 %v6988
      %v6991 = vmul.u32 %v6984, %v6975
      %v6992 = vadd.s32 %v6987, %v6989
      %vm6993 = vc.u32 %v6987, %v6989
      %v6994 = vadd.s32 %v6990, 1
      %v6995 = vsel %vm6993, %v6994, %v6990
      %v6996 = vadd.s32 %v6991, %v6995
      %v6997 = vadd.s32 %v6996, 536870912
      %v6998 = vshrl.u32 %v6997, 30
      %v6999 = vshll.u32 %v6998, 30
      %v7000 = vsub.s32 %v6996, %v6999
      %vm7001 = vcmp.lt.s32.totalorder %v7000, 0
      %v7002 = vsub.s32 0, %v7000
      %v7003 = vsel %vm7001, %v7002, %v7000
      %v7004 = vclz %v7003
      %v7005 = vsub.s32 %v7004, 2
      %vm7006 = vcmp.gt.s32.totalorder 0, %v7005
      %v7007 = vsel %vm7006, 0, %v7005
      %v7008 = vsub.s32 32, %v7007
      %v7009 = vshll.u32 %v7000, %v7007
      %v7010 = vshrl.u32 %v6992, %v7008
      %v7011 = vor.u32 %v7009, %v7010
      %v7012 = vsub.s32 4294967266, %v7007
      %v7013 = vadd.s32 %v7012, 127
      %v7014 = vshll.u32 %v7013, 23
      %v7015 = vor.u32 4788187, %v7014
      %v7016 = vand.u32 2147483647, %v7015
      %v7018 = vcvt.s32.f32 %v7011
      %v7019 = vmul.f32 %v7018, %v7016
      %v7020 = vxor.u32 %v7019, 2147483648
      %v7021 = vsel %vm6938, %v7020, %v7019
      %v7022 = vsub.s32 4, %v6998
      %v7023 = vsel %vm6938, %v7022, %v6998
      %v7024 = vsel %vm6937, %v5264, %v7021
      %v7025 = vsel %vm6937, 0, %v7023
      %v7026 = vcosq.f32.pop %v7024
      %v7027 = vsinq.f32.pop %v7024
      %vm7028 = vweird.f32 %v5264
      %v7029 = vadd.s32 %v7025, 3
      %v7030 = vand.u32 %v7029, 3
      %vm7031 = vcmp.lt.s32.totalorder %v7030, 2
      %vm7032 = vcmp.eq.s32.totalorder %v7030, 0
      %v7033 = vxor.u32 %v7027, 2147483648
      %v7034 = vsel %vm7032, %v7026, %v7033
      %vm7035 = vcmp.eq.s32.totalorder %v7030, 2
      %v7036 = vxor.u32 %v7026, 2147483648
      %v7037 = vsel %vm7035, %v7036, %v7027
      %v7038 = vsel %vm7031, %v7034, %v7037
      %v7039 = vsel %vm7028, nan, %v7038
      %v7040 = vand.u32 2147483647, %v5265
      %vm7041 = vcmp.le.f32.partialorder %v7040, 0.7853982
      %vm7042 = vcmp.lt.s32.totalorder %v5265, 0
      %v7043 = vand.u32 %v5265, 2139095040
      %v7044 = vshrl.u32 %v7043, 23
      %v7045 = vsub.s32 %v7044, 127
      %v7046 = vand.u32 2147483647, %v5265
      %v7047 = vand.u32 %v7046, 8388607
      %v7048 = vor.u32 %v7047, 8388608
      %v7049 = vsub.s32 0, %v7048
      %v7050 = vadd.s32 %v7045, 1
      %vm7051 = vcmp.gt.s32.totalorder %v7050, 0
      %v7052 = vsel %vm7051, %v7050, 0
      %v7053 = vshrl.u32 %v7052, 5
      %v7054 = vand.u32 %v7052, 31
      %v7055 = vsub.s32 32, %v7054
      %v7056 = vshrl.u32 683565275, %v7055
      %v7057 = vshll.u32 683565275, %v7054
      %v7058 = vshrl.u32 2475754826, %v7055
      %v7059 = vor.u32 %v7057, %v7058
      %v7060 = vshll.u32 2475754826, %v7054
      %v7061 = vshrl.u32 2131351028, %v7055
      %v7062 = vor.u32 %v7060, %v7061
      %v7063 = vshll.u32 2131351028, %v7054
      %v7064 = vshrl.u32 2102212464, %v7055
      %v7065 = vor.u32 %v7063, %v7064
      %v7066 = vshll.u32 2102212464, %v7054
      %v7067 = vshrl.u32 920167782, %v7055
      %v7068 = vor.u32 %v7066, %v7067
      %v7069 = vshll.u32 920167782, %v7054
      %v7070 = vshrl.u32 1326507024, %v7055
      %v7071 = vor.u32 %v7069, %v7070
      %vm7072 = vcmp.lt.s32.totalorder %v7053, 1
      %vm7073 = vcmp.lt.s32.totalorder %v7053, 2
      %vm7074 = vcmp.lt.s32.totalorder %v7053, 3
      %vm7075 = vcmp.lt.s32.totalorder %v7053, 4
      %v7076 = vsel %vm7072, %v7056, %v7059
      %v7077 = vsel %vm7075, %v7065, 2102212464
      %v7078 = vsel %vm7074, %v7062, %v7077
      %v7079 = vsel %vm7073, %v7076, %v7078
      %v7080 = vsel %vm7072, %v7059, %v7062
      %v7081 = vsel %vm7075, %v7068, 920167782
      %v7082 = vsel %vm7074, %v7065, %v7081
      %v7083 = vsel %vm7073, %v7080, %v7082
      %v7084 = vsel %vm7072, %v7062, %v7065
      %v7085 = vsel %vm7075, %v7071, 1326507024
      %v7086 = vsel %vm7074, %v7068, %v7085
      %v7087 = vsel %vm7073, %v7084, %v7086
      %v7088 = vshll.u32 %v7048, 8
      %v7089 = vmul.u32.u64.compose %v7088, %v7087
      %v7090 = vextract.low.u32 %v7089
      %v7091 = vextract.high.u32 %v7089
      %v7092 = vmul.u32.u64.compose %v7088, %v7083
      %v7093 = vextract.low.u32 %v7092
      %v7094 = vextract.high.u32 %v7092
      %v7095 = vmul.u32 %v7088, %v7079
      %v7096 = vadd.s32 %v7091, %v7093
      %vm7097 = vc.u32 %v7091, %v7093
      %v7098 = vadd.s32 %v7094, 1
      %v7099 = vsel %vm7097, %v7098, %v7094
      %v7100 = vadd.s32 %v7095, %v7099
      %v7101 = vadd.s32 %v7100, 536870912
      %v7102 = vshrl.u32 %v7101, 30
      %v7103 = vshll.u32 %v7102, 30
      %v7104 = vsub.s32 %v7100, %v7103
      %vm7105 = vcmp.lt.s32.totalorder %v7104, 0
      %v7106 = vsub.s32 0, %v7104
      %v7107 = vsel %vm7105, %v7106, %v7104
      %v7108 = vclz %v7107
      %v7109 = vsub.s32 %v7108, 2
      %vm7110 = vcmp.gt.s32.totalorder 0, %v7109
      %v7111 = vsel %vm7110, 0, %v7109
      %v7112 = vsub.s32 32, %v7111
      %v7113 = vshll.u32 %v7104, %v7111
      %v7114 = vshrl.u32 %v7096, %v7112
      %v7115 = vor.u32 %v7113, %v7114
      %v7116 = vsub.s32 4294967266, %v7111
      %v7117 = vadd.s32 %v7116, 127
      %v7118 = vshll.u32 %v7117, 23
      %v7119 = vor.u32 4788187, %v7118
      %v7120 = vand.u32 2147483647, %v7119
      %v7122 = vcvt.s32.f32 %v7115
      %v7123 = vmul.f32 %v7122, %v7120
      %v7124 = vxor.u32 %v7123, 2147483648
      %v7125 = vsel %vm7042, %v7124, %v7123
      %v7126 = vsub.s32 4, %v7102
      %v7127 = vsel %vm7042, %v7126, %v7102
      %v7128 = vsel %vm7041, %v5265, %v7125
      %v7129 = vsel %vm7041, 0, %v7127
      %v7130 = vcosq.f32.pop %v7128
      %v7131 = vsinq.f32.pop %v7128
      %vm7132 = vweird.f32 %v5265
      %v7133 = vadd.s32 %v7129, 3
      %v7134 = vand.u32 %v7133, 3
      %vm7135 = vcmp.lt.s32.totalorder %v7134, 2
      %vm7136 = vcmp.eq.s32.totalorder %v7134, 0
      %v7137 = vxor.u32 %v7131, 2147483648
      %v7138 = vsel %vm7136, %v7130, %v7137
      %vm7139 = vcmp.eq.s32.totalorder %v7134, 2
      %v7140 = vxor.u32 %v7130, 2147483648
      %v7141 = vsel %vm7139, %v7140, %v7131
      %v7142 = vsel %vm7135, %v7138, %v7141
      %v7143 = vsel %vm7132, nan, %v7142
      %v7144 = vand.u32 2147483647, %v5266
      %vm7145 = vcmp.le.f32.partialorder %v7144, 0.7853982
      %vm7146 = vcmp.lt.s32.totalorder %v5266, 0
      %v7147 = vand.u32 %v5266, 2139095040
      %v7148 = vshrl.u32 %v7147, 23
      %v7149 = vsub.s32 %v7148, 127
      %v7150 = vand.u32 2147483647, %v5266
      %v7151 = vand.u32 %v7150, 8388607
      %v7152 = vor.u32 %v7151, 8388608
      %v7153 = vsub.s32 0, %v7152
      %v7154 = vadd.s32 %v7149, 1
      %vm7155 = vcmp.gt.s32.totalorder %v7154, 0
      %v7156 = vsel %vm7155, %v7154, 0
      %v7157 = vshrl.u32 %v7156, 5
      %v7158 = vand.u32 %v7156, 31
      %v7159 = vsub.s32 32, %v7158
      %v7160 = vshrl.u32 683565275, %v7159
      %v7161 = vshll.u32 683565275, %v7158
      %v7162 = vshrl.u32 2475754826, %v7159
      %v7163 = vor.u32 %v7161, %v7162
      %v7164 = vshll.u32 2475754826, %v7158
      %v7165 = vshrl.u32 2131351028, %v7159
      %v7166 = vor.u32 %v7164, %v7165
      %v7167 = vshll.u32 2131351028, %v7158
      %v7168 = vshrl.u32 2102212464, %v7159
      %v7169 = vor.u32 %v7167, %v7168
      %v7170 = vshll.u32 2102212464, %v7158
      %v7171 = vshrl.u32 920167782, %v7159
      %v7172 = vor.u32 %v7170, %v7171
      %v7173 = vshll.u32 920167782, %v7158
      %v7174 = vshrl.u32 1326507024, %v7159
      %v7175 = vor.u32 %v7173, %v7174
      %vm7176 = vcmp.lt.s32.totalorder %v7157, 1
      %vm7177 = vcmp.lt.s32.totalorder %v7157, 2
      %vm7178 = vcmp.lt.s32.totalorder %v7157, 3
      %vm7179 = vcmp.lt.s32.totalorder %v7157, 4
      %v7180 = vsel %vm7176, %v7160, %v7163
      %v7181 = vsel %vm7179, %v7169, 2102212464
      %v7182 = vsel %vm7178, %v7166, %v7181
      %v7183 = vsel %vm7177, %v7180, %v7182
      %v7184 = vsel %vm7176, %v7163, %v7166
      %v7185 = vsel %vm7179, %v7172, 920167782
      %v7186 = vsel %vm7178, %v7169, %v7185
      %v7187 = vsel %vm7177, %v7184, %v7186
      %v7188 = vsel %vm7176, %v7166, %v7169
      %v7189 = vsel %vm7179, %v7175, 1326507024
      %v7190 = vsel %vm7178, %v7172, %v7189
      %v7191 = vsel %vm7177, %v7188, %v7190
      %v7192 = vshll.u32 %v7152, 8
      %v7193 = vmul.u32.u64.compose %v7192, %v7191
      %v7194 = vextract.low.u32 %v7193
      %v7195 = vextract.high.u32 %v7193
      %v7196 = vmul.u32.u64.compose %v7192, %v7187
      %v7197 = vextract.low.u32 %v7196
      %v7198 = vextract.high.u32 %v7196
      %v7199 = vmul.u32 %v7192, %v7183
      %v7200 = vadd.s32 %v7195, %v7197
      %vm7201 = vc.u32 %v7195, %v7197
      %v7202 = vadd.s32 %v7198, 1
      %v7203 = vsel %vm7201, %v7202, %v7198
      %v7204 = vadd.s32 %v7199, %v7203
      %v7205 = vadd.s32 %v7204, 536870912
      %v7206 = vshrl.u32 %v7205, 30
      %v7207 = vshll.u32 %v7206, 30
      %v7208 = vsub.s32 %v7204, %v7207
      %vm7209 = vcmp.lt.s32.totalorder %v7208, 0
      %v7210 = vsub.s32 0, %v7208
      %v7211 = vsel %vm7209, %v7210, %v7208
      %v7212 = vclz %v7211
      %v7213 = vsub.s32 %v7212, 2
      %vm7214 = vcmp.gt.s32.totalorder 0, %v7213
      %v7215 = vsel %vm7214, 0, %v7213
      %v7216 = vsub.s32 32, %v7215
      %v7217 = vshll.u32 %v7208, %v7215
      %v7218 = vshrl.u32 %v7200, %v7216
      %v7219 = vor.u32 %v7217, %v7218
      %v7220 = vsub.s32 4294967266, %v7215
      %v7221 = vadd.s32 %v7220, 127
      %v7222 = vshll.u32 %v7221, 23
      %v7223 = vor.u32 4788187, %v7222
      %v7224 = vand.u32 2147483647, %v7223
      %v7226 = vcvt.s32.f32 %v7219
      %v7227 = vmul.f32 %v7226, %v7224
      %v7228 = vxor.u32 %v7227, 2147483648
      %v7229 = vsel %vm7146, %v7228, %v7227
      %v7230 = vsub.s32 4, %v7206
      %v7231 = vsel %vm7146, %v7230, %v7206
      %v7232 = vsel %vm7145, %v5266, %v7229
      %v7233 = vsel %vm7145, 0, %v7231
      %v7234 = vcosq.f32.pop %v7232
      %v7235 = vsinq.f32.pop %v7232
      %vm7236 = vweird.f32 %v5266
      %v7237 = vadd.s32 %v7233, 3
      %v7238 = vand.u32 %v7237, 3
      %vm7239 = vcmp.lt.s32.totalorder %v7238, 2
      %vm7240 = vcmp.eq.s32.totalorder %v7238, 0
      %v7241 = vxor.u32 %v7235, 2147483648
      %v7242 = vsel %vm7240, %v7234, %v7241
      %vm7243 = vcmp.eq.s32.totalorder %v7238, 2
      %v7244 = vxor.u32 %v7234, 2147483648
      %v7245 = vsel %vm7243, %v7244, %v7235
      %v7246 = vsel %vm7239, %v7242, %v7245
      %v7247 = vsel %vm7236, nan, %v7246
      %v7248 = vand.u32 2147483647, %v5267
      %vm7249 = vcmp.le.f32.partialorder %v7248, 0.7853982
      %vm7250 = vcmp.lt.s32.totalorder %v5267, 0
      %v7251 = vand.u32 %v5267, 2139095040
      %v7252 = vshrl.u32 %v7251, 23
      %v7253 = vsub.s32 %v7252, 127
      %v7254 = vand.u32 2147483647, %v5267
      %v7255 = vand.u32 %v7254, 8388607
      %v7256 = vor.u32 %v7255, 8388608
      %v7257 = vsub.s32 0, %v7256
      %v7258 = vadd.s32 %v7253, 1
      %vm7259 = vcmp.gt.s32.totalorder %v7258, 0
      %v7260 = vsel %vm7259, %v7258, 0
      %v7261 = vshrl.u32 %v7260, 5
      %v7262 = vand.u32 %v7260, 31
      %v7263 = vsub.s32 32, %v7262
      %v7264 = vshrl.u32 683565275, %v7263
      %v7265 = vshll.u32 683565275, %v7262
      %v7266 = vshrl.u32 2475754826, %v7263
      %v7267 = vor.u32 %v7265, %v7266
      %v7268 = vshll.u32 2475754826, %v7262
      %v7269 = vshrl.u32 2131351028, %v7263
      %v7270 = vor.u32 %v7268, %v7269
      %v7271 = vshll.u32 2131351028, %v7262
      %v7272 = vshrl.u32 2102212464, %v7263
      %v7273 = vor.u32 %v7271, %v7272
      %v7274 = vshll.u32 2102212464, %v7262
      %v7275 = vshrl.u32 920167782, %v7263
      %v7276 = vor.u32 %v7274, %v7275
      %v7277 = vshll.u32 920167782, %v7262
      %v7278 = vshrl.u32 1326507024, %v7263
      %v7279 = vor.u32 %v7277, %v7278
      %vm7280 = vcmp.lt.s32.totalorder %v7261, 1
      %vm7281 = vcmp.lt.s32.totalorder %v7261, 2
      %vm7282 = vcmp.lt.s32.totalorder %v7261, 3
      %vm7283 = vcmp.lt.s32.totalorder %v7261, 4
      %v7284 = vsel %vm7280, %v7264, %v7267
      %v7285 = vsel %vm7283, %v7273, 2102212464
      %v7286 = vsel %vm7282, %v7270, %v7285
      %v7287 = vsel %vm7281, %v7284, %v7286
      %v7288 = vsel %vm7280, %v7267, %v7270
      %v7289 = vsel %vm7283, %v7276, 920167782
      %v7290 = vsel %vm7282, %v7273, %v7289
      %v7291 = vsel %vm7281, %v7288, %v7290
      %v7292 = vsel %vm7280, %v7270, %v7273
      %v7293 = vsel %vm7283, %v7279, 1326507024
      %v7294 = vsel %vm7282, %v7276, %v7293
      %v7295 = vsel %vm7281, %v7292, %v7294
      %v7296 = vshll.u32 %v7256, 8
      %v7297 = vmul.u32.u64.compose %v7296, %v7295
      %v7298 = vextract.low.u32 %v7297
      %v7299 = vextract.high.u32 %v7297
      %v7300 = vmul.u32.u64.compose %v7296, %v7291
      %v7301 = vextract.low.u32 %v7300
      %v7302 = vextract.high.u32 %v7300
      %v7303 = vmul.u32 %v7296, %v7287
      %v7304 = vadd.s32 %v7299, %v7301
      %vm7305 = vc.u32 %v7299, %v7301
      %v7306 = vadd.s32 %v7302, 1
      %v7307 = vsel %vm7305, %v7306, %v7302
      %v7308 = vadd.s32 %v7303, %v7307
      %v7309 = vadd.s32 %v7308, 536870912
      %v7310 = vshrl.u32 %v7309, 30
      %v7311 = vshll.u32 %v7310, 30
      %v7312 = vsub.s32 %v7308, %v7311
      %vm7313 = vcmp.lt.s32.totalorder %v7312, 0
      %v7314 = vsub.s32 0, %v7312
      %v7315 = vsel %vm7313, %v7314, %v7312
      %v7316 = vclz %v7315
      %v7317 = vsub.s32 %v7316, 2
      %vm7318 = vcmp.gt.s32.totalorder 0, %v7317
      %v7319 = vsel %vm7318, 0, %v7317
      %v7320 = vsub.s32 32, %v7319
      %v7321 = vshll.u32 %v7312, %v7319
      %v7322 = vshrl.u32 %v7304, %v7320
      %v7323 = vor.u32 %v7321, %v7322
      %v7324 = vsub.s32 4294967266, %v7319
      %v7325 = vadd.s32 %v7324, 127
      %v7326 = vshll.u32 %v7325, 23
      %v7327 = vor.u32 4788187, %v7326
      %v7328 = vand.u32 2147483647, %v7327
      %v7330 = vcvt.s32.f32 %v7323
      %v7331 = vmul.f32 %v7330, %v7328
      %v7332 = vxor.u32 %v7331, 2147483648
      %v7333 = vsel %vm7250, %v7332, %v7331
      %v7334 = vsub.s32 4, %v7310
      %v7335 = vsel %vm7250, %v7334, %v7310
      %v7336 = vsel %vm7249, %v5267, %v7333
      %v7337 = vsel %vm7249, 0, %v7335
      %v7338 = vcosq.f32.pop %v7336
      %v7339 = vsinq.f32.pop %v7336
      %vm7340 = vweird.f32 %v5267
      %v7341 = vadd.s32 %v7337, 3
      %v7342 = vand.u32 %v7341, 3
      %vm7343 = vcmp.lt.s32.totalorder %v7342, 2
      %vm7344 = vcmp.eq.s32.totalorder %v7342, 0
      %v7345 = vxor.u32 %v7339, 2147483648
      %v7346 = vsel %vm7344, %v7338, %v7345
      %vm7347 = vcmp.eq.s32.totalorder %v7342, 2
      %v7348 = vxor.u32 %v7338, 2147483648
      %v7349 = vsel %vm7347, %v7348, %v7339
      %v7350 = vsel %vm7343, %v7346, %v7349
      %v7351 = vsel %vm7340, nan, %v7350
      %v7352 = vand.u32 2147483647, %v5268
      %vm7353 = vcmp.le.f32.partialorder %v7352, 0.7853982
      %vm7354 = vcmp.lt.s32.totalorder %v5268, 0
      %v7355 = vand.u32 %v5268, 2139095040
      %v7356 = vshrl.u32 %v7355, 23
      %v7357 = vsub.s32 %v7356, 127
      %v7358 = vand.u32 2147483647, %v5268
      %v7359 = vand.u32 %v7358, 8388607
      %v7360 = vor.u32 %v7359, 8388608
      %v7361 = vsub.s32 0, %v7360
      %v7362 = vadd.s32 %v7357, 1
      %vm7363 = vcmp.gt.s32.totalorder %v7362, 0
      %v7364 = vsel %vm7363, %v7362, 0
      %v7365 = vshrl.u32 %v7364, 5
      %v7366 = vand.u32 %v7364, 31
      %v7367 = vsub.s32 32, %v7366
      %v7368 = vshrl.u32 683565275, %v7367
      %v7369 = vshll.u32 683565275, %v7366
      %v7370 = vshrl.u32 2475754826, %v7367
      %v7371 = vor.u32 %v7369, %v7370
      %v7372 = vshll.u32 2475754826, %v7366
      %v7373 = vshrl.u32 2131351028, %v7367
      %v7374 = vor.u32 %v7372, %v7373
      %v7375 = vshll.u32 2131351028, %v7366
      %v7376 = vshrl.u32 2102212464, %v7367
      %v7377 = vor.u32 %v7375, %v7376
      %v7378 = vshll.u32 2102212464, %v7366
      %v7379 = vshrl.u32 920167782, %v7367
      %v7380 = vor.u32 %v7378, %v7379
      %v7381 = vshll.u32 920167782, %v7366
      %v7382 = vshrl.u32 1326507024, %v7367
      %v7383 = vor.u32 %v7381, %v7382
      %vm7384 = vcmp.lt.s32.totalorder %v7365, 1
      %vm7385 = vcmp.lt.s32.totalorder %v7365, 2
      %vm7386 = vcmp.lt.s32.totalorder %v7365, 3
      %vm7387 = vcmp.lt.s32.totalorder %v7365, 4
      %v7388 = vsel %vm7384, %v7368, %v7371
      %v7389 = vsel %vm7387, %v7377, 2102212464
      %v7390 = vsel %vm7386, %v7374, %v7389
      %v7391 = vsel %vm7385, %v7388, %v7390
      %v7392 = vsel %vm7384, %v7371, %v7374
      %v7393 = vsel %vm7387, %v7380, 920167782
      %v7394 = vsel %vm7386, %v7377, %v7393
      %v7395 = vsel %vm7385, %v7392, %v7394
      %v7396 = vsel %vm7384, %v7374, %v7377
      %v7397 = vsel %vm7387, %v7383, 1326507024
      %v7398 = vsel %vm7386, %v7380, %v7397
      %v7399 = vsel %vm7385, %v7396, %v7398
      %v7400 = vshll.u32 %v7360, 8
      %v7401 = vmul.u32.u64.compose %v7400, %v7399
      %v7402 = vextract.low.u32 %v7401
      %v7403 = vextract.high.u32 %v7401
      %v7404 = vmul.u32.u64.compose %v7400, %v7395
      %v7405 = vextract.low.u32 %v7404
      %v7406 = vextract.high.u32 %v7404
      %v7407 = vmul.u32 %v7400, %v7391
      %v7408 = vadd.s32 %v7403, %v7405
      %vm7409 = vc.u32 %v7403, %v7405
      %v7410 = vadd.s32 %v7406, 1
      %v7411 = vsel %vm7409, %v7410, %v7406
      %v7412 = vadd.s32 %v7407, %v7411
      %v7413 = vadd.s32 %v7412, 536870912
      %v7414 = vshrl.u32 %v7413, 30
      %v7415 = vshll.u32 %v7414, 30
      %v7416 = vsub.s32 %v7412, %v7415
      %vm7417 = vcmp.lt.s32.totalorder %v7416, 0
      %v7418 = vsub.s32 0, %v7416
      %v7419 = vsel %vm7417, %v7418, %v7416
      %v7420 = vclz %v7419
      %v7421 = vsub.s32 %v7420, 2
      %vm7422 = vcmp.gt.s32.totalorder 0, %v7421
      %v7423 = vsel %vm7422, 0, %v7421
      %v7424 = vsub.s32 32, %v7423
      %v7425 = vshll.u32 %v7416, %v7423
      %v7426 = vshrl.u32 %v7408, %v7424
      %v7427 = vor.u32 %v7425, %v7426
      %v7428 = vsub.s32 4294967266, %v7423
      %v7429 = vadd.s32 %v7428, 127
      %v7430 = vshll.u32 %v7429, 23
      %v7431 = vor.u32 4788187, %v7430
      %v7432 = vand.u32 2147483647, %v7431
      %v7434 = vcvt.s32.f32 %v7427
      %v7435 = vmul.f32 %v7434, %v7432
      %v7436 = vxor.u32 %v7435, 2147483648
      %v7437 = vsel %vm7354, %v7436, %v7435
      %v7438 = vsub.s32 4, %v7414
      %v7439 = vsel %vm7354, %v7438, %v7414
      %v7440 = vsel %vm7353, %v5268, %v7437
      %v7441 = vsel %vm7353, 0, %v7439
      %v7442 = vcosq.f32.pop %v7440
      %v7443 = vsinq.f32.pop %v7440
      %vm7444 = vweird.f32 %v5268
      %v7445 = vadd.s32 %v7441, 3
      %v7446 = vand.u32 %v7445, 3
      %vm7447 = vcmp.lt.s32.totalorder %v7446, 2
      %vm7448 = vcmp.eq.s32.totalorder %v7446, 0
      %v7449 = vxor.u32 %v7443, 2147483648
      %v7450 = vsel %vm7448, %v7442, %v7449
      %vm7451 = vcmp.eq.s32.totalorder %v7446, 2
      %v7452 = vxor.u32 %v7442, 2147483648
      %v7453 = vsel %vm7451, %v7452, %v7443
      %v7454 = vsel %vm7447, %v7450, %v7453
      %v7455 = vsel %vm7444, nan, %v7454
      %v7456 = vand.u32 2147483647, %v5269
      %vm7457 = vcmp.le.f32.partialorder %v7456, 0.7853982
      %vm7458 = vcmp.lt.s32.totalorder %v5269, 0
      %v7459 = vand.u32 %v5269, 2139095040
      %v7460 = vshrl.u32 %v7459, 23
      %v7461 = vsub.s32 %v7460, 127
      %v7462 = vand.u32 2147483647, %v5269
      %v7463 = vand.u32 %v7462, 8388607
      %v7464 = vor.u32 %v7463, 8388608
      %v7465 = vsub.s32 0, %v7464
      %v7466 = vadd.s32 %v7461, 1
      %vm7467 = vcmp.gt.s32.totalorder %v7466, 0
      %v7468 = vsel %vm7467, %v7466, 0
      %v7469 = vshrl.u32 %v7468, 5
      %v7470 = vand.u32 %v7468, 31
      %v7471 = vsub.s32 32, %v7470
      %v7472 = vshrl.u32 683565275, %v7471
      %v7473 = vshll.u32 683565275, %v7470
      %v7474 = vshrl.u32 2475754826, %v7471
      %v7475 = vor.u32 %v7473, %v7474
      %v7476 = vshll.u32 2475754826, %v7470
      %v7477 = vshrl.u32 2131351028, %v7471
      %v7478 = vor.u32 %v7476, %v7477
      %v7479 = vshll.u32 2131351028, %v7470
      %v7480 = vshrl.u32 2102212464, %v7471
      %v7481 = vor.u32 %v7479, %v7480
      %v7482 = vshll.u32 2102212464, %v7470
      %v7483 = vshrl.u32 920167782, %v7471
      %v7484 = vor.u32 %v7482, %v7483
      %v7485 = vshll.u32 920167782, %v7470
      %v7486 = vshrl.u32 1326507024, %v7471
      %v7487 = vor.u32 %v7485, %v7486
      %vm7488 = vcmp.lt.s32.totalorder %v7469, 1
      %vm7489 = vcmp.lt.s32.totalorder %v7469, 2
      %vm7490 = vcmp.lt.s32.totalorder %v7469, 3
      %vm7491 = vcmp.lt.s32.totalorder %v7469, 4
      %v7492 = vsel %vm7488, %v7472, %v7475
      %v7493 = vsel %vm7491, %v7481, 2102212464
      %v7494 = vsel %vm7490, %v7478, %v7493
      %v7495 = vsel %vm7489, %v7492, %v7494
      %v7496 = vsel %vm7488, %v7475, %v7478
      %v7497 = vsel %vm7491, %v7484, 920167782
      %v7498 = vsel %vm7490, %v7481, %v7497
      %v7499 = vsel %vm7489, %v7496, %v7498
      %v7500 = vsel %vm7488, %v7478, %v7481
      %v7501 = vsel %vm7491, %v7487, 1326507024
      %v7502 = vsel %vm7490, %v7484, %v7501
      %v7503 = vsel %vm7489, %v7500, %v7502
      %v7504 = vshll.u32 %v7464, 8
      %v7505 = vmul.u32.u64.compose %v7504, %v7503
      %v7506 = vextract.low.u32 %v7505
      %v7507 = vextract.high.u32 %v7505
      %v7508 = vmul.u32.u64.compose %v7504, %v7499
      %v7509 = vextract.low.u32 %v7508
      %v7510 = vextract.high.u32 %v7508
      %v7511 = vmul.u32 %v7504, %v7495
      %v7512 = vadd.s32 %v7507, %v7509
      %vm7513 = vc.u32 %v7507, %v7509
      %v7514 = vadd.s32 %v7510, 1
      %v7515 = vsel %vm7513, %v7514, %v7510
      %v7516 = vadd.s32 %v7511, %v7515
      %v7517 = vadd.s32 %v7516, 536870912
      %v7518 = vshrl.u32 %v7517, 30
      %v7519 = vshll.u32 %v7518, 30
      %v7520 = vsub.s32 %v7516, %v7519
      %vm7521 = vcmp.lt.s32.totalorder %v7520, 0
      %v7522 = vsub.s32 0, %v7520
      %v7523 = vsel %vm7521, %v7522, %v7520
      %v7524 = vclz %v7523
      %v7525 = vsub.s32 %v7524, 2
      %vm7526 = vcmp.gt.s32.totalorder 0, %v7525
      %v7527 = vsel %vm7526, 0, %v7525
      %v7528 = vsub.s32 32, %v7527
      %v7529 = vshll.u32 %v7520, %v7527
      %v7530 = vshrl.u32 %v7512, %v7528
      %v7531 = vor.u32 %v7529, %v7530
      %v7532 = vsub.s32 4294967266, %v7527
      %v7533 = vadd.s32 %v7532, 127
      %v7534 = vshll.u32 %v7533, 23
      %v7535 = vor.u32 4788187, %v7534
      %v7536 = vand.u32 2147483647, %v7535
      %v7538 = vcvt.s32.f32 %v7531
      %v7539 = vmul.f32 %v7538, %v7536
      %v7540 = vxor.u32 %v7539, 2147483648
      %v7541 = vsel %vm7458, %v7540, %v7539
      %v7542 = vsub.s32 4, %v7518
      %v7543 = vsel %vm7458, %v7542, %v7518
      %v7544 = vsel %vm7457, %v5269, %v7541
      %v7545 = vsel %vm7457, 0, %v7543
      %v7546 = vcosq.f32.pop %v7544
      %v7547 = vsinq.f32.pop %v7544
      %vm7548 = vweird.f32 %v5269
      %v7549 = vadd.s32 %v7545, 3
      %v7550 = vand.u32 %v7549, 3
      %vm7551 = vcmp.lt.s32.totalorder %v7550, 2
      %vm7552 = vcmp.eq.s32.totalorder %v7550, 0
      %v7553 = vxor.u32 %v7547, 2147483648
      %v7554 = vsel %vm7552, %v7546, %v7553
      %vm7555 = vcmp.eq.s32.totalorder %v7550, 2
      %v7556 = vxor.u32 %v7546, 2147483648
      %v7557 = vsel %vm7555, %v7556, %v7547
      %v7558 = vsel %vm7551, %v7554, %v7557
      %v7559 = vsel %vm7548, nan, %v7558
      %v7560 = vand.u32 2147483647, %v5270
      %vm7561 = vcmp.le.f32.partialorder %v7560, 0.7853982
      %vm7562 = vcmp.lt.s32.totalorder %v5270, 0
      %v7563 = vand.u32 %v5270, 2139095040
      %v7564 = vshrl.u32 %v7563, 23
      %v7565 = vsub.s32 %v7564, 127
      %v7566 = vand.u32 2147483647, %v5270
      %v7567 = vand.u32 %v7566, 8388607
      %v7568 = vor.u32 %v7567, 8388608
      %v7569 = vsub.s32 0, %v7568
      %v7570 = vadd.s32 %v7565, 1
      %vm7571 = vcmp.gt.s32.totalorder %v7570, 0
      %v7572 = vsel %vm7571, %v7570, 0
      %v7573 = vshrl.u32 %v7572, 5
      %v7574 = vand.u32 %v7572, 31
      %v7575 = vsub.s32 32, %v7574
      %v7576 = vshrl.u32 683565275, %v7575
      %v7577 = vshll.u32 683565275, %v7574
      %v7578 = vshrl.u32 2475754826, %v7575
      %v7579 = vor.u32 %v7577, %v7578
      %v7580 = vshll.u32 2475754826, %v7574
      %v7581 = vshrl.u32 2131351028, %v7575
      %v7582 = vor.u32 %v7580, %v7581
      %v7583 = vshll.u32 2131351028, %v7574
      %v7584 = vshrl.u32 2102212464, %v7575
      %v7585 = vor.u32 %v7583, %v7584
      %v7586 = vshll.u32 2102212464, %v7574
      %v7587 = vshrl.u32 920167782, %v7575
      %v7588 = vor.u32 %v7586, %v7587
      %v7589 = vshll.u32 920167782, %v7574
      %v7590 = vshrl.u32 1326507024, %v7575
      %v7591 = vor.u32 %v7589, %v7590
      %vm7592 = vcmp.lt.s32.totalorder %v7573, 1
      %vm7593 = vcmp.lt.s32.totalorder %v7573, 2
      %vm7594 = vcmp.lt.s32.totalorder %v7573, 3
      %vm7595 = vcmp.lt.s32.totalorder %v7573, 4
      %v7596 = vsel %vm7592, %v7576, %v7579
      %v7597 = vsel %vm7595, %v7585, 2102212464
      %v7598 = vsel %vm7594, %v7582, %v7597
      %v7599 = vsel %vm7593, %v7596, %v7598
      %v7600 = vsel %vm7592, %v7579, %v7582
      %v7601 = vsel %vm7595, %v7588, 920167782
      %v7602 = vsel %vm7594, %v7585, %v7601
      %v7603 = vsel %vm7593, %v7600, %v7602
      %v7604 = vsel %vm7592, %v7582, %v7585
      %v7605 = vsel %vm7595, %v7591, 1326507024
      %v7606 = vsel %vm7594, %v7588, %v7605
      %v7607 = vsel %vm7593, %v7604, %v7606
      %v7608 = vshll.u32 %v7568, 8
      %v7609 = vmul.u32.u64.compose %v7608, %v7607
      %v7610 = vextract.low.u32 %v7609
      %v7611 = vextract.high.u32 %v7609
      %v7612 = vmul.u32.u64.compose %v7608, %v7603
      %v7613 = vextract.low.u32 %v7612
      %v7614 = vextract.high.u32 %v7612
      %v7615 = vmul.u32 %v7608, %v7599
      %v7616 = vadd.s32 %v7611, %v7613
      %vm7617 = vc.u32 %v7611, %v7613
      %v7618 = vadd.s32 %v7614, 1
      %v7619 = vsel %vm7617, %v7618, %v7614
      %v7620 = vadd.s32 %v7615, %v7619
      %v7621 = vadd.s32 %v7620, 536870912
      %v7622 = vshrl.u32 %v7621, 30
      %v7623 = vshll.u32 %v7622, 30
      %v7624 = vsub.s32 %v7620, %v7623
      %vm7625 = vcmp.lt.s32.totalorder %v7624, 0
      %v7626 = vsub.s32 0, %v7624
      %v7627 = vsel %vm7625, %v7626, %v7624
      %v7628 = vclz %v7627
      %v7629 = vsub.s32 %v7628, 2
      %vm7630 = vcmp.gt.s32.totalorder 0, %v7629
      %v7631 = vsel %vm7630, 0, %v7629
      %v7632 = vsub.s32 32, %v7631
      %v7633 = vshll.u32 %v7624, %v7631
      %v7634 = vshrl.u32 %v7616, %v7632
      %v7635 = vor.u32 %v7633, %v7634
      %v7636 = vsub.s32 4294967266, %v7631
      %v7637 = vadd.s32 %v7636, 127
      %v7638 = vshll.u32 %v7637, 23
      %v7639 = vor.u32 4788187, %v7638
      %v7640 = vand.u32 2147483647, %v7639
      %v7642 = vcvt.s32.f32 %v7635
      %v7643 = vmul.f32 %v7642, %v7640
      %v7644 = vxor.u32 %v7643, 2147483648
      %v7645 = vsel %vm7562, %v7644, %v7643
      %v7646 = vsub.s32 4, %v7622
      %v7647 = vsel %vm7562, %v7646, %v7622
      %v7648 = vsel %vm7561, %v5270, %v7645
      %v7649 = vsel %vm7561, 0, %v7647
      %v7650 = vcosq.f32.pop %v7648
      %v7651 = vsinq.f32.pop %v7648
      %vm7652 = vweird.f32 %v5270
      %v7653 = vadd.s32 %v7649, 3
      %v7654 = vand.u32 %v7653, 3
      %vm7655 = vcmp.lt.s32.totalorder %v7654, 2
      %vm7656 = vcmp.eq.s32.totalorder %v7654, 0
      %v7657 = vxor.u32 %v7651, 2147483648
      %v7658 = vsel %vm7656, %v7650, %v7657
      %vm7659 = vcmp.eq.s32.totalorder %v7654, 2
      %v7660 = vxor.u32 %v7650, 2147483648
      %v7661 = vsel %vm7659, %v7660, %v7651
      %v7662 = vsel %vm7655, %v7658, %v7661
      %v7663 = vsel %vm7652, nan, %v7662
      %v7664 = vand.u32 2147483647, %v5271
      %vm7665 = vcmp.le.f32.partialorder %v7664, 0.7853982
      %vm7666 = vcmp.lt.s32.totalorder %v5271, 0
      %v7667 = vand.u32 %v5271, 2139095040
      %v7668 = vshrl.u32 %v7667, 23
      %v7669 = vsub.s32 %v7668, 127
      %v7670 = vand.u32 2147483647, %v5271
      %v7671 = vand.u32 %v7670, 8388607
      %v7672 = vor.u32 %v7671, 8388608
      %v7673 = vsub.s32 0, %v7672
      %v7674 = vadd.s32 %v7669, 1
      %vm7675 = vcmp.gt.s32.totalorder %v7674, 0
      %v7676 = vsel %vm7675, %v7674, 0
      %v7677 = vshrl.u32 %v7676, 5
      %v7678 = vand.u32 %v7676, 31
      %v7679 = vsub.s32 32, %v7678
      %v7680 = vshrl.u32 683565275, %v7679
      %v7681 = vshll.u32 683565275, %v7678
      %v7682 = vshrl.u32 2475754826, %v7679
      %v7683 = vor.u32 %v7681, %v7682
      %v7684 = vshll.u32 2475754826, %v7678
      %v7685 = vshrl.u32 2131351028, %v7679
      %v7686 = vor.u32 %v7684, %v7685
      %v7687 = vshll.u32 2131351028, %v7678
      %v7688 = vshrl.u32 2102212464, %v7679
      %v7689 = vor.u32 %v7687, %v7688
      %v7690 = vshll.u32 2102212464, %v7678
      %v7691 = vshrl.u32 920167782, %v7679
      %v7692 = vor.u32 %v7690, %v7691
      %v7693 = vshll.u32 920167782, %v7678
      %v7694 = vshrl.u32 1326507024, %v7679
      %v7695 = vor.u32 %v7693, %v7694
      %vm7696 = vcmp.lt.s32.totalorder %v7677, 1
      %vm7697 = vcmp.lt.s32.totalorder %v7677, 2
      %vm7698 = vcmp.lt.s32.totalorder %v7677, 3
      %vm7699 = vcmp.lt.s32.totalorder %v7677, 4
      %v7700 = vsel %vm7696, %v7680, %v7683
      %v7701 = vsel %vm7699, %v7689, 2102212464
      %v7702 = vsel %vm7698, %v7686, %v7701
      %v7703 = vsel %vm7697, %v7700, %v7702
      %v7704 = vsel %vm7696, %v7683, %v7686
      %v7705 = vsel %vm7699, %v7692, 920167782
      %v7706 = vsel %vm7698, %v7689, %v7705
      %v7707 = vsel %vm7697, %v7704, %v7706
      %v7708 = vsel %vm7696, %v7686, %v7689
      %v7709 = vsel %vm7699, %v7695, 1326507024
      %v7710 = vsel %vm7698, %v7692, %v7709
      %v7711 = vsel %vm7697, %v7708, %v7710
      %v7712 = vshll.u32 %v7672, 8
      %v7713 = vmul.u32.u64.compose %v7712, %v7711
      %v7714 = vextract.low.u32 %v7713
      %v7715 = vextract.high.u32 %v7713
      %v7716 = vmul.u32.u64.compose %v7712, %v7707
      %v7717 = vextract.low.u32 %v7716
      %v7718 = vextract.high.u32 %v7716
      %v7719 = vmul.u32 %v7712, %v7703
      %v7720 = vadd.s32 %v7715, %v7717
      %vm7721 = vc.u32 %v7715, %v7717
      %v7722 = vadd.s32 %v7718, 1
      %v7723 = vsel %vm7721, %v7722, %v7718
      %v7724 = vadd.s32 %v7719, %v7723
      %v7725 = vadd.s32 %v7724, 536870912
      %v7726 = vshrl.u32 %v7725, 30
      %v7727 = vshll.u32 %v7726, 30
      %v7728 = vsub.s32 %v7724, %v7727
      %vm7729 = vcmp.lt.s32.totalorder %v7728, 0
      %v7730 = vsub.s32 0, %v7728
      %v7731 = vsel %vm7729, %v7730, %v7728
      %v7732 = vclz %v7731
      %v7733 = vsub.s32 %v7732, 2
      %vm7734 = vcmp.gt.s32.totalorder 0, %v7733
      %v7735 = vsel %vm7734, 0, %v7733
      %v7736 = vsub.s32 32, %v7735
      %v7737 = vshll.u32 %v7728, %v7735
      %v7738 = vshrl.u32 %v7720, %v7736
      %v7739 = vor.u32 %v7737, %v7738
      %v7740 = vsub.s32 4294967266, %v7735
      %v7741 = vadd.s32 %v7740, 127
      %v7742 = vshll.u32 %v7741, 23
      %v7743 = vor.u32 4788187, %v7742
      %v7744 = vand.u32 2147483647, %v7743
      %v7746 = vcvt.s32.f32 %v7739
      %v7747 = vmul.f32 %v7746, %v7744
      %v7748 = vxor.u32 %v7747, 2147483648
      %v7749 = vsel %vm7666, %v7748, %v7747
      %v7750 = vsub.s32 4, %v7726
      %v7751 = vsel %vm7666, %v7750, %v7726
      %v7752 = vsel %vm7665, %v5271, %v7749
      %v7753 = vsel %vm7665, 0, %v7751
      %v7754 = vcosq.f32.pop %v7752
      %v7755 = vsinq.f32.pop %v7752
      %vm7756 = vweird.f32 %v5271
      %v7757 = vadd.s32 %v7753, 3
      %v7758 = vand.u32 %v7757, 3
      %vm7759 = vcmp.lt.s32.totalorder %v7758, 2
      %vm7760 = vcmp.eq.s32.totalorder %v7758, 0
      %v7761 = vxor.u32 %v7755, 2147483648
      %v7762 = vsel %vm7760, %v7754, %v7761
      %vm7763 = vcmp.eq.s32.totalorder %v7758, 2
      %v7764 = vxor.u32 %v7754, 2147483648
      %v7765 = vsel %vm7763, %v7764, %v7755
      %v7766 = vsel %vm7759, %v7762, %v7765
      %v7767 = vsel %vm7756, nan, %v7766
      %v7768 = vand.u32 2147483647, %v5272
      %vm7769 = vcmp.le.f32.partialorder %v7768, 0.7853982
      %vm7770 = vcmp.lt.s32.totalorder %v5272, 0
      %v7771 = vand.u32 %v5272, 2139095040
      %v7772 = vshrl.u32 %v7771, 23
      %v7773 = vsub.s32 %v7772, 127
      %v7774 = vand.u32 2147483647, %v5272
      %v7775 = vand.u32 %v7774, 8388607
      %v7776 = vor.u32 %v7775, 8388608
      %v7777 = vsub.s32 0, %v7776
      %v7778 = vadd.s32 %v7773, 1
      %vm7779 = vcmp.gt.s32.totalorder %v7778, 0
      %v7780 = vsel %vm7779, %v7778, 0
      %v7781 = vshrl.u32 %v7780, 5
      %v7782 = vand.u32 %v7780, 31
      %v7783 = vsub.s32 32, %v7782
      %v7784 = vshrl.u32 683565275, %v7783
      %v7785 = vshll.u32 683565275, %v7782
      %v7786 = vshrl.u32 2475754826, %v7783
      %v7787 = vor.u32 %v7785, %v7786
      %v7788 = vshll.u32 2475754826, %v7782
      %v7789 = vshrl.u32 2131351028, %v7783
      %v7790 = vor.u32 %v7788, %v7789
      %v7791 = vshll.u32 2131351028, %v7782
      %v7792 = vshrl.u32 2102212464, %v7783
      %v7793 = vor.u32 %v7791, %v7792
      %v7794 = vshll.u32 2102212464, %v7782
      %v7795 = vshrl.u32 920167782, %v7783
      %v7796 = vor.u32 %v7794, %v7795
      %v7797 = vshll.u32 920167782, %v7782
      %v7798 = vshrl.u32 1326507024, %v7783
      %v7799 = vor.u32 %v7797, %v7798
      %vm7800 = vcmp.lt.s32.totalorder %v7781, 1
      %vm7801 = vcmp.lt.s32.totalorder %v7781, 2
      %vm7802 = vcmp.lt.s32.totalorder %v7781, 3
      %vm7803 = vcmp.lt.s32.totalorder %v7781, 4
      %v7804 = vsel %vm7800, %v7784, %v7787
      %v7805 = vsel %vm7803, %v7793, 2102212464
      %v7806 = vsel %vm7802, %v7790, %v7805
      %v7807 = vsel %vm7801, %v7804, %v7806
      %v7808 = vsel %vm7800, %v7787, %v7790
      %v7809 = vsel %vm7803, %v7796, 920167782
      %v7810 = vsel %vm7802, %v7793, %v7809
      %v7811 = vsel %vm7801, %v7808, %v7810
      %v7812 = vsel %vm7800, %v7790, %v7793
      %v7813 = vsel %vm7803, %v7799, 1326507024
      %v7814 = vsel %vm7802, %v7796, %v7813
      %v7815 = vsel %vm7801, %v7812, %v7814
      %v7816 = vshll.u32 %v7776, 8
      %v7817 = vmul.u32.u64.compose %v7816, %v7815
      %v7818 = vextract.low.u32 %v7817
      %v7819 = vextract.high.u32 %v7817
      %v7820 = vmul.u32.u64.compose %v7816, %v7811
      %v7821 = vextract.low.u32 %v7820
      %v7822 = vextract.high.u32 %v7820
      %v7823 = vmul.u32 %v7816, %v7807
      %v7824 = vadd.s32 %v7819, %v7821
      %vm7825 = vc.u32 %v7819, %v7821
      %v7826 = vadd.s32 %v7822, 1
      %v7827 = vsel %vm7825, %v7826, %v7822
      %v7828 = vadd.s32 %v7823, %v7827
      %v7829 = vadd.s32 %v7828, 536870912
      %v7830 = vshrl.u32 %v7829, 30
      %v7831 = vshll.u32 %v7830, 30
      %v7832 = vsub.s32 %v7828, %v7831
      %vm7833 = vcmp.lt.s32.totalorder %v7832, 0
      %v7834 = vsub.s32 0, %v7832
      %v7835 = vsel %vm7833, %v7834, %v7832
      %v7836 = vclz %v7835
      %v7837 = vsub.s32 %v7836, 2
      %vm7838 = vcmp.gt.s32.totalorder 0, %v7837
      %v7839 = vsel %vm7838, 0, %v7837
      %v7840 = vsub.s32 32, %v7839
      %v7841 = vshll.u32 %v7832, %v7839
      %v7842 = vshrl.u32 %v7824, %v7840
      %v7843 = vor.u32 %v7841, %v7842
      %v7844 = vsub.s32 4294967266, %v7839
      %v7845 = vadd.s32 %v7844, 127
      %v7846 = vshll.u32 %v7845, 23
      %v7847 = vor.u32 4788187, %v7846
      %v7848 = vand.u32 2147483647, %v7847
      %v7850 = vcvt.s32.f32 %v7843
      %v7851 = vmul.f32 %v7850, %v7848
      %v7852 = vxor.u32 %v7851, 2147483648
      %v7853 = vsel %vm7770, %v7852, %v7851
      %v7854 = vsub.s32 4, %v7830
      %v7855 = vsel %vm7770, %v7854, %v7830
      %v7856 = vsel %vm7769, %v5272, %v7853
      %v7857 = vsel %vm7769, 0, %v7855
      %v7858 = vcosq.f32.pop %v7856
      %v7859 = vsinq.f32.pop %v7856
      %vm7860 = vweird.f32 %v5272
      %v7861 = vadd.s32 %v7857, 3
      %v7862 = vand.u32 %v7861, 3
      %vm7863 = vcmp.lt.s32.totalorder %v7862, 2
      %vm7864 = vcmp.eq.s32.totalorder %v7862, 0
      %v7865 = vxor.u32 %v7859, 2147483648
      %v7866 = vsel %vm7864, %v7858, %v7865
      %vm7867 = vcmp.eq.s32.totalorder %v7862, 2
      %v7868 = vxor.u32 %v7858, 2147483648
      %v7869 = vsel %vm7867, %v7868, %v7859
      %v7870 = vsel %vm7863, %v7866, %v7869
      %v7871 = vsel %vm7860, nan, %v7870
      %v7872 = vand.u32 2147483647, %v5273
      %vm7873 = vcmp.le.f32.partialorder %v7872, 0.7853982
      %vm7874 = vcmp.lt.s32.totalorder %v5273, 0
      %v7875 = vand.u32 %v5273, 2139095040
      %v7876 = vshrl.u32 %v7875, 23
      %v7877 = vsub.s32 %v7876, 127
      %v7878 = vand.u32 2147483647, %v5273
      %v7879 = vand.u32 %v7878, 8388607
      %v7880 = vor.u32 %v7879, 8388608
      %v7881 = vsub.s32 0, %v7880
      %v7882 = vadd.s32 %v7877, 1
      %vm7883 = vcmp.gt.s32.totalorder %v7882, 0
      %v7884 = vsel %vm7883, %v7882, 0
      %v7885 = vshrl.u32 %v7884, 5
      %v7886 = vand.u32 %v7884, 31
      %v7887 = vsub.s32 32, %v7886
      %v7888 = vshrl.u32 683565275, %v7887
      %v7889 = vshll.u32 683565275, %v7886
      %v7890 = vshrl.u32 2475754826, %v7887
      %v7891 = vor.u32 %v7889, %v7890
      %v7892 = vshll.u32 2475754826, %v7886
      %v7893 = vshrl.u32 2131351028, %v7887
      %v7894 = vor.u32 %v7892, %v7893
      %v7895 = vshll.u32 2131351028, %v7886
      %v7896 = vshrl.u32 2102212464, %v7887
      %v7897 = vor.u32 %v7895, %v7896
      %v7898 = vshll.u32 2102212464, %v7886
      %v7899 = vshrl.u32 920167782, %v7887
      %v7900 = vor.u32 %v7898, %v7899
      %v7901 = vshll.u32 920167782, %v7886
      %v7902 = vshrl.u32 1326507024, %v7887
      %v7903 = vor.u32 %v7901, %v7902
      %vm7904 = vcmp.lt.s32.totalorder %v7885, 1
      %vm7905 = vcmp.lt.s32.totalorder %v7885, 2
      %vm7906 = vcmp.lt.s32.totalorder %v7885, 3
      %vm7907 = vcmp.lt.s32.totalorder %v7885, 4
      %v7908 = vsel %vm7904, %v7888, %v7891
      %v7909 = vsel %vm7907, %v7897, 2102212464
      %v7910 = vsel %vm7906, %v7894, %v7909
      %v7911 = vsel %vm7905, %v7908, %v7910
      %v7912 = vsel %vm7904, %v7891, %v7894
      %v7913 = vsel %vm7907, %v7900, 920167782
      %v7914 = vsel %vm7906, %v7897, %v7913
      %v7915 = vsel %vm7905, %v7912, %v7914
      %v7916 = vsel %vm7904, %v7894, %v7897
      %v7917 = vsel %vm7907, %v7903, 1326507024
      %v7918 = vsel %vm7906, %v7900, %v7917
      %v7919 = vsel %vm7905, %v7916, %v7918
      %v7920 = vshll.u32 %v7880, 8
      %v7921 = vmul.u32.u64.compose %v7920, %v7919
      %v7922 = vextract.low.u32 %v7921
      %v7923 = vextract.high.u32 %v7921
      %v7924 = vmul.u32.u64.compose %v7920, %v7915
      %v7925 = vextract.low.u32 %v7924
      %v7926 = vextract.high.u32 %v7924
      %v7927 = vmul.u32 %v7920, %v7911
      %v7928 = vadd.s32 %v7923, %v7925
      %vm7929 = vc.u32 %v7923, %v7925
      %v7930 = vadd.s32 %v7926, 1
      %v7931 = vsel %vm7929, %v7930, %v7926
      %v7932 = vadd.s32 %v7927, %v7931
      %v7933 = vadd.s32 %v7932, 536870912
      %v7934 = vshrl.u32 %v7933, 30
      %v7935 = vshll.u32 %v7934, 30
      %v7936 = vsub.s32 %v7932, %v7935
      %vm7937 = vcmp.lt.s32.totalorder %v7936, 0
      %v7938 = vsub.s32 0, %v7936
      %v7939 = vsel %vm7937, %v7938, %v7936
      %v7940 = vclz %v7939
      %v7941 = vsub.s32 %v7940, 2
      %vm7942 = vcmp.gt.s32.totalorder 0, %v7941
      %v7943 = vsel %vm7942, 0, %v7941
      %v7944 = vsub.s32 32, %v7943
      %v7945 = vshll.u32 %v7936, %v7943
      %v7946 = vshrl.u32 %v7928, %v7944
      %v7947 = vor.u32 %v7945, %v7946
      %v7948 = vsub.s32 4294967266, %v7943
      %v7949 = vadd.s32 %v7948, 127
      %v7950 = vshll.u32 %v7949, 23
      %v7951 = vor.u32 4788187, %v7950
      %v7952 = vand.u32 2147483647, %v7951
      %v7954 = vcvt.s32.f32 %v7947
      %v7955 = vmul.f32 %v7954, %v7952
      %v7956 = vxor.u32 %v7955, 2147483648
      %v7957 = vsel %vm7874, %v7956, %v7955
      %v7958 = vsub.s32 4, %v7934
      %v7959 = vsel %vm7874, %v7958, %v7934
      %v7960 = vsel %vm7873, %v5273, %v7957
      %v7961 = vsel %vm7873, 0, %v7959
      %v7962 = vcosq.f32.pop %v7960
      %v7963 = vsinq.f32.pop %v7960
      %vm7964 = vweird.f32 %v5273
      %v7965 = vadd.s32 %v7961, 3
      %v7966 = vand.u32 %v7965, 3
      %vm7967 = vcmp.lt.s32.totalorder %v7966, 2
      %vm7968 = vcmp.eq.s32.totalorder %v7966, 0
      %v7969 = vxor.u32 %v7963, 2147483648
      %v7970 = vsel %vm7968, %v7962, %v7969
      %vm7971 = vcmp.eq.s32.totalorder %v7966, 2
      %v7972 = vxor.u32 %v7962, 2147483648
      %v7973 = vsel %vm7971, %v7972, %v7963
      %v7974 = vsel %vm7967, %v7970, %v7973
      %v7975 = vsel %vm7964, nan, %v7974
      %v7976 = vand.u32 2147483647, %v5274
      %vm7977 = vcmp.le.f32.partialorder %v7976, 0.7853982
      %vm7978 = vcmp.lt.s32.totalorder %v5274, 0
      %v7979 = vand.u32 %v5274, 2139095040
      %v7980 = vshrl.u32 %v7979, 23
      %v7981 = vsub.s32 %v7980, 127
      %v7982 = vand.u32 2147483647, %v5274
      %v7983 = vand.u32 %v7982, 8388607
      %v7984 = vor.u32 %v7983, 8388608
      %v7985 = vsub.s32 0, %v7984
      %v7986 = vadd.s32 %v7981, 1
      %vm7987 = vcmp.gt.s32.totalorder %v7986, 0
      %v7988 = vsel %vm7987, %v7986, 0
      %v7989 = vshrl.u32 %v7988, 5
      %v7990 = vand.u32 %v7988, 31
      %v7991 = vsub.s32 32, %v7990
      %v7992 = vshrl.u32 683565275, %v7991
      %v7993 = vshll.u32 683565275, %v7990
      %v7994 = vshrl.u32 2475754826, %v7991
      %v7995 = vor.u32 %v7993, %v7994
      %v7996 = vshll.u32 2475754826, %v7990
      %v7997 = vshrl.u32 2131351028, %v7991
      %v7998 = vor.u32 %v7996, %v7997
      %v7999 = vshll.u32 2131351028, %v7990
      %v8000 = vshrl.u32 2102212464, %v7991
      %v8001 = vor.u32 %v7999, %v8000
      %v8002 = vshll.u32 2102212464, %v7990
      %v8003 = vshrl.u32 920167782, %v7991
      %v8004 = vor.u32 %v8002, %v8003
      %v8005 = vshll.u32 920167782, %v7990
      %v8006 = vshrl.u32 1326507024, %v7991
      %v8007 = vor.u32 %v8005, %v8006
      %vm8008 = vcmp.lt.s32.totalorder %v7989, 1
      %vm8009 = vcmp.lt.s32.totalorder %v7989, 2
      %vm8010 = vcmp.lt.s32.totalorder %v7989, 3
      %vm8011 = vcmp.lt.s32.totalorder %v7989, 4
      %v8012 = vsel %vm8008, %v7992, %v7995
      %v8013 = vsel %vm8011, %v8001, 2102212464
      %v8014 = vsel %vm8010, %v7998, %v8013
      %v8015 = vsel %vm8009, %v8012, %v8014
      %v8016 = vsel %vm8008, %v7995, %v7998
      %v8017 = vsel %vm8011, %v8004, 920167782
      %v8018 = vsel %vm8010, %v8001, %v8017
      %v8019 = vsel %vm8009, %v8016, %v8018
      %v8020 = vsel %vm8008, %v7998, %v8001
      %v8021 = vsel %vm8011, %v8007, 1326507024
      %v8022 = vsel %vm8010, %v8004, %v8021
      %v8023 = vsel %vm8009, %v8020, %v8022
      %v8024 = vshll.u32 %v7984, 8
      %v8025 = vmul.u32.u64.compose %v8024, %v8023
      %v8026 = vextract.low.u32 %v8025
      %v8027 = vextract.high.u32 %v8025
      %v8028 = vmul.u32.u64.compose %v8024, %v8019
      %v8029 = vextract.low.u32 %v8028
      %v8030 = vextract.high.u32 %v8028
      %v8031 = vmul.u32 %v8024, %v8015
      %v8032 = vadd.s32 %v8027, %v8029
      %vm8033 = vc.u32 %v8027, %v8029
      %v8034 = vadd.s32 %v8030, 1
      %v8035 = vsel %vm8033, %v8034, %v8030
      %v8036 = vadd.s32 %v8031, %v8035
      %v8037 = vadd.s32 %v8036, 536870912
      %v8038 = vshrl.u32 %v8037, 30
      %v8039 = vshll.u32 %v8038, 30
      %v8040 = vsub.s32 %v8036, %v8039
      %vm8041 = vcmp.lt.s32.totalorder %v8040, 0
      %v8042 = vsub.s32 0, %v8040
      %v8043 = vsel %vm8041, %v8042, %v8040
      %v8044 = vclz %v8043
      %v8045 = vsub.s32 %v8044, 2
      %vm8046 = vcmp.gt.s32.totalorder 0, %v8045
      %v8047 = vsel %vm8046, 0, %v8045
      %v8048 = vsub.s32 32, %v8047
      %v8049 = vshll.u32 %v8040, %v8047
      %v8050 = vshrl.u32 %v8032, %v8048
      %v8051 = vor.u32 %v8049, %v8050
      %v8052 = vsub.s32 4294967266, %v8047
      %v8053 = vadd.s32 %v8052, 127
      %v8054 = vshll.u32 %v8053, 23
      %v8055 = vor.u32 4788187, %v8054
      %v8056 = vand.u32 2147483647, %v8055
      %v8058 = vcvt.s32.f32 %v8051
      %v8059 = vmul.f32 %v8058, %v8056
      %v8060 = vxor.u32 %v8059, 2147483648
      %v8061 = vsel %vm7978, %v8060, %v8059
      %v8062 = vsub.s32 4, %v8038
      %v8063 = vsel %vm7978, %v8062, %v8038
      %v8064 = vsel %vm7977, %v5274, %v8061
      %v8065 = vsel %vm7977, 0, %v8063
      %v8066 = vcosq.f32.pop %v8064
      %v8067 = vsinq.f32.pop %v8064
      %vm8068 = vweird.f32 %v5274
      %v8069 = vadd.s32 %v8065, 3
      %v8070 = vand.u32 %v8069, 3
      %vm8071 = vcmp.lt.s32.totalorder %v8070, 2
      %vm8072 = vcmp.eq.s32.totalorder %v8070, 0
      %v8073 = vxor.u32 %v8067, 2147483648
      %v8074 = vsel %vm8072, %v8066, %v8073
      %vm8075 = vcmp.eq.s32.totalorder %v8070, 2
      %v8076 = vxor.u32 %v8066, 2147483648
      %v8077 = vsel %vm8075, %v8076, %v8067
      %v8078 = vsel %vm8071, %v8074, %v8077
      %v8079 = vsel %vm8068, nan, %v8078
      %v8080 = vand.u32 2147483647, %v5275
      %vm8081 = vcmp.le.f32.partialorder %v8080, 0.7853982
      %vm8082 = vcmp.lt.s32.totalorder %v5275, 0
      %v8083 = vand.u32 %v5275, 2139095040
      %v8084 = vshrl.u32 %v8083, 23
      %v8085 = vsub.s32 %v8084, 127
      %v8086 = vand.u32 2147483647, %v5275
      %v8087 = vand.u32 %v8086, 8388607
      %v8088 = vor.u32 %v8087, 8388608
      %v8089 = vsub.s32 0, %v8088
      %v8090 = vadd.s32 %v8085, 1
      %vm8091 = vcmp.gt.s32.totalorder %v8090, 0
      %v8092 = vsel %vm8091, %v8090, 0
      %v8093 = vshrl.u32 %v8092, 5
      %v8094 = vand.u32 %v8092, 31
      %v8095 = vsub.s32 32, %v8094
      %v8096 = vshrl.u32 683565275, %v8095
      %v8097 = vshll.u32 683565275, %v8094
      %v8098 = vshrl.u32 2475754826, %v8095
      %v8099 = vor.u32 %v8097, %v8098
      %v8100 = vshll.u32 2475754826, %v8094
      %v8101 = vshrl.u32 2131351028, %v8095
      %v8102 = vor.u32 %v8100, %v8101
      %v8103 = vshll.u32 2131351028, %v8094
      %v8104 = vshrl.u32 2102212464, %v8095
      %v8105 = vor.u32 %v8103, %v8104
      %v8106 = vshll.u32 2102212464, %v8094
      %v8107 = vshrl.u32 920167782, %v8095
      %v8108 = vor.u32 %v8106, %v8107
      %v8109 = vshll.u32 920167782, %v8094
      %v8110 = vshrl.u32 1326507024, %v8095
      %v8111 = vor.u32 %v8109, %v8110
      %vm8112 = vcmp.lt.s32.totalorder %v8093, 1
      %vm8113 = vcmp.lt.s32.totalorder %v8093, 2
      %vm8114 = vcmp.lt.s32.totalorder %v8093, 3
      %vm8115 = vcmp.lt.s32.totalorder %v8093, 4
      %v8116 = vsel %vm8112, %v8096, %v8099
      %v8117 = vsel %vm8115, %v8105, 2102212464
      %v8118 = vsel %vm8114, %v8102, %v8117
      %v8119 = vsel %vm8113, %v8116, %v8118
      %v8120 = vsel %vm8112, %v8099, %v8102
      %v8121 = vsel %vm8115, %v8108, 920167782
      %v8122 = vsel %vm8114, %v8105, %v8121
      %v8123 = vsel %vm8113, %v8120, %v8122
      %v8124 = vsel %vm8112, %v8102, %v8105
      %v8125 = vsel %vm8115, %v8111, 1326507024
      %v8126 = vsel %vm8114, %v8108, %v8125
      %v8127 = vsel %vm8113, %v8124, %v8126
      %v8128 = vshll.u32 %v8088, 8
      %v8129 = vmul.u32.u64.compose %v8128, %v8127
      %v8130 = vextract.low.u32 %v8129
      %v8131 = vextract.high.u32 %v8129
      %v8132 = vmul.u32.u64.compose %v8128, %v8123
      %v8133 = vextract.low.u32 %v8132
      %v8134 = vextract.high.u32 %v8132
      %v8135 = vmul.u32 %v8128, %v8119
      %v8136 = vadd.s32 %v8131, %v8133
      %vm8137 = vc.u32 %v8131, %v8133
      %v8138 = vadd.s32 %v8134, 1
      %v8139 = vsel %vm8137, %v8138, %v8134
      %v8140 = vadd.s32 %v8135, %v8139
      %v8141 = vadd.s32 %v8140, 536870912
      %v8142 = vshrl.u32 %v8141, 30
      %v8143 = vshll.u32 %v8142, 30
      %v8144 = vsub.s32 %v8140, %v8143
      %vm8145 = vcmp.lt.s32.totalorder %v8144, 0
      %v8146 = vsub.s32 0, %v8144
      %v8147 = vsel %vm8145, %v8146, %v8144
      %v8148 = vclz %v8147
      %v8149 = vsub.s32 %v8148, 2
      %vm8150 = vcmp.gt.s32.totalorder 0, %v8149
      %v8151 = vsel %vm8150, 0, %v8149
      %v8152 = vsub.s32 32, %v8151
      %v8153 = vshll.u32 %v8144, %v8151
      %v8154 = vshrl.u32 %v8136, %v8152
      %v8155 = vor.u32 %v8153, %v8154
      %v8156 = vsub.s32 4294967266, %v8151
      %v8157 = vadd.s32 %v8156, 127
      %v8158 = vshll.u32 %v8157, 23
      %v8159 = vor.u32 4788187, %v8158
      %v8160 = vand.u32 2147483647, %v8159
      %v8162 = vcvt.s32.f32 %v8155
      %v8163 = vmul.f32 %v8162, %v8160
      %v8164 = vxor.u32 %v8163, 2147483648
      %v8165 = vsel %vm8082, %v8164, %v8163
      %v8166 = vsub.s32 4, %v8142
      %v8167 = vsel %vm8082, %v8166, %v8142
      %v8168 = vsel %vm8081, %v5275, %v8165
      %v8169 = vsel %vm8081, 0, %v8167
      %v8170 = vcosq.f32.pop %v8168
      %v8171 = vsinq.f32.pop %v8168
      %vm8172 = vweird.f32 %v5275
      %v8173 = vadd.s32 %v8169, 3
      %v8174 = vand.u32 %v8173, 3
      %vm8175 = vcmp.lt.s32.totalorder %v8174, 2
      %vm8176 = vcmp.eq.s32.totalorder %v8174, 0
      %v8177 = vxor.u32 %v8171, 2147483648
      %v8178 = vsel %vm8176, %v8170, %v8177
      %vm8179 = vcmp.eq.s32.totalorder %v8174, 2
      %v8180 = vxor.u32 %v8170, 2147483648
      %v8181 = vsel %vm8179, %v8180, %v8171
      %v8182 = vsel %vm8175, %v8178, %v8181
      %v8183 = vsel %vm8172, nan, %v8182
      %v8184 = vand.u32 2147483647, %v5276
      %vm8185 = vcmp.le.f32.partialorder %v8184, 0.7853982
      %vm8186 = vcmp.lt.s32.totalorder %v5276, 0
      %v8187 = vand.u32 %v5276, 2139095040
      %v8188 = vshrl.u32 %v8187, 23
      %v8189 = vsub.s32 %v8188, 127
      %v8190 = vand.u32 2147483647, %v5276
      %v8191 = vand.u32 %v8190, 8388607
      %v8192 = vor.u32 %v8191, 8388608
      %v8193 = vsub.s32 0, %v8192
      %v8194 = vadd.s32 %v8189, 1
      %vm8195 = vcmp.gt.s32.totalorder %v8194, 0
      %v8196 = vsel %vm8195, %v8194, 0
      %v8197 = vshrl.u32 %v8196, 5
      %v8198 = vand.u32 %v8196, 31
      %v8199 = vsub.s32 32, %v8198
      %v8200 = vshrl.u32 683565275, %v8199
      %v8201 = vshll.u32 683565275, %v8198
      %v8202 = vshrl.u32 2475754826, %v8199
      %v8203 = vor.u32 %v8201, %v8202
      %v8204 = vshll.u32 2475754826, %v8198
      %v8205 = vshrl.u32 2131351028, %v8199
      %v8206 = vor.u32 %v8204, %v8205
      %v8207 = vshll.u32 2131351028, %v8198
      %v8208 = vshrl.u32 2102212464, %v8199
      %v8209 = vor.u32 %v8207, %v8208
      %v8210 = vshll.u32 2102212464, %v8198
      %v8211 = vshrl.u32 920167782, %v8199
      %v8212 = vor.u32 %v8210, %v8211
      %v8213 = vshll.u32 920167782, %v8198
      %v8214 = vshrl.u32 1326507024, %v8199
      %v8215 = vor.u32 %v8213, %v8214
      %vm8216 = vcmp.lt.s32.totalorder %v8197, 1
      %vm8217 = vcmp.lt.s32.totalorder %v8197, 2
      %vm8218 = vcmp.lt.s32.totalorder %v8197, 3
      %vm8219 = vcmp.lt.s32.totalorder %v8197, 4
      %v8220 = vsel %vm8216, %v8200, %v8203
      %v8221 = vsel %vm8219, %v8209, 2102212464
      %v8222 = vsel %vm8218, %v8206, %v8221
      %v8223 = vsel %vm8217, %v8220, %v8222
      %v8224 = vsel %vm8216, %v8203, %v8206
      %v8225 = vsel %vm8219, %v8212, 920167782
      %v8226 = vsel %vm8218, %v8209, %v8225
      %v8227 = vsel %vm8217, %v8224, %v8226
      %v8228 = vsel %vm8216, %v8206, %v8209
      %v8229 = vsel %vm8219, %v8215, 1326507024
      %v8230 = vsel %vm8218, %v8212, %v8229
      %v8231 = vsel %vm8217, %v8228, %v8230
      %v8232 = vshll.u32 %v8192, 8
      %v8233 = vmul.u32.u64.compose %v8232, %v8231
      %v8234 = vextract.low.u32 %v8233
      %v8235 = vextract.high.u32 %v8233
      %v8236 = vmul.u32.u64.compose %v8232, %v8227
      %v8237 = vextract.low.u32 %v8236
      %v8238 = vextract.high.u32 %v8236
      %v8239 = vmul.u32 %v8232, %v8223
      %v8240 = vadd.s32 %v8235, %v8237
      %vm8241 = vc.u32 %v8235, %v8237
      %v8242 = vadd.s32 %v8238, 1
      %v8243 = vsel %vm8241, %v8242, %v8238
      %v8244 = vadd.s32 %v8239, %v8243
      %v8245 = vadd.s32 %v8244, 536870912
      %v8246 = vshrl.u32 %v8245, 30
      %v8247 = vshll.u32 %v8246, 30
      %v8248 = vsub.s32 %v8244, %v8247
      %vm8249 = vcmp.lt.s32.totalorder %v8248, 0
      %v8250 = vsub.s32 0, %v8248
      %v8251 = vsel %vm8249, %v8250, %v8248
      %v8252 = vclz %v8251
      %v8253 = vsub.s32 %v8252, 2
      %vm8254 = vcmp.gt.s32.totalorder 0, %v8253
      %v8255 = vsel %vm8254, 0, %v8253
      %v8256 = vsub.s32 32, %v8255
      %v8257 = vshll.u32 %v8248, %v8255
      %v8258 = vshrl.u32 %v8240, %v8256
      %v8259 = vor.u32 %v8257, %v8258
      %v8260 = vsub.s32 4294967266, %v8255
      %v8261 = vadd.s32 %v8260, 127
      %v8262 = vshll.u32 %v8261, 23
      %v8263 = vor.u32 4788187, %v8262
      %v8264 = vand.u32 2147483647, %v8263
      %v8266 = vcvt.s32.f32 %v8259
      %v8267 = vmul.f32 %v8266, %v8264
      %v8268 = vxor.u32 %v8267, 2147483648
      %v8269 = vsel %vm8186, %v8268, %v8267
      %v8270 = vsub.s32 4, %v8246
      %v8271 = vsel %vm8186, %v8270, %v8246
      %v8272 = vsel %vm8185, %v5276, %v8269
      %v8273 = vsel %vm8185, 0, %v8271
      %v8274 = vcosq.f32.pop %v8272
      %v8275 = vsinq.f32.pop %v8272
      %vm8276 = vweird.f32 %v5276
      %v8277 = vadd.s32 %v8273, 3
      %v8278 = vand.u32 %v8277, 3
      %vm8279 = vcmp.lt.s32.totalorder %v8278, 2
      %vm8280 = vcmp.eq.s32.totalorder %v8278, 0
      %v8281 = vxor.u32 %v8275, 2147483648
      %v8282 = vsel %vm8280, %v8274, %v8281
      %vm8283 = vcmp.eq.s32.totalorder %v8278, 2
      %v8284 = vxor.u32 %v8274, 2147483648
      %v8285 = vsel %vm8283, %v8284, %v8275
      %v8286 = vsel %vm8279, %v8282, %v8285
      %v8287 = vsel %vm8276, nan, %v8286
      %v8288 = vand.u32 2147483647, %v5277
      %vm8289 = vcmp.le.f32.partialorder %v8288, 0.7853982
      %vm8290 = vcmp.lt.s32.totalorder %v5277, 0
      %v8291 = vand.u32 %v5277, 2139095040
      %v8292 = vshrl.u32 %v8291, 23
      %v8293 = vsub.s32 %v8292, 127
      %v8294 = vand.u32 2147483647, %v5277
      %v8295 = vand.u32 %v8294, 8388607
      %v8296 = vor.u32 %v8295, 8388608
      %v8297 = vsub.s32 0, %v8296
      %v8298 = vadd.s32 %v8293, 1
      %vm8299 = vcmp.gt.s32.totalorder %v8298, 0
      %v8300 = vsel %vm8299, %v8298, 0
      %v8301 = vshrl.u32 %v8300, 5
      %v8302 = vand.u32 %v8300, 31
      %v8303 = vsub.s32 32, %v8302
      %v8304 = vshrl.u32 683565275, %v8303
      %v8305 = vshll.u32 683565275, %v8302
      %v8306 = vshrl.u32 2475754826, %v8303
      %v8307 = vor.u32 %v8305, %v8306
      %v8308 = vshll.u32 2475754826, %v8302
      %v8309 = vshrl.u32 2131351028, %v8303
      %v8310 = vor.u32 %v8308, %v8309
      %v8311 = vshll.u32 2131351028, %v8302
      %v8312 = vshrl.u32 2102212464, %v8303
      %v8313 = vor.u32 %v8311, %v8312
      %v8314 = vshll.u32 2102212464, %v8302
      %v8315 = vshrl.u32 920167782, %v8303
      %v8316 = vor.u32 %v8314, %v8315
      %v8317 = vshll.u32 920167782, %v8302
      %v8318 = vshrl.u32 1326507024, %v8303
      %v8319 = vor.u32 %v8317, %v8318
      %vm8320 = vcmp.lt.s32.totalorder %v8301, 1
      %vm8321 = vcmp.lt.s32.totalorder %v8301, 2
      %vm8322 = vcmp.lt.s32.totalorder %v8301, 3
      %vm8323 = vcmp.lt.s32.totalorder %v8301, 4
      %v8324 = vsel %vm8320, %v8304, %v8307
      %v8325 = vsel %vm8323, %v8313, 2102212464
      %v8326 = vsel %vm8322, %v8310, %v8325
      %v8327 = vsel %vm8321, %v8324, %v8326
      %v8328 = vsel %vm8320, %v8307, %v8310
      %v8329 = vsel %vm8323, %v8316, 920167782
      %v8330 = vsel %vm8322, %v8313, %v8329
      %v8331 = vsel %vm8321, %v8328, %v8330
      %v8332 = vsel %vm8320, %v8310, %v8313
      %v8333 = vsel %vm8323, %v8319, 1326507024
      %v8334 = vsel %vm8322, %v8316, %v8333
      %v8335 = vsel %vm8321, %v8332, %v8334
      %v8336 = vshll.u32 %v8296, 8
      %v8337 = vmul.u32.u64.compose %v8336, %v8335
      %v8338 = vextract.low.u32 %v8337
      %v8339 = vextract.high.u32 %v8337
      %v8340 = vmul.u32.u64.compose %v8336, %v8331
      %v8341 = vextract.low.u32 %v8340
      %v8342 = vextract.high.u32 %v8340
      %v8343 = vmul.u32 %v8336, %v8327
      %v8344 = vadd.s32 %v8339, %v8341
      %vm8345 = vc.u32 %v8339, %v8341
      %v8346 = vadd.s32 %v8342, 1
      %v8347 = vsel %vm8345, %v8346, %v8342
      %v8348 = vadd.s32 %v8343, %v8347
      %v8349 = vadd.s32 %v8348, 536870912
      %v8350 = vshrl.u32 %v8349, 30
      %v8351 = vshll.u32 %v8350, 30
      %v8352 = vsub.s32 %v8348, %v8351
      %vm8353 = vcmp.lt.s32.totalorder %v8352, 0
      %v8354 = vsub.s32 0, %v8352
      %v8355 = vsel %vm8353, %v8354, %v8352
      %v8356 = vclz %v8355
      %v8357 = vsub.s32 %v8356, 2
      %vm8358 = vcmp.gt.s32.totalorder 0, %v8357
      %v8359 = vsel %vm8358, 0, %v8357
      %v8360 = vsub.s32 32, %v8359
      %v8361 = vshll.u32 %v8352, %v8359
      %v8362 = vshrl.u32 %v8344, %v8360
      %v8363 = vor.u32 %v8361, %v8362
      %v8364 = vsub.s32 4294967266, %v8359
      %v8365 = vadd.s32 %v8364, 127
      %v8366 = vshll.u32 %v8365, 23
      %v8367 = vor.u32 4788187, %v8366
      %v8368 = vand.u32 2147483647, %v8367
      %v8370 = vcvt.s32.f32 %v8363
      %v8371 = vmul.f32 %v8370, %v8368
      %v8372 = vxor.u32 %v8371, 2147483648
      %v8373 = vsel %vm8290, %v8372, %v8371
      %v8374 = vsub.s32 4, %v8350
      %v8375 = vsel %vm8290, %v8374, %v8350
      %v8376 = vsel %vm8289, %v5277, %v8373
      %v8377 = vsel %vm8289, 0, %v8375
      %v8378 = vcosq.f32.pop %v8376
      %v8379 = vsinq.f32.pop %v8376
      %vm8380 = vweird.f32 %v5277
      %v8381 = vadd.s32 %v8377, 3
      %v8382 = vand.u32 %v8381, 3
      %vm8383 = vcmp.lt.s32.totalorder %v8382, 2
      %vm8384 = vcmp.eq.s32.totalorder %v8382, 0
      %v8385 = vxor.u32 %v8379, 2147483648
      %v8386 = vsel %vm8384, %v8378, %v8385
      %vm8387 = vcmp.eq.s32.totalorder %v8382, 2
      %v8388 = vxor.u32 %v8378, 2147483648
      %v8389 = vsel %vm8387, %v8388, %v8379
      %v8390 = vsel %vm8383, %v8386, %v8389
      %v8391 = vsel %vm8380, nan, %v8390
      %v8392 = vand.u32 2147483647, %v5278
      %vm8393 = vcmp.le.f32.partialorder %v8392, 0.7853982
      %vm8394 = vcmp.lt.s32.totalorder %v5278, 0
      %v8395 = vand.u32 %v5278, 2139095040
      %v8396 = vshrl.u32 %v8395, 23
      %v8397 = vsub.s32 %v8396, 127
      %v8398 = vand.u32 2147483647, %v5278
      %v8399 = vand.u32 %v8398, 8388607
      %v8400 = vor.u32 %v8399, 8388608
      %v8401 = vsub.s32 0, %v8400
      %v8402 = vadd.s32 %v8397, 1
      %vm8403 = vcmp.gt.s32.totalorder %v8402, 0
      %v8404 = vsel %vm8403, %v8402, 0
      %v8405 = vshrl.u32 %v8404, 5
      %v8406 = vand.u32 %v8404, 31
      %v8407 = vsub.s32 32, %v8406
      %v8408 = vshrl.u32 683565275, %v8407
      %v8409 = vshll.u32 683565275, %v8406
      %v8410 = vshrl.u32 2475754826, %v8407
      %v8411 = vor.u32 %v8409, %v8410
      %v8412 = vshll.u32 2475754826, %v8406
      %v8413 = vshrl.u32 2131351028, %v8407
      %v8414 = vor.u32 %v8412, %v8413
      %v8415 = vshll.u32 2131351028, %v8406
      %v8416 = vshrl.u32 2102212464, %v8407
      %v8417 = vor.u32 %v8415, %v8416
      %v8418 = vshll.u32 2102212464, %v8406
      %v8419 = vshrl.u32 920167782, %v8407
      %v8420 = vor.u32 %v8418, %v8419
      %v8421 = vshll.u32 920167782, %v8406
      %v8422 = vshrl.u32 1326507024, %v8407
      %v8423 = vor.u32 %v8421, %v8422
      %vm8424 = vcmp.lt.s32.totalorder %v8405, 1
      %vm8425 = vcmp.lt.s32.totalorder %v8405, 2
      %vm8426 = vcmp.lt.s32.totalorder %v8405, 3
      %vm8427 = vcmp.lt.s32.totalorder %v8405, 4
      %v8428 = vsel %vm8424, %v8408, %v8411
      %v8429 = vsel %vm8427, %v8417, 2102212464
      %v8430 = vsel %vm8426, %v8414, %v8429
      %v8431 = vsel %vm8425, %v8428, %v8430
      %v8432 = vsel %vm8424, %v8411, %v8414
      %v8433 = vsel %vm8427, %v8420, 920167782
      %v8434 = vsel %vm8426, %v8417, %v8433
      %v8435 = vsel %vm8425, %v8432, %v8434
      %v8436 = vsel %vm8424, %v8414, %v8417
      %v8437 = vsel %vm8427, %v8423, 1326507024
      %v8438 = vsel %vm8426, %v8420, %v8437
      %v8439 = vsel %vm8425, %v8436, %v8438
      %v8440 = vshll.u32 %v8400, 8
      %v8441 = vmul.u32.u64.compose %v8440, %v8439
      %v8442 = vextract.low.u32 %v8441
      %v8443 = vextract.high.u32 %v8441
      %v8444 = vmul.u32.u64.compose %v8440, %v8435
      %v8445 = vextract.low.u32 %v8444
      %v8446 = vextract.high.u32 %v8444
      %v8447 = vmul.u32 %v8440, %v8431
      %v8448 = vadd.s32 %v8443, %v8445
      %vm8449 = vc.u32 %v8443, %v8445
      %v8450 = vadd.s32 %v8446, 1
      %v8451 = vsel %vm8449, %v8450, %v8446
      %v8452 = vadd.s32 %v8447, %v8451
      %v8453 = vadd.s32 %v8452, 536870912
      %v8454 = vshrl.u32 %v8453, 30
      %v8455 = vshll.u32 %v8454, 30
      %v8456 = vsub.s32 %v8452, %v8455
      %vm8457 = vcmp.lt.s32.totalorder %v8456, 0
      %v8458 = vsub.s32 0, %v8456
      %v8459 = vsel %vm8457, %v8458, %v8456
      %v8460 = vclz %v8459
      %v8461 = vsub.s32 %v8460, 2
      %vm8462 = vcmp.gt.s32.totalorder 0, %v8461
      %v8463 = vsel %vm8462, 0, %v8461
      %v8464 = vsub.s32 32, %v8463
      %v8465 = vshll.u32 %v8456, %v8463
      %v8466 = vshrl.u32 %v8448, %v8464
      %v8467 = vor.u32 %v8465, %v8466
      %v8468 = vsub.s32 4294967266, %v8463
      %v8469 = vadd.s32 %v8468, 127
      %v8470 = vshll.u32 %v8469, 23
      %v8471 = vor.u32 4788187, %v8470
      %v8472 = vand.u32 2147483647, %v8471
      %v8474 = vcvt.s32.f32 %v8467
      %v8475 = vmul.f32 %v8474, %v8472
      %v8476 = vxor.u32 %v8475, 2147483648
      %v8477 = vsel %vm8394, %v8476, %v8475
      %v8478 = vsub.s32 4, %v8454
      %v8479 = vsel %vm8394, %v8478, %v8454
      %v8480 = vsel %vm8393, %v5278, %v8477
      %v8481 = vsel %vm8393, 0, %v8479
      %v8482 = vcosq.f32.pop %v8480
      %v8483 = vsinq.f32.pop %v8480
      %vm8484 = vweird.f32 %v5278
      %v8485 = vadd.s32 %v8481, 3
      %v8486 = vand.u32 %v8485, 3
      %vm8487 = vcmp.lt.s32.totalorder %v8486, 2
      %vm8488 = vcmp.eq.s32.totalorder %v8486, 0
      %v8489 = vxor.u32 %v8483, 2147483648
      %v8490 = vsel %vm8488, %v8482, %v8489
      %vm8491 = vcmp.eq.s32.totalorder %v8486, 2
      %v8492 = vxor.u32 %v8482, 2147483648
      %v8493 = vsel %vm8491, %v8492, %v8483
      %v8494 = vsel %vm8487, %v8490, %v8493
      %v8495 = vsel %vm8484, nan, %v8494
      %v8496 = vand.u32 2147483647, %v5279
      %vm8497 = vcmp.le.f32.partialorder %v8496, 0.7853982
      %vm8498 = vcmp.lt.s32.totalorder %v5279, 0
      %v8499 = vand.u32 %v5279, 2139095040
      %v8500 = vshrl.u32 %v8499, 23
      %v8501 = vsub.s32 %v8500, 127
      %v8502 = vand.u32 2147483647, %v5279
      %v8503 = vand.u32 %v8502, 8388607
      %v8504 = vor.u32 %v8503, 8388608
      %v8505 = vsub.s32 0, %v8504
      %v8506 = vadd.s32 %v8501, 1
      %vm8507 = vcmp.gt.s32.totalorder %v8506, 0
      %v8508 = vsel %vm8507, %v8506, 0
      %v8509 = vshrl.u32 %v8508, 5
      %v8510 = vand.u32 %v8508, 31
      %v8511 = vsub.s32 32, %v8510
      %v8512 = vshrl.u32 683565275, %v8511
      %v8513 = vshll.u32 683565275, %v8510
      %v8514 = vshrl.u32 2475754826, %v8511
      %v8515 = vor.u32 %v8513, %v8514
      %v8516 = vshll.u32 2475754826, %v8510
      %v8517 = vshrl.u32 2131351028, %v8511
      %v8518 = vor.u32 %v8516, %v8517
      %v8519 = vshll.u32 2131351028, %v8510
      %v8520 = vshrl.u32 2102212464, %v8511
      %v8521 = vor.u32 %v8519, %v8520
      %v8522 = vshll.u32 2102212464, %v8510
      %v8523 = vshrl.u32 920167782, %v8511
      %v8524 = vor.u32 %v8522, %v8523
      %v8525 = vshll.u32 920167782, %v8510
      %v8526 = vshrl.u32 1326507024, %v8511
      %v8527 = vor.u32 %v8525, %v8526
      %vm8528 = vcmp.lt.s32.totalorder %v8509, 1
      %vm8529 = vcmp.lt.s32.totalorder %v8509, 2
      %vm8530 = vcmp.lt.s32.totalorder %v8509, 3
      %vm8531 = vcmp.lt.s32.totalorder %v8509, 4
      %v8532 = vsel %vm8528, %v8512, %v8515
      %v8533 = vsel %vm8531, %v8521, 2102212464
      %v8534 = vsel %vm8530, %v8518, %v8533
      %v8535 = vsel %vm8529, %v8532, %v8534
      %v8536 = vsel %vm8528, %v8515, %v8518
      %v8537 = vsel %vm8531, %v8524, 920167782
      %v8538 = vsel %vm8530, %v8521, %v8537
      %v8539 = vsel %vm8529, %v8536, %v8538
      %v8540 = vsel %vm8528, %v8518, %v8521
      %v8541 = vsel %vm8531, %v8527, 1326507024
      %v8542 = vsel %vm8530, %v8524, %v8541
      %v8543 = vsel %vm8529, %v8540, %v8542
      %v8544 = vshll.u32 %v8504, 8
      %v8545 = vmul.u32.u64.compose %v8544, %v8543
      %v8546 = vextract.low.u32 %v8545
      %v8547 = vextract.high.u32 %v8545
      %v8548 = vmul.u32.u64.compose %v8544, %v8539
      %v8549 = vextract.low.u32 %v8548
      %v8550 = vextract.high.u32 %v8548
      %v8551 = vmul.u32 %v8544, %v8535
      %v8552 = vadd.s32 %v8547, %v8549
      %vm8553 = vc.u32 %v8547, %v8549
      %v8554 = vadd.s32 %v8550, 1
      %v8555 = vsel %vm8553, %v8554, %v8550
      %v8556 = vadd.s32 %v8551, %v8555
      %v8557 = vadd.s32 %v8556, 536870912
      %v8558 = vshrl.u32 %v8557, 30
      %v8559 = vshll.u32 %v8558, 30
      %v8560 = vsub.s32 %v8556, %v8559
      %vm8561 = vcmp.lt.s32.totalorder %v8560, 0
      %v8562 = vsub.s32 0, %v8560
      %v8563 = vsel %vm8561, %v8562, %v8560
      %v8564 = vclz %v8563
      %v8565 = vsub.s32 %v8564, 2
      %vm8566 = vcmp.gt.s32.totalorder 0, %v8565
      %v8567 = vsel %vm8566, 0, %v8565
      %v8568 = vsub.s32 32, %v8567
      %v8569 = vshll.u32 %v8560, %v8567
      %v8570 = vshrl.u32 %v8552, %v8568
      %v8571 = vor.u32 %v8569, %v8570
      %v8572 = vsub.s32 4294967266, %v8567
      %v8573 = vadd.s32 %v8572, 127
      %v8574 = vshll.u32 %v8573, 23
      %v8575 = vor.u32 4788187, %v8574
      %v8576 = vand.u32 2147483647, %v8575
      %v8578 = vcvt.s32.f32 %v8571
      %v8579 = vmul.f32 %v8578, %v8576
      %v8580 = vxor.u32 %v8579, 2147483648
      %v8581 = vsel %vm8498, %v8580, %v8579
      %v8582 = vsub.s32 4, %v8558
      %v8583 = vsel %vm8498, %v8582, %v8558
      %v8584 = vsel %vm8497, %v5279, %v8581
      %v8585 = vsel %vm8497, 0, %v8583
      %v8586 = vcosq.f32.pop %v8584
      %v8587 = vsinq.f32.pop %v8584
      %vm8588 = vweird.f32 %v5279
      %v8589 = vadd.s32 %v8585, 3
      %v8590 = vand.u32 %v8589, 3
      %vm8591 = vcmp.lt.s32.totalorder %v8590, 2
      %vm8592 = vcmp.eq.s32.totalorder %v8590, 0
      %v8593 = vxor.u32 %v8587, 2147483648
      %v8594 = vsel %vm8592, %v8586, %v8593
      %vm8595 = vcmp.eq.s32.totalorder %v8590, 2
      %v8596 = vxor.u32 %v8586, 2147483648
      %v8597 = vsel %vm8595, %v8596, %v8587
      %v8598 = vsel %vm8591, %v8594, %v8597
      %v8599 = vsel %vm8588, nan, %v8598
      %v8600 = vpack.c.bf16 %v7143, %v7039
      %v8601 = vpack.c.bf16 %v7351, %v7247
      %v8602 = vpack.c.bf16 %v7559, %v7455
      %v8603 = vpack.c.bf16 %v7767, %v7663
      %v8604 = vpack.c.bf16 %v7975, %v7871
      %v8605 = vpack.c.bf16 %v8183, %v8079
      %v8606 = vpack.c.bf16 %v8391, %v8287
      %v8607 = vpack.c.bf16 %v8599, %v8495
      %8608 = vmatprep.subr.bf16.mxu0 0
      %8609 = vmatpush1.bf16.msra.mxu0 %v4154
      %8610 = vmatprep.subr.bf16.mxu0 0
      %8611 = vmatpush1.bf16.msra.mxu0 %v4155
      %8612 = vmatprep.subr.bf16.mxu0 0
      %8613 = vmatpush1.bf16.msra.mxu0 %v4156
      %8614 = vmatprep.subr.bf16.mxu0 0
      %8615 = vmatpush1.bf16.msra.mxu0 %v4157
      %8616 = vmatprep.subr.bf16.mxu0 0
      %8617 = vmatpush1.bf16.msra.mxu0 %v4158
      %8618 = vmatprep.subr.bf16.mxu0 0
      %8619 = vmatpush1.bf16.msra.mxu0 %v4159
      %8620 = vmatprep.subr.bf16.mxu0 0
      %8621 = vmatpush1.bf16.msra.mxu0 %v4160
      %8622 = vmatprep.subr.bf16.mxu0 0
      %8623 = vmatpush1.bf16.msra.mxu0 %v4161
      %8624 = vmatprep.subr.bf16.mxu0 0
      %8625 = vmatpush1.bf16.msra.mxu0 0
      %8626 = vmatprep.subr.bf16.mxu0 0
      %8627 = vmatpush1.bf16.msra.mxu0 0
      %8628 = vmatprep.subr.bf16.mxu0 0
      %8629 = vmatpush1.bf16.msra.mxu0 0
      %8630 = vmatprep.subr.bf16.mxu0 0
      %8631 = vmatpush1.bf16.msra.mxu0 0
      %8632 = vmatprep.subr.bf16.mxu0 0
      %8633 = vmatpush1.bf16.msra.mxu0 0
      %8634 = vmatprep.subr.bf16.mxu0 0
      %8635 = vmatpush1.bf16.msra.mxu0 0
      %8636 = vmatprep.subr.bf16.mxu0 0
      %8637 = vmatpush1.bf16.msra.mxu0 0
      %8638 = vmatprep.subr.bf16.mxu0 0
      %8639 = vmatpush1.bf16.msra.mxu0 0
      %8640 = vmatprep.mubr.bf16.mxu0 0
      %8641 = vmatmul.mubr.bf16.gmra.mrb[0].mxu0 %v8600
      %v8642 = vpop.f32.mrb[0].mxu0
      %v8643 = vadd.f32 0.0, %v8642
      %v8644 = vpop.f32.mrb[0].mxu0
      %v8645 = vpop.f32.mrb[0].mxu0
      %v8646 = vadd.f32 0.0, %v8645
      %v8647 = vpop.f32.mrb[0].mxu0
      %8648 = vmatprep.mubr.bf16.mxu0 0
      %8649 = vmatmul.mubr.bf16.gmra.mrb[0].mxu0 %v8601
      %v8650 = vpop.f32.mrb[0].mxu0
      %v8651 = vadd.f32 0.0, %v8650
      %v8652 = vpop.f32.mrb[0].mxu0
      %v8653 = vpop.f32.mrb[0].mxu0
      %v8654 = vadd.f32 0.0, %v8653
      %v8655 = vpop.f32.mrb[0].mxu0
      %8656 = vmatprep.mubr.bf16.mxu0 0
      %8657 = vmatmul.mubr.bf16.gmra.mrb[0].mxu0 %v8602
      %v8658 = vpop.f32.mrb[0].mxu0
      %v8659 = vadd.f32 0.0, %v8658
      %v8660 = vpop.f32.mrb[0].mxu0
      %v8661 = vpop.f32.mrb[0].mxu0
      %v8662 = vadd.f32 0.0, %v8661
      %v8663 = vpop.f32.mrb[0].mxu0
      %8664 = vmatprep.mubr.bf16.mxu0 0
      %8665 = vmatmul.mubr.bf16.gmra.mrb[0].mxu0 %v8603
      %v8666 = vpop.f32.mrb[0].mxu0
      %v8667 = vadd.f32 0.0, %v8666
      %v8668 = vpop.f32.mrb[0].mxu0
      %v8669 = vpop.f32.mrb[0].mxu0
      %v8670 = vadd.f32 0.0, %v8669
      %v8671 = vpop.f32.mrb[0].mxu0
      %8672 = vmatprep.mubr.bf16.mxu0 0
      %8673 = vmatmul.mubr.bf16.gmra.mrb[0].mxu0 %v8604
      %v8674 = vpop.f32.mrb[0].mxu0
      %v8675 = vadd.f32 0.0, %v8674
      %v8676 = vpop.f32.mrb[0].mxu0
      %v8677 = vpop.f32.mrb[0].mxu0
      %v8678 = vadd.f32 0.0, %v8677
      %v8679 = vpop.f32.mrb[0].mxu0
      %8680 = vmatprep.mubr.bf16.mxu0 0
      %8681 = vmatmul.mubr.bf16.gmra.mrb[0].mxu0 %v8605
      %v8682 = vpop.f32.mrb[0].mxu0
      %v8683 = vadd.f32 0.0, %v8682
      %v8684 = vpop.f32.mrb[0].mxu0
      %v8685 = vpop.f32.mrb[0].mxu0
      %v8686 = vadd.f32 0.0, %v8685
      %v8687 = vpop.f32.mrb[0].mxu0
      %8688 = vmatprep.mubr.bf16.mxu0 0
      %8689 = vmatmul.mubr.bf16.gmra.mrb[0].mxu0 %v8606
      %v8690 = vpop.f32.mrb[0].mxu0
      %v8691 = vadd.f32 0.0, %v8690
      %v8692 = vpop.f32.mrb[0].mxu0
      %v8693 = vpop.f32.mrb[0].mxu0
      %v8694 = vadd.f32 0.0, %v8693
      %v8695 = vpop.f32.mrb[0].mxu0
      %8696 = vmatprep.mubr.bf16.mxu0 0
      %8697 = vmatmul.mubr.bf16.gmra.mrb[0].mxu0 %v8607
      %v8698 = vpop.f32.mrb[0].mxu0
      %v8699 = vadd.f32 0.0, %v8698
      %v8700 = vpop.f32.mrb[0].mxu0
      %v8701 = vpop.f32.mrb[0].mxu0
      %v8702 = vadd.f32 0.0, %v8701
      %v8703 = vpop.f32.mrb[0].mxu0
      %8704 = vdwg.mxu0
      %8705 = vmatprep.subr.bf16.mxu0 0
      %8706 = vmatpush1.bf16.msra.mxu0 %v4299
      %8707 = vmatprep.subr.bf16.mxu0 0
      %8708 = vmatpush1.bf16.msra.mxu0 %v4300
      %8709 = vmatprep.subr.bf16.mxu0 0
      %8710 = vmatpush1.bf16.msra.mxu0 %v4301
      %8711 = vmatprep.subr.bf16.mxu0 0
      %8712 = vmatpush1.bf16.msra.mxu0 %v4302
      %8713 = vmatprep.subr.bf16.mxu0 0
      %8714 = vmatpush1.bf16.msra.mxu0 %v4303
      %8715 = vmatprep.subr.bf16.mxu0 0
      %8716 = vmatpush1.bf16.msra.mxu0 %v4304
      %8717 = vmatprep.subr.bf16.mxu0 0
      %8718 = vmatpush1.bf16.msra.mxu0 %v4305
      %8719 = vmatprep.subr.bf16.mxu0 0
      %8720 = vmatpush1.bf16.msra.mxu0 %v4306
      %8721 = vmatprep.subr.bf16.mxu0 0
      %8722 = vmatpush1.bf16.msra.mxu0 0
      %8723 = vmatprep.subr.bf16.mxu0 0
      %8724 = vmatpush1.bf16.msra.mxu0 0
      %8725 = vmatprep.subr.bf16.mxu0 0
      %8726 = vmatpush1.bf16.msra.mxu0 0
      %8727 = vmatprep.subr.bf16.mxu0 0
      %8728 = vmatpush1.bf16.msra.mxu0 0
      %8729 = vmatprep.subr.bf16.mxu0 0
      %8730 = vmatpush1.bf16.msra.mxu0 0
      %8731 = vmatprep.subr.bf16.mxu0 0
      %8732 = vmatpush1.bf16.msra.mxu0 0
      %8733 = vmatprep.subr.bf16.mxu0 0
      %8734 = vmatpush1.bf16.msra.mxu0 0
      %8735 = vmatprep.subr.bf16.mxu0 0
      %8736 = vmatpush1.bf16.msra.mxu0 0
      %8737 = vmatprep.mubr.bf16.mxu0 0
      %8738 = vmatmul.mubr.bf16.gmra.mrb[0].mxu0 %v6928
      %v8739 = vpop.f32.mrb[0].mxu0
      %v8740 = vadd.f32 %v8643, %v8739
      %v8741 = vpop.f32.mrb[0].mxu0
      %v8742 = vpop.f32.mrb[0].mxu0
      %v8743 = vadd.f32 %v8646, %v8742
      %v8744 = vpop.f32.mrb[0].mxu0
      %8745 = vmatprep.mubr.bf16.mxu0 0
      %8746 = vmatmul.mubr.bf16.gmra.mrb[0].mxu0 %v6929
      %v8747 = vpop.f32.mrb[0].mxu0
      %v8748 = vadd.f32 %v8651, %v8747
      %v8749 = vpop.f32.mrb[0].mxu0
      %v8750 = vpop.f32.mrb[0].mxu0
      %v8751 = vadd.f32 %v8654, %v8750
      %v8752 = vpop.f32.mrb[0].mxu0
      %8753 = vmatprep.mubr.bf16.mxu0 0
      %8754 = vmatmul.mubr.bf16.gmra.mrb[0].mxu0 %v6930
      %v8755 = vpop.f32.mrb[0].mxu0
      %v8756 = vadd.f32 %v8659, %v8755
      %v8757 = vpop.f32.mrb[0].mxu0
      %v8758 = vpop.f32.mrb[0].mxu0
      %v8759 = vadd.f32 %v8662, %v8758
      %v8760 = vpop.f32.mrb[0].mxu0
      %8761 = vmatprep.mubr.bf16.mxu0 0
      %8762 = vmatmul.mubr.bf16.gmra.mrb[0].mxu0 %v6931
      %v8763 = vpop.f32.mrb[0].mxu0
      %v8764 = vadd.f32 %v8667, %v8763
      %v8765 = vpop.f32.mrb[0].mxu0
      %v8766 = vpop.f32.mrb[0].mxu0
      %v8767 = vadd.f32 %v8670, %v8766
      %v8768 = vpop.f32.mrb[0].mxu0
      %8769 = vmatprep.mubr.bf16.mxu0 0
      %8770 = vmatmul.mubr.bf16.gmra.mrb[0].mxu0 %v6932
      %v8771 = vpop.f32.mrb[0].mxu0
      %v8772 = vadd.f32 %v8675, %v8771
      %v8773 = vpop.f32.mrb[0].mxu0
      %v8774 = vpop.f32.mrb[0].mxu0
      %v8775 = vadd.f32 %v8678, %v8774
      %v8776 = vpop.f32.mrb[0].mxu0
      %8777 = vmatprep.mubr.bf16.mxu0 0
      %8778 = vmatmul.mubr.bf16.gmra.mrb[0].mxu0 %v6933
      %v8779 = vpop.f32.mrb[0].mxu0
      %v8780 = vadd.f32 %v8683, %v8779
      %v8781 = vpop.f32.mrb[0].mxu0
      %v8782 = vpop.f32.mrb[0].mxu0
      %v8783 = vadd.f32 %v8686, %v8782
      %v8784 = vpop.f32.mrb[0].mxu0
      %8785 = vmatprep.mubr.bf16.mxu0 0
      %8786 = vmatmul.mubr.bf16.gmra.mrb[0].mxu0 %v6934
      %v8787 = vpop.f32.mrb[0].mxu0
      %v8788 = vadd.f32 %v8691, %v8787
      %v8789 = vpop.f32.mrb[0].mxu0
      %v8790 = vpop.f32.mrb[0].mxu0
      %v8791 = vadd.f32 %v8694, %v8790
      %v8792 = vpop.f32.mrb[0].mxu0
      %8793 = vmatprep.mubr.bf16.mxu0 0
      %8794 = vmatmul.mubr.bf16.gmra.mrb[0].mxu0 %v6935
      %v8795 = vpop.f32.mrb[0].mxu0
      %v8796 = vadd.f32 %v8699, %v8795
      %v8797 = vpop.f32.mrb[0].mxu0
      %v8798 = vpop.f32.mrb[0].mxu0
      %v8799 = vadd.f32 %v8702, %v8798
      %v8800 = vpop.f32.mrb[0].mxu0
      %8801 = vdwg.mxu0
      %v8802 = vadd.f32 %v8740, %v4416
      %v8803 = vadd.f32 %v8743, %v4416
      %v8804 = vadd.f32 %v8748, %v4416
      %v8805 = vadd.f32 %v8751, %v4416
      %v8806 = vadd.f32 %v8756, %v4416
      %v8807 = vadd.f32 %v8759, %v4416
      %v8808 = vadd.f32 %v8764, %v4416
      %v8809 = vadd.f32 %v8767, %v4416
      %v8810 = vadd.f32 %v8772, %v4416
      %v8811 = vadd.f32 %v8775, %v4416
      %v8812 = vadd.f32 %v8780, %v4416
      %v8813 = vadd.f32 %v8783, %v4416
      %v8814 = vadd.f32 %v8788, %v4416
      %v8815 = vadd.f32 %v8791, %v4416
      %v8816 = vadd.f32 %v8796, %v4416
      %v8817 = vadd.f32 %v8799, %v4416
      %v8818 = vmax.f32 %v8802, 0.0
      %v8819 = vmax.f32 %v8803, 0.0
      %v8820 = vmax.f32 %v8804, 0.0
      %v8821 = vmax.f32 %v8805, 0.0
      %v8822 = vmax.f32 %v8806, 0.0
      %v8823 = vmax.f32 %v8807, 0.0
      %v8824 = vmax.f32 %v8808, 0.0
      %v8825 = vmax.f32 %v8809, 0.0
      %v8826 = vmax.f32 %v8810, 0.0
      %v8827 = vmax.f32 %v8811, 0.0
      %v8828 = vmax.f32 %v8812, 0.0
      %v8829 = vmax.f32 %v8813, 0.0
      %v8830 = vmax.f32 %v8814, 0.0
      %v8831 = vmax.f32 %v8815, 0.0
      %v8832 = vmax.f32 %v8816, 0.0
      %v8833 = vmax.f32 %v8817, 0.0
      %v8834 = vpack.c.bf16 %v8819, %v8818
      %v8835 = vpack.c.bf16 %v8821, %v8820
      %v8836 = vpack.c.bf16 %v8823, %v8822
      %v8837 = vpack.c.bf16 %v8825, %v8824
      %v8838 = vpack.c.bf16 %v8827, %v8826
      %v8839 = vpack.c.bf16 %v8829, %v8828
      %v8840 = vpack.c.bf16 %v8831, %v8830
      %v8841 = vpack.c.bf16 %v8833, %v8832
      %8842 = vmatprep.subr.bf16.mxu0 0
      %8843 = vmatpush1.bf16.msra.mxu0 %v4496
      %8844 = vmatprep.subr.bf16.mxu0 0
      %8845 = vmatpush1.bf16.msra.mxu0 %v4497
      %8846 = vmatprep.subr.bf16.mxu0 0
      %8847 = vmatpush1.bf16.msra.mxu0 %v4498
      %8848 = vmatprep.subr.bf16.mxu0 0
      %8849 = vmatpush1.bf16.msra.mxu0 %v4499
      %8850 = vmatprep.subr.bf16.mxu0 0
      %8851 = vmatpush1.bf16.msra.mxu0 %v4500
      %8852 = vmatprep.subr.bf16.mxu0 0
      %8853 = vmatpush1.bf16.msra.mxu0 %v4501
      %8854 = vmatprep.subr.bf16.mxu0 0
      %8855 = vmatpush1.bf16.msra.mxu0 %v4502
      %8856 = vmatprep.subr.bf16.mxu0 0
      %8857 = vmatpush1.bf16.msra.mxu0 %v4503
      %8858 = vmatprep.subr.bf16.mxu0 0
      %8859 = vmatpush1.bf16.msra.mxu0 0
      %8860 = vmatprep.subr.bf16.mxu0 0
      %8861 = vmatpush1.bf16.msra.mxu0 0
      %8862 = vmatprep.subr.bf16.mxu0 0
      %8863 = vmatpush1.bf16.msra.mxu0 0
      %8864 = vmatprep.subr.bf16.mxu0 0
      %8865 = vmatpush1.bf16.msra.mxu0 0
      %8866 = vmatprep.subr.bf16.mxu0 0
      %8867 = vmatpush1.bf16.msra.mxu0 0
      %8868 = vmatprep.subr.bf16.mxu0 0
      %8869 = vmatpush1.bf16.msra.mxu0 0
      %8870 = vmatprep.subr.bf16.mxu0 0
      %8871 = vmatpush1.bf16.msra.mxu0 0
      %8872 = vmatprep.subr.bf16.mxu0 0
      %8873 = vmatpush1.bf16.msra.mxu0 0
      %8874 = vmatprep.mubr.bf16.mxu0 0
      %8875 = vmatmul.mubr.bf16.gmra.mrb[0].mxu0 %v8834
      %v8876 = vpop.f32.mrb[0].mxu0
      %v8877 = vadd.f32 %v4462, %v8876
      %v8878 = vpop.f32.mrb[0].mxu0
      %v8879 = vpop.f32.mrb[0].mxu0
      %v8880 = vadd.f32 %v4462, %v8879
      %v8881 = vpop.f32.mrb[0].mxu0
      %8882 = vmatprep.mubr.bf16.mxu0 0
      %8883 = vmatmul.mubr.bf16.gmra.mrb[0].mxu0 %v8835
      %v8884 = vpop.f32.mrb[0].mxu0
      %v8885 = vadd.f32 %v4462, %v8884
      %v8886 = vpop.f32.mrb[0].mxu0
      %v8887 = vpop.f32.mrb[0].mxu0
      %v8888 = vadd.f32 %v4462, %v8887
      %v8889 = vpop.f32.mrb[0].mxu0
      %8890 = vmatprep.mubr.bf16.mxu0 0
      %8891 = vmatmul.mubr.bf16.gmra.mrb[0].mxu0 %v8836
      %v8892 = vpop.f32.mrb[0].mxu0
      %v8893 = vadd.f32 %v4462, %v8892
      %v8894 = vpop.f32.mrb[0].mxu0
      %v8895 = vpop.f32.mrb[0].mxu0
      %v8896 = vadd.f32 %v4462, %v8895
      %v8897 = vpop.f32.mrb[0].mxu0
      %8898 = vmatprep.mubr.bf16.mxu0 0
      %8899 = vmatmul.mubr.bf16.gmra.mrb[0].mxu0 %v8837
      %v8900 = vpop.f32.mrb[0].mxu0
      %v8901 = vadd.f32 %v4462, %v8900
      %v8902 = vpop.f32.mrb[0].mxu0
      %v8903 = vpop.f32.mrb[0].mxu0
      %v8904 = vadd.f32 %v4462, %v8903
      %v8905 = vpop.f32.mrb[0].mxu0
      %8906 = vmatprep.mubr.bf16.mxu0 0
      %8907 = vmatmul.mubr.bf16.gmra.mrb[0].mxu0 %v8838
      %v8908 = vpop.f32.mrb[0].mxu0
      %v8909 = vadd.f32 %v4462, %v8908
      %v8910 = vpop.f32.mrb[0].mxu0
      %v8911 = vpop.f32.mrb[0].mxu0
      %v8912 = vadd.f32 %v4462, %v8911
      %v8913 = vpop.f32.mrb[0].mxu0
      %8914 = vmatprep.mubr.bf16.mxu0 0
      %8915 = vmatmul.mubr.bf16.gmra.mrb[0].mxu0 %v8839
      %v8916 = vpop.f32.mrb[0].mxu0
      %v8917 = vadd.f32 %v4462, %v8916
      %v8918 = vpop.f32.mrb[0].mxu0
      %v8919 = vpop.f32.mrb[0].mxu0
      %v8920 = vadd.f32 %v4462, %v8919
      %v8921 = vpop.f32.mrb[0].mxu0
      %8922 = vmatprep.mubr.bf16.mxu0 0
      %8923 = vmatmul.mubr.bf16.gmra.mrb[0].mxu0 %v8840
      %v8924 = vpop.f32.mrb[0].mxu0
      %v8925 = vadd.f32 %v4462, %v8924
      %v8926 = vpop.f32.mrb[0].mxu0
      %v8927 = vpop.f32.mrb[0].mxu0
      %v8928 = vadd.f32 %v4462, %v8927
      %v8929 = vpop.f32.mrb[0].mxu0
      %8930 = vmatprep.mubr.bf16.mxu0 0
      %8931 = vmatmul.mubr.bf16.gmra.mrb[0].mxu0 %v8841
      %v8932 = vpop.f32.mrb[0].mxu0
      %v8933 = vadd.f32 %v4462, %v8932
      %v8934 = vpop.f32.mrb[0].mxu0
      %v8935 = vpop.f32.mrb[0].mxu0
      %v8936 = vadd.f32 %v4462, %v8935
      %v8937 = vpop.f32.mrb[0].mxu0
      %8938 = vdwg.mxu0
      %v8939 = vmax.f32 %v8877, 0.0
      %v8940 = vmax.f32 %v8880, 0.0
      %v8941 = vmax.f32 %v8885, 0.0
      %v8942 = vmax.f32 %v8888, 0.0
      %v8943 = vmax.f32 %v8893, 0.0
      %v8944 = vmax.f32 %v8896, 0.0
      %v8945 = vmax.f32 %v8901, 0.0
      %v8946 = vmax.f32 %v8904, 0.0
      %v8947 = vmax.f32 %v8909, 0.0
      %v8948 = vmax.f32 %v8912, 0.0
      %v8949 = vmax.f32 %v8917, 0.0
      %v8950 = vmax.f32 %v8920, 0.0
      %v8951 = vmax.f32 %v8925, 0.0
      %v8952 = vmax.f32 %v8928, 0.0
      %v8953 = vmax.f32 %v8933, 0.0
      %v8954 = vmax.f32 %v8936, 0.0
      %v8955 = vpack.c.bf16 %v8940, %v8939
      %v8956 = vpack.c.bf16 %v8942, %v8941
      %v8957 = vpack.c.bf16 %v8944, %v8943
      %v8958 = vpack.c.bf16 %v8946, %v8945
      %v8959 = vpack.c.bf16 %v8948, %v8947
      %v8960 = vpack.c.bf16 %v8950, %v8949
      %v8961 = vpack.c.bf16 %v8952, %v8951
      %v8962 = vpack.c.bf16 %v8954, %v8953
      %8963 = vmatprep.subr.bf16.mxu0 0
      %8964 = vmatpush1.bf16.msra.mxu0 %v4671
      %8965 = vmatprep.subr.bf16.mxu0 0
      %8966 = vmatpush1.bf16.msra.mxu0 %v4672
      %8967 = vmatprep.subr.bf16.mxu0 0
      %8968 = vmatpush1.bf16.msra.mxu0 %v4673
      %8969 = vmatprep.subr.bf16.mxu0 0
      %8970 = vmatpush1.bf16.msra.mxu0 %v4674
      %8971 = vmatprep.subr.bf16.mxu0 0
      %8972 = vmatpush1.bf16.msra.mxu0 %v4675
      %8973 = vmatprep.subr.bf16.mxu0 0
      %8974 = vmatpush1.bf16.msra.mxu0 %v4676
      %8975 = vmatprep.subr.bf16.mxu0 0
      %8976 = vmatpush1.bf16.msra.mxu0 %v4677
      %8977 = vmatprep.subr.bf16.mxu0 0
      %8978 = vmatpush1.bf16.msra.mxu0 %v4678
      %8979 = vmatprep.subr.bf16.mxu0 0
      %8980 = vmatpush1.bf16.msra.mxu0 0
      %8981 = vmatprep.subr.bf16.mxu0 0
      %8982 = vmatpush1.bf16.msra.mxu0 0
      %8983 = vmatprep.subr.bf16.mxu0 0
      %8984 = vmatpush1.bf16.msra.mxu0 0
      %8985 = vmatprep.subr.bf16.mxu0 0
      %8986 = vmatpush1.bf16.msra.mxu0 0
      %8987 = vmatprep.subr.bf16.mxu0 0
      %8988 = vmatpush1.bf16.msra.mxu0 0
      %8989 = vmatprep.subr.bf16.mxu0 0
      %8990 = vmatpush1.bf16.msra.mxu0 0
      %8991 = vmatprep.subr.bf16.mxu0 0
      %8992 = vmatpush1.bf16.msra.mxu0 0
      %8993 = vmatprep.subr.bf16.mxu0 0
      %8994 = vmatpush1.bf16.msra.mxu0 0
      %8995 = vmatprep.mubr.bf16.mxu0 0
      %8996 = vmatmul.mubr.bf16.gmra.mrb[0].mxu0 %v8955
      %v8997 = vpop.f32.mrb[0].mxu0
      %v8998 = vadd.f32 %v4637, %v8997
      %v8999 = vpop.f32.mrb[0].mxu0
      %v9000 = vpop.f32.mrb[0].mxu0
      %v9001 = vadd.f32 %v4637, %v9000
      %v9002 = vpop.f32.mrb[0].mxu0
      %9003 = vmatprep.mubr.bf16.mxu0 0
      %9004 = vmatmul.mubr.bf16.gmra.mrb[0].mxu0 %v8956
      %v9005 = vpop.f32.mrb[0].mxu0
      %v9006 = vadd.f32 %v4637, %v9005
      %v9007 = vpop.f32.mrb[0].mxu0
      %v9008 = vpop.f32.mrb[0].mxu0
      %v9009 = vadd.f32 %v4637, %v9008
      %v9010 = vpop.f32.mrb[0].mxu0
      %9011 = vmatprep.mubr.bf16.mxu0 0
      %9012 = vmatmul.mubr.bf16.gmra.mrb[0].mxu0 %v8957
      %v9013 = vpop.f32.mrb[0].mxu0
      %v9014 = vadd.f32 %v4637, %v9013
      %v9015 = vpop.f32.mrb[0].mxu0
      %v9016 = vpop.f32.mrb[0].mxu0
      %v9017 = vadd.f32 %v4637, %v9016
      %v9018 = vpop.f32.mrb[0].mxu0
      %9019 = vmatprep.mubr.bf16.mxu0 0
      %9020 = vmatmul.mubr.bf16.gmra.mrb[0].mxu0 %v8958
      %v9021 = vpop.f32.mrb[0].mxu0
      %v9022 = vadd.f32 %v4637, %v9021
      %v9023 = vpop.f32.mrb[0].mxu0
      %v9024 = vpop.f32.mrb[0].mxu0
      %v9025 = vadd.f32 %v4637, %v9024
      %v9026 = vpop.f32.mrb[0].mxu0
      %9027 = vmatprep.mubr.bf16.mxu0 0
      %9028 = vmatmul.mubr.bf16.gmra.mrb[0].mxu0 %v8959
      %v9029 = vpop.f32.mrb[0].mxu0
      %v9030 = vadd.f32 %v4637, %v9029
      %v9031 = vpop.f32.mrb[0].mxu0
      %v9032 = vpop.f32.mrb[0].mxu0
      %v9033 = vadd.f32 %v4637, %v9032
      %v9034 = vpop.f32.mrb[0].mxu0
      %9035 = vmatprep.mubr.bf16.mxu0 0
      %9036 = vmatmul.mubr.bf16.gmra.mrb[0].mxu0 %v8960
      %v9037 = vpop.f32.mrb[0].mxu0
      %v9038 = vadd.f32 %v4637, %v9037
      %v9039 = vpop.f32.mrb[0].mxu0
      %v9040 = vpop.f32.mrb[0].mxu0
      %v9041 = vadd.f32 %v4637, %v9040
      %v9042 = vpop.f32.mrb[0].mxu0
      %9043 = vmatprep.mubr.bf16.mxu0 0
      %9044 = vmatmul.mubr.bf16.gmra.mrb[0].mxu0 %v8961
      %v9045 = vpop.f32.mrb[0].mxu0
      %v9046 = vadd.f32 %v4637, %v9045
      %v9047 = vpop.f32.mrb[0].mxu0
      %v9048 = vpop.f32.mrb[0].mxu0
      %v9049 = vadd.f32 %v4637, %v9048
      %v9050 = vpop.f32.mrb[0].mxu0
      %9051 = vmatprep.mubr.bf16.mxu0 0
      %9052 = vmatmul.mubr.bf16.gmra.mrb[0].mxu0 %v8962
      %v9053 = vpop.f32.mrb[0].mxu0
      %v9054 = vadd.f32 %v4637, %v9053
      %v9055 = vpop.f32.mrb[0].mxu0
      %v9056 = vpop.f32.mrb[0].mxu0
      %v9057 = vadd.f32 %v4637, %v9056
      %v9058 = vpop.f32.mrb[0].mxu0
      %9059 = vdwg.mxu0
      %v9060 = vmax.f32 %v8998, 0.0
      %v9061 = vmax.f32 %v9001, 0.0
      %v9062 = vmax.f32 %v9006, 0.0
      %v9063 = vmax.f32 %v9009, 0.0
      %v9064 = vmax.f32 %v9014, 0.0
      %v9065 = vmax.f32 %v9017, 0.0
      %v9066 = vmax.f32 %v9022, 0.0
      %v9067 = vmax.f32 %v9025, 0.0
      %v9068 = vmax.f32 %v9030, 0.0
      %v9069 = vmax.f32 %v9033, 0.0
      %v9070 = vmax.f32 %v9038, 0.0
      %v9071 = vmax.f32 %v9041, 0.0
      %v9072 = vmax.f32 %v9046, 0.0
      %v9073 = vmax.f32 %v9049, 0.0
      %v9074 = vmax.f32 %v9054, 0.0
      %v9075 = vmax.f32 %v9057, 0.0
      %v9076 = vpack.c.bf16 %v9061, %v9060
      %v9077 = vpack.c.bf16 %v9063, %v9062
      %v9078 = vpack.c.bf16 %v9065, %v9064
      %v9079 = vpack.c.bf16 %v9067, %v9066
      %v9080 = vpack.c.bf16 %v9069, %v9068
      %v9081 = vpack.c.bf16 %v9071, %v9070
      %v9082 = vpack.c.bf16 %v9073, %v9072
      %v9083 = vpack.c.bf16 %v9075, %v9074
      %9084 = vmatprep.subr.bf16.mxu0 0
      %9085 = vmatpush1.bf16.msra.mxu0 %v4846
      %9086 = vmatprep.subr.bf16.mxu0 0
      %9087 = vmatpush1.bf16.msra.mxu0 %v4847
      %9088 = vmatprep.subr.bf16.mxu0 0
      %9089 = vmatpush1.bf16.msra.mxu0 %v4848
      %9090 = vmatprep.subr.bf16.mxu0 0
      %9091 = vmatpush1.bf16.msra.mxu0 %v4849
      %9092 = vmatprep.subr.bf16.mxu0 0
      %9093 = vmatpush1.bf16.msra.mxu0 %v4850
      %9094 = vmatprep.subr.bf16.mxu0 0
      %9095 = vmatpush1.bf16.msra.mxu0 %v4851
      %9096 = vmatprep.subr.bf16.mxu0 0
      %9097 = vmatpush1.bf16.msra.mxu0 %v4852
      %9098 = vmatprep.subr.bf16.mxu0 0
      %9099 = vmatpush1.bf16.msra.mxu0 %v4853
      %9100 = vmatprep.subr.bf16.mxu0 0
      %9101 = vmatpush1.bf16.msra.mxu0 0
      %9102 = vmatprep.subr.bf16.mxu0 0
      %9103 = vmatpush1.bf16.msra.mxu0 0
      %9104 = vmatprep.subr.bf16.mxu0 0
      %9105 = vmatpush1.bf16.msra.mxu0 0
      %9106 = vmatprep.subr.bf16.mxu0 0
      %9107 = vmatpush1.bf16.msra.mxu0 0
      %9108 = vmatprep.subr.bf16.mxu0 0
      %9109 = vmatpush1.bf16.msra.mxu0 0
      %9110 = vmatprep.subr.bf16.mxu0 0
      %9111 = vmatpush1.bf16.msra.mxu0 0
      %9112 = vmatprep.subr.bf16.mxu0 0
      %9113 = vmatpush1.bf16.msra.mxu0 0
      %9114 = vmatprep.subr.bf16.mxu0 0
      %9115 = vmatpush1.bf16.msra.mxu0 0
      %9116 = vmatprep.mubr.bf16.mxu0 0
      %9117 = vmatmul.mubr.bf16.gmra.mrb[0].mxu0 %v9076
      %v9118 = vpop.f32.mrb[0].mxu0
      %v9119 = vadd.f32 %v4812, %v9118
      %v9120 = vpop.f32.mrb[0].mxu0
      %v9121 = vpop.f32.mrb[0].mxu0
      %v9122 = vadd.f32 %v4812, %v9121
      %v9123 = vpop.f32.mrb[0].mxu0
      %9124 = vmatprep.mubr.bf16.mxu0 0
      %9125 = vmatmul.mubr.bf16.gmra.mrb[0].mxu0 %v9077
      %v9126 = vpop.f32.mrb[0].mxu0
      %v9127 = vadd.f32 %v4812, %v9126
      %v9128 = vpop.f32.mrb[0].mxu0
      %v9129 = vpop.f32.mrb[0].mxu0
      %v9130 = vadd.f32 %v4812, %v9129
      %v9131 = vpop.f32.mrb[0].mxu0
      %9132 = vmatprep.mubr.bf16.mxu0 0
      %9133 = vmatmul.mubr.bf16.gmra.mrb[0].mxu0 %v9078
      %v9134 = vpop.f32.mrb[0].mxu0
      %v9135 = vadd.f32 %v4812, %v9134
      %v9136 = vpop.f32.mrb[0].mxu0
      %v9137 = vpop.f32.mrb[0].mxu0
      %v9138 = vadd.f32 %v4812, %v9137
      %v9139 = vpop.f32.mrb[0].mxu0
      %9140 = vmatprep.mubr.bf16.mxu0 0
      %9141 = vmatmul.mubr.bf16.gmra.mrb[0].mxu0 %v9079
      %v9142 = vpop.f32.mrb[0].mxu0
      %v9143 = vadd.f32 %v4812, %v9142
      %v9144 = vpop.f32.mrb[0].mxu0
      %v9145 = vpop.f32.mrb[0].mxu0
      %v9146 = vadd.f32 %v4812, %v9145
      %v9147 = vpop.f32.mrb[0].mxu0
      %9148 = vmatprep.mubr.bf16.mxu0 0
      %9149 = vmatmul.mubr.bf16.gmra.mrb[0].mxu0 %v9080
      %v9150 = vpop.f32.mrb[0].mxu0
      %v9151 = vadd.f32 %v4812, %v9150
      %v9152 = vpop.f32.mrb[0].mxu0
      %v9153 = vpop.f32.mrb[0].mxu0
      %v9154 = vadd.f32 %v4812, %v9153
      %v9155 = vpop.f32.mrb[0].mxu0
      %9156 = vmatprep.mubr.bf16.mxu0 0
      %9157 = vmatmul.mubr.bf16.gmra.mrb[0].mxu0 %v9081
      %v9158 = vpop.f32.mrb[0].mxu0
      %v9159 = vadd.f32 %v4812, %v9158
      %v9160 = vpop.f32.mrb[0].mxu0
      %v9161 = vpop.f32.mrb[0].mxu0
      %v9162 = vadd.f32 %v4812, %v9161
      %v9163 = vpop.f32.mrb[0].mxu0
      %9164 = vmatprep.mubr.bf16.mxu0 0
      %9165 = vmatmul.mubr.bf16.gmra.mrb[0].mxu0 %v9082
      %v9166 = vpop.f32.mrb[0].mxu0
      %v9167 = vadd.f32 %v4812, %v9166
      %v9168 = vpop.f32.mrb[0].mxu0
      %v9169 = vpop.f32.mrb[0].mxu0
      %v9170 = vadd.f32 %v4812, %v9169
      %v9171 = vpop.f32.mrb[0].mxu0
      %9172 = vmatprep.mubr.bf16.mxu0 0
      %9173 = vmatmul.mubr.bf16.gmra.mrb[0].mxu0 %v9083
      %v9174 = vpop.f32.mrb[0].mxu0
      %v9175 = vadd.f32 %v4812, %v9174
      %v9176 = vpop.f32.mrb[0].mxu0
      %v9177 = vpop.f32.mrb[0].mxu0
      %v9178 = vadd.f32 %v4812, %v9177
      %v9179 = vpop.f32.mrb[0].mxu0
      %9180 = vdwg.mxu0
      %9181 = vst.msk [vmem:[%s388 + $0x80] sm:$0xff] %vm4959, %v9119
      %9182 = vst.msk [vmem:[%s388 + $0x88] sm:$0xff] %vm4959, %v9122
      %9183 = vst.msk [vmem:[%s388 + $0x90] sm:$0xff] %vm4959, %v9127
      %9184 = vst.msk [vmem:[%s388 + $0x98] sm:$0xff] %vm4959, %v9130
      %9185 = vst.msk [vmem:[%s388 + $0xa0] sm:$0xff] %vm4959, %v9135
      %9186 = vst.msk [vmem:[%s388 + $0xa8] sm:$0xff] %vm4959, %v9138
      %9187 = vst.msk [vmem:[%s388 + $0xb0] sm:$0xff] %vm4959, %v9143
      %9188 = vst.msk [vmem:[%s388 + $0xb8] sm:$0xff] %vm4959, %v9146
      %9189 = vst.msk [vmem:[%s388 + $0xc0] sm:$0xff] %vm4959, %v9151
      %9190 = vst.msk [vmem:[%s388 + $0xc8] sm:$0xff] %vm4959, %v9154
      %9191 = vst.msk [vmem:[%s388 + $0xd0] sm:$0xff] %vm4959, %v9159
      %9192 = vst.msk [vmem:[%s388 + $0xd8] sm:$0xff] %vm4959, %v9162
      %9193 = vst.msk [vmem:[%s388 + $0xe0] sm:$0xff] %vm4959, %v9167
      %9194 = vst.msk [vmem:[%s388 + $0xe8] sm:$0xff] %vm4959, %v9170
      %9195 = vst.msk [vmem:[%s388 + $0xf0] sm:$0xff] %vm4959, %v9175
      %9196 = vst.msk [vmem:[%s388 + $0xf8] sm:$0xff] %vm4959, %v9178
      %s9197 = smul.u32 32, %s22
      %p9198 = scmp.lt.s32.totalorder %s9197, 127
      %s9199 = scalar_select %p9198, %s9197, 127
      %s9200 = smul.addr %s9199, 8
      %s9201 = scalar_lea.vmem %s11, %s9200
      // Predicated region
      $region65: #{tpu_custom_call.1} parent=63 // pred_check
        %p9202 = pneg %p276
      $region66: #{tpu_custom_call.1} parent=63 // pred_check_branch
        %9204 = sbr.rel (%p9202) target = $region68
      $region67: #{tpu_custom_call.1} parent=63 // pred_region
        %s9205 = smul.u32 32, %s22
      $region68: #{tpu_custom_call.1} parent=63 // pred_fallthru
        _
    $region64: #{tpu_custom_call.1} parent=5 // pred_fallthru
      _
    %p9206 = scmp.le.s32.totalorder 2, %s17
    // Predicated region
    $region69: #{tpu_custom_call.1} parent=5 // pred_check
      %p9207 = pneg %p9206
    $region70: #{tpu_custom_call.1} parent=5 // pred_check_branch
      %9209 = sbr.rel (%p9207) target = $region72
    $region71: #{tpu_custom_call.1} parent=5 // pred_region
      %s9210 = ssub.s32 %s17, 2
      // Predicated region
      $region73: #{tpu_custom_call.1} parent=71 // pred_check
        %p9211 = pneg %p282
      $region74: #{tpu_custom_call.1} parent=71 // pred_check_branch
        %9213 = sbr.rel (%p9211) target = $region76
      $region75: #{tpu_custom_call.1} parent=71 // pred_region
        %s9214 = smul.u32 32, %s23
        %p9215 = scmp.lt.s32.totalorder %s9214, 127
        %s9216 = scalar_select %p9215, %s9214, 127
        %s9217 = smul.addr %s9216, 8
        %s9218 = scalar_lea.vmem %s11, %s9217
      $region76: #{tpu_custom_call.1} parent=71 // pred_fallthru
        _
    $region72: #{tpu_custom_call.1} parent=5 // pred_fallthru
      _
  $region6: #{tpu_custom_call.1} parent=0 // loop_footer
    %s21 = sadd.s32 1, %s17
  $region7: #{tpu_custom_call.1} parent=0 // loop_footer_branch
    %16 = sbr.rel target = $region3
  $region8: #{tpu_custom_call.1} parent=0 // loop_exit
    _

</llo_original>
